<compile_context>
chip_gen: v5e
topology: v5e:2x2
jax: 0.10.0
libtpu: 0.0.40
codegen_flags: <defaults>
</compile_context>

<pallas_src>
import jax
import jax.numpy as jnp
from jax.experimental import pallas as pl
from jax.experimental.pallas import tpu as pltpu

BN_EPS = 1e-3                 # BatchNorm2d(eps=0.001)
MXU_DTYPE = jnp.bfloat16      # MXU operand dtype (f32 accumulation)
RAW_DTYPE = jnp.bfloat16      # storage dtype of raw (pre-BN) conv outputs


# ----------------------------- small helpers -----------------------------

def _batch_block(n):
    """Largest divisor of n that is <= 8 (so the grid never needs padded samples)."""
    best = 1
    for d in range(1, min(n, 8) + 1):
        if n % d == 0:
            best = d
    if best == 1 and n <= 16:
        best = n
    return best


def _cparams(semantics, block_bytes):
    limit = int(min(max(4 * block_bytes, 16 * 2 ** 20), 64 * 2 ** 20))
    return pltpu.CompilerParams(dimension_semantics=semantics,
                                vmem_limit_bytes=limit)


def _w1x1(w):     # (Cout, Cin, 1, 1) -> (Cin, Cout) in MXU dtype
    return jnp.transpose(w.reshape(w.shape[0], w.shape[1]), (1, 0)).astype(MXU_DTYPE)


def _write_conv(y_f32, y_ref, s_ref):
    """Store bf16 raw conv output + per-channel [sum; sumsq] partial stats (f32)."""
    y_ref[...] = y_f32.reshape(y_ref.shape).astype(y_ref.dtype)
    s = jnp.concatenate([jnp.sum(y_f32, axis=0, keepdims=True),
                         jnp.sum(y_f32 * y_f32, axis=0, keepdims=True)], axis=0)
    s_ref[...] = s.reshape(s_ref.shape)


# ----------------------------- Pallas kernels -----------------------------

def _input_kernel(x_ref, w7_ref, wd_ref, w1_ref, wp_ref,
                  y7_ref, yd_ref, y1_ref, yp_ref,
                  s7_ref, sd_ref, s1_ref, sp_ref):
    # One pass over x: the three 1x1 convs reading x (branch7x7_1, branch7x7dbl_1,
    # branch1x1) plus the pool branch (avg_pool3x3 fused with its 1x1 conv).
    B, H, W, Cin = x_ref.shape
    rows = B * H * W
    xb = x_ref[...]                                   # bf16 tile
    x2 = xb.reshape(rows, Cin)                        # MXU operand

    def conv(op2d, w_ref, y_ref, s_ref):
        y = jnp.dot(op2d, w_ref[...], preferred_element_type=jnp.float32)
        _write_conv(y, y_ref, s_ref)

    conv(x2, w7_ref, y7_ref, s7_ref)
    conv(x2, wd_ref, yd_ref, sd_ref)
    conv(x2, w1_ref, y1_ref, s1_ref)

    # F.avg_pool2d(x, 3, stride=1, padding=1), count_include_pad=True (divide by 9),
    # done separably (3 shifted adds along W, then 3 along H) on the VMEM tile.
    xf = xb.astype(jnp.float32)
    x3 = xf.reshape(B * H, W, Cin)
    zw = jnp.zeros((B * H, 1, Cin), jnp.float32)
    xw = jnp.concatenate([zw, x3, zw], axis=1)                     # (B*H, W+2, Cin)
    sw = (xw[:, 0:W, :] + xw[:, 1:W + 1, :] + xw[:, 2:W + 2, :]).reshape(B, H, W, Cin)
    zh = jnp.zeros((B, 1, W, Cin), jnp.float32)
    xh = jnp.concatenate([zh, sw, zh], axis=1)                     # (B, H+2, W, Cin)
    pooled = (xh[:, 0:H, :, :] + xh[:, 1:H + 1, :, :] + xh[:, 2:H + 2, :, :]) * (1.0 / 9.0)
    conv(pooled.reshape(rows, Cin).astype(MXU_DTYPE), wp_ref, yp_ref, sp_ref)


def _make_tap_conv_kernel(taps, shift_h):
    # (1,k)/(k,1) conv, stride 1, 'same' zero padding, with the PREVIOUS layer's
    # BN+ReLU fused on the input tile.  Halo is built in VMEM (concat with zeros) so
    # no XLA-side pad / HBM copy is needed; `taps` shifted matmuls accumulate in f32.
    pad = (taps - 1) // 2

    def kernel(x_ref, ss_ref, w_ref, y_ref, s_ref):
        B, H, W, Cout = y_ref.shape
        Cin = x_ref.shape[-1]
        rows = B * H * W

        # fused BN(prev) + ReLU on the raw (pre-BN) input activations
        a32 = jnp.maximum(
            x_ref[...].astype(jnp.float32) * ss_ref[0:1, :] + ss_ref[1:2, :], 0.0)

        w = w_ref[...]                                # (taps, Cin, Cout)
        acc = jnp.zeros((rows, Cout), jnp.float32)
        if shift_h:                                   # (k,1) conv: shift along H (major axis)
            z = jnp.zeros((B, pad, W, Cin), jnp.float32)
            ap = jnp.concatenate([z, a32, z], axis=1).astype(MXU_DTYPE)
            for t in range(taps):                     # unrolled: `taps` MXU matmuls
                xt = ap[:, t:t + H, :, :].reshape(rows, Cin)
                acc = acc + jnp.dot(xt, w[t], preferred_element_type=jnp.float32)
        else:                                         # (1,k) conv: shift along W (sublane axis)
            a3 = a32.reshape(B * H, W, Cin)
            z = jnp.zeros((B * H, pad, Cin), jnp.float32)
            ap = jnp.concatenate([z, a3, z], axis=1).astype(MXU_DTYPE)
            for t in range(taps):
                xt = ap[:, t:t + W, :].reshape(rows, Cin)
                acc = acc + jnp.dot(xt, w[t], preferred_element_type=jnp.float32)

        _write_conv(acc, y_ref, s_ref)
    return kernel


def _bn_relu_concat_kernel(y1_ref, y7_ref, yd_ref, yp_ref,
                           s1_ref, s7_ref, sd_ref, sp_ref, o_ref):
    # Fused BN+ReLU epilogue of the four branch-final convs, written as one lane-dense
    # (B_blk, H, W, 768) block == torch.cat([b1x1, b7x7, b7x7dbl, bpool], dim=C).
    def bnr(y_ref, ss_ref):
        y = y_ref[...].astype(jnp.float32)
        return jnp.maximum(y * ss_ref[0:1, :] + ss_ref[1:2, :], 0.0)

    o_ref[...] = jnp.concatenate(
        [bnr(y1_ref, s1_ref), bnr(y7_ref, s7_ref),
         bnr(yd_ref, sd_ref), bnr(yp_ref, sp_ref)], axis=-1).astype(o_ref.dtype)


# ----------------------------- pallas_call wrappers -----------------------------

def _input_convs(x4, w7, wd, w1, wp, b_blk):
    N, H, W, Cin = x4.shape
    nb = N // b_blk
    c7 = w7.shape[1]
    co = w1.shape[1]
    rows = b_blk * H * W
    blk = rows * Cin * 8 + rows * (2 * c7 + 2 * co) * 6 + Cin * (2 * c7 + 2 * co) * 2

    def y_spec(c):
        return pl.BlockSpec((b_blk, H, W, c), lambda n: (n, 0, 0, 0))

    def s_spec(c):
        return pl.BlockSpec((1, 2, c), lambda n: (n, 0, 0))

    def w_spec(c):
        return pl.BlockSpec((Cin, c), lambda n: (0, 0))

    return pl.pallas_call(
        _input_kernel,
        out_shape=(jax.ShapeDtypeStruct((N, H, W, c7), RAW_DTYPE),
                   jax.ShapeDtypeStruct((N, H, W, c7), RAW_DTYPE),
                   jax.ShapeDtypeStruct((N, H, W, co), RAW_DTYPE),
                   jax.ShapeDtypeStruct((N, H, W, co), RAW_DTYPE),
                   jax.ShapeDtypeStruct((nb, 2, c7), jnp.float32),
                   jax.ShapeDtypeStruct((nb, 2, c7), jnp.float32),
                   jax.ShapeDtypeStruct((nb, 2, co), jnp.float32),
                   jax.ShapeDtypeStruct((nb, 2, co), jnp.float32)),
        grid=(nb,),
        in_specs=[pl.BlockSpec((b_blk, H, W, Cin), lambda n: (n, 0, 0, 0)),
                  w_spec(c7), w_spec(c7), w_spec(co), w_spec(co)],
        out_specs=(y_spec(c7), y_spec(c7), y_spec(co), y_spec(co),
                   s_spec(c7), s_spec(c7), s_spec(co), s_spec(co)),
        compiler_params=_cparams(("parallel",), blk),
        cost_estimate=pl.CostEstimate(
            flops=2 * N * H * W * Cin * (2 * c7 + 2 * co) + 9 * N * H * W * Cin,
            transcendentals=0,
            bytes_accessed=N * H * W * (Cin + 2 * c7 + 2 * co) * 2
                           + Cin * (2 * c7 + 2 * co) * 2),
    )(x4, w7, wd, w1, wp)


def _tap_conv(y_prev, ss_prev, w_oihw, b_blk):
    """(1,7)/(7,1) conv with the previous BasicConv2d's BN+ReLU fused on its input.
    Returns raw (pre-BN) output (N,H,W,Cout) bf16 + per-block stats partials."""
    N, H, W, Cin = y_prev.shape
    Cout, _, kh, kw = w_oihw.shape
    assert kh == 1 or kw == 1
    taps = max(kh, kw)
    shift_h = kh > 1
    nb = N // b_blk
    rows = b_blk * H * W
    w_taps = jnp.transpose(w_oihw.reshape(Cout, Cin, taps), (2, 1, 0)).astype(MXU_DTYPE)
    blk = rows * Cin * 8 + taps * Cin * Cout * 2 + rows * Cout * 6

    return pl.pallas_call(
        _make_tap_conv_kernel(taps, shift_h),
        out_shape=(jax.ShapeDtypeStruct((N, H, W, Cout), RAW_DTYPE),
                   jax.ShapeDtypeStruct((nb, 2, Cout), jnp.float32)),
        grid=(nb,),
        in_specs=[pl.BlockSpec((b_blk, H, W, Cin), lambda n: (n, 0, 0, 0)),
                  pl.BlockSpec((2, Cin), lambda n: (0, 0)),
                  pl.BlockSpec((taps, Cin, Cout), lambda n: (0, 0, 0))],
        out_specs=(pl.BlockSpec((b_blk, H, W, Cout), lambda n: (n, 0, 0, 0)),
                   pl.BlockSpec((1, 2, Cout), lambda n: (n, 0, 0))),
        compiler_params=_cparams(("parallel",), blk),
        cost_estimate=pl.CostEstimate(
            flops=2 * N * H * W * Cin * Cout * taps, transcendentals=0,
            bytes_accessed=N * H * W * (Cin + Cout) * 2 + taps * Cin * Cout * 2),
    )(y_prev, ss_prev, w_taps)


def _bn_relu_concat(y1, y7, yd, yp, s1, s7, sd, sp, b_blk):
    N, H, W, C = y1.shape
    nb = N // b_blk
    blk = b_blk * H * W * 4 * C * 6
    yspec = pl.BlockSpec((b_blk, H, W, C), lambda n: (n, 0, 0, 0))
    sspec = pl.BlockSpec((2, C), lambda n: (0, 0))
    return pl.pallas_call(
        _bn_relu_concat_kernel,
        out_shape=jax.ShapeDtypeStruct((N, H, W, 4 * C), jnp.float32),
        grid=(nb,),
        in_specs=[yspec, yspec, yspec, yspec, sspec, sspec, sspec, sspec],
        out_specs=pl.BlockSpec((b_blk, H, W, 4 * C), lambda n: (n, 0, 0, 0)),
        compiler_params=_cparams(("parallel",), blk),
    )(y1, y7, yd, yp, s1, s7, sd, sp)


# ----------------------------- BatchNorm glue (tiny, O(C)) -----------------------------

def _bn_scale_shift(stats_partials, gamma, beta, count):
    # BatchNorm2d(track_running_stats=False): biased batch statistics.
    # NOTE: stats are accumulated on the RAW (bias-free, pre-BN) conv outputs, so any
    # zero rows contribute exactly zero -- do not fuse a bias/BN before stats.
    stats = jnp.sum(stats_partials, axis=0)            # reduce per-block partials
    mean = stats[0] / count
    var = jnp.maximum(stats[1] / count - mean * mean, 0.0)
    scale = gamma * jax.lax.rsqrt(var + BN_EPS)
    shift = beta - mean * scale
    return jnp.stack([scale, shift], axis=0).astype(jnp.float32)   # (2, C)


# ----------------------------- InceptionC -----------------------------

def init_params(key, in_channels, c7):
    shapes = {
        "branch1x1":      (192, in_channels, 1, 1),
        "branch7x7_1":    (c7, in_channels, 1, 1),
        "branch7x7_2":    (c7, c7, 1, 7),
        "branch7x7_3":    (192, c7, 7, 1),
        "branch7x7dbl_1": (c7, in_channels, 1, 1),
        "branch7x7dbl_2": (c7, c7, 7, 1),
        "branch7x7dbl_3": (c7, c7, 1, 7),
        "branch7x7dbl_4": (c7, c7, 7, 1),
        "branch7x7dbl_5": (192, c7, 1, 7),
        "branch_pool":    (192, in_channels, 1, 1),
    }
    params = {}
    keys = jax.random.split(key, len(shapes))
    for k, (name, shp) in zip(keys, shapes.items()):
        w = jax.random.normal(k, shp, dtype=jnp.float32) * 0.1
        gamma = jnp.ones((shp[0],), jnp.float32)   # BN affine defaults
        beta = jnp.zeros((shp[0],), jnp.float32)
        params[name] = (w, gamma, beta)
    return params


def inception_c_forward(x_nchw, params):
    x = jnp.transpose(x_nchw, (0, 2, 3, 1))          # single NCHW -> NHWC transpose
    N, H, W, Cin = x.shape
    M = N * H * W
    xb = x.astype(MXU_DTYPE)
    b_blk = _batch_block(N)

    w71, g71, b71 = params["branch7x7_1"]
    wd1, gd1, bd1 = params["branch7x7dbl_1"]
    w11, g11, b11 = params["branch1x1"]
    wpl, gpl, bpl = params["branch_pool"]

    # ---- pass 1: everything that reads x (three 1x1 heads + fused pool branch) ----
    y71, yd1, y11, ypl, p71, pd1, p11, ppl = _input_convs(
        xb, _w1x1(w71), _w1x1(wd1), _w1x1(w11), _w1x1(wpl), b_blk)
    ss71 = _bn_scale_shift(p71, g71, b71, M)
    ssd1 = _bn_scale_shift(pd1, gd1, bd1, M)
    ss11 = _bn_scale_shift(p11, g11, b11, M)
    sspl = _bn_scale_shift(ppl, gpl, bpl, M)

    def tap(y_prev, ss_prev, name):                  # BN+ReLU(prev) fused into this conv
        w, g, b = params[name]
        y, p = _tap_conv(y_prev, ss_prev, w, b_blk)
        return y, _bn_scale_shift(p, g, b, M)

    # branch 7x7:     1x1 -> 1x7 -> 7x1(->192)
    y72, ss72 = tap(y71, ss71, "branch7x7_2")
    y73, ss73 = tap(y72, ss72, "branch7x7_3")

    # branch 7x7dbl:  1x1 -> 7x1 -> 1x7 -> 7x1 -> 1x7(->192)
    yd2, ssd2 = tap(yd1, ssd1, "branch7x7dbl_2")
    yd3, ssd3 = tap(yd2, ssd2, "branch7x7dbl_3")
    yd4, ssd4 = tap(yd3, ssd3, "branch7x7dbl_4")
    yd5, ssd5 = tap(yd4, ssd4, "branch7x7dbl_5")

    # fused BN+ReLU epilogue + channel concat (order: [b1x1, b7x7, b7x7dbl, bpool])
    out = _bn_relu_concat(y11, y73, yd5, ypl, ss11, ss73, ssd5, sspl, b_blk)
    # TODO(synk): return NHWC directly if the caller can consume it (saves this shuffle).
    return jnp.transpose(out, (0, 3, 1, 2))          # single NHWC -> NCHW transpose


if __name__ == "__main__":
    key = jax.random.PRNGKey(0)
    kx, kp = jax.random.split(key)

    N, Cin, H, W = 2, 16, 8, 8
    c7 = 8
    x = jax.random.normal(kx, (N, Cin, H, W), dtype=jnp.float32)
    params = init_params(kp, Cin, c7)

    fwd = jax.jit(inception_c_forward)
    out = fwd(x, params)
    jax.block_until_ready(out)

    assert out.shape == (N, 192 * 4, H, W), out.shape
    assert bool(jnp.isfinite(out).all())
    print("KERNEL_OK")
</pallas_src>

<mosaic_0001>
module attributes {stable_mosaic.version = 11 : i64} {
  func.func @_input_kernel(%arg0: i32, %arg1: memref<2x8x8x16xbf16, #tpu.memory_space<vmem>>, %arg2: memref<16x8xbf16, #tpu.memory_space<vmem>>, %arg3: memref<16x8xbf16, #tpu.memory_space<vmem>>, %arg4: memref<16x192xbf16, #tpu.memory_space<vmem>>, %arg5: memref<16x192xbf16, #tpu.memory_space<vmem>>, %arg6: memref<2x8x8x8xbf16, #tpu.memory_space<vmem>>, %arg7: memref<2x8x8x8xbf16, #tpu.memory_space<vmem>>, %arg8: memref<2x8x8x192xbf16, #tpu.memory_space<vmem>>, %arg9: memref<2x8x8x192xbf16, #tpu.memory_space<vmem>>, %arg10: memref<1x2x8xf32, #tpu.memory_space<vmem>>, %arg11: memref<1x2x8xf32, #tpu.memory_space<vmem>>, %arg12: memref<1x2x192xf32, #tpu.memory_space<vmem>>, %arg13: memref<1x2x192xf32, #tpu.memory_space<vmem>>) attributes {dimension_semantics = [#tpu.dimension_semantics<parallel>], iteration_bounds = array<i64: 1>, scalar_prefetch = 0 : i64, scratch_operands = 0 : i64, tpu.core_type = #tpu.core_type<tc>, window_params = [{transform_indices = @transform_0, window_bounds = array<i64: 2, 8, 8, 16>}, {pipeline_mode = #tpu.pipeline_mode<synchronous>, transform_indices = @transform_1, window_bounds = array<i64: 16, 8>}, {pipeline_mode = #tpu.pipeline_mode<synchronous>, transform_indices = @transform_2, window_bounds = array<i64: 16, 8>}, {pipeline_mode = #tpu.pipeline_mode<synchronous>, transform_indices = @transform_3, window_bounds = array<i64: 16, 192>}, {pipeline_mode = #tpu.pipeline_mode<synchronous>, transform_indices = @transform_4, window_bounds = array<i64: 16, 192>}, {transform_indices = @transform_5, window_bounds = array<i64: 2, 8, 8, 8>}, {transform_indices = @transform_6, window_bounds = array<i64: 2, 8, 8, 8>}, {transform_indices = @transform_7, window_bounds = array<i64: 2, 8, 8, 192>}, {transform_indices = @transform_8, window_bounds = array<i64: 2, 8, 8, 192>}, {transform_indices = @transform_9, window_bounds = array<i64: 1, 2, 8>}, {transform_indices = @transform_10, window_bounds = array<i64: 1, 2, 8>}, {transform_indices = @transform_11, window_bounds = array<i64: 1, 2, 192>}, {transform_indices = @transform_12, window_bounds = array<i64: 1, 2, 192>}]} {
    %c0 = arith.constant 0 : index
    %c0_0 = arith.constant 0 : index
    %c0_1 = arith.constant 0 : index
    %c0_2 = arith.constant 0 : index
    %0 = vector.load %arg1[%c0, %c0_0, %c0_1, %c0_2] : memref<2x8x8x16xbf16, #tpu.memory_space<vmem>>, vector<2x8x8x16xbf16>
    %1 = vector.shape_cast %0 : vector<2x8x8x16xbf16> to vector<128x16xbf16>
    %c0_3 = arith.constant 0 : index
    %c0_4 = arith.constant 0 : index
    %2 = vector.load %arg2[%c0_3, %c0_4] : memref<16x8xbf16, #tpu.memory_space<vmem>>, vector<16x8xbf16>
    %cst = arith.constant dense<0.000000e+00> : vector<128x8xf32>
    %3 = tpu.matmul %1, %2, %cst {dimension_numbers = #tpu.dot_dimension_numbers<[1], [0], [0], [1], [0, 0, 1, 1], [], []>} : vector<128x16xbf16>, vector<16x8xbf16>, vector<128x8xf32> -> vector<128x8xf32>
    %4 = vector.shape_cast %3 : vector<128x8xf32> to vector<2x8x8x8xf32>
    %5 = arith.truncf %4 : vector<2x8x8x8xf32> to vector<2x8x8x8xbf16>
    %c0_5 = arith.constant 0 : index
    %c0_6 = arith.constant 0 : index
    %c0_7 = arith.constant 0 : index
    %c0_8 = arith.constant 0 : index
    %6 = vector.load %arg6[%c0_5, %c0_6, %c0_7, %c0_8] : memref<2x8x8x8xbf16, #tpu.memory_space<vmem>>, vector<2x8x8x8xbf16>
    tpu.vector_store %arg6[%c0_5, %c0_6, %c0_7, %c0_8], %5 {strides = array<i32>} : memref<2x8x8x8xbf16, #tpu.memory_space<vmem>>, vector<2x8x8x8xbf16>,
    %cst_9 = arith.constant dense<0.000000e+00> : vector<8xf32>
    %7 = vector.multi_reduction <add>, %3, %cst_9 [0] : vector<128x8xf32> to vector<8xf32>
    %8 = vector.shape_cast %7 : vector<8xf32> to vector<1x8xf32>
    %9 = arith.mulf %3, %3 : vector<128x8xf32>
    %cst_10 = arith.constant dense<0.000000e+00> : vector<8xf32>
    %10 = vector.multi_reduction <add>, %9, %cst_10 [0] : vector<128x8xf32> to vector<8xf32>
    %11 = vector.shape_cast %10 : vector<8xf32> to vector<1x8xf32>
    %12 = tpu.concatenate %8, %11 in 0 : vector<1x8xf32>, vector<1x8xf32> -> vector<2x8xf32>
    %13 = vector.shape_cast %12 : vector<2x8xf32> to vector<1x2x8xf32>
    %c0_11 = arith.constant 0 : index
    %c0_12 = arith.constant 0 : index
    %c0_13 = arith.constant 0 : index
    %14 = vector.load %arg10[%c0_11, %c0_12, %c0_13] : memref<1x2x8xf32, #tpu.memory_space<vmem>>, vector<1x2x8xf32>
    tpu.vector_store %arg10[%c0_11, %c0_12, %c0_13], %13 {strides = array<i32>} : memref<1x2x8xf32, #tpu.memory_space<vmem>>, vector<1x2x8xf32>,
    %c0_14 = arith.constant 0 : index
    %c0_15 = arith.constant 0 : index
    %15 = vector.load %arg3[%c0_14, %c0_15] : memref<16x8xbf16, #tpu.memory_space<vmem>>, vector<16x8xbf16>
    %cst_16 = arith.constant dense<0.000000e+00> : vector<128x8xf32>
    %16 = tpu.matmul %1, %15, %cst_16 {dimension_numbers = #tpu.dot_dimension_numbers<[1], [0], [0], [1], [0, 0, 1, 1], [], []>} : vector<128x16xbf16>, vector<16x8xbf16>, vector<128x8xf32> -> vector<128x8xf32>
    %17 = vector.shape_cast %16 : vector<128x8xf32> to vector<2x8x8x8xf32>
    %18 = arith.truncf %17 : vector<2x8x8x8xf32> to vector<2x8x8x8xbf16>
    %c0_17 = arith.constant 0 : index
    %c0_18 = arith.constant 0 : index
    %c0_19 = arith.constant 0 : index
    %c0_20 = arith.constant 0 : index
    %19 = vector.load %arg7[%c0_17, %c0_18, %c0_19, %c0_20] : memref<2x8x8x8xbf16, #tpu.memory_space<vmem>>, vector<2x8x8x8xbf16>
    tpu.vector_store %arg7[%c0_17, %c0_18, %c0_19, %c0_20], %18 {strides = array<i32>} : memref<2x8x8x8xbf16, #tpu.memory_space<vmem>>, vector<2x8x8x8xbf16>,
    %cst_21 = arith.constant dense<0.000000e+00> : vector<8xf32>
    %20 = vector.multi_reduction <add>, %16, %cst_21 [0] : vector<128x8xf32> to vector<8xf32>
    %21 = vector.shape_cast %20 : vector<8xf32> to vector<1x8xf32>
    %22 = arith.mulf %16, %16 : vector<128x8xf32>
    %cst_22 = arith.constant dense<0.000000e+00> : vector<8xf32>
    %23 = vector.multi_reduction <add>, %22, %cst_22 [0] : vector<128x8xf32> to vector<8xf32>
    %24 = vector.shape_cast %23 : vector<8xf32> to vector<1x8xf32>
    %25 = tpu.concatenate %21, %24 in 0 : vector<1x8xf32>, vector<1x8xf32> -> vector<2x8xf32>
    %26 = vector.shape_cast %25 : vector<2x8xf32> to vector<1x2x8xf32>
    %c0_23 = arith.constant 0 : index
    %c0_24 = arith.constant 0 : index
    %c0_25 = arith.constant 0 : index
    %27 = vector.load %arg11[%c0_23, %c0_24, %c0_25] : memref<1x2x8xf32, #tpu.memory_space<vmem>>, vector<1x2x8xf32>
    tpu.vector_store %arg11[%c0_23, %c0_24, %c0_25], %26 {strides = array<i32>} : memref<1x2x8xf32, #tpu.memory_space<vmem>>, vector<1x2x8xf32>,
    %c0_26 = arith.constant 0 : index
    %c0_27 = arith.constant 0 : index
    %28 = vector.load %arg4[%c0_26, %c0_27] : memref<16x192xbf16, #tpu.memory_space<vmem>>, vector<16x192xbf16>
    %cst_28 = arith.constant dense<0.000000e+00> : vector<128x192xf32>
    %29 = tpu.matmul %1, %28, %cst_28 {dimension_numbers = #tpu.dot_dimension_numbers<[1], [0], [0], [1], [0, 0, 1, 1], [], []>} : vector<128x16xbf16>, vector<16x192xbf16>, vector<128x192xf32> -> vector<128x192xf32>
    %30 = vector.shape_cast %29 : vector<128x192xf32> to vector<2x8x8x192xf32>
    %31 = arith.truncf %30 : vector<2x8x8x192xf32> to vector<2x8x8x192xbf16>
    %c0_29 = arith.constant 0 : index
    %c0_30 = arith.constant 0 : index
    %c0_31 = arith.constant 0 : index
    %c0_32 = arith.constant 0 : index
    %32 = vector.load %arg8[%c0_29, %c0_30, %c0_31, %c0_32] : memref<2x8x8x192xbf16, #tpu.memory_space<vmem>>, vector<2x8x8x192xbf16>
    tpu.vector_store %arg8[%c0_29, %c0_30, %c0_31, %c0_32], %31 {strides = array<i32>} : memref<2x8x8x192xbf16, #tpu.memory_space<vmem>>, vector<2x8x8x192xbf16>,
    %cst_33 = arith.constant dense<0.000000e+00> : vector<192xf32>
    %33 = vector.multi_reduction <add>, %29, %cst_33 [0] : vector<128x192xf32> to vector<192xf32>
    %34 = vector.shape_cast %33 : vector<192xf32> to vector<1x192xf32>
    %35 = arith.mulf %29, %29 : vector<128x192xf32>
    %cst_34 = arith.constant dense<0.000000e+00> : vector<192xf32>
    %36 = vector.multi_reduction <add>, %35, %cst_34 [0] : vector<128x192xf32> to vector<192xf32>
    %37 = vector.shape_cast %36 : vector<192xf32> to vector<1x192xf32>
    %38 = tpu.concatenate %34, %37 in 0 : vector<1x192xf32>, vector<1x192xf32> -> vector<2x192xf32>
    %39 = vector.shape_cast %38 : vector<2x192xf32> to vector<1x2x192xf32>
    %c0_35 = arith.constant 0 : index
    %c0_36 = arith.constant 0 : index
    %c0_37 = arith.constant 0 : index
    %40 = vector.load %arg12[%c0_35, %c0_36, %c0_37] : memref<1x2x192xf32, #tpu.memory_space<vmem>>, vector<1x2x192xf32>
    tpu.vector_store %arg12[%c0_35, %c0_36, %c0_37], %39 {strides = array<i32>} : memref<1x2x192xf32, #tpu.memory_space<vmem>>, vector<1x2x192xf32>,
    %41 = arith.extf %0 : vector<2x8x8x16xbf16> to vector<2x8x8x16xf32>
    %42 = vector.shape_cast %41 : vector<2x8x8x16xf32> to vector<16x8x16xf32>
    %cst_38 = arith.constant 0.000000e+00 : f32
    %43 = vector.broadcast %cst_38 : f32 to vector<16x1x16xf32>
    %44 = tpu.concatenate %43, %42, %43 in 1 : vector<16x1x16xf32>, vector<16x8x16xf32>, vector<16x1x16xf32> -> vector<16x10x16xf32>
    %45 = vector.extract_strided_slice %44 {offsets = [0, 0, 0], sizes = [16, 8, 16], strides = [1, 1, 1]} : vector<16x10x16xf32> to vector<16x8x16xf32>
    %46 = vector.extract_strided_slice %44 {offsets = [0, 1, 0], sizes = [16, 8, 16], strides = [1, 1, 1]} : vector<16x10x16xf32> to vector<16x8x16xf32>
    %47 = arith.addf %45, %46 : vector<16x8x16xf32>
    %48 = vector.extract_strided_slice %44 {offsets = [0, 2, 0], sizes = [16, 8, 16], strides = [1, 1, 1]} : vector<16x10x16xf32> to vector<16x8x16xf32>
    %49 = arith.addf %47, %48 : vector<16x8x16xf32>
    %50 = vector.shape_cast %49 : vector<16x8x16xf32> to vector<2x8x8x16xf32>
    %cst_39 = arith.constant 0.000000e+00 : f32
    %51 = vector.broadcast %cst_39 : f32 to vector<2x1x8x16xf32>
    %52 = tpu.concatenate %51, %50, %51 in 1 : vector<2x1x8x16xf32>, vector<2x8x8x16xf32>, vector<2x1x8x16xf32> -> vector<2x10x8x16xf32>
    %53 = vector.extract_strided_slice %52 {offsets = [0, 0, 0, 0], sizes = [2, 8, 8, 16], strides = [1, 1, 1, 1]} : vector<2x10x8x16xf32> to vector<2x8x8x16xf32>
    %54 = vector.extract_strided_slice %52 {offsets = [0, 1, 0, 0], sizes = [2, 8, 8, 16], strides = [1, 1, 1, 1]} : vector<2x10x8x16xf32> to vector<2x8x8x16xf32>
    %55 = arith.addf %53, %54 : vector<2x8x8x16xf32>
    %56 = vector.extract_strided_slice %52 {offsets = [0, 2, 0, 0], sizes = [2, 8, 8, 16], strides = [1, 1, 1, 1]} : vector<2x10x8x16xf32> to vector<2x8x8x16xf32>
    %57 = arith.addf %55, %56 : vector<2x8x8x16xf32>
    %cst_40 = arith.constant 0.111111112 : f32
    %58 = vector.broadcast %cst_40 : f32 to vector<2x8x8x16xf32>
    %59 = arith.mulf %57, %58 : vector<2x8x8x16xf32>
    %60 = vector.shape_cast %59 : vector<2x8x8x16xf32> to vector<128x16xf32>
    %61 = arith.truncf %60 : vector<128x16xf32> to vector<128x16xbf16>
    %c0_41 = arith.constant 0 : index
    %c0_42 = arith.constant 0 : index
    %62 = vector.load %arg5[%c0_41, %c0_42] : memref<16x192xbf16, #tpu.memory_space<vmem>>, vector<16x192xbf16>
    %cst_43 = arith.constant dense<0.000000e+00> : vector<128x192xf32>
    %63 = tpu.matmul %61, %62, %cst_43 {dimension_numbers = #tpu.dot_dimension_numbers<[1], [0], [0], [1], [0, 0, 1, 1], [], []>} : vector<128x16xbf16>, vector<16x192xbf16>, vector<128x192xf32> -> vector<128x192xf32>
    %64 = vector.shape_cast %63 : vector<128x192xf32> to vector<2x8x8x192xf32>
    %65 = arith.truncf %64 : vector<2x8x8x192xf32> to vector<2x8x8x192xbf16>
    %c0_44 = arith.constant 0 : index
    %c0_45 = arith.constant 0 : index
    %c0_46 = arith.constant 0 : index
    %c0_47 = arith.constant 0 : index
    %66 = vector.load %arg9[%c0_44, %c0_45, %c0_46, %c0_47] : memref<2x8x8x192xbf16, #tpu.memory_space<vmem>>, vector<2x8x8x192xbf16>
    tpu.vector_store %arg9[%c0_44, %c0_45, %c0_46, %c0_47], %65 {strides = array<i32>} : memref<2x8x8x192xbf16, #tpu.memory_space<vmem>>, vector<2x8x8x192xbf16>,
    %cst_48 = arith.constant dense<0.000000e+00> : vector<192xf32>
    %67 = vector.multi_reduction <add>, %63, %cst_48 [0] : vector<128x192xf32> to vector<192xf32>
    %68 = vector.shape_cast %67 : vector<192xf32> to vector<1x192xf32>
    %69 = arith.mulf %63, %63 : vector<128x192xf32>
    %cst_49 = arith.constant dense<0.000000e+00> : vector<192xf32>
    %70 = vector.multi_reduction <add>, %69, %cst_49 [0] : vector<128x192xf32> to vector<192xf32>
    %71 = vector.shape_cast %70 : vector<192xf32> to vector<1x192xf32>
    %72 = tpu.concatenate %68, %71 in 0 : vector<1x192xf32>, vector<1x192xf32> -> vector<2x192xf32>
    %73 = vector.shape_cast %72 : vector<2x192xf32> to vector<1x2x192xf32>
    %c0_50 = arith.constant 0 : index
    %c0_51 = arith.constant 0 : index
    %c0_52 = arith.constant 0 : index
    %74 = vector.load %arg13[%c0_50, %c0_51, %c0_52] : memref<1x2x192xf32, #tpu.memory_space<vmem>>, vector<1x2x192xf32>
    tpu.vector_store %arg13[%c0_50, %c0_51, %c0_52], %73 {strides = array<i32>} : memref<1x2x192xf32, #tpu.memory_space<vmem>>, vector<1x2x192xf32>,
    return
  }
  func.func @transform_0(%arg0: i32) -> (i32, i32, i32, i32) {
    %c0_i32 = arith.constant 0 : i32
    %c0_i32_0 = arith.constant 0 : i32
    %c0_i32_1 = arith.constant 0 : i32
    %c0_i32_2 = arith.constant 0 : i32
    return %arg0, %c0_i32, %c0_i32_0, %c0_i32_1 : i32, i32, i32, i32
  }
  func.func @transform_1(%arg0: i32) -> (i32, i32) {
    %c0_i32 = arith.constant 0 : i32
    %c0_i32_0 = arith.constant 0 : i32
    %c0_i32_1 = arith.constant 0 : i32
    return %c0_i32, %c0_i32_0 : i32, i32
  }
  func.func @transform_2(%arg0: i32) -> (i32, i32) {
    %c0_i32 = arith.constant 0 : i32
    %c0_i32_0 = arith.constant 0 : i32
    %c0_i32_1 = arith.constant 0 : i32
    return %c0_i32, %c0_i32_0 : i32, i32
  }
  func.func @transform_3(%arg0: i32) -> (i32, i32) {
    %c0_i32 = arith.constant 0 : i32
    %c0_i32_0 = arith.constant 0 : i32
    %c0_i32_1 = arith.constant 0 : i32
    return %c0_i32, %c0_i32_0 : i32, i32
  }
  func.func @transform_4(%arg0: i32) -> (i32, i32) {
    %c0_i32 = arith.constant 0 : i32
    %c0_i32_0 = arith.constant 0 : i32
    %c0_i32_1 = arith.constant 0 : i32
    return %c0_i32, %c0_i32_0 : i32, i32
  }
  func.func @transform_5(%arg0: i32) -> (i32, i32, i32, i32) {
    %c0_i32 = arith.constant 0 : i32
    %c0_i32_0 = arith.constant 0 : i32
    %c0_i32_1 = arith.constant 0 : i32
    %c0_i32_2 = arith.constant 0 : i32
    return %arg0, %c0_i32, %c0_i32_0, %c0_i32_1 : i32, i32, i32, i32
  }
  func.func @transform_6(%arg0: i32) -> (i32, i32, i32, i32) {
    %c0_i32 = arith.constant 0 : i32
    %c0_i32_0 = arith.constant 0 : i32
    %c0_i32_1 = arith.constant 0 : i32
    %c0_i32_2 = arith.constant 0 : i32
    return %arg0, %c0_i32, %c0_i32_0, %c0_i32_1 : i32, i32, i32, i32
  }
  func.func @transform_7(%arg0: i32) -> (i32, i32, i32, i32) {
    %c0_i32 = arith.constant 0 : i32
    %c0_i32_0 = arith.constant 0 : i32
    %c0_i32_1 = arith.constant 0 : i32
    %c0_i32_2 = arith.constant 0 : i32
    return %arg0, %c0_i32, %c0_i32_0, %c0_i32_1 : i32, i32, i32, i32
  }
  func.func @transform_8(%arg0: i32) -> (i32, i32, i32, i32) {
    %c0_i32 = arith.constant 0 : i32
    %c0_i32_0 = arith.constant 0 : i32
    %c0_i32_1 = arith.constant 0 : i32
    %c0_i32_2 = arith.constant 0 : i32
    return %arg0, %c0_i32, %c0_i32_0, %c0_i32_1 : i32, i32, i32, i32
  }
  func.func @transform_9(%arg0: i32) -> (i32, i32, i32) {
    %c0_i32 = arith.constant 0 : i32
    %c0_i32_0 = arith.constant 0 : i32
    %c0_i32_1 = arith.constant 0 : i32
    return %arg0, %c0_i32, %c0_i32_0 : i32, i32, i32
  }
  func.func @transform_10(%arg0: i32) -> (i32, i32, i32) {
    %c0_i32 = arith.constant 0 : i32
    %c0_i32_0 = arith.constant 0 : i32
    %c0_i32_1 = arith.constant 0 : i32
    return %arg0, %c0_i32, %c0_i32_0 : i32, i32, i32
  }
  func.func @transform_11(%arg0: i32) -> (i32, i32, i32) {
    %c0_i32 = arith.constant 0 : i32
    %c0_i32_0 = arith.constant 0 : i32
    %c0_i32_1 = arith.constant 0 : i32
    return %arg0, %c0_i32, %c0_i32_0 : i32, i32, i32
  }
  func.func @transform_12(%arg0: i32) -> (i32, i32, i32) {
    %c0_i32 = arith.constant 0 : i32
    %c0_i32_0 = arith.constant 0 : i32
    %c0_i32_1 = arith.constant 0 : i32
    return %arg0, %c0_i32, %c0_i32_0 : i32, i32, i32
  }
}

module attributes {stable_mosaic.version = 11 : i64} {
  func.func @kernel(%arg0: i32, %arg1: memref<2x8x8x8xbf16, #tpu.memory_space<vmem>>, %arg2: memref<2x8xf32, #tpu.memory_space<vmem>>, %arg3: memref<7x8x8xbf16, #tpu.memory_space<vmem>>, %arg4: memref<2x8x8x8xbf16, #tpu.memory_space<vmem>>, %arg5: memref<1x2x8xf32, #tpu.memory_space<vmem>>) attributes {dimension_semantics = [#tpu.dimension_semantics<parallel>], iteration_bounds = array<i64: 1>, scalar_prefetch = 0 : i64, scratch_operands = 0 : i64, tpu.core_type = #tpu.core_type<tc>, window_params = [{transform_indices = @transform_0, window_bounds = array<i64: 2, 8, 8, 8>}, {pipeline_mode = #tpu.pipeline_mode<synchronous>, transform_indices = @transform_1, window_bounds = array<i64: 2, 8>}, {pipeline_mode = #tpu.pipeline_mode<synchronous>, transform_indices = @transform_2, window_bounds = array<i64: 7, 8, 8>}, {transform_indices = @transform_3, window_bounds = array<i64: 2, 8, 8, 8>}, {transform_indices = @transform_4, window_bounds = array<i64: 1, 2, 8>}]} {
    %c0 = arith.constant 0 : index
    %c0_0 = arith.constant 0 : index
    %c0_1 = arith.constant 0 : index
    %c0_2 = arith.constant 0 : index
    %0 = vector.load %arg1[%c0, %c0_0, %c0_1, %c0_2] : memref<2x8x8x8xbf16, #tpu.memory_space<vmem>>, vector<2x8x8x8xbf16>
    %1 = arith.extf %0 : vector<2x8x8x8xbf16> to vector<2x8x8x8xf32>
    %c0_3 = arith.constant 0 : index
    %c0_4 = arith.constant 0 : index
    %2 = vector.load %arg2[%c0_3, %c0_4] : memref<2x8xf32, #tpu.memory_space<vmem>>, vector<1x8xf32>
    %3 = vector.shape_cast %2 : vector<1x8xf32> to vector<1x1x1x8xf32>
    %4 = vector.broadcast %3 : vector<1x1x1x8xf32> to vector<2x8x8x8xf32>
    %5 = arith.mulf %1, %4 : vector<2x8x8x8xf32>
    %c1 = arith.constant 1 : index
    %c0_5 = arith.constant 0 : index
    %6 = vector.load %arg2[%c1, %c0_5] : memref<2x8xf32, #tpu.memory_space<vmem>>, vector<1x8xf32>
    %7 = vector.shape_cast %6 : vector<1x8xf32> to vector<1x1x1x8xf32>
    %8 = vector.broadcast %7 : vector<1x1x1x8xf32> to vector<2x8x8x8xf32>
    %9 = arith.addf %5, %8 : vector<2x8x8x8xf32>
    %cst = arith.constant 0.000000e+00 : f32
    %10 = vector.broadcast %cst : f32 to vector<2x8x8x8xf32>
    %11 = arith.maximumf %9, %10 : vector<2x8x8x8xf32>
    %c0_6 = arith.constant 0 : index
    %c0_7 = arith.constant 0 : index
    %c0_8 = arith.constant 0 : index
    %12 = vector.load %arg3[%c0_6, %c0_7, %c0_8] : memref<7x8x8xbf16, #tpu.memory_space<vmem>>, vector<7x8x8xbf16>
    %cst_9 = arith.constant 0.000000e+00 : f32
    %13 = vector.broadcast %cst_9 : f32 to vector<128x8xf32>
    %14 = vector.shape_cast %11 : vector<2x8x8x8xf32> to vector<16x8x8xf32>
    %cst_10 = arith.constant 0.000000e+00 : f32
    %15 = vector.broadcast %cst_10 : f32 to vector<16x3x8xf32>
    %16 = tpu.concatenate %15, %14, %15 in 1 : vector<16x3x8xf32>, vector<16x8x8xf32>, vector<16x3x8xf32> -> vector<16x14x8xf32>
    %17 = arith.truncf %16 : vector<16x14x8xf32> to vector<16x14x8xbf16>
    %18 = vector.extract_strided_slice %17 {offsets = [0, 0, 0], sizes = [16, 8, 8], strides = [1, 1, 1]} : vector<16x14x8xbf16> to vector<16x8x8xbf16>
    %19 = vector.shape_cast %18 : vector<16x8x8xbf16> to vector<128x8xbf16>
    %20 = vector.extract_strided_slice %12 {offsets = [0, 0, 0], sizes = [1, 8, 8], strides = [1, 1, 1]} : vector<7x8x8xbf16> to vector<1x8x8xbf16>
    %21 = vector.shape_cast %20 : vector<1x8x8xbf16> to vector<8x8xbf16>
    %cst_11 = arith.constant dense<0.000000e+00> : vector<128x8xf32>
    %22 = tpu.matmul %19, %21, %cst_11 {dimension_numbers = #tpu.dot_dimension_numbers<[1], [0], [0], [1], [0, 0, 1, 1], [], []>} : vector<128x8xbf16>, vector<8x8xbf16>, vector<128x8xf32> -> vector<128x8xf32>
    %23 = arith.addf %13, %22 : vector<128x8xf32>
    %24 = vector.extract_strided_slice %17 {offsets = [0, 1, 0], sizes = [16, 8, 8], strides = [1, 1, 1]} : vector<16x14x8xbf16> to vector<16x8x8xbf16>
    %25 = vector.shape_cast %24 : vector<16x8x8xbf16> to vector<128x8xbf16>
    %26 = vector.extract_strided_slice %12 {offsets = [1, 0, 0], sizes = [1, 8, 8], strides = [1, 1, 1]} : vector<7x8x8xbf16> to vector<1x8x8xbf16>
    %27 = vector.shape_cast %26 : vector<1x8x8xbf16> to vector<8x8xbf16>
    %cst_12 = arith.constant dense<0.000000e+00> : vector<128x8xf32>
    %28 = tpu.matmul %25, %27, %cst_12 {dimension_numbers = #tpu.dot_dimension_numbers<[1], [0], [0], [1], [0, 0, 1, 1], [], []>} : vector<128x8xbf16>, vector<8x8xbf16>, vector<128x8xf32> -> vector<128x8xf32>
    %29 = arith.addf %23, %28 : vector<128x8xf32>
    %30 = vector.extract_strided_slice %17 {offsets = [0, 2, 0], sizes = [16, 8, 8], strides = [1, 1, 1]} : vector<16x14x8xbf16> to vector<16x8x8xbf16>
    %31 = vector.shape_cast %30 : vector<16x8x8xbf16> to vector<128x8xbf16>
    %32 = vector.extract_strided_slice %12 {offsets = [2, 0, 0], sizes = [1, 8, 8], strides = [1, 1, 1]} : vector<7x8x8xbf16> to vector<1x8x8xbf16>
    %33 = vector.shape_cast %32 : vector<1x8x8xbf16> to vector<8x8xbf16>
    %cst_13 = arith.constant dense<0.000000e+00> : vector<128x8xf32>
    %34 = tpu.matmul %31, %33, %cst_13 {dimension_numbers = #tpu.dot_dimension_numbers<[1], [0], [0], [1], [0, 0, 1, 1], [], []>} : vector<128x8xbf16>, vector<8x8xbf16>, vector<128x8xf32> -> vector<128x8xf32>
    %35 = arith.addf %29, %34 : vector<128x8xf32>
    %36 = vector.extract_strided_slice %17 {offsets = [0, 3, 0], sizes = [16, 8, 8], strides = [1, 1, 1]} : vector<16x14x8xbf16> to vector<16x8x8xbf16>
    %37 = vector.shape_cast %36 : vector<16x8x8xbf16> to vector<128x8xbf16>
    %38 = vector.extract_strided_slice %12 {offsets = [3, 0, 0], sizes = [1, 8, 8], strides = [1, 1, 1]} : vector<7x8x8xbf16> to vector<1x8x8xbf16>
    %39 = vector.shape_cast %38 : vector<1x8x8xbf16> to vector<8x8xbf16>
    %cst_14 = arith.constant dense<0.000000e+00> : vector<128x8xf32>
    %40 = tpu.matmul %37, %39, %cst_14 {dimension_numbers = #tpu.dot_dimension_numbers<[1], [0], [0], [1], [0, 0, 1, 1], [], []>} : vector<128x8xbf16>, vector<8x8xbf16>, vector<128x8xf32> -> vector<128x8xf32>
    %41 = arith.addf %35, %40 : vector<128x8xf32>
    %42 = vector.extract_strided_slice %17 {offsets = [0, 4, 0], sizes = [16, 8, 8], strides = [1, 1, 1]} : vector<16x14x8xbf16> to vector<16x8x8xbf16>
    %43 = vector.shape_cast %42 : vector<16x8x8xbf16> to vector<128x8xbf16>
    %44 = vector.extract_strided_slice %12 {offsets = [4, 0, 0], sizes = [1, 8, 8], strides = [1, 1, 1]} : vector<7x8x8xbf16> to vector<1x8x8xbf16>
    %45 = vector.shape_cast %44 : vector<1x8x8xbf16> to vector<8x8xbf16>
    %cst_15 = arith.constant dense<0.000000e+00> : vector<128x8xf32>
    %46 = tpu.matmul %43, %45, %cst_15 {dimension_numbers = #tpu.dot_dimension_numbers<[1], [0], [0], [1], [0, 0, 1, 1], [], []>} : vector<128x8xbf16>, vector<8x8xbf16>, vector<128x8xf32> -> vector<128x8xf32>
    %47 = arith.addf %41, %46 : vector<128x8xf32>
    %48 = vector.extract_strided_slice %17 {offsets = [0, 5, 0], sizes = [16, 8, 8], strides = [1, 1, 1]} : vector<16x14x8xbf16> to vector<16x8x8xbf16>
    %49 = vector.shape_cast %48 : vector<16x8x8xbf16> to vector<128x8xbf16>
    %50 = vector.extract_strided_slice %12 {offsets = [5, 0, 0], sizes = [1, 8, 8], strides = [1, 1, 1]} : vector<7x8x8xbf16> to vector<1x8x8xbf16>
    %51 = vector.shape_cast %50 : vector<1x8x8xbf16> to vector<8x8xbf16>
    %cst_16 = arith.constant dense<0.000000e+00> : vector<128x8xf32>
    %52 = tpu.matmul %49, %51, %cst_16 {dimension_numbers = #tpu.dot_dimension_numbers<[1], [0], [0], [1], [0, 0, 1, 1], [], []>} : vector<128x8xbf16>, vector<8x8xbf16>, vector<128x8xf32> -> vector<128x8xf32>
    %53 = arith.addf %47, %52 : vector<128x8xf32>
    %54 = vector.extract_strided_slice %17 {offsets = [0, 6, 0], sizes = [16, 8, 8], strides = [1, 1, 1]} : vector<16x14x8xbf16> to vector<16x8x8xbf16>
    %55 = vector.shape_cast %54 : vector<16x8x8xbf16> to vector<128x8xbf16>
    %56 = vector.extract_strided_slice %12 {offsets = [6, 0, 0], sizes = [1, 8, 8], strides = [1, 1, 1]} : vector<7x8x8xbf16> to vector<1x8x8xbf16>
    %57 = vector.shape_cast %56 : vector<1x8x8xbf16> to vector<8x8xbf16>
    %cst_17 = arith.constant dense<0.000000e+00> : vector<128x8xf32>
    %58 = tpu.matmul %55, %57, %cst_17 {dimension_numbers = #tpu.dot_dimension_numbers<[1], [0], [0], [1], [0, 0, 1, 1], [], []>} : vector<128x8xbf16>, vector<8x8xbf16>, vector<128x8xf32> -> vector<128x8xf32>
    %59 = arith.addf %53, %58 : vector<128x8xf32>
    %60 = vector.shape_cast %59 : vector<128x8xf32> to vector<2x8x8x8xf32>
    %61 = arith.truncf %60 : vector<2x8x8x8xf32> to vector<2x8x8x8xbf16>
    %c0_18 = arith.constant 0 : index
    %c0_19 = arith.constant 0 : index
    %c0_20 = arith.constant 0 : index
    %c0_21 = arith.constant 0 : index
    %62 = vector.load %arg4[%c0_18, %c0_19, %c0_20, %c0_21] : memref<2x8x8x8xbf16, #tpu.memory_space<vmem>>, vector<2x8x8x8xbf16>
    tpu.vector_store %arg4[%c0_18, %c0_19, %c0_20, %c0_21], %61 {strides = array<i32>} : memref<2x8x8x8xbf16, #tpu.memory_space<vmem>>, vector<2x8x8x8xbf16>,
    %cst_22 = arith.constant dense<0.000000e+00> : vector<8xf32>
    %63 = vector.multi_reduction <add>, %59, %cst_22 [0] : vector<128x8xf32> to vector<8xf32>
    %64 = vector.shape_cast %63 : vector<8xf32> to vector<1x8xf32>
    %65 = arith.mulf %59, %59 : vector<128x8xf32>
    %cst_23 = arith.constant dense<0.000000e+00> : vector<8xf32>
    %66 = vector.multi_reduction <add>, %65, %cst_23 [0] : vector<128x8xf32> to vector<8xf32>
    %67 = vector.shape_cast %66 : vector<8xf32> to vector<1x8xf32>
    %68 = tpu.concatenate %64, %67 in 0 : vector<1x8xf32>, vector<1x8xf32> -> vector<2x8xf32>
    %69 = vector.shape_cast %68 : vector<2x8xf32> to vector<1x2x8xf32>
    %c0_24 = arith.constant 0 : index
    %c0_25 = arith.constant 0 : index
    %c0_26 = arith.constant 0 : index
    %70 = vector.load %arg5[%c0_24, %c0_25, %c0_26] : memref<1x2x8xf32, #tpu.memory_space<vmem>>, vector<1x2x8xf32>
    tpu.vector_store %arg5[%c0_24, %c0_25, %c0_26], %69 {strides = array<i32>} : memref<1x2x8xf32, #tpu.memory_space<vmem>>, vector<1x2x8xf32>,
    return
  }
  func.func @transform_0(%arg0: i32) -> (i32, i32, i32, i32) {
    %c0_i32 = arith.constant 0 : i32
    %c0_i32_0 = arith.constant 0 : i32
    %c0_i32_1 = arith.constant 0 : i32
    %c0_i32_2 = arith.constant 0 : i32
    return %arg0, %c0_i32, %c0_i32_0, %c0_i32_1 : i32, i32, i32, i32
  }
  func.func @transform_1(%arg0: i32) -> (i32, i32) {
    %c0_i32 = arith.constant 0 : i32
    %c0_i32_0 = arith.constant 0 : i32
    %c0_i32_1 = arith.constant 0 : i32
    return %c0_i32, %c0_i32_0 : i32, i32
  }
  func.func @transform_2(%arg0: i32) -> (i32, i32, i32) {
    %c0_i32 = arith.constant 0 : i32
    %c0_i32_0 = arith.constant 0 : i32
    %c0_i32_1 = arith.constant 0 : i32
    %c0_i32_2 = arith.constant 0 : i32
    return %c0_i32, %c0_i32_0, %c0_i32_1 : i32, i32, i32
  }
  func.func @transform_3(%arg0: i32) -> (i32, i32, i32, i32) {
    %c0_i32 = arith.constant 0 : i32
    %c0_i32_0 = arith.constant 0 : i32
    %c0_i32_1 = arith.constant 0 : i32
    %c0_i32_2 = arith.constant 0 : i32
    return %arg0, %c0_i32, %c0_i32_0, %c0_i32_1 : i32, i32, i32, i32
  }
  func.func @transform_4(%arg0: i32) -> (i32, i32, i32) {
    %c0_i32 = arith.constant 0 : i32
    %c0_i32_0 = arith.constant 0 : i32
    %c0_i32_1 = arith.constant 0 : i32
    return %arg0, %c0_i32, %c0_i32_0 : i32, i32, i32
  }
}

module attributes {stable_mosaic.version = 11 : i64} {
  func.func @kernel(%arg0: i32, %arg1: memref<2x8x8x8xbf16, #tpu.memory_space<vmem>>, %arg2: memref<2x8xf32, #tpu.memory_space<vmem>>, %arg3: memref<7x8x8xbf16, #tpu.memory_space<vmem>>, %arg4: memref<2x8x8x8xbf16, #tpu.memory_space<vmem>>, %arg5: memref<1x2x8xf32, #tpu.memory_space<vmem>>) attributes {dimension_semantics = [#tpu.dimension_semantics<parallel>], iteration_bounds = array<i64: 1>, scalar_prefetch = 0 : i64, scratch_operands = 0 : i64, tpu.core_type = #tpu.core_type<tc>, window_params = [{transform_indices = @transform_0, window_bounds = array<i64: 2, 8, 8, 8>}, {pipeline_mode = #tpu.pipeline_mode<synchronous>, transform_indices = @transform_1, window_bounds = array<i64: 2, 8>}, {pipeline_mode = #tpu.pipeline_mode<synchronous>, transform_indices = @transform_2, window_bounds = array<i64: 7, 8, 8>}, {transform_indices = @transform_3, window_bounds = array<i64: 2, 8, 8, 8>}, {transform_indices = @transform_4, window_bounds = array<i64: 1, 2, 8>}]} {
    %c0 = arith.constant 0 : index
    %c0_0 = arith.constant 0 : index
    %c0_1 = arith.constant 0 : index
    %c0_2 = arith.constant 0 : index
    %0 = vector.load %arg1[%c0, %c0_0, %c0_1, %c0_2] : memref<2x8x8x8xbf16, #tpu.memory_space<vmem>>, vector<2x8x8x8xbf16>
    %1 = arith.extf %0 : vector<2x8x8x8xbf16> to vector<2x8x8x8xf32>
    %c0_3 = arith.constant 0 : index
    %c0_4 = arith.constant 0 : index
    %2 = vector.load %arg2[%c0_3, %c0_4] : memref<2x8xf32, #tpu.memory_space<vmem>>, vector<1x8xf32>
    %3 = vector.shape_cast %2 : vector<1x8xf32> to vector<1x1x1x8xf32>
    %4 = vector.broadcast %3 : vector<1x1x1x8xf32> to vector<2x8x8x8xf32>
    %5 = arith.mulf %1, %4 : vector<2x8x8x8xf32>
    %c1 = arith.constant 1 : index
    %c0_5 = arith.constant 0 : index
    %6 = vector.load %arg2[%c1, %c0_5] : memref<2x8xf32, #tpu.memory_space<vmem>>, vector<1x8xf32>
    %7 = vector.shape_cast %6 : vector<1x8xf32> to vector<1x1x1x8xf32>
    %8 = vector.broadcast %7 : vector<1x1x1x8xf32> to vector<2x8x8x8xf32>
    %9 = arith.addf %5, %8 : vector<2x8x8x8xf32>
    %cst = arith.constant 0.000000e+00 : f32
    %10 = vector.broadcast %cst : f32 to vector<2x8x8x8xf32>
    %11 = arith.maximumf %9, %10 : vector<2x8x8x8xf32>
    %c0_6 = arith.constant 0 : index
    %c0_7 = arith.constant 0 : index
    %c0_8 = arith.constant 0 : index
    %12 = vector.load %arg3[%c0_6, %c0_7, %c0_8] : memref<7x8x8xbf16, #tpu.memory_space<vmem>>, vector<7x8x8xbf16>
    %cst_9 = arith.constant 0.000000e+00 : f32
    %13 = vector.broadcast %cst_9 : f32 to vector<128x8xf32>
    %cst_10 = arith.constant 0.000000e+00 : f32
    %14 = vector.broadcast %cst_10 : f32 to vector<2x3x8x8xf32>
    %15 = tpu.concatenate %14, %11, %14 in 1 : vector<2x3x8x8xf32>, vector<2x8x8x8xf32>, vector<2x3x8x8xf32> -> vector<2x14x8x8xf32>
    %16 = arith.truncf %15 : vector<2x14x8x8xf32> to vector<2x14x8x8xbf16>
    %17 = vector.extract_strided_slice %16 {offsets = [0, 0, 0, 0], sizes = [2, 8, 8, 8], strides = [1, 1, 1, 1]} : vector<2x14x8x8xbf16> to vector<2x8x8x8xbf16>
    %18 = vector.shape_cast %17 : vector<2x8x8x8xbf16> to vector<128x8xbf16>
    %19 = vector.extract_strided_slice %12 {offsets = [0, 0, 0], sizes = [1, 8, 8], strides = [1, 1, 1]} : vector<7x8x8xbf16> to vector<1x8x8xbf16>
    %20 = vector.shape_cast %19 : vector<1x8x8xbf16> to vector<8x8xbf16>
    %cst_11 = arith.constant dense<0.000000e+00> : vector<128x8xf32>
    %21 = tpu.matmul %18, %20, %cst_11 {dimension_numbers = #tpu.dot_dimension_numbers<[1], [0], [0], [1], [0, 0, 1, 1], [], []>} : vector<128x8xbf16>, vector<8x8xbf16>, vector<128x8xf32> -> vector<128x8xf32>
    %22 = arith.addf %13, %21 : vector<128x8xf32>
    %23 = vector.extract_strided_slice %16 {offsets = [0, 1, 0, 0], sizes = [2, 8, 8, 8], strides = [1, 1, 1, 1]} : vector<2x14x8x8xbf16> to vector<2x8x8x8xbf16>
    %24 = vector.shape_cast %23 : vector<2x8x8x8xbf16> to vector<128x8xbf16>
    %25 = vector.extract_strided_slice %12 {offsets = [1, 0, 0], sizes = [1, 8, 8], strides = [1, 1, 1]} : vector<7x8x8xbf16> to vector<1x8x8xbf16>
    %26 = vector.shape_cast %25 : vector<1x8x8xbf16> to vector<8x8xbf16>
    %cst_12 = arith.constant dense<0.000000e+00> : vector<128x8xf32>
    %27 = tpu.matmul %24, %26, %cst_12 {dimension_numbers = #tpu.dot_dimension_numbers<[1], [0], [0], [1], [0, 0, 1, 1], [], []>} : vector<128x8xbf16>, vector<8x8xbf16>, vector<128x8xf32> -> vector<128x8xf32>
    %28 = arith.addf %22, %27 : vector<128x8xf32>
    %29 = vector.extract_strided_slice %16 {offsets = [0, 2, 0, 0], sizes = [2, 8, 8, 8], strides = [1, 1, 1, 1]} : vector<2x14x8x8xbf16> to vector<2x8x8x8xbf16>
    %30 = vector.shape_cast %29 : vector<2x8x8x8xbf16> to vector<128x8xbf16>
    %31 = vector.extract_strided_slice %12 {offsets = [2, 0, 0], sizes = [1, 8, 8], strides = [1, 1, 1]} : vector<7x8x8xbf16> to vector<1x8x8xbf16>
    %32 = vector.shape_cast %31 : vector<1x8x8xbf16> to vector<8x8xbf16>
    %cst_13 = arith.constant dense<0.000000e+00> : vector<128x8xf32>
    %33 = tpu.matmul %30, %32, %cst_13 {dimension_numbers = #tpu.dot_dimension_numbers<[1], [0], [0], [1], [0, 0, 1, 1], [], []>} : vector<128x8xbf16>, vector<8x8xbf16>, vector<128x8xf32> -> vector<128x8xf32>
    %34 = arith.addf %28, %33 : vector<128x8xf32>
    %35 = vector.extract_strided_slice %16 {offsets = [0, 3, 0, 0], sizes = [2, 8, 8, 8], strides = [1, 1, 1, 1]} : vector<2x14x8x8xbf16> to vector<2x8x8x8xbf16>
    %36 = vector.shape_cast %35 : vector<2x8x8x8xbf16> to vector<128x8xbf16>
    %37 = vector.extract_strided_slice %12 {offsets = [3, 0, 0], sizes = [1, 8, 8], strides = [1, 1, 1]} : vector<7x8x8xbf16> to vector<1x8x8xbf16>
    %38 = vector.shape_cast %37 : vector<1x8x8xbf16> to vector<8x8xbf16>
    %cst_14 = arith.constant dense<0.000000e+00> : vector<128x8xf32>
    %39 = tpu.matmul %36, %38, %cst_14 {dimension_numbers = #tpu.dot_dimension_numbers<[1], [0], [0], [1], [0, 0, 1, 1], [], []>} : vector<128x8xbf16>, vector<8x8xbf16>, vector<128x8xf32> -> vector<128x8xf32>
    %40 = arith.addf %34, %39 : vector<128x8xf32>
    %41 = vector.extract_strided_slice %16 {offsets = [0, 4, 0, 0], sizes = [2, 8, 8, 8], strides = [1, 1, 1, 1]} : vector<2x14x8x8xbf16> to vector<2x8x8x8xbf16>
    %42 = vector.shape_cast %41 : vector<2x8x8x8xbf16> to vector<128x8xbf16>
    %43 = vector.extract_strided_slice %12 {offsets = [4, 0, 0], sizes = [1, 8, 8], strides = [1, 1, 1]} : vector<7x8x8xbf16> to vector<1x8x8xbf16>
    %44 = vector.shape_cast %43 : vector<1x8x8xbf16> to vector<8x8xbf16>
    %cst_15 = arith.constant dense<0.000000e+00> : vector<128x8xf32>
    %45 = tpu.matmul %42, %44, %cst_15 {dimension_numbers = #tpu.dot_dimension_numbers<[1], [0], [0], [1], [0, 0, 1, 1], [], []>} : vector<128x8xbf16>, vector<8x8xbf16>, vector<128x8xf32> -> vector<128x8xf32>
    %46 = arith.addf %40, %45 : vector<128x8xf32>
    %47 = vector.extract_strided_slice %16 {offsets = [0, 5, 0, 0], sizes = [2, 8, 8, 8], strides = [1, 1, 1, 1]} : vector<2x14x8x8xbf16> to vector<2x8x8x8xbf16>
    %48 = vector.shape_cast %47 : vector<2x8x8x8xbf16> to vector<128x8xbf16>
    %49 = vector.extract_strided_slice %12 {offsets = [5, 0, 0], sizes = [1, 8, 8], strides = [1, 1, 1]} : vector<7x8x8xbf16> to vector<1x8x8xbf16>
    %50 = vector.shape_cast %49 : vector<1x8x8xbf16> to vector<8x8xbf16>
    %cst_16 = arith.constant dense<0.000000e+00> : vector<128x8xf32>
    %51 = tpu.matmul %48, %50, %cst_16 {dimension_numbers = #tpu.dot_dimension_numbers<[1], [0], [0], [1], [0, 0, 1, 1], [], []>} : vector<128x8xbf16>, vector<8x8xbf16>, vector<128x8xf32> -> vector<128x8xf32>
    %52 = arith.addf %46, %51 : vector<128x8xf32>
    %53 = vector.extract_strided_slice %16 {offsets = [0, 6, 0, 0], sizes = [2, 8, 8, 8], strides = [1, 1, 1, 1]} : vector<2x14x8x8xbf16> to vector<2x8x8x8xbf16>
    %54 = vector.shape_cast %53 : vector<2x8x8x8xbf16> to vector<128x8xbf16>
    %55 = vector.extract_strided_slice %12 {offsets = [6, 0, 0], sizes = [1, 8, 8], strides = [1, 1, 1]} : vector<7x8x8xbf16> to vector<1x8x8xbf16>
    %56 = vector.shape_cast %55 : vector<1x8x8xbf16> to vector<8x8xbf16>
    %cst_17 = arith.constant dense<0.000000e+00> : vector<128x8xf32>
    %57 = tpu.matmul %54, %56, %cst_17 {dimension_numbers = #tpu.dot_dimension_numbers<[1], [0], [0], [1], [0, 0, 1, 1], [], []>} : vector<128x8xbf16>, vector<8x8xbf16>, vector<128x8xf32> -> vector<128x8xf32>
    %58 = arith.addf %52, %57 : vector<128x8xf32>
    %59 = vector.shape_cast %58 : vector<128x8xf32> to vector<2x8x8x8xf32>
    %60 = arith.truncf %59 : vector<2x8x8x8xf32> to vector<2x8x8x8xbf16>
    %c0_18 = arith.constant 0 : index
    %c0_19 = arith.constant 0 : index
    %c0_20 = arith.constant 0 : index
    %c0_21 = arith.constant 0 : index
    %61 = vector.load %arg4[%c0_18, %c0_19, %c0_20, %c0_21] : memref<2x8x8x8xbf16, #tpu.memory_space<vmem>>, vector<2x8x8x8xbf16>
    tpu.vector_store %arg4[%c0_18, %c0_19, %c0_20, %c0_21], %60 {strides = array<i32>} : memref<2x8x8x8xbf16, #tpu.memory_space<vmem>>, vector<2x8x8x8xbf16>,
    %cst_22 = arith.constant dense<0.000000e+00> : vector<8xf32>
    %62 = vector.multi_reduction <add>, %58, %cst_22 [0] : vector<128x8xf32> to vector<8xf32>
    %63 = vector.shape_cast %62 : vector<8xf32> to vector<1x8xf32>
    %64 = arith.mulf %58, %58 : vector<128x8xf32>
    %cst_23 = arith.constant dense<0.000000e+00> : vector<8xf32>
    %65 = vector.multi_reduction <add>, %64, %cst_23 [0] : vector<128x8xf32> to vector<8xf32>
    %66 = vector.shape_cast %65 : vector<8xf32> to vector<1x8xf32>
    %67 = tpu.concatenate %63, %66 in 0 : vector<1x8xf32>, vector<1x8xf32> -> vector<2x8xf32>
    %68 = vector.shape_cast %67 : vector<2x8xf32> to vector<1x2x8xf32>
    %c0_24 = arith.constant 0 : index
    %c0_25 = arith.constant 0 : index
    %c0_26 = arith.constant 0 : index
    %69 = vector.load %arg5[%c0_24, %c0_25, %c0_26] : memref<1x2x8xf32, #tpu.memory_space<vmem>>, vector<1x2x8xf32>
    tpu.vector_store %arg5[%c0_24, %c0_25, %c0_26], %68 {strides = array<i32>} : memref<1x2x8xf32, #tpu.memory_space<vmem>>, vector<1x2x8xf32>,
    return
  }
  func.func @transform_0(%arg0: i32) -> (i32, i32, i32, i32) {
    %c0_i32 = arith.constant 0 : i32
    %c0_i32_0 = arith.constant 0 : i32
    %c0_i32_1 = arith.constant 0 : i32
    %c0_i32_2 = arith.constant 0 : i32
    return %arg0, %c0_i32, %c0_i32_0, %c0_i32_1 : i32, i32, i32, i32
  }
  func.func @transform_1(%arg0: i32) -> (i32, i32) {
    %c0_i32 = arith.constant 0 : i32
    %c0_i32_0 = arith.constant 0 : i32
    %c0_i32_1 = arith.constant 0 : i32
    return %c0_i32, %c0_i32_0 : i32, i32
  }
  func.func @transform_2(%arg0: i32) -> (i32, i32, i32) {
    %c0_i32 = arith.constant 0 : i32
    %c0_i32_0 = arith.constant 0 : i32
    %c0_i32_1 = arith.constant 0 : i32
    %c0_i32_2 = arith.constant 0 : i32
    return %c0_i32, %c0_i32_0, %c0_i32_1 : i32, i32, i32
  }
  func.func @transform_3(%arg0: i32) -> (i32, i32, i32, i32) {
    %c0_i32 = arith.constant 0 : i32
    %c0_i32_0 = arith.constant 0 : i32
    %c0_i32_1 = arith.constant 0 : i32
    %c0_i32_2 = arith.constant 0 : i32
    return %arg0, %c0_i32, %c0_i32_0, %c0_i32_1 : i32, i32, i32, i32
  }
  func.func @transform_4(%arg0: i32) -> (i32, i32, i32) {
    %c0_i32 = arith.constant 0 : i32
    %c0_i32_0 = arith.constant 0 : i32
    %c0_i32_1 = arith.constant 0 : i32
    return %arg0, %c0_i32, %c0_i32_0 : i32, i32, i32
  }
}

module attributes {stable_mosaic.version = 11 : i64} {
  func.func @kernel(%arg0: i32, %arg1: memref<2x8x8x8xbf16, #tpu.memory_space<vmem>>, %arg2: memref<2x8xf32, #tpu.memory_space<vmem>>, %arg3: memref<7x8x192xbf16, #tpu.memory_space<vmem>>, %arg4: memref<2x8x8x192xbf16, #tpu.memory_space<vmem>>, %arg5: memref<1x2x192xf32, #tpu.memory_space<vmem>>) attributes {dimension_semantics = [#tpu.dimension_semantics<parallel>], iteration_bounds = array<i64: 1>, scalar_prefetch = 0 : i64, scratch_operands = 0 : i64, tpu.core_type = #tpu.core_type<tc>, window_params = [{transform_indices = @transform_0, window_bounds = array<i64: 2, 8, 8, 8>}, {pipeline_mode = #tpu.pipeline_mode<synchronous>, transform_indices = @transform_1, window_bounds = array<i64: 2, 8>}, {pipeline_mode = #tpu.pipeline_mode<synchronous>, transform_indices = @transform_2, window_bounds = array<i64: 7, 8, 192>}, {transform_indices = @transform_3, window_bounds = array<i64: 2, 8, 8, 192>}, {transform_indices = @transform_4, window_bounds = array<i64: 1, 2, 192>}]} {
    %c0 = arith.constant 0 : index
    %c0_0 = arith.constant 0 : index
    %c0_1 = arith.constant 0 : index
    %c0_2 = arith.constant 0 : index
    %0 = vector.load %arg1[%c0, %c0_0, %c0_1, %c0_2] : memref<2x8x8x8xbf16, #tpu.memory_space<vmem>>, vector<2x8x8x8xbf16>
    %1 = arith.extf %0 : vector<2x8x8x8xbf16> to vector<2x8x8x8xf32>
    %c0_3 = arith.constant 0 : index
    %c0_4 = arith.constant 0 : index
    %2 = vector.load %arg2[%c0_3, %c0_4] : memref<2x8xf32, #tpu.memory_space<vmem>>, vector<1x8xf32>
    %3 = vector.shape_cast %2 : vector<1x8xf32> to vector<1x1x1x8xf32>
    %4 = vector.broadcast %3 : vector<1x1x1x8xf32> to vector<2x8x8x8xf32>
    %5 = arith.mulf %1, %4 : vector<2x8x8x8xf32>
    %c1 = arith.constant 1 : index
    %c0_5 = arith.constant 0 : index
    %6 = vector.load %arg2[%c1, %c0_5] : memref<2x8xf32, #tpu.memory_space<vmem>>, vector<1x8xf32>
    %7 = vector.shape_cast %6 : vector<1x8xf32> to vector<1x1x1x8xf32>
    %8 = vector.broadcast %7 : vector<1x1x1x8xf32> to vector<2x8x8x8xf32>
    %9 = arith.addf %5, %8 : vector<2x8x8x8xf32>
    %cst = arith.constant 0.000000e+00 : f32
    %10 = vector.broadcast %cst : f32 to vector<2x8x8x8xf32>
    %11 = arith.maximumf %9, %10 : vector<2x8x8x8xf32>
    %c0_6 = arith.constant 0 : index
    %c0_7 = arith.constant 0 : index
    %c0_8 = arith.constant 0 : index
    %12 = vector.load %arg3[%c0_6, %c0_7, %c0_8] : memref<7x8x192xbf16, #tpu.memory_space<vmem>>, vector<7x8x192xbf16>
    %cst_9 = arith.constant 0.000000e+00 : f32
    %13 = vector.broadcast %cst_9 : f32 to vector<128x192xf32>
    %cst_10 = arith.constant 0.000000e+00 : f32
    %14 = vector.broadcast %cst_10 : f32 to vector<2x3x8x8xf32>
    %15 = tpu.concatenate %14, %11, %14 in 1 : vector<2x3x8x8xf32>, vector<2x8x8x8xf32>, vector<2x3x8x8xf32> -> vector<2x14x8x8xf32>
    %16 = arith.truncf %15 : vector<2x14x8x8xf32> to vector<2x14x8x8xbf16>
    %17 = vector.extract_strided_slice %16 {offsets = [0, 0, 0, 0], sizes = [2, 8, 8, 8], strides = [1, 1, 1, 1]} : vector<2x14x8x8xbf16> to vector<2x8x8x8xbf16>
    %18 = vector.shape_cast %17 : vector<2x8x8x8xbf16> to vector<128x8xbf16>
    %19 = vector.extract_strided_slice %12 {offsets = [0, 0, 0], sizes = [1, 8, 192], strides = [1, 1, 1]} : vector<7x8x192xbf16> to vector<1x8x192xbf16>
    %20 = vector.shape_cast %19 : vector<1x8x192xbf16> to vector<8x192xbf16>
    %cst_11 = arith.constant dense<0.000000e+00> : vector<128x192xf32>
    %21 = tpu.matmul %18, %20, %cst_11 {dimension_numbers = #tpu.dot_dimension_numbers<[1], [0], [0], [1], [0, 0, 1, 1], [], []>} : vector<128x8xbf16>, vector<8x192xbf16>, vector<128x192xf32> -> vector<128x192xf32>
    %22 = arith.addf %13, %21 : vector<128x192xf32>
    %23 = vector.extract_strided_slice %16 {offsets = [0, 1, 0, 0], sizes = [2, 8, 8, 8], strides = [1, 1, 1, 1]} : vector<2x14x8x8xbf16> to vector<2x8x8x8xbf16>
    %24 = vector.shape_cast %23 : vector<2x8x8x8xbf16> to vector<128x8xbf16>
    %25 = vector.extract_strided_slice %12 {offsets = [1, 0, 0], sizes = [1, 8, 192], strides = [1, 1, 1]} : vector<7x8x192xbf16> to vector<1x8x192xbf16>
    %26 = vector.shape_cast %25 : vector<1x8x192xbf16> to vector<8x192xbf16>
    %cst_12 = arith.constant dense<0.000000e+00> : vector<128x192xf32>
    %27 = tpu.matmul %24, %26, %cst_12 {dimension_numbers = #tpu.dot_dimension_numbers<[1], [0], [0], [1], [0, 0, 1, 1], [], []>} : vector<128x8xbf16>, vector<8x192xbf16>, vector<128x192xf32> -> vector<128x192xf32>
    %28 = arith.addf %22, %27 : vector<128x192xf32>
    %29 = vector.extract_strided_slice %16 {offsets = [0, 2, 0, 0], sizes = [2, 8, 8, 8], strides = [1, 1, 1, 1]} : vector<2x14x8x8xbf16> to vector<2x8x8x8xbf16>
    %30 = vector.shape_cast %29 : vector<2x8x8x8xbf16> to vector<128x8xbf16>
    %31 = vector.extract_strided_slice %12 {offsets = [2, 0, 0], sizes = [1, 8, 192], strides = [1, 1, 1]} : vector<7x8x192xbf16> to vector<1x8x192xbf16>
    %32 = vector.shape_cast %31 : vector<1x8x192xbf16> to vector<8x192xbf16>
    %cst_13 = arith.constant dense<0.000000e+00> : vector<128x192xf32>
    %33 = tpu.matmul %30, %32, %cst_13 {dimension_numbers = #tpu.dot_dimension_numbers<[1], [0], [0], [1], [0, 0, 1, 1], [], []>} : vector<128x8xbf16>, vector<8x192xbf16>, vector<128x192xf32> -> vector<128x192xf32>
    %34 = arith.addf %28, %33 : vector<128x192xf32>
    %35 = vector.extract_strided_slice %16 {offsets = [0, 3, 0, 0], sizes = [2, 8, 8, 8], strides = [1, 1, 1, 1]} : vector<2x14x8x8xbf16> to vector<2x8x8x8xbf16>
    %36 = vector.shape_cast %35 : vector<2x8x8x8xbf16> to vector<128x8xbf16>
    %37 = vector.extract_strided_slice %12 {offsets = [3, 0, 0], sizes = [1, 8, 192], strides = [1, 1, 1]} : vector<7x8x192xbf16> to vector<1x8x192xbf16>
    %38 = vector.shape_cast %37 : vector<1x8x192xbf16> to vector<8x192xbf16>
    %cst_14 = arith.constant dense<0.000000e+00> : vector<128x192xf32>
    %39 = tpu.matmul %36, %38, %cst_14 {dimension_numbers = #tpu.dot_dimension_numbers<[1], [0], [0], [1], [0, 0, 1, 1], [], []>} : vector<128x8xbf16>, vector<8x192xbf16>, vector<128x192xf32> -> vector<128x192xf32>
    %40 = arith.addf %34, %39 : vector<128x192xf32>
    %41 = vector.extract_strided_slice %16 {offsets = [0, 4, 0, 0], sizes = [2, 8, 8, 8], strides = [1, 1, 1, 1]} : vector<2x14x8x8xbf16> to vector<2x8x8x8xbf16>
    %42 = vector.shape_cast %41 : vector<2x8x8x8xbf16> to vector<128x8xbf16>
    %43 = vector.extract_strided_slice %12 {offsets = [4, 0, 0], sizes = [1, 8, 192], strides = [1, 1, 1]} : vector<7x8x192xbf16> to vector<1x8x192xbf16>
    %44 = vector.shape_cast %43 : vector<1x8x192xbf16> to vector<8x192xbf16>
    %cst_15 = arith.constant dense<0.000000e+00> : vector<128x192xf32>
    %45 = tpu.matmul %42, %44, %cst_15 {dimension_numbers = #tpu.dot_dimension_numbers<[1], [0], [0], [1], [0, 0, 1, 1], [], []>} : vector<128x8xbf16>, vector<8x192xbf16>, vector<128x192xf32> -> vector<128x192xf32>
    %46 = arith.addf %40, %45 : vector<128x192xf32>
    %47 = vector.extract_strided_slice %16 {offsets = [0, 5, 0, 0], sizes = [2, 8, 8, 8], strides = [1, 1, 1, 1]} : vector<2x14x8x8xbf16> to vector<2x8x8x8xbf16>
    %48 = vector.shape_cast %47 : vector<2x8x8x8xbf16> to vector<128x8xbf16>
    %49 = vector.extract_strided_slice %12 {offsets = [5, 0, 0], sizes = [1, 8, 192], strides = [1, 1, 1]} : vector<7x8x192xbf16> to vector<1x8x192xbf16>
    %50 = vector.shape_cast %49 : vector<1x8x192xbf16> to vector<8x192xbf16>
    %cst_16 = arith.constant dense<0.000000e+00> : vector<128x192xf32>
    %51 = tpu.matmul %48, %50, %cst_16 {dimension_numbers = #tpu.dot_dimension_numbers<[1], [0], [0], [1], [0, 0, 1, 1], [], []>} : vector<128x8xbf16>, vector<8x192xbf16>, vector<128x192xf32> -> vector<128x192xf32>
    %52 = arith.addf %46, %51 : vector<128x192xf32>
    %53 = vector.extract_strided_slice %16 {offsets = [0, 6, 0, 0], sizes = [2, 8, 8, 8], strides = [1, 1, 1, 1]} : vector<2x14x8x8xbf16> to vector<2x8x8x8xbf16>
    %54 = vector.shape_cast %53 : vector<2x8x8x8xbf16> to vector<128x8xbf16>
    %55 = vector.extract_strided_slice %12 {offsets = [6, 0, 0], sizes = [1, 8, 192], strides = [1, 1, 1]} : vector<7x8x192xbf16> to vector<1x8x192xbf16>
    %56 = vector.shape_cast %55 : vector<1x8x192xbf16> to vector<8x192xbf16>
    %cst_17 = arith.constant dense<0.000000e+00> : vector<128x192xf32>
    %57 = tpu.matmul %54, %56, %cst_17 {dimension_numbers = #tpu.dot_dimension_numbers<[1], [0], [0], [1], [0, 0, 1, 1], [], []>} : vector<128x8xbf16>, vector<8x192xbf16>, vector<128x192xf32> -> vector<128x192xf32>
    %58 = arith.addf %52, %57 : vector<128x192xf32>
    %59 = vector.shape_cast %58 : vector<128x192xf32> to vector<2x8x8x192xf32>
    %60 = arith.truncf %59 : vector<2x8x8x192xf32> to vector<2x8x8x192xbf16>
    %c0_18 = arith.constant 0 : index
    %c0_19 = arith.constant 0 : index
    %c0_20 = arith.constant 0 : index
    %c0_21 = arith.constant 0 : index
    %61 = vector.load %arg4[%c0_18, %c0_19, %c0_20, %c0_21] : memref<2x8x8x192xbf16, #tpu.memory_space<vmem>>, vector<2x8x8x192xbf16>
    tpu.vector_store %arg4[%c0_18, %c0_19, %c0_20, %c0_21], %60 {strides = array<i32>} : memref<2x8x8x192xbf16, #tpu.memory_space<vmem>>, vector<2x8x8x192xbf16>,
    %cst_22 = arith.constant dense<0.000000e+00> : vector<192xf32>
    %62 = vector.multi_reduction <add>, %58, %cst_22 [0] : vector<128x192xf32> to vector<192xf32>
    %63 = vector.shape_cast %62 : vector<192xf32> to vector<1x192xf32>
    %64 = arith.mulf %58, %58 : vector<128x192xf32>
    %cst_23 = arith.constant dense<0.000000e+00> : vector<192xf32>
    %65 = vector.multi_reduction <add>, %64, %cst_23 [0] : vector<128x192xf32> to vector<192xf32>
    %66 = vector.shape_cast %65 : vector<192xf32> to vector<1x192xf32>
    %67 = tpu.concatenate %63, %66 in 0 : vector<1x192xf32>, vector<1x192xf32> -> vector<2x192xf32>
    %68 = vector.shape_cast %67 : vector<2x192xf32> to vector<1x2x192xf32>
    %c0_24 = arith.constant 0 : index
    %c0_25 = arith.constant 0 : index
    %c0_26 = arith.constant 0 : index
    %69 = vector.load %arg5[%c0_24, %c0_25, %c0_26] : memref<1x2x192xf32, #tpu.memory_space<vmem>>, vector<1x2x192xf32>
    tpu.vector_store %arg5[%c0_24, %c0_25, %c0_26], %68 {strides = array<i32>} : memref<1x2x192xf32, #tpu.memory_space<vmem>>, vector<1x2x192xf32>,
    return
  }
  func.func @transform_0(%arg0: i32) -> (i32, i32, i32, i32) {
    %c0_i32 = arith.constant 0 : i32
    %c0_i32_0 = arith.constant 0 : i32
    %c0_i32_1 = arith.constant 0 : i32
    %c0_i32_2 = arith.constant 0 : i32
    return %arg0, %c0_i32, %c0_i32_0, %c0_i32_1 : i32, i32, i32, i32
  }
  func.func @transform_1(%arg0: i32) -> (i32, i32) {
    %c0_i32 = arith.constant 0 : i32
    %c0_i32_0 = arith.constant 0 : i32
    %c0_i32_1 = arith.constant 0 : i32
    return %c0_i32, %c0_i32_0 : i32, i32
  }
  func.func @transform_2(%arg0: i32) -> (i32, i32, i32) {
    %c0_i32 = arith.constant 0 : i32
    %c0_i32_0 = arith.constant 0 : i32
    %c0_i32_1 = arith.constant 0 : i32
    %c0_i32_2 = arith.constant 0 : i32
    return %c0_i32, %c0_i32_0, %c0_i32_1 : i32, i32, i32
  }
  func.func @transform_3(%arg0: i32) -> (i32, i32, i32, i32) {
    %c0_i32 = arith.constant 0 : i32
    %c0_i32_0 = arith.constant 0 : i32
    %c0_i32_1 = arith.constant 0 : i32
    %c0_i32_2 = arith.constant 0 : i32
    return %arg0, %c0_i32, %c0_i32_0, %c0_i32_1 : i32, i32, i32, i32
  }
  func.func @transform_4(%arg0: i32) -> (i32, i32, i32) {
    %c0_i32 = arith.constant 0 : i32
    %c0_i32_0 = arith.constant 0 : i32
    %c0_i32_1 = arith.constant 0 : i32
    return %arg0, %c0_i32, %c0_i32_0 : i32, i32, i32
  }
}

module attributes {stable_mosaic.version = 11 : i64} {
  func.func @kernel(%arg0: i32, %arg1: memref<2x8x8x8xbf16, #tpu.memory_space<vmem>>, %arg2: memref<2x8xf32, #tpu.memory_space<vmem>>, %arg3: memref<7x8x192xbf16, #tpu.memory_space<vmem>>, %arg4: memref<2x8x8x192xbf16, #tpu.memory_space<vmem>>, %arg5: memref<1x2x192xf32, #tpu.memory_space<vmem>>) attributes {dimension_semantics = [#tpu.dimension_semantics<parallel>], iteration_bounds = array<i64: 1>, scalar_prefetch = 0 : i64, scratch_operands = 0 : i64, tpu.core_type = #tpu.core_type<tc>, window_params = [{transform_indices = @transform_0, window_bounds = array<i64: 2, 8, 8, 8>}, {pipeline_mode = #tpu.pipeline_mode<synchronous>, transform_indices = @transform_1, window_bounds = array<i64: 2, 8>}, {pipeline_mode = #tpu.pipeline_mode<synchronous>, transform_indices = @transform_2, window_bounds = array<i64: 7, 8, 192>}, {transform_indices = @transform_3, window_bounds = array<i64: 2, 8, 8, 192>}, {transform_indices = @transform_4, window_bounds = array<i64: 1, 2, 192>}]} {
    %c0 = arith.constant 0 : index
    %c0_0 = arith.constant 0 : index
    %c0_1 = arith.constant 0 : index
    %c0_2 = arith.constant 0 : index
    %0 = vector.load %arg1[%c0, %c0_0, %c0_1, %c0_2] : memref<2x8x8x8xbf16, #tpu.memory_space<vmem>>, vector<2x8x8x8xbf16>
    %1 = arith.extf %0 : vector<2x8x8x8xbf16> to vector<2x8x8x8xf32>
    %c0_3 = arith.constant 0 : index
    %c0_4 = arith.constant 0 : index
    %2 = vector.load %arg2[%c0_3, %c0_4] : memref<2x8xf32, #tpu.memory_space<vmem>>, vector<1x8xf32>
    %3 = vector.shape_cast %2 : vector<1x8xf32> to vector<1x1x1x8xf32>
    %4 = vector.broadcast %3 : vector<1x1x1x8xf32> to vector<2x8x8x8xf32>
    %5 = arith.mulf %1, %4 : vector<2x8x8x8xf32>
    %c1 = arith.constant 1 : index
    %c0_5 = arith.constant 0 : index
    %6 = vector.load %arg2[%c1, %c0_5] : memref<2x8xf32, #tpu.memory_space<vmem>>, vector<1x8xf32>
    %7 = vector.shape_cast %6 : vector<1x8xf32> to vector<1x1x1x8xf32>
    %8 = vector.broadcast %7 : vector<1x1x1x8xf32> to vector<2x8x8x8xf32>
    %9 = arith.addf %5, %8 : vector<2x8x8x8xf32>
    %cst = arith.constant 0.000000e+00 : f32
    %10 = vector.broadcast %cst : f32 to vector<2x8x8x8xf32>
    %11 = arith.maximumf %9, %10 : vector<2x8x8x8xf32>
    %c0_6 = arith.constant 0 : index
    %c0_7 = arith.constant 0 : index
    %c0_8 = arith.constant 0 : index
    %12 = vector.load %arg3[%c0_6, %c0_7, %c0_8] : memref<7x8x192xbf16, #tpu.memory_space<vmem>>, vector<7x8x192xbf16>
    %cst_9 = arith.constant 0.000000e+00 : f32
    %13 = vector.broadcast %cst_9 : f32 to vector<128x192xf32>
    %14 = vector.shape_cast %11 : vector<2x8x8x8xf32> to vector<16x8x8xf32>
    %cst_10 = arith.constant 0.000000e+00 : f32
    %15 = vector.broadcast %cst_10 : f32 to vector<16x3x8xf32>
    %16 = tpu.concatenate %15, %14, %15 in 1 : vector<16x3x8xf32>, vector<16x8x8xf32>, vector<16x3x8xf32> -> vector<16x14x8xf32>
    %17 = arith.truncf %16 : vector<16x14x8xf32> to vector<16x14x8xbf16>
    %18 = vector.extract_strided_slice %17 {offsets = [0, 0, 0], sizes = [16, 8, 8], strides = [1, 1, 1]} : vector<16x14x8xbf16> to vector<16x8x8xbf16>
    %19 = vector.shape_cast %18 : vector<16x8x8xbf16> to vector<128x8xbf16>
    %20 = vector.extract_strided_slice %12 {offsets = [0, 0, 0], sizes = [1, 8, 192], strides = [1, 1, 1]} : vector<7x8x192xbf16> to vector<1x8x192xbf16>
    %21 = vector.shape_cast %20 : vector<1x8x192xbf16> to vector<8x192xbf16>
    %cst_11 = arith.constant dense<0.000000e+00> : vector<128x192xf32>
    %22 = tpu.matmul %19, %21, %cst_11 {dimension_numbers = #tpu.dot_dimension_numbers<[1], [0], [0], [1], [0, 0, 1, 1], [], []>} : vector<128x8xbf16>, vector<8x192xbf16>, vector<128x192xf32> -> vector<128x192xf32>
    %23 = arith.addf %13, %22 : vector<128x192xf32>
    %24 = vector.extract_strided_slice %17 {offsets = [0, 1, 0], sizes = [16, 8, 8], strides = [1, 1, 1]} : vector<16x14x8xbf16> to vector<16x8x8xbf16>
    %25 = vector.shape_cast %24 : vector<16x8x8xbf16> to vector<128x8xbf16>
    %26 = vector.extract_strided_slice %12 {offsets = [1, 0, 0], sizes = [1, 8, 192], strides = [1, 1, 1]} : vector<7x8x192xbf16> to vector<1x8x192xbf16>
    %27 = vector.shape_cast %26 : vector<1x8x192xbf16> to vector<8x192xbf16>
    %cst_12 = arith.constant dense<0.000000e+00> : vector<128x192xf32>
    %28 = tpu.matmul %25, %27, %cst_12 {dimension_numbers = #tpu.dot_dimension_numbers<[1], [0], [0], [1], [0, 0, 1, 1], [], []>} : vector<128x8xbf16>, vector<8x192xbf16>, vector<128x192xf32> -> vector<128x192xf32>
    %29 = arith.addf %23, %28 : vector<128x192xf32>
    %30 = vector.extract_strided_slice %17 {offsets = [0, 2, 0], sizes = [16, 8, 8], strides = [1, 1, 1]} : vector<16x14x8xbf16> to vector<16x8x8xbf16>
    %31 = vector.shape_cast %30 : vector<16x8x8xbf16> to vector<128x8xbf16>
    %32 = vector.extract_strided_slice %12 {offsets = [2, 0, 0], sizes = [1, 8, 192], strides = [1, 1, 1]} : vector<7x8x192xbf16> to vector<1x8x192xbf16>
    %33 = vector.shape_cast %32 : vector<1x8x192xbf16> to vector<8x192xbf16>
    %cst_13 = arith.constant dense<0.000000e+00> : vector<128x192xf32>
    %34 = tpu.matmul %31, %33, %cst_13 {dimension_numbers = #tpu.dot_dimension_numbers<[1], [0], [0], [1], [0, 0, 1, 1], [], []>} : vector<128x8xbf16>, vector<8x192xbf16>, vector<128x192xf32> -> vector<128x192xf32>
    %35 = arith.addf %29, %34 : vector<128x192xf32>
    %36 = vector.extract_strided_slice %17 {offsets = [0, 3, 0], sizes = [16, 8, 8], strides = [1, 1, 1]} : vector<16x14x8xbf16> to vector<16x8x8xbf16>
    %37 = vector.shape_cast %36 : vector<16x8x8xbf16> to vector<128x8xbf16>
    %38 = vector.extract_strided_slice %12 {offsets = [3, 0, 0], sizes = [1, 8, 192], strides = [1, 1, 1]} : vector<7x8x192xbf16> to vector<1x8x192xbf16>
    %39 = vector.shape_cast %38 : vector<1x8x192xbf16> to vector<8x192xbf16>
    %cst_14 = arith.constant dense<0.000000e+00> : vector<128x192xf32>
    %40 = tpu.matmul %37, %39, %cst_14 {dimension_numbers = #tpu.dot_dimension_numbers<[1], [0], [0], [1], [0, 0, 1, 1], [], []>} : vector<128x8xbf16>, vector<8x192xbf16>, vector<128x192xf32> -> vector<128x192xf32>
    %41 = arith.addf %35, %40 : vector<128x192xf32>
    %42 = vector.extract_strided_slice %17 {offsets = [0, 4, 0], sizes = [16, 8, 8], strides = [1, 1, 1]} : vector<16x14x8xbf16> to vector<16x8x8xbf16>
    %43 = vector.shape_cast %42 : vector<16x8x8xbf16> to vector<128x8xbf16>
    %44 = vector.extract_strided_slice %12 {offsets = [4, 0, 0], sizes = [1, 8, 192], strides = [1, 1, 1]} : vector<7x8x192xbf16> to vector<1x8x192xbf16>
    %45 = vector.shape_cast %44 : vector<1x8x192xbf16> to vector<8x192xbf16>
    %cst_15 = arith.constant dense<0.000000e+00> : vector<128x192xf32>
    %46 = tpu.matmul %43, %45, %cst_15 {dimension_numbers = #tpu.dot_dimension_numbers<[1], [0], [0], [1], [0, 0, 1, 1], [], []>} : vector<128x8xbf16>, vector<8x192xbf16>, vector<128x192xf32> -> vector<128x192xf32>
    %47 = arith.addf %41, %46 : vector<128x192xf32>
    %48 = vector.extract_strided_slice %17 {offsets = [0, 5, 0], sizes = [16, 8, 8], strides = [1, 1, 1]} : vector<16x14x8xbf16> to vector<16x8x8xbf16>
    %49 = vector.shape_cast %48 : vector<16x8x8xbf16> to vector<128x8xbf16>
    %50 = vector.extract_strided_slice %12 {offsets = [5, 0, 0], sizes = [1, 8, 192], strides = [1, 1, 1]} : vector<7x8x192xbf16> to vector<1x8x192xbf16>
    %51 = vector.shape_cast %50 : vector<1x8x192xbf16> to vector<8x192xbf16>
    %cst_16 = arith.constant dense<0.000000e+00> : vector<128x192xf32>
    %52 = tpu.matmul %49, %51, %cst_16 {dimension_numbers = #tpu.dot_dimension_numbers<[1], [0], [0], [1], [0, 0, 1, 1], [], []>} : vector<128x8xbf16>, vector<8x192xbf16>, vector<128x192xf32> -> vector<128x192xf32>
    %53 = arith.addf %47, %52 : vector<128x192xf32>
    %54 = vector.extract_strided_slice %17 {offsets = [0, 6, 0], sizes = [16, 8, 8], strides = [1, 1, 1]} : vector<16x14x8xbf16> to vector<16x8x8xbf16>
    %55 = vector.shape_cast %54 : vector<16x8x8xbf16> to vector<128x8xbf16>
    %56 = vector.extract_strided_slice %12 {offsets = [6, 0, 0], sizes = [1, 8, 192], strides = [1, 1, 1]} : vector<7x8x192xbf16> to vector<1x8x192xbf16>
    %57 = vector.shape_cast %56 : vector<1x8x192xbf16> to vector<8x192xbf16>
    %cst_17 = arith.constant dense<0.000000e+00> : vector<128x192xf32>
    %58 = tpu.matmul %55, %57, %cst_17 {dimension_numbers = #tpu.dot_dimension_numbers<[1], [0], [0], [1], [0, 0, 1, 1], [], []>} : vector<128x8xbf16>, vector<8x192xbf16>, vector<128x192xf32> -> vector<128x192xf32>
    %59 = arith.addf %53, %58 : vector<128x192xf32>
    %60 = vector.shape_cast %59 : vector<128x192xf32> to vector<2x8x8x192xf32>
    %61 = arith.truncf %60 : vector<2x8x8x192xf32> to vector<2x8x8x192xbf16>
    %c0_18 = arith.constant 0 : index
    %c0_19 = arith.constant 0 : index
    %c0_20 = arith.constant 0 : index
    %c0_21 = arith.constant 0 : index
    %62 = vector.load %arg4[%c0_18, %c0_19, %c0_20, %c0_21] : memref<2x8x8x192xbf16, #tpu.memory_space<vmem>>, vector<2x8x8x192xbf16>
    tpu.vector_store %arg4[%c0_18, %c0_19, %c0_20, %c0_21], %61 {strides = array<i32>} : memref<2x8x8x192xbf16, #tpu.memory_space<vmem>>, vector<2x8x8x192xbf16>,
    %cst_22 = arith.constant dense<0.000000e+00> : vector<192xf32>
    %63 = vector.multi_reduction <add>, %59, %cst_22 [0] : vector<128x192xf32> to vector<192xf32>
    %64 = vector.shape_cast %63 : vector<192xf32> to vector<1x192xf32>
    %65 = arith.mulf %59, %59 : vector<128x192xf32>
    %cst_23 = arith.constant dense<0.000000e+00> : vector<192xf32>
    %66 = vector.multi_reduction <add>, %65, %cst_23 [0] : vector<128x192xf32> to vector<192xf32>
    %67 = vector.shape_cast %66 : vector<192xf32> to vector<1x192xf32>
    %68 = tpu.concatenate %64, %67 in 0 : vector<1x192xf32>, vector<1x192xf32> -> vector<2x192xf32>
    %69 = vector.shape_cast %68 : vector<2x192xf32> to vector<1x2x192xf32>
    %c0_24 = arith.constant 0 : index
    %c0_25 = arith.constant 0 : index
    %c0_26 = arith.constant 0 : index
    %70 = vector.load %arg5[%c0_24, %c0_25, %c0_26] : memref<1x2x192xf32, #tpu.memory_space<vmem>>, vector<1x2x192xf32>
    tpu.vector_store %arg5[%c0_24, %c0_25, %c0_26], %69 {strides = array<i32>} : memref<1x2x192xf32, #tpu.memory_space<vmem>>, vector<1x2x192xf32>,
    return
  }
  func.func @transform_0(%arg0: i32) -> (i32, i32, i32, i32) {
    %c0_i32 = arith.constant 0 : i32
    %c0_i32_0 = arith.constant 0 : i32
    %c0_i32_1 = arith.constant 0 : i32
    %c0_i32_2 = arith.constant 0 : i32
    return %arg0, %c0_i32, %c0_i32_0, %c0_i32_1 : i32, i32, i32, i32
  }
  func.func @transform_1(%arg0: i32) -> (i32, i32) {
    %c0_i32 = arith.constant 0 : i32
    %c0_i32_0 = arith.constant 0 : i32
    %c0_i32_1 = arith.constant 0 : i32
    return %c0_i32, %c0_i32_0 : i32, i32
  }
  func.func @transform_2(%arg0: i32) -> (i32, i32, i32) {
    %c0_i32 = arith.constant 0 : i32
    %c0_i32_0 = arith.constant 0 : i32
    %c0_i32_1 = arith.constant 0 : i32
    %c0_i32_2 = arith.constant 0 : i32
    return %c0_i32, %c0_i32_0, %c0_i32_1 : i32, i32, i32
  }
  func.func @transform_3(%arg0: i32) -> (i32, i32, i32, i32) {
    %c0_i32 = arith.constant 0 : i32
    %c0_i32_0 = arith.constant 0 : i32
    %c0_i32_1 = arith.constant 0 : i32
    %c0_i32_2 = arith.constant 0 : i32
    return %arg0, %c0_i32, %c0_i32_0, %c0_i32_1 : i32, i32, i32, i32
  }
  func.func @transform_4(%arg0: i32) -> (i32, i32, i32) {
    %c0_i32 = arith.constant 0 : i32
    %c0_i32_0 = arith.constant 0 : i32
    %c0_i32_1 = arith.constant 0 : i32
    return %arg0, %c0_i32, %c0_i32_0 : i32, i32, i32
  }
}

module attributes {stable_mosaic.version = 11 : i64} {
  func.func @_bn_relu_concat_kernel(%arg0: i32, %arg1: memref<2x8x8x192xbf16, #tpu.memory_space<vmem>>, %arg2: memref<2x8x8x192xbf16, #tpu.memory_space<vmem>>, %arg3: memref<2x8x8x192xbf16, #tpu.memory_space<vmem>>, %arg4: memref<2x8x8x192xbf16, #tpu.memory_space<vmem>>, %arg5: memref<2x192xf32, #tpu.memory_space<vmem>>, %arg6: memref<2x192xf32, #tpu.memory_space<vmem>>, %arg7: memref<2x192xf32, #tpu.memory_space<vmem>>, %arg8: memref<2x192xf32, #tpu.memory_space<vmem>>, %arg9: memref<2x8x8x768xf32, #tpu.memory_space<vmem>>) attributes {dimension_semantics = [#tpu.dimension_semantics<parallel>], iteration_bounds = array<i64: 1>, scalar_prefetch = 0 : i64, scratch_operands = 0 : i64, tpu.core_type = #tpu.core_type<tc>, window_params = [{transform_indices = @transform_0, window_bounds = array<i64: 2, 8, 8, 192>}, {transform_indices = @transform_1, window_bounds = array<i64: 2, 8, 8, 192>}, {transform_indices = @transform_2, window_bounds = array<i64: 2, 8, 8, 192>}, {transform_indices = @transform_3, window_bounds = array<i64: 2, 8, 8, 192>}, {pipeline_mode = #tpu.pipeline_mode<synchronous>, transform_indices = @transform_4, window_bounds = array<i64: 2, 192>}, {pipeline_mode = #tpu.pipeline_mode<synchronous>, transform_indices = @transform_5, window_bounds = array<i64: 2, 192>}, {pipeline_mode = #tpu.pipeline_mode<synchronous>, transform_indices = @transform_6, window_bounds = array<i64: 2, 192>}, {pipeline_mode = #tpu.pipeline_mode<synchronous>, transform_indices = @transform_7, window_bounds = array<i64: 2, 192>}, {transform_indices = @transform_8, window_bounds = array<i64: 2, 8, 8, 768>}]} {
    %c0 = arith.constant 0 : index
    %c0_0 = arith.constant 0 : index
    %c0_1 = arith.constant 0 : index
    %c0_2 = arith.constant 0 : index
    %0 = vector.load %arg1[%c0, %c0_0, %c0_1, %c0_2] : memref<2x8x8x192xbf16, #tpu.memory_space<vmem>>, vector<2x8x8x192xbf16>
    %1 = arith.extf %0 : vector<2x8x8x192xbf16> to vector<2x8x8x192xf32>
    %c0_3 = arith.constant 0 : index
    %c0_4 = arith.constant 0 : index
    %2 = vector.load %arg5[%c0_3, %c0_4] : memref<2x192xf32, #tpu.memory_space<vmem>>, vector<1x192xf32>
    %3 = vector.shape_cast %2 : vector<1x192xf32> to vector<1x1x1x192xf32>
    %4 = vector.broadcast %3 : vector<1x1x1x192xf32> to vector<2x8x8x192xf32>
    %5 = arith.mulf %1, %4 : vector<2x8x8x192xf32>
    %c1 = arith.constant 1 : index
    %c0_5 = arith.constant 0 : index
    %6 = vector.load %arg5[%c1, %c0_5] : memref<2x192xf32, #tpu.memory_space<vmem>>, vector<1x192xf32>
    %7 = vector.shape_cast %6 : vector<1x192xf32> to vector<1x1x1x192xf32>
    %8 = vector.broadcast %7 : vector<1x1x1x192xf32> to vector<2x8x8x192xf32>
    %9 = arith.addf %5, %8 : vector<2x8x8x192xf32>
    %cst = arith.constant 0.000000e+00 : f32
    %10 = vector.broadcast %cst : f32 to vector<2x8x8x192xf32>
    %11 = arith.maximumf %9, %10 : vector<2x8x8x192xf32>
    %c0_6 = arith.constant 0 : index
    %c0_7 = arith.constant 0 : index
    %c0_8 = arith.constant 0 : index
    %c0_9 = arith.constant 0 : index
    %12 = vector.load %arg2[%c0_6, %c0_7, %c0_8, %c0_9] : memref<2x8x8x192xbf16, #tpu.memory_space<vmem>>, vector<2x8x8x192xbf16>
    %13 = arith.extf %12 : vector<2x8x8x192xbf16> to vector<2x8x8x192xf32>
    %c0_10 = arith.constant 0 : index
    %c0_11 = arith.constant 0 : index
    %14 = vector.load %arg6[%c0_10, %c0_11] : memref<2x192xf32, #tpu.memory_space<vmem>>, vector<1x192xf32>
    %15 = vector.shape_cast %14 : vector<1x192xf32> to vector<1x1x1x192xf32>
    %16 = vector.broadcast %15 : vector<1x1x1x192xf32> to vector<2x8x8x192xf32>
    %17 = arith.mulf %13, %16 : vector<2x8x8x192xf32>
    %c1_12 = arith.constant 1 : index
    %c0_13 = arith.constant 0 : index
    %18 = vector.load %arg6[%c1_12, %c0_13] : memref<2x192xf32, #tpu.memory_space<vmem>>, vector<1x192xf32>
    %19 = vector.shape_cast %18 : vector<1x192xf32> to vector<1x1x1x192xf32>
    %20 = vector.broadcast %19 : vector<1x1x1x192xf32> to vector<2x8x8x192xf32>
    %21 = arith.addf %17, %20 : vector<2x8x8x192xf32>
    %cst_14 = arith.constant 0.000000e+00 : f32
    %22 = vector.broadcast %cst_14 : f32 to vector<2x8x8x192xf32>
    %23 = arith.maximumf %21, %22 : vector<2x8x8x192xf32>
    %c0_15 = arith.constant 0 : index
    %c0_16 = arith.constant 0 : index
    %c0_17 = arith.constant 0 : index
    %c0_18 = arith.constant 0 : index
    %24 = vector.load %arg3[%c0_15, %c0_16, %c0_17, %c0_18] : memref<2x8x8x192xbf16, #tpu.memory_space<vmem>>, vector<2x8x8x192xbf16>
    %25 = arith.extf %24 : vector<2x8x8x192xbf16> to vector<2x8x8x192xf32>
    %c0_19 = arith.constant 0 : index
    %c0_20 = arith.constant 0 : index
    %26 = vector.load %arg7[%c0_19, %c0_20] : memref<2x192xf32, #tpu.memory_space<vmem>>, vector<1x192xf32>
    %27 = vector.shape_cast %26 : vector<1x192xf32> to vector<1x1x1x192xf32>
    %28 = vector.broadcast %27 : vector<1x1x1x192xf32> to vector<2x8x8x192xf32>
    %29 = arith.mulf %25, %28 : vector<2x8x8x192xf32>
    %c1_21 = arith.constant 1 : index
    %c0_22 = arith.constant 0 : index
    %30 = vector.load %arg7[%c1_21, %c0_22] : memref<2x192xf32, #tpu.memory_space<vmem>>, vector<1x192xf32>
    %31 = vector.shape_cast %30 : vector<1x192xf32> to vector<1x1x1x192xf32>
    %32 = vector.broadcast %31 : vector<1x1x1x192xf32> to vector<2x8x8x192xf32>
    %33 = arith.addf %29, %32 : vector<2x8x8x192xf32>
    %cst_23 = arith.constant 0.000000e+00 : f32
    %34 = vector.broadcast %cst_23 : f32 to vector<2x8x8x192xf32>
    %35 = arith.maximumf %33, %34 : vector<2x8x8x192xf32>
    %c0_24 = arith.constant 0 : index
    %c0_25 = arith.constant 0 : index
    %c0_26 = arith.constant 0 : index
    %c0_27 = arith.constant 0 : index
    %36 = vector.load %arg4[%c0_24, %c0_25, %c0_26, %c0_27] : memref<2x8x8x192xbf16, #tpu.memory_space<vmem>>, vector<2x8x8x192xbf16>
    %37 = arith.extf %36 : vector<2x8x8x192xbf16> to vector<2x8x8x192xf32>
    %c0_28 = arith.constant 0 : index
    %c0_29 = arith.constant 0 : index
    %38 = vector.load %arg8[%c0_28, %c0_29] : memref<2x192xf32, #tpu.memory_space<vmem>>, vector<1x192xf32>
    %39 = vector.shape_cast %38 : vector<1x192xf32> to vector<1x1x1x192xf32>
    %40 = vector.broadcast %39 : vector<1x1x1x192xf32> to vector<2x8x8x192xf32>
    %41 = arith.mulf %37, %40 : vector<2x8x8x192xf32>
    %c1_30 = arith.constant 1 : index
    %c0_31 = arith.constant 0 : index
    %42 = vector.load %arg8[%c1_30, %c0_31] : memref<2x192xf32, #tpu.memory_space<vmem>>, vector<1x192xf32>
    %43 = vector.shape_cast %42 : vector<1x192xf32> to vector<1x1x1x192xf32>
    %44 = vector.broadcast %43 : vector<1x1x1x192xf32> to vector<2x8x8x192xf32>
    %45 = arith.addf %41, %44 : vector<2x8x8x192xf32>
    %cst_32 = arith.constant 0.000000e+00 : f32
    %46 = vector.broadcast %cst_32 : f32 to vector<2x8x8x192xf32>
    %47 = arith.maximumf %45, %46 : vector<2x8x8x192xf32>
    %48 = tpu.concatenate %11, %23, %35, %47 in 3 : vector<2x8x8x192xf32>, vector<2x8x8x192xf32>, vector<2x8x8x192xf32>, vector<2x8x8x192xf32> -> vector<2x8x8x768xf32>
    %c0_33 = arith.constant 0 : index
    %c0_34 = arith.constant 0 : index
    %c0_35 = arith.constant 0 : index
    %c0_36 = arith.constant 0 : index
    %49 = vector.load %arg9[%c0_33, %c0_34, %c0_35, %c0_36] : memref<2x8x8x768xf32, #tpu.memory_space<vmem>>, vector<2x8x8x768xf32>
    tpu.vector_store %arg9[%c0_33, %c0_34, %c0_35, %c0_36], %48 {strides = array<i32>} : memref<2x8x8x768xf32, #tpu.memory_space<vmem>>, vector<2x8x8x768xf32>,
    return
  }
  func.func @transform_0(%arg0: i32) -> (i32, i32, i32, i32) {
    %c0_i32 = arith.constant 0 : i32
    %c0_i32_0 = arith.constant 0 : i32
    %c0_i32_1 = arith.constant 0 : i32
    %c0_i32_2 = arith.constant 0 : i32
    return %arg0, %c0_i32, %c0_i32_0, %c0_i32_1 : i32, i32, i32, i32
  }
  func.func @transform_1(%arg0: i32) -> (i32, i32, i32, i32) {
    %c0_i32 = arith.constant 0 : i32
    %c0_i32_0 = arith.constant 0 : i32
    %c0_i32_1 = arith.constant 0 : i32
    %c0_i32_2 = arith.constant 0 : i32
    return %arg0, %c0_i32, %c0_i32_0, %c0_i32_1 : i32, i32, i32, i32
  }
  func.func @transform_2(%arg0: i32) -> (i32, i32, i32, i32) {
    %c0_i32 = arith.constant 0 : i32
    %c0_i32_0 = arith.constant 0 : i32
    %c0_i32_1 = arith.constant 0 : i32
    %c0_i32_2 = arith.constant 0 : i32
    return %arg0, %c0_i32, %c0_i32_0, %c0_i32_1 : i32, i32, i32, i32
  }
  func.func @transform_3(%arg0: i32) -> (i32, i32, i32, i32) {
    %c0_i32 = arith.constant 0 : i32
    %c0_i32_0 = arith.constant 0 : i32
    %c0_i32_1 = arith.constant 0 : i32
    %c0_i32_2 = arith.constant 0 : i32
    return %arg0, %c0_i32, %c0_i32_0, %c0_i32_1 : i32, i32, i32, i32
  }
  func.func @transform_4(%arg0: i32) -> (i32, i32) {
    %c0_i32 = arith.constant 0 : i32
    %c0_i32_0 = arith.constant 0 : i32
    %c0_i32_1 = arith.constant 0 : i32
    return %c0_i32, %c0_i32_0 : i32, i32
  }
  func.func @transform_5(%arg0: i32) -> (i32, i32) {
    %c0_i32 = arith.constant 0 : i32
    %c0_i32_0 = arith.constant 0 : i32
    %c0_i32_1 = arith.constant 0 : i32
    return %c0_i32, %c0_i32_0 : i32, i32
  }
  func.func @transform_6(%arg0: i32) -> (i32, i32) {
    %c0_i32 = arith.constant 0 : i32
    %c0_i32_0 = arith.constant 0 : i32
    %c0_i32_1 = arith.constant 0 : i32
    return %c0_i32, %c0_i32_0 : i32, i32
  }
  func.func @transform_7(%arg0: i32) -> (i32, i32) {
    %c0_i32 = arith.constant 0 : i32
    %c0_i32_0 = arith.constant 0 : i32
    %c0_i32_1 = arith.constant 0 : i32
    return %c0_i32, %c0_i32_0 : i32, i32
  }
  func.func @transform_8(%arg0: i32) -> (i32, i32, i32, i32) {
    %c0_i32 = arith.constant 0 : i32
    %c0_i32_0 = arith.constant 0 : i32
    %c0_i32_1 = arith.constant 0 : i32
    %c0_i32_2 = arith.constant 0 : i32
    return %arg0, %c0_i32, %c0_i32_0, %c0_i32_1 : i32, i32, i32, i32
  }
}

</mosaic_0001>

<llo_original>
// kernel: inception_c_forward.11
$region0: #{inception_c_forward.11}
  #allocation0 [shape = 'u32[]', space=smem, size = 0x4, offset = 0x4, fixed_abs, tag = 'smem constant byte address 0x4 - core index']
  #allocation1 [shape = 'u32[72,128]{1,0:T(1,128)}', space=vmem, size = 0x9000, scoped, tag = 'internal scratch']
  %s0 = inlined_call_operand.vmem [shape: bf16[2,8,8,8], index: 0, kind: input, shape index: {}]
  %s1 = inlined_call_operand.vmem [shape: f32[2,8], index: 1, kind: input, shape index: {}]
  %s2 = inlined_call_operand.vmem [shape: bf16[7,8,8], index: 2, kind: input, shape index: {}]
  %s3 = inlined_call_operand.vmem [shape: bf16[2,8,8,8], index: 3, kind: output, shape index: {0}]
  %s4 = inlined_call_operand.vmem [shape: f32[1,2,8], index: 4, kind: output, shape index: {1}]
  %5 = xla_tuple %s3, %s4
  %s6 = sld [smem:[#allocation0]]
  $region30: #{inception_c_forward.11} parent=0
    _
  %s8 = ssub.s32 1, %s6
  %s9 = scalar_select 0, %s8, %s6
  // Predicated region
  $region2: #{inception_c_forward.11} parent=0 // pred_check
    _
  $region3: #{inception_c_forward.11} parent=0 // pred_check_branch
    %11 = sbr.rel (0) target = $region5
  $region4: #{inception_c_forward.11} parent=0 // pred_region
    _
  $region5: #{inception_c_forward.11} parent=0 // pred_fallthru
    _
  // Predicated region
  $region6: #{inception_c_forward.11} parent=0 // pred_check
    _
  $region7: #{inception_c_forward.11} parent=0 // pred_check_branch
    %13 = sbr.rel (0) target = $region9
  $region8: #{inception_c_forward.11} parent=0 // pred_region
    _
  $region9: #{inception_c_forward.11} parent=0 // pred_fallthru
    _
  // Predicated region
  $region10: #{inception_c_forward.11} parent=0 // pred_check
    _
  $region11: #{inception_c_forward.11} parent=0 // pred_check_branch
    %15 = sbr.rel (0) target = $region13
  $region12: #{inception_c_forward.11} parent=0 // pred_region
    _
  $region13: #{inception_c_forward.11} parent=0 // pred_fallthru
    _
  %v17 = vld [vmem:[%s0] sm:$0xf]
  %v18 = vld [vmem:[%s0 + $0x4] sm:$0xf]
  %v19 = vld [vmem:[%s0 + $0x8] sm:$0xf]
  %v20 = vld [vmem:[%s0 + $0xc] sm:$0xf]
  %v21 = vld [vmem:[%s0 + $0x10] sm:$0xf]
  %v22 = vld [vmem:[%s0 + $0x14] sm:$0xf]
  %v23 = vld [vmem:[%s0 + $0x18] sm:$0xf]
  %v24 = vld [vmem:[%s0 + $0x1c] sm:$0xf]
  %v25 = vld [vmem:[%s0 + $0x20] sm:$0xf]
  %v26 = vld [vmem:[%s0 + $0x24] sm:$0xf]
  %v27 = vld [vmem:[%s0 + $0x28] sm:$0xf]
  %v28 = vld [vmem:[%s0 + $0x2c] sm:$0xf]
  %v29 = vld [vmem:[%s0 + $0x30] sm:$0xf]
  %v30 = vld [vmem:[%s0 + $0x34] sm:$0xf]
  %v31 = vld [vmem:[%s0 + $0x38] sm:$0xf]
  %v32 = vld [vmem:[%s0 + $0x3c] sm:$0xf]
  %v33 = vunpack.c.l.bf16 %v17
  %v34 = vunpack.c.l.bf16 %v18
  %v35 = vunpack.c.l.bf16 %v19
  %v36 = vunpack.c.l.bf16 %v20
  %v37 = vunpack.c.l.bf16 %v21
  %v38 = vunpack.c.l.bf16 %v22
  %v39 = vunpack.c.l.bf16 %v23
  %v40 = vunpack.c.l.bf16 %v24
  %v41 = vunpack.c.l.bf16 %v25
  %v42 = vunpack.c.l.bf16 %v26
  %v43 = vunpack.c.l.bf16 %v27
  %v44 = vunpack.c.l.bf16 %v28
  %v45 = vunpack.c.l.bf16 %v29
  %v46 = vunpack.c.l.bf16 %v30
  %v47 = vunpack.c.l.bf16 %v31
  %v48 = vunpack.c.l.bf16 %v32
  %v49 = vld [vmem:[%s1] sm:$0x1]
  %v50 = vperm.slane %v49, 0
  %v51 = vmul.f32 %v33, %v50
  %v52 = vmul.f32 %v34, %v50
  %v53 = vmul.f32 %v35, %v50
  %v54 = vmul.f32 %v36, %v50
  %v55 = vmul.f32 %v37, %v50
  %v56 = vmul.f32 %v38, %v50
  %v57 = vmul.f32 %v39, %v50
  %v58 = vmul.f32 %v40, %v50
  %v59 = vmul.f32 %v41, %v50
  %v60 = vmul.f32 %v42, %v50
  %v61 = vmul.f32 %v43, %v50
  %v62 = vmul.f32 %v44, %v50
  %v63 = vmul.f32 %v45, %v50
  %v64 = vmul.f32 %v46, %v50
  %v65 = vmul.f32 %v47, %v50
  %v66 = vmul.f32 %v48, %v50
  %v67 = vld [vmem:[%s1 + $0x1] sm:$0x1]
  %v68 = vperm.slane %v67, 0
  %v69 = vadd.f32 %v51, %v68
  %v70 = vadd.f32 %v52, %v68
  %v71 = vadd.f32 %v53, %v68
  %v72 = vadd.f32 %v54, %v68
  %v73 = vadd.f32 %v55, %v68
  %v74 = vadd.f32 %v56, %v68
  %v75 = vadd.f32 %v57, %v68
  %v76 = vadd.f32 %v58, %v68
  %v77 = vadd.f32 %v59, %v68
  %v78 = vadd.f32 %v60, %v68
  %v79 = vadd.f32 %v61, %v68
  %v80 = vadd.f32 %v62, %v68
  %v81 = vadd.f32 %v63, %v68
  %v82 = vadd.f32 %v64, %v68
  %v83 = vadd.f32 %v65, %v68
  %v84 = vadd.f32 %v66, %v68
  %v85 = vmax.f32 %v69, 0.0
  %v86 = vmax.f32 %v70, 0.0
  %v87 = vmax.f32 %v71, 0.0
  %v88 = vmax.f32 %v72, 0.0
  %v89 = vmax.f32 %v73, 0.0
  %v90 = vmax.f32 %v74, 0.0
  %v91 = vmax.f32 %v75, 0.0
  %v92 = vmax.f32 %v76, 0.0
  %v93 = vmax.f32 %v77, 0.0
  %v94 = vmax.f32 %v78, 0.0
  %v95 = vmax.f32 %v79, 0.0
  %v96 = vmax.f32 %v80, 0.0
  %v97 = vmax.f32 %v81, 0.0
  %v98 = vmax.f32 %v82, 0.0
  %v99 = vmax.f32 %v83, 0.0
  %v100 = vmax.f32 %v84, 0.0
  %v101 = vld [vmem:[%s2] sm:$0xf]
  %v102 = vld [vmem:[%s2 + $0x4] sm:$0xf]
  %v103 = vld [vmem:[%s2 + $0x8] sm:$0xf]
  %v104 = vld [vmem:[%s2 + $0xc] sm:$0xf]
  %v105 = vld [vmem:[%s2 + $0x10] sm:$0xf]
  %v106 = vld [vmem:[%s2 + $0x14] sm:$0xf]
  %v107 = vld [vmem:[%s2 + $0x18] sm:$0xf]
  %v108 = vpack.c.bf16 0.0, 0.0
  %v109 = vpack.c.bf16 %v85, %v85
  %v110 = vpack.c.bf16 %v86, %v86
  %v111 = vpack.c.bf16 %v87, %v87
  %v112 = vpack.c.bf16 %v88, %v88
  %v113 = vpack.c.bf16 %v89, %v89
  %v114 = vpack.c.bf16 %v90, %v90
  %v115 = vpack.c.bf16 %v91, %v91
  %v116 = vpack.c.bf16 %v92, %v92
  %v117 = vpack.c.bf16 %v93, %v93
  %v118 = vpack.c.bf16 %v94, %v94
  %v119 = vpack.c.bf16 %v95, %v95
  %v120 = vpack.c.bf16 %v96, %v96
  %v121 = vpack.c.bf16 %v97, %v97
  %v122 = vpack.c.bf16 %v98, %v98
  %v123 = vpack.c.bf16 %v99, %v99
  %v124 = vpack.c.bf16 %v100, %v100
  %v138 = vunpack.c.l.b16 %v108
  %v139 = vunpack.c.l.b16 %v109
  %v140 = vunpack.c.l.b16 %v110
  %v141 = vunpack.c.l.b16 %v111
  %v142 = vunpack.c.l.b16 %v112
  %v143 = vunpack.c.l.b16 %v113
  %v144 = vunpack.c.l.b16 %v114
  %v145 = vunpack.c.l.b16 %v117
  %v146 = vunpack.c.l.b16 %v118
  %v147 = vunpack.c.l.b16 %v119
  %v148 = vunpack.c.l.b16 %v120
  %v149 = vunpack.c.l.b16 %v121
  %v150 = vunpack.c.l.b16 %v122
  %v151 = vpack.c.b16 %v138, %v138
  %v152 = vpack.c.b16 %v140, %v139
  %v153 = vpack.c.b16 %v142, %v141
  %v154 = vpack.c.b16 %v144, %v143
  %v155 = vpack.c.b16 %v146, %v145
  %v156 = vpack.c.b16 %v148, %v147
  %v157 = vpack.c.b16 %v150, %v149
  %vm158 = vcmask 64512
  %v160 = vsel %vm158, %v151, 0
  %v163 = vsel %vm158, %v152, 0
  %v166 = vsel %vm158, %v153, 0
  %v169 = vsel %vm158, %v154, 0
  %v172 = vsel %vm158, %v155, 0
  %v175 = vsel %vm158, %v156, 0
  %v178 = vsel %vm158, %v157, 0
  %vm180 = vcmask 1043456
  %v182 = vsel %vm180, %v102, 0
  %184 = vmatpush.bf16.msra.mxu0 0
  %185 = vmatpush.bf16.msra.mxu0 0
  %186 = vmatpush.bf16.msra.mxu0 0
  %187 = vmatpush.bf16.msra.mxu0 0
  %188 = vmatpush.bf16.msra.mxu0 0
  %189 = vmatpush.bf16.msra.mxu0 0
  %190 = vmatpush.bf16.msra.mxu0 0
  %191 = vmatpush.bf16.msra.mxu0 %v182
  %192 = vmatmul.bf16.gmra.mxu0 %v160
  %v193 = vpop.f32.mrf.mxu0
  %v194 = vadd.f32 0.0, %v193
  %v195 = vpop.f32.mrf.mxu0
  %v196 = vadd.f32 0.0, %v195
  %197 = vmatmul.bf16.gmra.mxu0 %v163
  %v198 = vpop.f32.mrf.mxu0
  %v199 = vadd.f32 0.0, %v198
  %v200 = vpop.f32.mrf.mxu0
  %v201 = vadd.f32 0.0, %v200
  %202 = vmatmul.bf16.gmra.mxu0 %v166
  %v203 = vpop.f32.mrf.mxu0
  %v204 = vadd.f32 0.0, %v203
  %v205 = vpop.f32.mrf.mxu0
  %v206 = vadd.f32 0.0, %v205
  %207 = vmatmul.bf16.gmra.mxu0 %v169
  %v208 = vpop.f32.mrf.mxu0
  %v209 = vadd.f32 0.0, %v208
  %v210 = vpop.f32.mrf.mxu0
  %v211 = vadd.f32 0.0, %v210
  %212 = vmatmul.bf16.gmra.mxu0 %v160
  %v213 = vpop.f32.mrf.mxu0
  %v214 = vadd.f32 0.0, %v213
  %v215 = vpop.f32.mrf.mxu0
  %v216 = vadd.f32 0.0, %v215
  %217 = vmatmul.bf16.gmra.mxu0 %v172
  %v218 = vpop.f32.mrf.mxu0
  %v219 = vadd.f32 0.0, %v218
  %v220 = vpop.f32.mrf.mxu0
  %v221 = vadd.f32 0.0, %v220
  %222 = vmatmul.bf16.gmra.mxu0 %v175
  %v223 = vpop.f32.mrf.mxu0
  %v224 = vadd.f32 0.0, %v223
  %v225 = vpop.f32.mrf.mxu0
  %v226 = vadd.f32 0.0, %v225
  %227 = vmatmul.bf16.gmra.mxu0 %v178
  %v228 = vpop.f32.mrf.mxu0
  %v229 = vadd.f32 0.0, %v228
  %v230 = vpop.f32.mrf.mxu0
  %v231 = vadd.f32 0.0, %v230
  %232 = vdwg.mxu0
  %v233 = vpack.c.b16 %v139, %v138
  %v234 = vpack.c.b16 %v141, %v140
  %v235 = vpack.c.b16 %v143, %v142
  %v236 = vpack.c.b16 %v145, %v138
  %v237 = vpack.c.b16 %v147, %v146
  %v238 = vpack.c.b16 %v149, %v148
  %v240 = vsel %vm158, %v233, 0
  %v243 = vsel %vm158, %v234, 0
  %v246 = vsel %vm158, %v235, 0
  %v249 = vsel %vm158, %v236, 0
  %v252 = vsel %vm158, %v237, 0
  %v255 = vsel %vm158, %v238, 0
  %v258 = vsel %vm180, %v101, 0
  %260 = vmatpush.bf16.msra.mxu0 0
  %261 = vmatpush.bf16.msra.mxu0 0
  %262 = vmatpush.bf16.msra.mxu0 0
  %263 = vmatpush.bf16.msra.mxu0 0
  %264 = vmatpush.bf16.msra.mxu0 0
  %265 = vmatpush.bf16.msra.mxu0 0
  %266 = vmatpush.bf16.msra.mxu0 0
  %267 = vmatpush.bf16.msra.mxu0 %v258
  %268 = vmatmul.bf16.gmra.mxu0 %v160
  %v269 = vpop.f32.mrf.mxu0
  %v270 = vadd.f32 %v194, %v269
  %v271 = vpop.f32.mrf.mxu0
  %v272 = vadd.f32 %v196, %v271
  %273 = vmatmul.bf16.gmra.mxu0 %v240
  %v274 = vpop.f32.mrf.mxu0
  %v275 = vadd.f32 %v199, %v274
  %v276 = vpop.f32.mrf.mxu0
  %v277 = vadd.f32 %v201, %v276
  %278 = vmatmul.bf16.gmra.mxu0 %v243
  %v279 = vpop.f32.mrf.mxu0
  %v280 = vadd.f32 %v204, %v279
  %v281 = vpop.f32.mrf.mxu0
  %v282 = vadd.f32 %v206, %v281
  %283 = vmatmul.bf16.gmra.mxu0 %v246
  %v284 = vpop.f32.mrf.mxu0
  %v285 = vadd.f32 %v209, %v284
  %v286 = vpop.f32.mrf.mxu0
  %v287 = vadd.f32 %v211, %v286
  %288 = vmatmul.bf16.gmra.mxu0 %v160
  %v289 = vpop.f32.mrf.mxu0
  %v290 = vadd.f32 %v214, %v289
  %v291 = vpop.f32.mrf.mxu0
  %v292 = vadd.f32 %v216, %v291
  %293 = vmatmul.bf16.gmra.mxu0 %v249
  %v294 = vpop.f32.mrf.mxu0
  %v295 = vadd.f32 %v219, %v294
  %v296 = vpop.f32.mrf.mxu0
  %v297 = vadd.f32 %v221, %v296
  %298 = vmatmul.bf16.gmra.mxu0 %v252
  %v299 = vpop.f32.mrf.mxu0
  %v300 = vadd.f32 %v224, %v299
  %v301 = vpop.f32.mrf.mxu0
  %v302 = vadd.f32 %v226, %v301
  %303 = vmatmul.bf16.gmra.mxu0 %v255
  %v304 = vpop.f32.mrf.mxu0
  %v305 = vadd.f32 %v229, %v304
  %v306 = vpop.f32.mrf.mxu0
  %v307 = vadd.f32 %v231, %v306
  %308 = vdwg.mxu0
  %v311 = vunpack.c.l.b16 %v115
  %v312 = vunpack.c.l.b16 %v123
  %v313 = vpack.c.b16 %v311, %v144
  %v314 = vpack.c.b16 %v312, %v150
  %v316 = vsel %vm158, %v313, 0
  %v319 = vsel %vm158, %v314, 0
  %v322 = vsel %vm180, %v103, 0
  %324 = vmatpush.bf16.msra.mxu0 0
  %325 = vmatpush.bf16.msra.mxu0 0
  %326 = vmatpush.bf16.msra.mxu0 0
  %327 = vmatpush.bf16.msra.mxu0 0
  %328 = vmatpush.bf16.msra.mxu0 0
  %329 = vmatpush.bf16.msra.mxu0 0
  %330 = vmatpush.bf16.msra.mxu0 0
  %331 = vmatpush.bf16.msra.mxu0 %v322
  %332 = vmatmul.bf16.gmra.mxu0 %v240
  %v333 = vpop.f32.mrf.mxu0
  %v334 = vadd.f32 0.0, %v333
  %v335 = vpop.f32.mrf.mxu0
  %v336 = vadd.f32 0.0, %v335
  %337 = vmatmul.bf16.gmra.mxu0 %v243
  %v338 = vpop.f32.mrf.mxu0
  %v339 = vadd.f32 0.0, %v338
  %v340 = vpop.f32.mrf.mxu0
  %v341 = vadd.f32 0.0, %v340
  %342 = vmatmul.bf16.gmra.mxu0 %v246
  %v343 = vpop.f32.mrf.mxu0
  %v344 = vadd.f32 0.0, %v343
  %v345 = vpop.f32.mrf.mxu0
  %v346 = vadd.f32 0.0, %v345
  %347 = vmatmul.bf16.gmra.mxu0 %v316
  %v348 = vpop.f32.mrf.mxu0
  %v349 = vadd.f32 0.0, %v348
  %v350 = vpop.f32.mrf.mxu0
  %v351 = vadd.f32 0.0, %v350
  %352 = vmatmul.bf16.gmra.mxu0 %v249
  %v353 = vpop.f32.mrf.mxu0
  %v354 = vadd.f32 0.0, %v353
  %v355 = vpop.f32.mrf.mxu0
  %v356 = vadd.f32 0.0, %v355
  %357 = vmatmul.bf16.gmra.mxu0 %v252
  %v358 = vpop.f32.mrf.mxu0
  %v359 = vadd.f32 0.0, %v358
  %v360 = vpop.f32.mrf.mxu0
  %v361 = vadd.f32 0.0, %v360
  %362 = vmatmul.bf16.gmra.mxu0 %v255
  %v363 = vpop.f32.mrf.mxu0
  %v364 = vadd.f32 0.0, %v363
  %v365 = vpop.f32.mrf.mxu0
  %v366 = vadd.f32 0.0, %v365
  %367 = vmatmul.bf16.gmra.mxu0 %v319
  %v368 = vpop.f32.mrf.mxu0
  %v369 = vadd.f32 0.0, %v368
  %v370 = vpop.f32.mrf.mxu0
  %v371 = vadd.f32 0.0, %v370
  %372 = vdwg.mxu0
  %v373 = vadd.f32 %v270, %v334
  %v374 = vadd.f32 %v272, %v336
  %v375 = vadd.f32 %v275, %v339
  %v376 = vadd.f32 %v277, %v341
  %v377 = vadd.f32 %v280, %v344
  %v378 = vadd.f32 %v282, %v346
  %v379 = vadd.f32 %v285, %v349
  %v380 = vadd.f32 %v287, %v351
  %v381 = vadd.f32 %v290, %v354
  %v382 = vadd.f32 %v292, %v356
  %v383 = vadd.f32 %v295, %v359
  %v384 = vadd.f32 %v297, %v361
  %v385 = vadd.f32 %v300, %v364
  %v386 = vadd.f32 %v302, %v366
  %v387 = vadd.f32 %v305, %v369
  %v388 = vadd.f32 %v307, %v371
  %v391 = vunpack.c.l.b16 %v116
  %v392 = vunpack.c.l.b16 %v124
  %v393 = vpack.c.b16 %v391, %v311
  %v394 = vpack.c.b16 %v392, %v312
  %v396 = vsel %vm158, %v393, 0
  %v399 = vsel %vm158, %v394, 0
  %v402 = vsel %vm180, %v104, 0
  %404 = vmatpush.bf16.msra.mxu0 0
  %405 = vmatpush.bf16.msra.mxu0 0
  %406 = vmatpush.bf16.msra.mxu0 0
  %407 = vmatpush.bf16.msra.mxu0 0
  %408 = vmatpush.bf16.msra.mxu0 0
  %409 = vmatpush.bf16.msra.mxu0 0
  %410 = vmatpush.bf16.msra.mxu0 0
  %411 = vmatpush.bf16.msra.mxu0 %v402
  %412 = vmatmul.bf16.gmra.mxu0 %v163
  %v413 = vpop.f32.mrf.mxu0
  %v414 = vadd.f32 0.0, %v413
  %v415 = vpop.f32.mrf.mxu0
  %v416 = vadd.f32 0.0, %v415
  %417 = vmatmul.bf16.gmra.mxu0 %v166
  %v418 = vpop.f32.mrf.mxu0
  %v419 = vadd.f32 0.0, %v418
  %v420 = vpop.f32.mrf.mxu0
  %v421 = vadd.f32 0.0, %v420
  %422 = vmatmul.bf16.gmra.mxu0 %v169
  %v423 = vpop.f32.mrf.mxu0
  %v424 = vadd.f32 0.0, %v423
  %v425 = vpop.f32.mrf.mxu0
  %v426 = vadd.f32 0.0, %v425
  %427 = vmatmul.bf16.gmra.mxu0 %v396
  %v428 = vpop.f32.mrf.mxu0
  %v429 = vadd.f32 0.0, %v428
  %v430 = vpop.f32.mrf.mxu0
  %v431 = vadd.f32 0.0, %v430
  %432 = vmatmul.bf16.gmra.mxu0 %v172
  %v433 = vpop.f32.mrf.mxu0
  %v434 = vadd.f32 0.0, %v433
  %v435 = vpop.f32.mrf.mxu0
  %v436 = vadd.f32 0.0, %v435
  %437 = vmatmul.bf16.gmra.mxu0 %v175
  %v438 = vpop.f32.mrf.mxu0
  %v439 = vadd.f32 0.0, %v438
  %v440 = vpop.f32.mrf.mxu0
  %v441 = vadd.f32 0.0, %v440
  %442 = vmatmul.bf16.gmra.mxu0 %v178
  %v443 = vpop.f32.mrf.mxu0
  %v444 = vadd.f32 0.0, %v443
  %v445 = vpop.f32.mrf.mxu0
  %v446 = vadd.f32 0.0, %v445
  %447 = vmatmul.bf16.gmra.mxu0 %v399
  %v448 = vpop.f32.mrf.mxu0
  %v449 = vadd.f32 0.0, %v448
  %v450 = vpop.f32.mrf.mxu0
  %v451 = vadd.f32 0.0, %v450
  %452 = vdwg.mxu0
  %v453 = vadd.f32 %v373, %v414
  %v454 = vadd.f32 %v374, %v416
  %v455 = vadd.f32 %v375, %v419
  %v456 = vadd.f32 %v376, %v421
  %v457 = vadd.f32 %v377, %v424
  %v458 = vadd.f32 %v378, %v426
  %v459 = vadd.f32 %v379, %v429
  %v460 = vadd.f32 %v380, %v431
  %v461 = vadd.f32 %v381, %v434
  %v462 = vadd.f32 %v382, %v436
  %v463 = vadd.f32 %v383, %v439
  %v464 = vadd.f32 %v384, %v441
  %v465 = vadd.f32 %v385, %v444
  %v466 = vadd.f32 %v386, %v446
  %v467 = vadd.f32 %v387, %v449
  %v468 = vadd.f32 %v388, %v451
  %v469 = vpack.c.b16 %v138, %v391
  %v470 = vpack.c.b16 %v138, %v392
  %v472 = vsel %vm158, %v469, 0
  %v475 = vsel %vm158, %v470, 0
  %v478 = vsel %vm180, %v105, 0
  %480 = vmatpush.bf16.msra.mxu0 0
  %481 = vmatpush.bf16.msra.mxu0 0
  %482 = vmatpush.bf16.msra.mxu0 0
  %483 = vmatpush.bf16.msra.mxu0 0
  %484 = vmatpush.bf16.msra.mxu0 0
  %485 = vmatpush.bf16.msra.mxu0 0
  %486 = vmatpush.bf16.msra.mxu0 0
  %487 = vmatpush.bf16.msra.mxu0 %v478
  %488 = vmatmul.bf16.gmra.mxu0 %v243
  %v489 = vpop.f32.mrf.mxu0
  %v490 = vadd.f32 0.0, %v489
  %v491 = vpop.f32.mrf.mxu0
  %v492 = vadd.f32 0.0, %v491
  %493 = vmatmul.bf16.gmra.mxu0 %v246
  %v494 = vpop.f32.mrf.mxu0
  %v495 = vadd.f32 0.0, %v494
  %v496 = vpop.f32.mrf.mxu0
  %v497 = vadd.f32 0.0, %v496
  %498 = vmatmul.bf16.gmra.mxu0 %v316
  %v499 = vpop.f32.mrf.mxu0
  %v500 = vadd.f32 0.0, %v499
  %v501 = vpop.f32.mrf.mxu0
  %v502 = vadd.f32 0.0, %v501
  %503 = vmatmul.bf16.gmra.mxu0 %v472
  %v504 = vpop.f32.mrf.mxu0
  %v505 = vadd.f32 0.0, %v504
  %v506 = vpop.f32.mrf.mxu0
  %v507 = vadd.f32 0.0, %v506
  %508 = vmatmul.bf16.gmra.mxu0 %v252
  %v509 = vpop.f32.mrf.mxu0
  %v510 = vadd.f32 0.0, %v509
  %v511 = vpop.f32.mrf.mxu0
  %v512 = vadd.f32 0.0, %v511
  %513 = vmatmul.bf16.gmra.mxu0 %v255
  %v514 = vpop.f32.mrf.mxu0
  %v515 = vadd.f32 0.0, %v514
  %v516 = vpop.f32.mrf.mxu0
  %v517 = vadd.f32 0.0, %v516
  %518 = vmatmul.bf16.gmra.mxu0 %v319
  %v519 = vpop.f32.mrf.mxu0
  %v520 = vadd.f32 0.0, %v519
  %v521 = vpop.f32.mrf.mxu0
  %v522 = vadd.f32 0.0, %v521
  %523 = vmatmul.bf16.gmra.mxu0 %v475
  %v524 = vpop.f32.mrf.mxu0
  %v525 = vadd.f32 0.0, %v524
  %v526 = vpop.f32.mrf.mxu0
  %v527 = vadd.f32 0.0, %v526
  %528 = vdwg.mxu0
  %v529 = vadd.f32 %v453, %v490
  %v530 = vadd.f32 %v454, %v492
  %v531 = vadd.f32 %v455, %v495
  %v532 = vadd.f32 %v456, %v497
  %v533 = vadd.f32 %v457, %v500
  %v534 = vadd.f32 %v458, %v502
  %v535 = vadd.f32 %v459, %v505
  %v536 = vadd.f32 %v460, %v507
  %v537 = vadd.f32 %v461, %v510
  %v538 = vadd.f32 %v462, %v512
  %v539 = vadd.f32 %v463, %v515
  %v540 = vadd.f32 %v464, %v517
  %v541 = vadd.f32 %v465, %v520
  %v542 = vadd.f32 %v466, %v522
  %v543 = vadd.f32 %v467, %v525
  %v544 = vadd.f32 %v468, %v527
  %v546 = vsel %vm180, %v106, 0
  %548 = vmatpush.bf16.msra.mxu0 0
  %549 = vmatpush.bf16.msra.mxu0 0
  %550 = vmatpush.bf16.msra.mxu0 0
  %551 = vmatpush.bf16.msra.mxu0 0
  %552 = vmatpush.bf16.msra.mxu0 0
  %553 = vmatpush.bf16.msra.mxu0 0
  %554 = vmatpush.bf16.msra.mxu0 0
  %555 = vmatpush.bf16.msra.mxu0 %v546
  %556 = vmatmul.bf16.gmra.mxu0 %v166
  %v557 = vpop.f32.mrf.mxu0
  %v558 = vadd.f32 0.0, %v557
  %v559 = vpop.f32.mrf.mxu0
  %v560 = vadd.f32 0.0, %v559
  %561 = vmatmul.bf16.gmra.mxu0 %v169
  %v562 = vpop.f32.mrf.mxu0
  %v563 = vadd.f32 0.0, %v562
  %v564 = vpop.f32.mrf.mxu0
  %v565 = vadd.f32 0.0, %v564
  %566 = vmatmul.bf16.gmra.mxu0 %v396
  %v567 = vpop.f32.mrf.mxu0
  %v568 = vadd.f32 0.0, %v567
  %v569 = vpop.f32.mrf.mxu0
  %v570 = vadd.f32 0.0, %v569
  %571 = vmatmul.bf16.gmra.mxu0 %v160
  %v572 = vpop.f32.mrf.mxu0
  %v573 = vadd.f32 0.0, %v572
  %v574 = vpop.f32.mrf.mxu0
  %v575 = vadd.f32 0.0, %v574
  %576 = vmatmul.bf16.gmra.mxu0 %v175
  %v577 = vpop.f32.mrf.mxu0
  %v578 = vadd.f32 0.0, %v577
  %v579 = vpop.f32.mrf.mxu0
  %v580 = vadd.f32 0.0, %v579
  %581 = vmatmul.bf16.gmra.mxu0 %v178
  %v582 = vpop.f32.mrf.mxu0
  %v583 = vadd.f32 0.0, %v582
  %v584 = vpop.f32.mrf.mxu0
  %v585 = vadd.f32 0.0, %v584
  %586 = vmatmul.bf16.gmra.mxu0 %v399
  %v587 = vpop.f32.mrf.mxu0
  %v588 = vadd.f32 0.0, %v587
  %v589 = vpop.f32.mrf.mxu0
  %v590 = vadd.f32 0.0, %v589
  %591 = vmatmul.bf16.gmra.mxu0 %v160
  %v592 = vpop.f32.mrf.mxu0
  %v593 = vadd.f32 0.0, %v592
  %v594 = vpop.f32.mrf.mxu0
  %v595 = vadd.f32 0.0, %v594
  %596 = vdwg.mxu0
  %v597 = vadd.f32 %v529, %v558
  %v598 = vadd.f32 %v530, %v560
  %v599 = vadd.f32 %v531, %v563
  %v600 = vadd.f32 %v532, %v565
  %v601 = vadd.f32 %v533, %v568
  %v602 = vadd.f32 %v534, %v570
  %v603 = vadd.f32 %v535, %v573
  %v604 = vadd.f32 %v536, %v575
  %v605 = vadd.f32 %v537, %v578
  %v606 = vadd.f32 %v538, %v580
  %v607 = vadd.f32 %v539, %v583
  %v608 = vadd.f32 %v540, %v585
  %v609 = vadd.f32 %v541, %v588
  %v610 = vadd.f32 %v542, %v590
  %v611 = vadd.f32 %v543, %v593
  %v612 = vadd.f32 %v544, %v595
  %v614 = vsel %vm180, %v107, 0
  %616 = vmatpush.bf16.msra.mxu0 0
  %617 = vmatpush.bf16.msra.mxu0 0
  %618 = vmatpush.bf16.msra.mxu0 0
  %619 = vmatpush.bf16.msra.mxu0 0
  %620 = vmatpush.bf16.msra.mxu0 0
  %621 = vmatpush.bf16.msra.mxu0 0
  %622 = vmatpush.bf16.msra.mxu0 0
  %623 = vmatpush.bf16.msra.mxu0 %v614
  %624 = vmatmul.bf16.gmra.mxu0 %v246
  %v625 = vpop.f32.mrf.mxu0
  %v626 = vadd.f32 0.0, %v625
  %v627 = vpop.f32.mrf.mxu0
  %v628 = vadd.f32 0.0, %v627
  %629 = vmatmul.bf16.gmra.mxu0 %v316
  %v630 = vpop.f32.mrf.mxu0
  %v631 = vadd.f32 0.0, %v630
  %v632 = vpop.f32.mrf.mxu0
  %v633 = vadd.f32 0.0, %v632
  %634 = vmatmul.bf16.gmra.mxu0 %v472
  %v635 = vpop.f32.mrf.mxu0
  %v636 = vadd.f32 0.0, %v635
  %v637 = vpop.f32.mrf.mxu0
  %v638 = vadd.f32 0.0, %v637
  %639 = vmatmul.bf16.gmra.mxu0 %v160
  %v640 = vpop.f32.mrf.mxu0
  %v641 = vadd.f32 0.0, %v640
  %v642 = vpop.f32.mrf.mxu0
  %v643 = vadd.f32 0.0, %v642
  %644 = vmatmul.bf16.gmra.mxu0 %v255
  %v645 = vpop.f32.mrf.mxu0
  %v646 = vadd.f32 0.0, %v645
  %v647 = vpop.f32.mrf.mxu0
  %v648 = vadd.f32 0.0, %v647
  %649 = vmatmul.bf16.gmra.mxu0 %v319
  %v650 = vpop.f32.mrf.mxu0
  %v651 = vadd.f32 0.0, %v650
  %v652 = vpop.f32.mrf.mxu0
  %v653 = vadd.f32 0.0, %v652
  %654 = vmatmul.bf16.gmra.mxu0 %v475
  %v655 = vpop.f32.mrf.mxu0
  %v656 = vadd.f32 0.0, %v655
  %v657 = vpop.f32.mrf.mxu0
  %v658 = vadd.f32 0.0, %v657
  %659 = vmatmul.bf16.gmra.mxu0 %v160
  %v660 = vpop.f32.mrf.mxu0
  %v661 = vadd.f32 0.0, %v660
  %v662 = vpop.f32.mrf.mxu0
  %v663 = vadd.f32 0.0, %v662
  %664 = vdwg.mxu0
  %v665 = vadd.f32 %v597, %v626
  %v666 = vadd.f32 %v598, %v628
  %v667 = vadd.f32 %v599, %v631
  %v668 = vadd.f32 %v600, %v633
  %v669 = vadd.f32 %v601, %v636
  %v670 = vadd.f32 %v602, %v638
  %v671 = vadd.f32 %v603, %v641
  %v672 = vadd.f32 %v604, %v643
  %v673 = vadd.f32 %v605, %v646
  %v674 = vadd.f32 %v606, %v648
  %v675 = vadd.f32 %v607, %v651
  %v676 = vadd.f32 %v608, %v653
  %v677 = vadd.f32 %v609, %v656
  %v678 = vadd.f32 %v610, %v658
  %v679 = vadd.f32 %v611, %v661
  %v680 = vadd.f32 %v612, %v663
  %v681 = vpack.c.bf16 %v665, %v665
  %v682 = vpack.c.bf16 %v666, %v666
  %v683 = vpack.c.bf16 %v667, %v667
  %v684 = vpack.c.bf16 %v668, %v668
  %v685 = vpack.c.bf16 %v669, %v669
  %v686 = vpack.c.bf16 %v670, %v670
  %v687 = vpack.c.bf16 %v671, %v671
  %v688 = vpack.c.bf16 %v672, %v672
  %v689 = vpack.c.bf16 %v673, %v673
  %v690 = vpack.c.bf16 %v674, %v674
  %v691 = vpack.c.bf16 %v675, %v675
  %v692 = vpack.c.bf16 %v676, %v676
  %v693 = vpack.c.bf16 %v677, %v677
  %v694 = vpack.c.bf16 %v678, %v678
  %v695 = vpack.c.bf16 %v679, %v679
  %v696 = vpack.c.bf16 %v680, %v680
  %vm697 = vcmask 60416
  %698 = vst.msk [vmem:[%s3] sm:$0xf] %vm697, %v681
  %699 = vst.msk [vmem:[%s3 + $0x4] sm:$0xf] %vm697, %v682
  %700 = vst.msk [vmem:[%s3 + $0x8] sm:$0xf] %vm697, %v683
  %701 = vst.msk [vmem:[%s3 + $0xc] sm:$0xf] %vm697, %v684
  %702 = vst.msk [vmem:[%s3 + $0x10] sm:$0xf] %vm697, %v685
  %703 = vst.msk [vmem:[%s3 + $0x14] sm:$0xf] %vm697, %v686
  %704 = vst.msk [vmem:[%s3 + $0x18] sm:$0xf] %vm697, %v687
  %705 = vst.msk [vmem:[%s3 + $0x1c] sm:$0xf] %vm697, %v688
  %706 = vst.msk [vmem:[%s3 + $0x20] sm:$0xf] %vm697, %v689
  %707 = vst.msk [vmem:[%s3 + $0x24] sm:$0xf] %vm697, %v690
  %708 = vst.msk [vmem:[%s3 + $0x28] sm:$0xf] %vm697, %v691
  %709 = vst.msk [vmem:[%s3 + $0x2c] sm:$0xf] %vm697, %v692
  %710 = vst.msk [vmem:[%s3 + $0x30] sm:$0xf] %vm697, %v693
  %711 = vst.msk [vmem:[%s3 + $0x34] sm:$0xf] %vm697, %v694
  %712 = vst.msk [vmem:[%s3 + $0x38] sm:$0xf] %vm697, %v695
  %713 = vst.msk [vmem:[%s3 + $0x3c] sm:$0xf] %vm697, %v696
  %v714 = vsel %vm158, %v665, 0.0
  %v715 = vsel %vm158, %v666, 0.0
  %v716 = vadd.f32 %v714, %v715
  %v717 = vsel %vm158, %v667, 0.0
  %v718 = vadd.f32 %v716, %v717
  %v719 = vsel %vm158, %v668, 0.0
  %v720 = vadd.f32 %v718, %v719
  %v721 = vsel %vm158, %v669, 0.0
  %v722 = vadd.f32 %v720, %v721
  %v723 = vsel %vm158, %v670, 0.0
  %v724 = vadd.f32 %v722, %v723
  %v725 = vsel %vm158, %v671, 0.0
  %v726 = vadd.f32 %v724, %v725
  %v727 = vsel %vm158, %v672, 0.0
  %v728 = vadd.f32 %v726, %v727
  %v729 = vsel %vm158, %v673, 0.0
  %v730 = vadd.f32 %v728, %v729
  %v731 = vsel %vm158, %v674, 0.0
  %v732 = vadd.f32 %v730, %v731
  %v733 = vsel %vm158, %v675, 0.0
  %v734 = vadd.f32 %v732, %v733
  %v735 = vsel %vm158, %v676, 0.0
  %v736 = vadd.f32 %v734, %v735
  %v737 = vsel %vm158, %v677, 0.0
  %v738 = vadd.f32 %v736, %v737
  %v739 = vsel %vm158, %v678, 0.0
  %v740 = vadd.f32 %v738, %v739
  %v741 = vsel %vm158, %v679, 0.0
  %v742 = vadd.f32 %v740, %v741
  %v743 = vsel %vm158, %v680, 0.0
  %v744 = vadd.f32 %v742, %v743
  %v745 = vrot.slane %v744, 4
  %v746 = vadd.f32 %v744, %v745
  %v747 = vrot.slane %v746, 2
  %v748 = vadd.f32 %v746, %v747
  %v749 = vrot.slane %v748, 1
  %v750 = vadd.f32 %v748, %v749
  %v751 = vmul.f32 %v665, %v665
  %v752 = vmul.f32 %v666, %v666
  %v753 = vmul.f32 %v667, %v667
  %v754 = vmul.f32 %v668, %v668
  %v755 = vmul.f32 %v669, %v669
  %v756 = vmul.f32 %v670, %v670
  %v757 = vmul.f32 %v671, %v671
  %v758 = vmul.f32 %v672, %v672
  %v759 = vmul.f32 %v673, %v673
  %v760 = vmul.f32 %v674, %v674
  %v761 = vmul.f32 %v675, %v675
  %v762 = vmul.f32 %v676, %v676
  %v763 = vmul.f32 %v677, %v677
  %v764 = vmul.f32 %v678, %v678
  %v765 = vmul.f32 %v679, %v679
  %v766 = vmul.f32 %v680, %v680
  %v767 = vsel %vm158, %v751, 0.0
  %v768 = vsel %vm158, %v752, 0.0
  %v769 = vadd.f32 %v767, %v768
  %v770 = vsel %vm158, %v753, 0.0
  %v771 = vadd.f32 %v769, %v770
  %v772 = vsel %vm158, %v754, 0.0
  %v773 = vadd.f32 %v771, %v772
  %v774 = vsel %vm158, %v755, 0.0
  %v775 = vadd.f32 %v773, %v774
  %v776 = vsel %vm158, %v756, 0.0
  %v777 = vadd.f32 %v775, %v776
  %v778 = vsel %vm158, %v757, 0.0
  %v779 = vadd.f32 %v777, %v778
  %v780 = vsel %vm158, %v758, 0.0
  %v781 = vadd.f32 %v779, %v780
  %v782 = vsel %vm158, %v759, 0.0
  %v783 = vadd.f32 %v781, %v782
  %v784 = vsel %vm158, %v760, 0.0
  %v785 = vadd.f32 %v783, %v784
  %v786 = vsel %vm158, %v761, 0.0
  %v787 = vadd.f32 %v785, %v786
  %v788 = vsel %vm158, %v762, 0.0
  %v789 = vadd.f32 %v787, %v788
  %v790 = vsel %vm158, %v763, 0.0
  %v791 = vadd.f32 %v789, %v790
  %v792 = vsel %vm158, %v764, 0.0
  %v793 = vadd.f32 %v791, %v792
  %v794 = vsel %vm158, %v765, 0.0
  %v795 = vadd.f32 %v793, %v794
  %v796 = vsel %vm158, %v766, 0.0
  %v797 = vadd.f32 %v795, %v796
  %v798 = vrot.slane %v797, 4
  %v799 = vadd.f32 %v797, %v798
  %v800 = vrot.slane %v799, 2
  %v801 = vadd.f32 %v799, %v800
  %v802 = vrot.slane %v801, 1
  %v803 = vadd.f32 %v801, %v802
  %vm804 = vcmask 1040384
  %v805 = vsel %vm804, %v750, %v803
  %vm806 = vcmask 58368
  %807 = vst.msk [vmem:[%s4] sm:$0x3] %vm806, %v805
  // Predicated region
  $region14: #{inception_c_forward.11} parent=0 // pred_check
    _
  $region15: #{inception_c_forward.11} parent=0 // pred_check_branch
    %809 = sbr.rel (0) target = $region17
  $region16: #{inception_c_forward.11} parent=0 // pred_region
    _
  $region17: #{inception_c_forward.11} parent=0 // pred_fallthru
    _
  // Predicated region
  $region18: #{inception_c_forward.11} parent=0 // pred_check
    _
  $region19: #{inception_c_forward.11} parent=0 // pred_check_branch
    %811 = sbr.rel (0) target = $region21
  $region20: #{inception_c_forward.11} parent=0 // pred_region
    _
  $region21: #{inception_c_forward.11} parent=0 // pred_fallthru
    _
  // Predicated region
  $region22: #{inception_c_forward.11} parent=0 // pred_check
    _
  $region23: #{inception_c_forward.11} parent=0 // pred_check_branch
    %813 = sbr.rel (0) target = $region25
  $region24: #{inception_c_forward.11} parent=0 // pred_region
    _
  $region25: #{inception_c_forward.11} parent=0 // pred_fallthru
    _
  // Predicated region
  $region26: #{inception_c_forward.11} parent=0 // pred_check
    _
  $region27: #{inception_c_forward.11} parent=0 // pred_check_branch
    %815 = sbr.rel (0) target = $region29
  $region28: #{inception_c_forward.11} parent=0 // pred_region
    _
  $region29: #{inception_c_forward.11} parent=0 // pred_fallthru
    _

// kernel: inception_c_forward.10
$region0: #{inception_c_forward.10}
  #allocation0 [shape = 'u32[]', space=smem, size = 0x4, offset = 0x4, fixed_abs, tag = 'smem constant byte address 0x4 - core index']
  #allocation1 [shape = 'u32[72,128]{1,0:T(1,128)}', space=vmem, size = 0x9000, scoped, tag = 'internal scratch']
  %s0 = inlined_call_operand.vmem [shape: bf16[2,8,8,8], index: 0, kind: input, shape index: {}]
  %s1 = inlined_call_operand.vmem [shape: f32[2,8], index: 1, kind: input, shape index: {}]
  %s2 = inlined_call_operand.vmem [shape: bf16[7,8,192], index: 2, kind: input, shape index: {}]
  %s3 = inlined_call_operand.vmem [shape: bf16[2,8,8,192], index: 3, kind: output, shape index: {0}]
  %s4 = inlined_call_operand.vmem [shape: f32[1,2,192], index: 4, kind: output, shape index: {1}]
  %5 = xla_tuple %s3, %s4
  %s6 = sld [smem:[#allocation0]]
  $region30: #{inception_c_forward.10} parent=0
    _
  %s8 = ssub.s32 1, %s6
  %s9 = scalar_select 0, %s8, %s6
  // Predicated region
  $region2: #{inception_c_forward.10} parent=0 // pred_check
    _
  $region3: #{inception_c_forward.10} parent=0 // pred_check_branch
    %11 = sbr.rel (0) target = $region5
  $region4: #{inception_c_forward.10} parent=0 // pred_region
    _
  $region5: #{inception_c_forward.10} parent=0 // pred_fallthru
    _
  // Predicated region
  $region6: #{inception_c_forward.10} parent=0 // pred_check
    _
  $region7: #{inception_c_forward.10} parent=0 // pred_check_branch
    %13 = sbr.rel (0) target = $region9
  $region8: #{inception_c_forward.10} parent=0 // pred_region
    _
  $region9: #{inception_c_forward.10} parent=0 // pred_fallthru
    _
  // Predicated region
  $region10: #{inception_c_forward.10} parent=0 // pred_check
    _
  $region11: #{inception_c_forward.10} parent=0 // pred_check_branch
    %15 = sbr.rel (0) target = $region13
  $region12: #{inception_c_forward.10} parent=0 // pred_region
    _
  $region13: #{inception_c_forward.10} parent=0 // pred_fallthru
    _
  %v17 = vld [vmem:[%s0] sm:$0xf]
  %v18 = vld [vmem:[%s0 + $0x4] sm:$0xf]
  %v19 = vld [vmem:[%s0 + $0x8] sm:$0xf]
  %v20 = vld [vmem:[%s0 + $0xc] sm:$0xf]
  %v21 = vld [vmem:[%s0 + $0x10] sm:$0xf]
  %v22 = vld [vmem:[%s0 + $0x14] sm:$0xf]
  %v23 = vld [vmem:[%s0 + $0x18] sm:$0xf]
  %v24 = vld [vmem:[%s0 + $0x1c] sm:$0xf]
  %v25 = vld [vmem:[%s0 + $0x20] sm:$0xf]
  %v26 = vld [vmem:[%s0 + $0x24] sm:$0xf]
  %v27 = vld [vmem:[%s0 + $0x28] sm:$0xf]
  %v28 = vld [vmem:[%s0 + $0x2c] sm:$0xf]
  %v29 = vld [vmem:[%s0 + $0x30] sm:$0xf]
  %v30 = vld [vmem:[%s0 + $0x34] sm:$0xf]
  %v31 = vld [vmem:[%s0 + $0x38] sm:$0xf]
  %v32 = vld [vmem:[%s0 + $0x3c] sm:$0xf]
  %v33 = vunpack.c.l.bf16 %v17
  %v34 = vunpack.c.l.bf16 %v18
  %v35 = vunpack.c.l.bf16 %v19
  %v36 = vunpack.c.l.bf16 %v20
  %v37 = vunpack.c.l.bf16 %v21
  %v38 = vunpack.c.l.bf16 %v22
  %v39 = vunpack.c.l.bf16 %v23
  %v40 = vunpack.c.l.bf16 %v24
  %v41 = vunpack.c.l.bf16 %v25
  %v42 = vunpack.c.l.bf16 %v26
  %v43 = vunpack.c.l.bf16 %v27
  %v44 = vunpack.c.l.bf16 %v28
  %v45 = vunpack.c.l.bf16 %v29
  %v46 = vunpack.c.l.bf16 %v30
  %v47 = vunpack.c.l.bf16 %v31
  %v48 = vunpack.c.l.bf16 %v32
  %v49 = vld [vmem:[%s1] sm:$0x1]
  %v50 = vperm.slane %v49, 0
  %v51 = vmul.f32 %v33, %v50
  %v52 = vmul.f32 %v34, %v50
  %v53 = vmul.f32 %v35, %v50
  %v54 = vmul.f32 %v36, %v50
  %v55 = vmul.f32 %v37, %v50
  %v56 = vmul.f32 %v38, %v50
  %v57 = vmul.f32 %v39, %v50
  %v58 = vmul.f32 %v40, %v50
  %v59 = vmul.f32 %v41, %v50
  %v60 = vmul.f32 %v42, %v50
  %v61 = vmul.f32 %v43, %v50
  %v62 = vmul.f32 %v44, %v50
  %v63 = vmul.f32 %v45, %v50
  %v64 = vmul.f32 %v46, %v50
  %v65 = vmul.f32 %v47, %v50
  %v66 = vmul.f32 %v48, %v50
  %v67 = vld [vmem:[%s1 + $0x1] sm:$0x1]
  %v68 = vperm.slane %v67, 0
  %v69 = vadd.f32 %v51, %v68
  %v70 = vadd.f32 %v52, %v68
  %v71 = vadd.f32 %v53, %v68
  %v72 = vadd.f32 %v54, %v68
  %v73 = vadd.f32 %v55, %v68
  %v74 = vadd.f32 %v56, %v68
  %v75 = vadd.f32 %v57, %v68
  %v76 = vadd.f32 %v58, %v68
  %v77 = vadd.f32 %v59, %v68
  %v78 = vadd.f32 %v60, %v68
  %v79 = vadd.f32 %v61, %v68
  %v80 = vadd.f32 %v62, %v68
  %v81 = vadd.f32 %v63, %v68
  %v82 = vadd.f32 %v64, %v68
  %v83 = vadd.f32 %v65, %v68
  %v84 = vadd.f32 %v66, %v68
  %v85 = vmax.f32 %v69, 0.0
  %v86 = vmax.f32 %v70, 0.0
  %v87 = vmax.f32 %v71, 0.0
  %v88 = vmax.f32 %v72, 0.0
  %v89 = vmax.f32 %v73, 0.0
  %v90 = vmax.f32 %v74, 0.0
  %v91 = vmax.f32 %v75, 0.0
  %v92 = vmax.f32 %v76, 0.0
  %v93 = vmax.f32 %v77, 0.0
  %v94 = vmax.f32 %v78, 0.0
  %v95 = vmax.f32 %v79, 0.0
  %v96 = vmax.f32 %v80, 0.0
  %v97 = vmax.f32 %v81, 0.0
  %v98 = vmax.f32 %v82, 0.0
  %v99 = vmax.f32 %v83, 0.0
  %v100 = vmax.f32 %v84, 0.0
  %v101 = vld [vmem:[%s2] sm:$0xff]
  %v102 = vld [vmem:[%s2 + $0x8] sm:$0xff]
  %v103 = vld [vmem:[%s2 + $0x10] sm:$0xff]
  %v104 = vld [vmem:[%s2 + $0x18] sm:$0xff]
  %v105 = vld [vmem:[%s2 + $0x20] sm:$0xff]
  %v106 = vld [vmem:[%s2 + $0x28] sm:$0xff]
  %v107 = vld [vmem:[%s2 + $0x30] sm:$0xff]
  %v108 = vpack.c.bf16 0.0, 0.0
  %v109 = vpack.c.bf16 %v85, %v85
  %v110 = vpack.c.bf16 %v86, %v86
  %v111 = vpack.c.bf16 %v87, %v87
  %v112 = vpack.c.bf16 %v88, %v88
  %v113 = vpack.c.bf16 %v89, %v89
  %v114 = vpack.c.bf16 %v90, %v90
  %v115 = vpack.c.bf16 %v91, %v91
  %v116 = vpack.c.bf16 %v92, %v92
  %v117 = vpack.c.bf16 %v93, %v93
  %v118 = vpack.c.bf16 %v94, %v94
  %v119 = vpack.c.bf16 %v95, %v95
  %v120 = vpack.c.bf16 %v96, %v96
  %v121 = vpack.c.bf16 %v97, %v97
  %v122 = vpack.c.bf16 %v98, %v98
  %v123 = vpack.c.bf16 %v99, %v99
  %v124 = vpack.c.bf16 %v100, %v100
  %v138 = vunpack.c.l.b16 %v108
  %v139 = vunpack.c.l.b16 %v109
  %v140 = vunpack.c.l.b16 %v110
  %v141 = vunpack.c.l.b16 %v111
  %v142 = vunpack.c.l.b16 %v112
  %v143 = vunpack.c.l.b16 %v113
  %v144 = vunpack.c.l.b16 %v114
  %v145 = vunpack.c.l.b16 %v117
  %v146 = vunpack.c.l.b16 %v118
  %v147 = vunpack.c.l.b16 %v119
  %v148 = vunpack.c.l.b16 %v120
  %v149 = vunpack.c.l.b16 %v121
  %v150 = vunpack.c.l.b16 %v122
  %v151 = vpack.c.b16 %v138, %v138
  %v152 = vpack.c.b16 %v140, %v139
  %v153 = vpack.c.b16 %v142, %v141
  %v154 = vpack.c.b16 %v144, %v143
  %v155 = vpack.c.b16 %v146, %v145
  %v156 = vpack.c.b16 %v148, %v147
  %v157 = vpack.c.b16 %v150, %v149
  %v159 = vunpack.c.l.b16 %v102
  %v160 = vunpack.c.h.b16 %v102
  %v161 = vpack.c.b16 %v159, %v159
  %v162 = vpack.c.b16 %v160, %v160
  %vm163 = vcmask 64512
  %v165 = vsel %vm163, %v151, 0
  %v168 = vsel %vm163, %v152, 0
  %v171 = vsel %vm163, %v153, 0
  %v174 = vsel %vm163, %v154, 0
  %v177 = vsel %vm163, %v155, 0
  %v180 = vsel %vm163, %v156, 0
  %v183 = vsel %vm163, %v157, 0
  %vm185 = vcmask 1043456
  %v187 = vsel %vm185, %v161, 0
  %v190 = vsel %vm185, %v162, 0
  %192 = vmatpush.bf16.msra.mxu0 0
  %193 = vmatpush.bf16.msra.mxu0 0
  %194 = vmatpush.bf16.msra.mxu0 0
  %195 = vmatpush.bf16.msra.mxu0 0
  %196 = vmatpush.bf16.msra.mxu0 0
  %197 = vmatpush.bf16.msra.mxu0 0
  %198 = vmatpush.bf16.msra.mxu0 0
  %199 = vmatpush.bf16.msra.mxu0 %v187
  %200 = vmatmul.bf16.gmra.mxu0 %v165
  %v201 = vpop.f32.mrf.mxu0
  %v202 = vadd.f32 0.0, %v201
  %v203 = vpop.f32.mrf.mxu0
  %v204 = vadd.f32 0.0, %v203
  %205 = vmatmul.bf16.gmra.mxu0 %v168
  %v206 = vpop.f32.mrf.mxu0
  %v207 = vadd.f32 0.0, %v206
  %v208 = vpop.f32.mrf.mxu0
  %v209 = vadd.f32 0.0, %v208
  %210 = vmatmul.bf16.gmra.mxu0 %v171
  %v211 = vpop.f32.mrf.mxu0
  %v212 = vadd.f32 0.0, %v211
  %v213 = vpop.f32.mrf.mxu0
  %v214 = vadd.f32 0.0, %v213
  %215 = vmatmul.bf16.gmra.mxu0 %v174
  %v216 = vpop.f32.mrf.mxu0
  %v217 = vadd.f32 0.0, %v216
  %v218 = vpop.f32.mrf.mxu0
  %v219 = vadd.f32 0.0, %v218
  %220 = vmatmul.bf16.gmra.mxu0 %v165
  %v221 = vpop.f32.mrf.mxu0
  %v222 = vadd.f32 0.0, %v221
  %v223 = vpop.f32.mrf.mxu0
  %v224 = vadd.f32 0.0, %v223
  %225 = vmatmul.bf16.gmra.mxu0 %v177
  %v226 = vpop.f32.mrf.mxu0
  %v227 = vadd.f32 0.0, %v226
  %v228 = vpop.f32.mrf.mxu0
  %v229 = vadd.f32 0.0, %v228
  %230 = vmatmul.bf16.gmra.mxu0 %v180
  %v231 = vpop.f32.mrf.mxu0
  %v232 = vadd.f32 0.0, %v231
  %v233 = vpop.f32.mrf.mxu0
  %v234 = vadd.f32 0.0, %v233
  %235 = vmatmul.bf16.gmra.mxu0 %v183
  %v236 = vpop.f32.mrf.mxu0
  %v237 = vadd.f32 0.0, %v236
  %v238 = vpop.f32.mrf.mxu0
  %v239 = vadd.f32 0.0, %v238
  %240 = vdwg.mxu0
  %241 = vmatpush.bf16.msra.mxu0 0
  %242 = vmatpush.bf16.msra.mxu0 0
  %243 = vmatpush.bf16.msra.mxu0 0
  %244 = vmatpush.bf16.msra.mxu0 0
  %245 = vmatpush.bf16.msra.mxu0 0
  %246 = vmatpush.bf16.msra.mxu0 0
  %247 = vmatpush.bf16.msra.mxu0 0
  %248 = vmatpush.bf16.msra.mxu0 %v190
  %249 = vmatmul.bf16.gmra.mxu0 %v165
  %v250 = vpop.f32.mrf.mxu0
  %v251 = vadd.f32 0.0, %v250
  %v252 = vpop.f32.mrf.mxu0
  %v253 = vadd.f32 0.0, %v252
  %254 = vmatmul.bf16.gmra.mxu0 %v168
  %v255 = vpop.f32.mrf.mxu0
  %v256 = vadd.f32 0.0, %v255
  %v257 = vpop.f32.mrf.mxu0
  %v258 = vadd.f32 0.0, %v257
  %259 = vmatmul.bf16.gmra.mxu0 %v171
  %v260 = vpop.f32.mrf.mxu0
  %v261 = vadd.f32 0.0, %v260
  %v262 = vpop.f32.mrf.mxu0
  %v263 = vadd.f32 0.0, %v262
  %264 = vmatmul.bf16.gmra.mxu0 %v174
  %v265 = vpop.f32.mrf.mxu0
  %v266 = vadd.f32 0.0, %v265
  %v267 = vpop.f32.mrf.mxu0
  %v268 = vadd.f32 0.0, %v267
  %269 = vmatmul.bf16.gmra.mxu0 %v165
  %v270 = vpop.f32.mrf.mxu0
  %v271 = vadd.f32 0.0, %v270
  %v272 = vpop.f32.mrf.mxu0
  %v273 = vadd.f32 0.0, %v272
  %274 = vmatmul.bf16.gmra.mxu0 %v177
  %v275 = vpop.f32.mrf.mxu0
  %v276 = vadd.f32 0.0, %v275
  %v277 = vpop.f32.mrf.mxu0
  %v278 = vadd.f32 0.0, %v277
  %279 = vmatmul.bf16.gmra.mxu0 %v180
  %v280 = vpop.f32.mrf.mxu0
  %v281 = vadd.f32 0.0, %v280
  %v282 = vpop.f32.mrf.mxu0
  %v283 = vadd.f32 0.0, %v282
  %284 = vmatmul.bf16.gmra.mxu0 %v183
  %v285 = vpop.f32.mrf.mxu0
  %v286 = vadd.f32 0.0, %v285
  %v287 = vpop.f32.mrf.mxu0
  %v288 = vadd.f32 0.0, %v287
  %289 = vdwg.mxu0
  %v290 = vpack.c.b16 %v139, %v138
  %v291 = vpack.c.b16 %v141, %v140
  %v292 = vpack.c.b16 %v143, %v142
  %v293 = vpack.c.b16 %v145, %v138
  %v294 = vpack.c.b16 %v147, %v146
  %v295 = vpack.c.b16 %v149, %v148
  %v297 = vunpack.c.l.b16 %v101
  %v298 = vunpack.c.h.b16 %v101
  %v299 = vpack.c.b16 %v297, %v297
  %v300 = vpack.c.b16 %v298, %v298
  %v302 = vsel %vm163, %v290, 0
  %v305 = vsel %vm163, %v291, 0
  %v308 = vsel %vm163, %v292, 0
  %v311 = vsel %vm163, %v293, 0
  %v314 = vsel %vm163, %v294, 0
  %v317 = vsel %vm163, %v295, 0
  %v320 = vsel %vm185, %v299, 0
  %v323 = vsel %vm185, %v300, 0
  %325 = vmatpush.bf16.msra.mxu0 0
  %326 = vmatpush.bf16.msra.mxu0 0
  %327 = vmatpush.bf16.msra.mxu0 0
  %328 = vmatpush.bf16.msra.mxu0 0
  %329 = vmatpush.bf16.msra.mxu0 0
  %330 = vmatpush.bf16.msra.mxu0 0
  %331 = vmatpush.bf16.msra.mxu0 0
  %332 = vmatpush.bf16.msra.mxu0 %v320
  %333 = vmatmul.bf16.gmra.mxu0 %v165
  %v334 = vpop.f32.mrf.mxu0
  %v335 = vadd.f32 %v202, %v334
  %v336 = vpop.f32.mrf.mxu0
  %v337 = vadd.f32 %v204, %v336
  %338 = vmatmul.bf16.gmra.mxu0 %v302
  %v339 = vpop.f32.mrf.mxu0
  %v340 = vadd.f32 %v207, %v339
  %v341 = vpop.f32.mrf.mxu0
  %v342 = vadd.f32 %v209, %v341
  %343 = vmatmul.bf16.gmra.mxu0 %v305
  %v344 = vpop.f32.mrf.mxu0
  %v345 = vadd.f32 %v212, %v344
  %v346 = vpop.f32.mrf.mxu0
  %v347 = vadd.f32 %v214, %v346
  %348 = vmatmul.bf16.gmra.mxu0 %v308
  %v349 = vpop.f32.mrf.mxu0
  %v350 = vadd.f32 %v217, %v349
  %v351 = vpop.f32.mrf.mxu0
  %v352 = vadd.f32 %v219, %v351
  %353 = vmatmul.bf16.gmra.mxu0 %v165
  %v354 = vpop.f32.mrf.mxu0
  %v355 = vadd.f32 %v222, %v354
  %v356 = vpop.f32.mrf.mxu0
  %v357 = vadd.f32 %v224, %v356
  %358 = vmatmul.bf16.gmra.mxu0 %v311
  %v359 = vpop.f32.mrf.mxu0
  %v360 = vadd.f32 %v227, %v359
  %v361 = vpop.f32.mrf.mxu0
  %v362 = vadd.f32 %v229, %v361
  %363 = vmatmul.bf16.gmra.mxu0 %v314
  %v364 = vpop.f32.mrf.mxu0
  %v365 = vadd.f32 %v232, %v364
  %v366 = vpop.f32.mrf.mxu0
  %v367 = vadd.f32 %v234, %v366
  %368 = vmatmul.bf16.gmra.mxu0 %v317
  %v369 = vpop.f32.mrf.mxu0
  %v370 = vadd.f32 %v237, %v369
  %v371 = vpop.f32.mrf.mxu0
  %v372 = vadd.f32 %v239, %v371
  %373 = vdwg.mxu0
  %374 = vmatpush.bf16.msra.mxu0 0
  %375 = vmatpush.bf16.msra.mxu0 0
  %376 = vmatpush.bf16.msra.mxu0 0
  %377 = vmatpush.bf16.msra.mxu0 0
  %378 = vmatpush.bf16.msra.mxu0 0
  %379 = vmatpush.bf16.msra.mxu0 0
  %380 = vmatpush.bf16.msra.mxu0 0
  %381 = vmatpush.bf16.msra.mxu0 %v323
  %382 = vmatmul.bf16.gmra.mxu0 %v165
  %v383 = vpop.f32.mrf.mxu0
  %v384 = vadd.f32 %v251, %v383
  %v385 = vpop.f32.mrf.mxu0
  %v386 = vadd.f32 %v253, %v385
  %387 = vmatmul.bf16.gmra.mxu0 %v302
  %v388 = vpop.f32.mrf.mxu0
  %v389 = vadd.f32 %v256, %v388
  %v390 = vpop.f32.mrf.mxu0
  %v391 = vadd.f32 %v258, %v390
  %392 = vmatmul.bf16.gmra.mxu0 %v305
  %v393 = vpop.f32.mrf.mxu0
  %v394 = vadd.f32 %v261, %v393
  %v395 = vpop.f32.mrf.mxu0
  %v396 = vadd.f32 %v263, %v395
  %397 = vmatmul.bf16.gmra.mxu0 %v308
  %v398 = vpop.f32.mrf.mxu0
  %v399 = vadd.f32 %v266, %v398
  %v400 = vpop.f32.mrf.mxu0
  %v401 = vadd.f32 %v268, %v400
  %402 = vmatmul.bf16.gmra.mxu0 %v165
  %v403 = vpop.f32.mrf.mxu0
  %v404 = vadd.f32 %v271, %v403
  %v405 = vpop.f32.mrf.mxu0
  %v406 = vadd.f32 %v273, %v405
  %407 = vmatmul.bf16.gmra.mxu0 %v311
  %v408 = vpop.f32.mrf.mxu0
  %v409 = vadd.f32 %v276, %v408
  %v410 = vpop.f32.mrf.mxu0
  %v411 = vadd.f32 %v278, %v410
  %412 = vmatmul.bf16.gmra.mxu0 %v314
  %v413 = vpop.f32.mrf.mxu0
  %v414 = vadd.f32 %v281, %v413
  %v415 = vpop.f32.mrf.mxu0
  %v416 = vadd.f32 %v283, %v415
  %417 = vmatmul.bf16.gmra.mxu0 %v317
  %v418 = vpop.f32.mrf.mxu0
  %v419 = vadd.f32 %v286, %v418
  %v420 = vpop.f32.mrf.mxu0
  %v421 = vadd.f32 %v288, %v420
  %422 = vdwg.mxu0
  %v425 = vunpack.c.l.b16 %v115
  %v426 = vunpack.c.l.b16 %v123
  %v427 = vpack.c.b16 %v425, %v144
  %v428 = vpack.c.b16 %v426, %v150
  %v430 = vunpack.c.l.b16 %v103
  %v431 = vunpack.c.h.b16 %v103
  %v432 = vpack.c.b16 %v430, %v430
  %v433 = vpack.c.b16 %v431, %v431
  %v435 = vsel %vm163, %v427, 0
  %v438 = vsel %vm163, %v428, 0
  %v441 = vsel %vm185, %v432, 0
  %v444 = vsel %vm185, %v433, 0
  %446 = vmatpush.bf16.msra.mxu0 0
  %447 = vmatpush.bf16.msra.mxu0 0
  %448 = vmatpush.bf16.msra.mxu0 0
  %449 = vmatpush.bf16.msra.mxu0 0
  %450 = vmatpush.bf16.msra.mxu0 0
  %451 = vmatpush.bf16.msra.mxu0 0
  %452 = vmatpush.bf16.msra.mxu0 0
  %453 = vmatpush.bf16.msra.mxu0 %v441
  %454 = vmatmul.bf16.gmra.mxu0 %v302
  %v455 = vpop.f32.mrf.mxu0
  %v456 = vadd.f32 0.0, %v455
  %v457 = vpop.f32.mrf.mxu0
  %v458 = vadd.f32 0.0, %v457
  %459 = vmatmul.bf16.gmra.mxu0 %v305
  %v460 = vpop.f32.mrf.mxu0
  %v461 = vadd.f32 0.0, %v460
  %v462 = vpop.f32.mrf.mxu0
  %v463 = vadd.f32 0.0, %v462
  %464 = vmatmul.bf16.gmra.mxu0 %v308
  %v465 = vpop.f32.mrf.mxu0
  %v466 = vadd.f32 0.0, %v465
  %v467 = vpop.f32.mrf.mxu0
  %v468 = vadd.f32 0.0, %v467
  %469 = vmatmul.bf16.gmra.mxu0 %v435
  %v470 = vpop.f32.mrf.mxu0
  %v471 = vadd.f32 0.0, %v470
  %v472 = vpop.f32.mrf.mxu0
  %v473 = vadd.f32 0.0, %v472
  %474 = vmatmul.bf16.gmra.mxu0 %v311
  %v475 = vpop.f32.mrf.mxu0
  %v476 = vadd.f32 0.0, %v475
  %v477 = vpop.f32.mrf.mxu0
  %v478 = vadd.f32 0.0, %v477
  %479 = vmatmul.bf16.gmra.mxu0 %v314
  %v480 = vpop.f32.mrf.mxu0
  %v481 = vadd.f32 0.0, %v480
  %v482 = vpop.f32.mrf.mxu0
  %v483 = vadd.f32 0.0, %v482
  %484 = vmatmul.bf16.gmra.mxu0 %v317
  %v485 = vpop.f32.mrf.mxu0
  %v486 = vadd.f32 0.0, %v485
  %v487 = vpop.f32.mrf.mxu0
  %v488 = vadd.f32 0.0, %v487
  %489 = vmatmul.bf16.gmra.mxu0 %v438
  %v490 = vpop.f32.mrf.mxu0
  %v491 = vadd.f32 0.0, %v490
  %v492 = vpop.f32.mrf.mxu0
  %v493 = vadd.f32 0.0, %v492
  %494 = vdwg.mxu0
  %495 = vmatpush.bf16.msra.mxu0 0
  %496 = vmatpush.bf16.msra.mxu0 0
  %497 = vmatpush.bf16.msra.mxu0 0
  %498 = vmatpush.bf16.msra.mxu0 0
  %499 = vmatpush.bf16.msra.mxu0 0
  %500 = vmatpush.bf16.msra.mxu0 0
  %501 = vmatpush.bf16.msra.mxu0 0
  %502 = vmatpush.bf16.msra.mxu0 %v444
  %503 = vmatmul.bf16.gmra.mxu0 %v302
  %v504 = vpop.f32.mrf.mxu0
  %v505 = vadd.f32 0.0, %v504
  %v506 = vpop.f32.mrf.mxu0
  %v507 = vadd.f32 0.0, %v506
  %508 = vmatmul.bf16.gmra.mxu0 %v305
  %v509 = vpop.f32.mrf.mxu0
  %v510 = vadd.f32 0.0, %v509
  %v511 = vpop.f32.mrf.mxu0
  %v512 = vadd.f32 0.0, %v511
  %513 = vmatmul.bf16.gmra.mxu0 %v308
  %v514 = vpop.f32.mrf.mxu0
  %v515 = vadd.f32 0.0, %v514
  %v516 = vpop.f32.mrf.mxu0
  %v517 = vadd.f32 0.0, %v516
  %518 = vmatmul.bf16.gmra.mxu0 %v435
  %v519 = vpop.f32.mrf.mxu0
  %v520 = vadd.f32 0.0, %v519
  %v521 = vpop.f32.mrf.mxu0
  %v522 = vadd.f32 0.0, %v521
  %523 = vmatmul.bf16.gmra.mxu0 %v311
  %v524 = vpop.f32.mrf.mxu0
  %v525 = vadd.f32 0.0, %v524
  %v526 = vpop.f32.mrf.mxu0
  %v527 = vadd.f32 0.0, %v526
  %528 = vmatmul.bf16.gmra.mxu0 %v314
  %v529 = vpop.f32.mrf.mxu0
  %v530 = vadd.f32 0.0, %v529
  %v531 = vpop.f32.mrf.mxu0
  %v532 = vadd.f32 0.0, %v531
  %533 = vmatmul.bf16.gmra.mxu0 %v317
  %v534 = vpop.f32.mrf.mxu0
  %v535 = vadd.f32 0.0, %v534
  %v536 = vpop.f32.mrf.mxu0
  %v537 = vadd.f32 0.0, %v536
  %538 = vmatmul.bf16.gmra.mxu0 %v438
  %v539 = vpop.f32.mrf.mxu0
  %v540 = vadd.f32 0.0, %v539
  %v541 = vpop.f32.mrf.mxu0
  %v542 = vadd.f32 0.0, %v541
  %543 = vdwg.mxu0
  %v544 = vadd.f32 %v335, %v456
  %v545 = vadd.f32 %v384, %v505
  %v546 = vadd.f32 %v337, %v458
  %v547 = vadd.f32 %v386, %v507
  %v548 = vadd.f32 %v340, %v461
  %v549 = vadd.f32 %v389, %v510
  %v550 = vadd.f32 %v342, %v463
  %v551 = vadd.f32 %v391, %v512
  %v552 = vadd.f32 %v345, %v466
  %v553 = vadd.f32 %v394, %v515
  %v554 = vadd.f32 %v347, %v468
  %v555 = vadd.f32 %v396, %v517
  %v556 = vadd.f32 %v350, %v471
  %v557 = vadd.f32 %v399, %v520
  %v558 = vadd.f32 %v352, %v473
  %v559 = vadd.f32 %v401, %v522
  %v560 = vadd.f32 %v355, %v476
  %v561 = vadd.f32 %v404, %v525
  %v562 = vadd.f32 %v357, %v478
  %v563 = vadd.f32 %v406, %v527
  %v564 = vadd.f32 %v360, %v481
  %v565 = vadd.f32 %v409, %v530
  %v566 = vadd.f32 %v362, %v483
  %v567 = vadd.f32 %v411, %v532
  %v568 = vadd.f32 %v365, %v486
  %v569 = vadd.f32 %v414, %v535
  %v570 = vadd.f32 %v367, %v488
  %v571 = vadd.f32 %v416, %v537
  %v572 = vadd.f32 %v370, %v491
  %v573 = vadd.f32 %v419, %v540
  %v574 = vadd.f32 %v372, %v493
  %v575 = vadd.f32 %v421, %v542
  %v578 = vunpack.c.l.b16 %v116
  %v579 = vunpack.c.l.b16 %v124
  %v580 = vpack.c.b16 %v578, %v425
  %v581 = vpack.c.b16 %v579, %v426
  %v583 = vunpack.c.l.b16 %v104
  %v584 = vunpack.c.h.b16 %v104
  %v585 = vpack.c.b16 %v583, %v583
  %v586 = vpack.c.b16 %v584, %v584
  %v588 = vsel %vm163, %v580, 0
  %v591 = vsel %vm163, %v581, 0
  %v594 = vsel %vm185, %v585, 0
  %v597 = vsel %vm185, %v586, 0
  %599 = vmatpush.bf16.msra.mxu0 0
  %600 = vmatpush.bf16.msra.mxu0 0
  %601 = vmatpush.bf16.msra.mxu0 0
  %602 = vmatpush.bf16.msra.mxu0 0
  %603 = vmatpush.bf16.msra.mxu0 0
  %604 = vmatpush.bf16.msra.mxu0 0
  %605 = vmatpush.bf16.msra.mxu0 0
  %606 = vmatpush.bf16.msra.mxu0 %v594
  %607 = vmatmul.bf16.gmra.mxu0 %v168
  %v608 = vpop.f32.mrf.mxu0
  %v609 = vadd.f32 0.0, %v608
  %v610 = vpop.f32.mrf.mxu0
  %v611 = vadd.f32 0.0, %v610
  %612 = vmatmul.bf16.gmra.mxu0 %v171
  %v613 = vpop.f32.mrf.mxu0
  %v614 = vadd.f32 0.0, %v613
  %v615 = vpop.f32.mrf.mxu0
  %v616 = vadd.f32 0.0, %v615
  %617 = vmatmul.bf16.gmra.mxu0 %v174
  %v618 = vpop.f32.mrf.mxu0
  %v619 = vadd.f32 0.0, %v618
  %v620 = vpop.f32.mrf.mxu0
  %v621 = vadd.f32 0.0, %v620
  %622 = vmatmul.bf16.gmra.mxu0 %v588
  %v623 = vpop.f32.mrf.mxu0
  %v624 = vadd.f32 0.0, %v623
  %v625 = vpop.f32.mrf.mxu0
  %v626 = vadd.f32 0.0, %v625
  %627 = vmatmul.bf16.gmra.mxu0 %v177
  %v628 = vpop.f32.mrf.mxu0
  %v629 = vadd.f32 0.0, %v628
  %v630 = vpop.f32.mrf.mxu0
  %v631 = vadd.f32 0.0, %v630
  %632 = vmatmul.bf16.gmra.mxu0 %v180
  %v633 = vpop.f32.mrf.mxu0
  %v634 = vadd.f32 0.0, %v633
  %v635 = vpop.f32.mrf.mxu0
  %v636 = vadd.f32 0.0, %v635
  %637 = vmatmul.bf16.gmra.mxu0 %v183
  %v638 = vpop.f32.mrf.mxu0
  %v639 = vadd.f32 0.0, %v638
  %v640 = vpop.f32.mrf.mxu0
  %v641 = vadd.f32 0.0, %v640
  %642 = vmatmul.bf16.gmra.mxu0 %v591
  %v643 = vpop.f32.mrf.mxu0
  %v644 = vadd.f32 0.0, %v643
  %v645 = vpop.f32.mrf.mxu0
  %v646 = vadd.f32 0.0, %v645
  %647 = vdwg.mxu0
  %648 = vmatpush.bf16.msra.mxu0 0
  %649 = vmatpush.bf16.msra.mxu0 0
  %650 = vmatpush.bf16.msra.mxu0 0
  %651 = vmatpush.bf16.msra.mxu0 0
  %652 = vmatpush.bf16.msra.mxu0 0
  %653 = vmatpush.bf16.msra.mxu0 0
  %654 = vmatpush.bf16.msra.mxu0 0
  %655 = vmatpush.bf16.msra.mxu0 %v597
  %656 = vmatmul.bf16.gmra.mxu0 %v168
  %v657 = vpop.f32.mrf.mxu0
  %v658 = vadd.f32 0.0, %v657
  %v659 = vpop.f32.mrf.mxu0
  %v660 = vadd.f32 0.0, %v659
  %661 = vmatmul.bf16.gmra.mxu0 %v171
  %v662 = vpop.f32.mrf.mxu0
  %v663 = vadd.f32 0.0, %v662
  %v664 = vpop.f32.mrf.mxu0
  %v665 = vadd.f32 0.0, %v664
  %666 = vmatmul.bf16.gmra.mxu0 %v174
  %v667 = vpop.f32.mrf.mxu0
  %v668 = vadd.f32 0.0, %v667
  %v669 = vpop.f32.mrf.mxu0
  %v670 = vadd.f32 0.0, %v669
  %671 = vmatmul.bf16.gmra.mxu0 %v588
  %v672 = vpop.f32.mrf.mxu0
  %v673 = vadd.f32 0.0, %v672
  %v674 = vpop.f32.mrf.mxu0
  %v675 = vadd.f32 0.0, %v674
  %676 = vmatmul.bf16.gmra.mxu0 %v177
  %v677 = vpop.f32.mrf.mxu0
  %v678 = vadd.f32 0.0, %v677
  %v679 = vpop.f32.mrf.mxu0
  %v680 = vadd.f32 0.0, %v679
  %681 = vmatmul.bf16.gmra.mxu0 %v180
  %v682 = vpop.f32.mrf.mxu0
  %v683 = vadd.f32 0.0, %v682
  %v684 = vpop.f32.mrf.mxu0
  %v685 = vadd.f32 0.0, %v684
  %686 = vmatmul.bf16.gmra.mxu0 %v183
  %v687 = vpop.f32.mrf.mxu0
  %v688 = vadd.f32 0.0, %v687
  %v689 = vpop.f32.mrf.mxu0
  %v690 = vadd.f32 0.0, %v689
  %691 = vmatmul.bf16.gmra.mxu0 %v591
  %v692 = vpop.f32.mrf.mxu0
  %v693 = vadd.f32 0.0, %v692
  %v694 = vpop.f32.mrf.mxu0
  %v695 = vadd.f32 0.0, %v694
  %696 = vdwg.mxu0
  %v697 = vadd.f32 %v544, %v609
  %v698 = vadd.f32 %v545, %v658
  %v699 = vadd.f32 %v546, %v611
  %v700 = vadd.f32 %v547, %v660
  %v701 = vadd.f32 %v548, %v614
  %v702 = vadd.f32 %v549, %v663
  %v703 = vadd.f32 %v550, %v616
  %v704 = vadd.f32 %v551, %v665
  %v705 = vadd.f32 %v552, %v619
  %v706 = vadd.f32 %v553, %v668
  %v707 = vadd.f32 %v554, %v621
  %v708 = vadd.f32 %v555, %v670
  %v709 = vadd.f32 %v556, %v624
  %v710 = vadd.f32 %v557, %v673
  %v711 = vadd.f32 %v558, %v626
  %v712 = vadd.f32 %v559, %v675
  %v713 = vadd.f32 %v560, %v629
  %v714 = vadd.f32 %v561, %v678
  %v715 = vadd.f32 %v562, %v631
  %v716 = vadd.f32 %v563, %v680
  %v717 = vadd.f32 %v564, %v634
  %v718 = vadd.f32 %v565, %v683
  %v719 = vadd.f32 %v566, %v636
  %v720 = vadd.f32 %v567, %v685
  %v721 = vadd.f32 %v568, %v639
  %v722 = vadd.f32 %v569, %v688
  %v723 = vadd.f32 %v570, %v641
  %v724 = vadd.f32 %v571, %v690
  %v725 = vadd.f32 %v572, %v644
  %v726 = vadd.f32 %v573, %v693
  %v727 = vadd.f32 %v574, %v646
  %v728 = vadd.f32 %v575, %v695
  %v729 = vpack.c.b16 %v138, %v578
  %v730 = vpack.c.b16 %v138, %v579
  %v732 = vunpack.c.l.b16 %v105
  %v733 = vunpack.c.h.b16 %v105
  %v734 = vpack.c.b16 %v732, %v732
  %v735 = vpack.c.b16 %v733, %v733
  %v737 = vsel %vm163, %v729, 0
  %v740 = vsel %vm163, %v730, 0
  %v743 = vsel %vm185, %v734, 0
  %v746 = vsel %vm185, %v735, 0
  %748 = vmatpush.bf16.msra.mxu0 0
  %749 = vmatpush.bf16.msra.mxu0 0
  %750 = vmatpush.bf16.msra.mxu0 0
  %751 = vmatpush.bf16.msra.mxu0 0
  %752 = vmatpush.bf16.msra.mxu0 0
  %753 = vmatpush.bf16.msra.mxu0 0
  %754 = vmatpush.bf16.msra.mxu0 0
  %755 = vmatpush.bf16.msra.mxu0 %v743
  %756 = vmatmul.bf16.gmra.mxu0 %v305
  %v757 = vpop.f32.mrf.mxu0
  %v758 = vadd.f32 0.0, %v757
  %v759 = vpop.f32.mrf.mxu0
  %v760 = vadd.f32 0.0, %v759
  %761 = vmatmul.bf16.gmra.mxu0 %v308
  %v762 = vpop.f32.mrf.mxu0
  %v763 = vadd.f32 0.0, %v762
  %v764 = vpop.f32.mrf.mxu0
  %v765 = vadd.f32 0.0, %v764
  %766 = vmatmul.bf16.gmra.mxu0 %v435
  %v767 = vpop.f32.mrf.mxu0
  %v768 = vadd.f32 0.0, %v767
  %v769 = vpop.f32.mrf.mxu0
  %v770 = vadd.f32 0.0, %v769
  %771 = vmatmul.bf16.gmra.mxu0 %v737
  %v772 = vpop.f32.mrf.mxu0
  %v773 = vadd.f32 0.0, %v772
  %v774 = vpop.f32.mrf.mxu0
  %v775 = vadd.f32 0.0, %v774
  %776 = vmatmul.bf16.gmra.mxu0 %v314
  %v777 = vpop.f32.mrf.mxu0
  %v778 = vadd.f32 0.0, %v777
  %v779 = vpop.f32.mrf.mxu0
  %v780 = vadd.f32 0.0, %v779
  %781 = vmatmul.bf16.gmra.mxu0 %v317
  %v782 = vpop.f32.mrf.mxu0
  %v783 = vadd.f32 0.0, %v782
  %v784 = vpop.f32.mrf.mxu0
  %v785 = vadd.f32 0.0, %v784
  %786 = vmatmul.bf16.gmra.mxu0 %v438
  %v787 = vpop.f32.mrf.mxu0
  %v788 = vadd.f32 0.0, %v787
  %v789 = vpop.f32.mrf.mxu0
  %v790 = vadd.f32 0.0, %v789
  %791 = vmatmul.bf16.gmra.mxu0 %v740
  %v792 = vpop.f32.mrf.mxu0
  %v793 = vadd.f32 0.0, %v792
  %v794 = vpop.f32.mrf.mxu0
  %v795 = vadd.f32 0.0, %v794
  %796 = vdwg.mxu0
  %797 = vmatpush.bf16.msra.mxu0 0
  %798 = vmatpush.bf16.msra.mxu0 0
  %799 = vmatpush.bf16.msra.mxu0 0
  %800 = vmatpush.bf16.msra.mxu0 0
  %801 = vmatpush.bf16.msra.mxu0 0
  %802 = vmatpush.bf16.msra.mxu0 0
  %803 = vmatpush.bf16.msra.mxu0 0
  %804 = vmatpush.bf16.msra.mxu0 %v746
  %805 = vmatmul.bf16.gmra.mxu0 %v305
  %v806 = vpop.f32.mrf.mxu0
  %v807 = vadd.f32 0.0, %v806
  %v808 = vpop.f32.mrf.mxu0
  %v809 = vadd.f32 0.0, %v808
  %810 = vmatmul.bf16.gmra.mxu0 %v308
  %v811 = vpop.f32.mrf.mxu0
  %v812 = vadd.f32 0.0, %v811
  %v813 = vpop.f32.mrf.mxu0
  %v814 = vadd.f32 0.0, %v813
  %815 = vmatmul.bf16.gmra.mxu0 %v435
  %v816 = vpop.f32.mrf.mxu0
  %v817 = vadd.f32 0.0, %v816
  %v818 = vpop.f32.mrf.mxu0
  %v819 = vadd.f32 0.0, %v818
  %820 = vmatmul.bf16.gmra.mxu0 %v737
  %v821 = vpop.f32.mrf.mxu0
  %v822 = vadd.f32 0.0, %v821
  %v823 = vpop.f32.mrf.mxu0
  %v824 = vadd.f32 0.0, %v823
  %825 = vmatmul.bf16.gmra.mxu0 %v314
  %v826 = vpop.f32.mrf.mxu0
  %v827 = vadd.f32 0.0, %v826
  %v828 = vpop.f32.mrf.mxu0
  %v829 = vadd.f32 0.0, %v828
  %830 = vmatmul.bf16.gmra.mxu0 %v317
  %v831 = vpop.f32.mrf.mxu0
  %v832 = vadd.f32 0.0, %v831
  %v833 = vpop.f32.mrf.mxu0
  %v834 = vadd.f32 0.0, %v833
  %835 = vmatmul.bf16.gmra.mxu0 %v438
  %v836 = vpop.f32.mrf.mxu0
  %v837 = vadd.f32 0.0, %v836
  %v838 = vpop.f32.mrf.mxu0
  %v839 = vadd.f32 0.0, %v838
  %840 = vmatmul.bf16.gmra.mxu0 %v740
  %v841 = vpop.f32.mrf.mxu0
  %v842 = vadd.f32 0.0, %v841
  %v843 = vpop.f32.mrf.mxu0
  %v844 = vadd.f32 0.0, %v843
  %845 = vdwg.mxu0
  %v846 = vadd.f32 %v697, %v758
  %v847 = vadd.f32 %v698, %v807
  %v848 = vadd.f32 %v699, %v760
  %v849 = vadd.f32 %v700, %v809
  %v850 = vadd.f32 %v701, %v763
  %v851 = vadd.f32 %v702, %v812
  %v852 = vadd.f32 %v703, %v765
  %v853 = vadd.f32 %v704, %v814
  %v854 = vadd.f32 %v705, %v768
  %v855 = vadd.f32 %v706, %v817
  %v856 = vadd.f32 %v707, %v770
  %v857 = vadd.f32 %v708, %v819
  %v858 = vadd.f32 %v709, %v773
  %v859 = vadd.f32 %v710, %v822
  %v860 = vadd.f32 %v711, %v775
  %v861 = vadd.f32 %v712, %v824
  %v862 = vadd.f32 %v713, %v778
  %v863 = vadd.f32 %v714, %v827
  %v864 = vadd.f32 %v715, %v780
  %v865 = vadd.f32 %v716, %v829
  %v866 = vadd.f32 %v717, %v783
  %v867 = vadd.f32 %v718, %v832
  %v868 = vadd.f32 %v719, %v785
  %v869 = vadd.f32 %v720, %v834
  %v870 = vadd.f32 %v721, %v788
  %v871 = vadd.f32 %v722, %v837
  %v872 = vadd.f32 %v723, %v790
  %v873 = vadd.f32 %v724, %v839
  %v874 = vadd.f32 %v725, %v793
  %v875 = vadd.f32 %v726, %v842
  %v876 = vadd.f32 %v727, %v795
  %v877 = vadd.f32 %v728, %v844
  %v879 = vunpack.c.l.b16 %v106
  %v880 = vunpack.c.h.b16 %v106
  %v881 = vpack.c.b16 %v879, %v879
  %v882 = vpack.c.b16 %v880, %v880
  %v884 = vsel %vm185, %v881, 0
  %v887 = vsel %vm185, %v882, 0
  %889 = vmatpush.bf16.msra.mxu0 0
  %890 = vmatpush.bf16.msra.mxu0 0
  %891 = vmatpush.bf16.msra.mxu0 0
  %892 = vmatpush.bf16.msra.mxu0 0
  %893 = vmatpush.bf16.msra.mxu0 0
  %894 = vmatpush.bf16.msra.mxu0 0
  %895 = vmatpush.bf16.msra.mxu0 0
  %896 = vmatpush.bf16.msra.mxu0 %v884
  %897 = vmatmul.bf16.gmra.mxu0 %v171
  %v898 = vpop.f32.mrf.mxu0
  %v899 = vadd.f32 0.0, %v898
  %v900 = vpop.f32.mrf.mxu0
  %v901 = vadd.f32 0.0, %v900
  %902 = vmatmul.bf16.gmra.mxu0 %v174
  %v903 = vpop.f32.mrf.mxu0
  %v904 = vadd.f32 0.0, %v903
  %v905 = vpop.f32.mrf.mxu0
  %v906 = vadd.f32 0.0, %v905
  %907 = vmatmul.bf16.gmra.mxu0 %v588
  %v908 = vpop.f32.mrf.mxu0
  %v909 = vadd.f32 0.0, %v908
  %v910 = vpop.f32.mrf.mxu0
  %v911 = vadd.f32 0.0, %v910
  %912 = vmatmul.bf16.gmra.mxu0 %v165
  %v913 = vpop.f32.mrf.mxu0
  %v914 = vadd.f32 0.0, %v913
  %v915 = vpop.f32.mrf.mxu0
  %v916 = vadd.f32 0.0, %v915
  %917 = vmatmul.bf16.gmra.mxu0 %v180
  %v918 = vpop.f32.mrf.mxu0
  %v919 = vadd.f32 0.0, %v918
  %v920 = vpop.f32.mrf.mxu0
  %v921 = vadd.f32 0.0, %v920
  %922 = vmatmul.bf16.gmra.mxu0 %v183
  %v923 = vpop.f32.mrf.mxu0
  %v924 = vadd.f32 0.0, %v923
  %v925 = vpop.f32.mrf.mxu0
  %v926 = vadd.f32 0.0, %v925
  %927 = vmatmul.bf16.gmra.mxu0 %v591
  %v928 = vpop.f32.mrf.mxu0
  %v929 = vadd.f32 0.0, %v928
  %v930 = vpop.f32.mrf.mxu0
  %v931 = vadd.f32 0.0, %v930
  %932 = vmatmul.bf16.gmra.mxu0 %v165
  %v933 = vpop.f32.mrf.mxu0
  %v934 = vadd.f32 0.0, %v933
  %v935 = vpop.f32.mrf.mxu0
  %v936 = vadd.f32 0.0, %v935
  %937 = vdwg.mxu0
  %938 = vmatpush.bf16.msra.mxu0 0
  %939 = vmatpush.bf16.msra.mxu0 0
  %940 = vmatpush.bf16.msra.mxu0 0
  %941 = vmatpush.bf16.msra.mxu0 0
  %942 = vmatpush.bf16.msra.mxu0 0
  %943 = vmatpush.bf16.msra.mxu0 0
  %944 = vmatpush.bf16.msra.mxu0 0
  %945 = vmatpush.bf16.msra.mxu0 %v887
  %946 = vmatmul.bf16.gmra.mxu0 %v171
  %v947 = vpop.f32.mrf.mxu0
  %v948 = vadd.f32 0.0, %v947
  %v949 = vpop.f32.mrf.mxu0
  %v950 = vadd.f32 0.0, %v949
  %951 = vmatmul.bf16.gmra.mxu0 %v174
  %v952 = vpop.f32.mrf.mxu0
  %v953 = vadd.f32 0.0, %v952
  %v954 = vpop.f32.mrf.mxu0
  %v955 = vadd.f32 0.0, %v954
  %956 = vmatmul.bf16.gmra.mxu0 %v588
  %v957 = vpop.f32.mrf.mxu0
  %v958 = vadd.f32 0.0, %v957
  %v959 = vpop.f32.mrf.mxu0
  %v960 = vadd.f32 0.0, %v959
  %961 = vmatmul.bf16.gmra.mxu0 %v165
  %v962 = vpop.f32.mrf.mxu0
  %v963 = vadd.f32 0.0, %v962
  %v964 = vpop.f32.mrf.mxu0
  %v965 = vadd.f32 0.0, %v964
  %966 = vmatmul.bf16.gmra.mxu0 %v180
  %v967 = vpop.f32.mrf.mxu0
  %v968 = vadd.f32 0.0, %v967
  %v969 = vpop.f32.mrf.mxu0
  %v970 = vadd.f32 0.0, %v969
  %971 = vmatmul.bf16.gmra.mxu0 %v183
  %v972 = vpop.f32.mrf.mxu0
  %v973 = vadd.f32 0.0, %v972
  %v974 = vpop.f32.mrf.mxu0
  %v975 = vadd.f32 0.0, %v974
  %976 = vmatmul.bf16.gmra.mxu0 %v591
  %v977 = vpop.f32.mrf.mxu0
  %v978 = vadd.f32 0.0, %v977
  %v979 = vpop.f32.mrf.mxu0
  %v980 = vadd.f32 0.0, %v979
  %981 = vmatmul.bf16.gmra.mxu0 %v165
  %v982 = vpop.f32.mrf.mxu0
  %v983 = vadd.f32 0.0, %v982
  %v984 = vpop.f32.mrf.mxu0
  %v985 = vadd.f32 0.0, %v984
  %986 = vdwg.mxu0
  %v987 = vadd.f32 %v846, %v899
  %v988 = vadd.f32 %v847, %v948
  %v989 = vadd.f32 %v848, %v901
  %v990 = vadd.f32 %v849, %v950
  %v991 = vadd.f32 %v850, %v904
  %v992 = vadd.f32 %v851, %v953
  %v993 = vadd.f32 %v852, %v906
  %v994 = vadd.f32 %v853, %v955
  %v995 = vadd.f32 %v854, %v909
  %v996 = vadd.f32 %v855, %v958
  %v997 = vadd.f32 %v856, %v911
  %v998 = vadd.f32 %v857, %v960
  %v999 = vadd.f32 %v858, %v914
  %v1000 = vadd.f32 %v859, %v963
  %v1001 = vadd.f32 %v860, %v916
  %v1002 = vadd.f32 %v861, %v965
  %v1003 = vadd.f32 %v862, %v919
  %v1004 = vadd.f32 %v863, %v968
  %v1005 = vadd.f32 %v864, %v921
  %v1006 = vadd.f32 %v865, %v970
  %v1007 = vadd.f32 %v866, %v924
  %v1008 = vadd.f32 %v867, %v973
  %v1009 = vadd.f32 %v868, %v926
  %v1010 = vadd.f32 %v869, %v975
  %v1011 = vadd.f32 %v870, %v929
  %v1012 = vadd.f32 %v871, %v978
  %v1013 = vadd.f32 %v872, %v931
  %v1014 = vadd.f32 %v873, %v980
  %v1015 = vadd.f32 %v874, %v934
  %v1016 = vadd.f32 %v875, %v983
  %v1017 = vadd.f32 %v876, %v936
  %v1018 = vadd.f32 %v877, %v985
  %v1020 = vunpack.c.l.b16 %v107
  %v1021 = vunpack.c.h.b16 %v107
  %v1022 = vpack.c.b16 %v1020, %v1020
  %v1023 = vpack.c.b16 %v1021, %v1021
  %v1025 = vsel %vm185, %v1022, 0
  %v1028 = vsel %vm185, %v1023, 0
  %1030 = vmatpush.bf16.msra.mxu0 0
  %1031 = vmatpush.bf16.msra.mxu0 0
  %1032 = vmatpush.bf16.msra.mxu0 0
  %1033 = vmatpush.bf16.msra.mxu0 0
  %1034 = vmatpush.bf16.msra.mxu0 0
  %1035 = vmatpush.bf16.msra.mxu0 0
  %1036 = vmatpush.bf16.msra.mxu0 0
  %1037 = vmatpush.bf16.msra.mxu0 %v1025
  %1038 = vmatmul.bf16.gmra.mxu0 %v308
  %v1039 = vpop.f32.mrf.mxu0
  %v1040 = vadd.f32 0.0, %v1039
  %v1041 = vpop.f32.mrf.mxu0
  %v1042 = vadd.f32 0.0, %v1041
  %1043 = vmatmul.bf16.gmra.mxu0 %v435
  %v1044 = vpop.f32.mrf.mxu0
  %v1045 = vadd.f32 0.0, %v1044
  %v1046 = vpop.f32.mrf.mxu0
  %v1047 = vadd.f32 0.0, %v1046
  %1048 = vmatmul.bf16.gmra.mxu0 %v737
  %v1049 = vpop.f32.mrf.mxu0
  %v1050 = vadd.f32 0.0, %v1049
  %v1051 = vpop.f32.mrf.mxu0
  %v1052 = vadd.f32 0.0, %v1051
  %1053 = vmatmul.bf16.gmra.mxu0 %v165
  %v1054 = vpop.f32.mrf.mxu0
  %v1055 = vadd.f32 0.0, %v1054
  %v1056 = vpop.f32.mrf.mxu0
  %v1057 = vadd.f32 0.0, %v1056
  %1058 = vmatmul.bf16.gmra.mxu0 %v317
  %v1059 = vpop.f32.mrf.mxu0
  %v1060 = vadd.f32 0.0, %v1059
  %v1061 = vpop.f32.mrf.mxu0
  %v1062 = vadd.f32 0.0, %v1061
  %1063 = vmatmul.bf16.gmra.mxu0 %v438
  %v1064 = vpop.f32.mrf.mxu0
  %v1065 = vadd.f32 0.0, %v1064
  %v1066 = vpop.f32.mrf.mxu0
  %v1067 = vadd.f32 0.0, %v1066
  %1068 = vmatmul.bf16.gmra.mxu0 %v740
  %v1069 = vpop.f32.mrf.mxu0
  %v1070 = vadd.f32 0.0, %v1069
  %v1071 = vpop.f32.mrf.mxu0
  %v1072 = vadd.f32 0.0, %v1071
  %1073 = vmatmul.bf16.gmra.mxu0 %v165
  %v1074 = vpop.f32.mrf.mxu0
  %v1075 = vadd.f32 0.0, %v1074
  %v1076 = vpop.f32.mrf.mxu0
  %v1077 = vadd.f32 0.0, %v1076
  %1078 = vdwg.mxu0
  %1079 = vmatpush.bf16.msra.mxu0 0
  %1080 = vmatpush.bf16.msra.mxu0 0
  %1081 = vmatpush.bf16.msra.mxu0 0
  %1082 = vmatpush.bf16.msra.mxu0 0
  %1083 = vmatpush.bf16.msra.mxu0 0
  %1084 = vmatpush.bf16.msra.mxu0 0
  %1085 = vmatpush.bf16.msra.mxu0 0
  %1086 = vmatpush.bf16.msra.mxu0 %v1028
  %1087 = vmatmul.bf16.gmra.mxu0 %v308
  %v1088 = vpop.f32.mrf.mxu0
  %v1089 = vadd.f32 0.0, %v1088
  %v1090 = vpop.f32.mrf.mxu0
  %v1091 = vadd.f32 0.0, %v1090
  %1092 = vmatmul.bf16.gmra.mxu0 %v435
  %v1093 = vpop.f32.mrf.mxu0
  %v1094 = vadd.f32 0.0, %v1093
  %v1095 = vpop.f32.mrf.mxu0
  %v1096 = vadd.f32 0.0, %v1095
  %1097 = vmatmul.bf16.gmra.mxu0 %v737
  %v1098 = vpop.f32.mrf.mxu0
  %v1099 = vadd.f32 0.0, %v1098
  %v1100 = vpop.f32.mrf.mxu0
  %v1101 = vadd.f32 0.0, %v1100
  %1102 = vmatmul.bf16.gmra.mxu0 %v165
  %v1103 = vpop.f32.mrf.mxu0
  %v1104 = vadd.f32 0.0, %v1103
  %v1105 = vpop.f32.mrf.mxu0
  %v1106 = vadd.f32 0.0, %v1105
  %1107 = vmatmul.bf16.gmra.mxu0 %v317
  %v1108 = vpop.f32.mrf.mxu0
  %v1109 = vadd.f32 0.0, %v1108
  %v1110 = vpop.f32.mrf.mxu0
  %v1111 = vadd.f32 0.0, %v1110
  %1112 = vmatmul.bf16.gmra.mxu0 %v438
  %v1113 = vpop.f32.mrf.mxu0
  %v1114 = vadd.f32 0.0, %v1113
  %v1115 = vpop.f32.mrf.mxu0
  %v1116 = vadd.f32 0.0, %v1115
  %1117 = vmatmul.bf16.gmra.mxu0 %v740
  %v1118 = vpop.f32.mrf.mxu0
  %v1119 = vadd.f32 0.0, %v1118
  %v1120 = vpop.f32.mrf.mxu0
  %v1121 = vadd.f32 0.0, %v1120
  %1122 = vmatmul.bf16.gmra.mxu0 %v165
  %v1123 = vpop.f32.mrf.mxu0
  %v1124 = vadd.f32 0.0, %v1123
  %v1125 = vpop.f32.mrf.mxu0
  %v1126 = vadd.f32 0.0, %v1125
  %1127 = vdwg.mxu0
  %v1128 = vadd.f32 %v987, %v1040
  %v1129 = vadd.f32 %v988, %v1089
  %v1130 = vadd.f32 %v989, %v1042
  %v1131 = vadd.f32 %v990, %v1091
  %v1132 = vadd.f32 %v991, %v1045
  %v1133 = vadd.f32 %v992, %v1094
  %v1134 = vadd.f32 %v993, %v1047
  %v1135 = vadd.f32 %v994, %v1096
  %v1136 = vadd.f32 %v995, %v1050
  %v1137 = vadd.f32 %v996, %v1099
  %v1138 = vadd.f32 %v997, %v1052
  %v1139 = vadd.f32 %v998, %v1101
  %v1140 = vadd.f32 %v999, %v1055
  %v1141 = vadd.f32 %v1000, %v1104
  %v1142 = vadd.f32 %v1001, %v1057
  %v1143 = vadd.f32 %v1002, %v1106
  %v1144 = vadd.f32 %v1003, %v1060
  %v1145 = vadd.f32 %v1004, %v1109
  %v1146 = vadd.f32 %v1005, %v1062
  %v1147 = vadd.f32 %v1006, %v1111
  %v1148 = vadd.f32 %v1007, %v1065
  %v1149 = vadd.f32 %v1008, %v1114
  %v1150 = vadd.f32 %v1009, %v1067
  %v1151 = vadd.f32 %v1010, %v1116
  %v1152 = vadd.f32 %v1011, %v1070
  %v1153 = vadd.f32 %v1012, %v1119
  %v1154 = vadd.f32 %v1013, %v1072
  %v1155 = vadd.f32 %v1014, %v1121
  %v1156 = vadd.f32 %v1015, %v1075
  %v1157 = vadd.f32 %v1016, %v1124
  %v1158 = vadd.f32 %v1017, %v1077
  %v1159 = vadd.f32 %v1018, %v1126
  %v1160 = vpack.c.bf16 %v1129, %v1128
  %v1161 = vpack.c.bf16 %v1131, %v1130
  %v1162 = vpack.c.bf16 %v1133, %v1132
  %v1163 = vpack.c.bf16 %v1135, %v1134
  %v1164 = vpack.c.bf16 %v1137, %v1136
  %v1165 = vpack.c.bf16 %v1139, %v1138
  %v1166 = vpack.c.bf16 %v1141, %v1140
  %v1167 = vpack.c.bf16 %v1143, %v1142
  %v1168 = vpack.c.bf16 %v1145, %v1144
  %v1169 = vpack.c.bf16 %v1147, %v1146
  %v1170 = vpack.c.bf16 %v1149, %v1148
  %v1171 = vpack.c.bf16 %v1151, %v1150
  %v1172 = vpack.c.bf16 %v1153, %v1152
  %v1173 = vpack.c.bf16 %v1155, %v1154
  %v1174 = vpack.c.bf16 %v1157, %v1156
  %v1175 = vpack.c.bf16 %v1159, %v1158
  %vm1176 = vcmask 523268
  %vm1177 = vmor %vm1176, %vm185
  %1178 = vst.msk [vmem:[%s3] sm:$0xff] %vm1177, %v1160
  %1179 = vst.msk [vmem:[%s3 + $0x8] sm:$0xff] %vm1177, %v1161
  %1180 = vst.msk [vmem:[%s3 + $0x10] sm:$0xff] %vm1177, %v1162
  %1181 = vst.msk [vmem:[%s3 + $0x18] sm:$0xff] %vm1177, %v1163
  %1182 = vst.msk [vmem:[%s3 + $0x20] sm:$0xff] %vm1177, %v1164
  %1183 = vst.msk [vmem:[%s3 + $0x28] sm:$0xff] %vm1177, %v1165
  %1184 = vst.msk [vmem:[%s3 + $0x30] sm:$0xff] %vm1177, %v1166
  %1185 = vst.msk [vmem:[%s3 + $0x38] sm:$0xff] %vm1177, %v1167
  %1186 = vst.msk [vmem:[%s3 + $0x40] sm:$0xff] %vm1177, %v1168
  %1187 = vst.msk [vmem:[%s3 + $0x48] sm:$0xff] %vm1177, %v1169
  %1188 = vst.msk [vmem:[%s3 + $0x50] sm:$0xff] %vm1177, %v1170
  %1189 = vst.msk [vmem:[%s3 + $0x58] sm:$0xff] %vm1177, %v1171
  %1190 = vst.msk [vmem:[%s3 + $0x60] sm:$0xff] %vm1177, %v1172
  %1191 = vst.msk [vmem:[%s3 + $0x68] sm:$0xff] %vm1177, %v1173
  %1192 = vst.msk [vmem:[%s3 + $0x70] sm:$0xff] %vm1177, %v1174
  %1193 = vst.msk [vmem:[%s3 + $0x78] sm:$0xff] %vm1177, %v1175
  %v1194 = vadd.f32 %v1128, %v1130
  %v1195 = vadd.f32 %v1194, %v1132
  %v1196 = vadd.f32 %v1195, %v1134
  %v1197 = vadd.f32 %v1196, %v1136
  %v1198 = vadd.f32 %v1197, %v1138
  %v1199 = vadd.f32 %v1198, %v1140
  %v1200 = vadd.f32 %v1199, %v1142
  %v1201 = vadd.f32 %v1200, %v1144
  %v1202 = vadd.f32 %v1201, %v1146
  %v1203 = vadd.f32 %v1202, %v1148
  %v1204 = vadd.f32 %v1203, %v1150
  %v1205 = vadd.f32 %v1204, %v1152
  %v1206 = vadd.f32 %v1205, %v1154
  %v1207 = vadd.f32 %v1206, %v1156
  %v1208 = vadd.f32 %v1207, %v1158
  %v1209 = vrot.slane %v1208, 4
  %v1210 = vadd.f32 %v1208, %v1209
  %v1211 = vrot.slane %v1210, 2
  %v1212 = vadd.f32 %v1210, %v1211
  %v1213 = vrot.slane %v1212, 1
  %v1214 = vadd.f32 %v1212, %v1213
  %vm1215 = vcmask 523264
  %v1216 = vsel %vm1215, %v1129, 0.0
  %v1217 = vsel %vm1215, %v1131, 0.0
  %v1218 = vadd.f32 %v1216, %v1217
  %v1219 = vsel %vm1215, %v1133, 0.0
  %v1220 = vadd.f32 %v1218, %v1219
  %v1221 = vsel %vm1215, %v1135, 0.0
  %v1222 = vadd.f32 %v1220, %v1221
  %v1223 = vsel %vm1215, %v1137, 0.0
  %v1224 = vadd.f32 %v1222, %v1223
  %v1225 = vsel %vm1215, %v1139, 0.0
  %v1226 = vadd.f32 %v1224, %v1225
  %v1227 = vsel %vm1215, %v1141, 0.0
  %v1228 = vadd.f32 %v1226, %v1227
  %v1229 = vsel %vm1215, %v1143, 0.0
  %v1230 = vadd.f32 %v1228, %v1229
  %v1231 = vsel %vm1215, %v1145, 0.0
  %v1232 = vadd.f32 %v1230, %v1231
  %v1233 = vsel %vm1215, %v1147, 0.0
  %v1234 = vadd.f32 %v1232, %v1233
  %v1235 = vsel %vm1215, %v1149, 0.0
  %v1236 = vadd.f32 %v1234, %v1235
  %v1237 = vsel %vm1215, %v1151, 0.0
  %v1238 = vadd.f32 %v1236, %v1237
  %v1239 = vsel %vm1215, %v1153, 0.0
  %v1240 = vadd.f32 %v1238, %v1239
  %v1241 = vsel %vm1215, %v1155, 0.0
  %v1242 = vadd.f32 %v1240, %v1241
  %v1243 = vsel %vm1215, %v1157, 0.0
  %v1244 = vadd.f32 %v1242, %v1243
  %v1245 = vsel %vm1215, %v1159, 0.0
  %v1246 = vadd.f32 %v1244, %v1245
  %v1247 = vrot.slane %v1246, 4
  %v1248 = vadd.f32 %v1246, %v1247
  %v1249 = vrot.slane %v1248, 2
  %v1250 = vadd.f32 %v1248, %v1249
  %v1251 = vrot.slane %v1250, 1
  %v1252 = vadd.f32 %v1250, %v1251
  %v1253 = vmul.f32 %v1128, %v1128
  %v1254 = vmul.f32 %v1129, %v1129
  %v1255 = vmul.f32 %v1130, %v1130
  %v1256 = vmul.f32 %v1131, %v1131
  %v1257 = vmul.f32 %v1132, %v1132
  %v1258 = vmul.f32 %v1133, %v1133
  %v1259 = vmul.f32 %v1134, %v1134
  %v1260 = vmul.f32 %v1135, %v1135
  %v1261 = vmul.f32 %v1136, %v1136
  %v1262 = vmul.f32 %v1137, %v1137
  %v1263 = vmul.f32 %v1138, %v1138
  %v1264 = vmul.f32 %v1139, %v1139
  %v1265 = vmul.f32 %v1140, %v1140
  %v1266 = vmul.f32 %v1141, %v1141
  %v1267 = vmul.f32 %v1142, %v1142
  %v1268 = vmul.f32 %v1143, %v1143
  %v1269 = vmul.f32 %v1144, %v1144
  %v1270 = vmul.f32 %v1145, %v1145
  %v1271 = vmul.f32 %v1146, %v1146
  %v1272 = vmul.f32 %v1147, %v1147
  %v1273 = vmul.f32 %v1148, %v1148
  %v1274 = vmul.f32 %v1149, %v1149
  %v1275 = vmul.f32 %v1150, %v1150
  %v1276 = vmul.f32 %v1151, %v1151
  %v1277 = vmul.f32 %v1152, %v1152
  %v1278 = vmul.f32 %v1153, %v1153
  %v1279 = vmul.f32 %v1154, %v1154
  %v1280 = vmul.f32 %v1155, %v1155
  %v1281 = vmul.f32 %v1156, %v1156
  %v1282 = vmul.f32 %v1157, %v1157
  %v1283 = vmul.f32 %v1158, %v1158
  %v1284 = vmul.f32 %v1159, %v1159
  %v1285 = vadd.f32 %v1253, %v1255
  %v1286 = vadd.f32 %v1285, %v1257
  %v1287 = vadd.f32 %v1286, %v1259
  %v1288 = vadd.f32 %v1287, %v1261
  %v1289 = vadd.f32 %v1288, %v1263
  %v1290 = vadd.f32 %v1289, %v1265
  %v1291 = vadd.f32 %v1290, %v1267
  %v1292 = vadd.f32 %v1291, %v1269
  %v1293 = vadd.f32 %v1292, %v1271
  %v1294 = vadd.f32 %v1293, %v1273
  %v1295 = vadd.f32 %v1294, %v1275
  %v1296 = vadd.f32 %v1295, %v1277
  %v1297 = vadd.f32 %v1296, %v1279
  %v1298 = vadd.f32 %v1297, %v1281
  %v1299 = vadd.f32 %v1298, %v1283
  %v1300 = vrot.slane %v1299, 4
  %v1301 = vadd.f32 %v1299, %v1300
  %v1302 = vrot.slane %v1301, 2
  %v1303 = vadd.f32 %v1301, %v1302
  %v1304 = vrot.slane %v1303, 1
  %v1305 = vadd.f32 %v1303, %v1304
  %v1306 = vsel %vm1215, %v1254, 0.0
  %v1307 = vsel %vm1215, %v1256, 0.0
  %v1308 = vadd.f32 %v1306, %v1307
  %v1309 = vsel %vm1215, %v1258, 0.0
  %v1310 = vadd.f32 %v1308, %v1309
  %v1311 = vsel %vm1215, %v1260, 0.0
  %v1312 = vadd.f32 %v1310, %v1311
  %v1313 = vsel %vm1215, %v1262, 0.0
  %v1314 = vadd.f32 %v1312, %v1313
  %v1315 = vsel %vm1215, %v1264, 0.0
  %v1316 = vadd.f32 %v1314, %v1315
  %v1317 = vsel %vm1215, %v1266, 0.0
  %v1318 = vadd.f32 %v1316, %v1317
  %v1319 = vsel %vm1215, %v1268, 0.0
  %v1320 = vadd.f32 %v1318, %v1319
  %v1321 = vsel %vm1215, %v1270, 0.0
  %v1322 = vadd.f32 %v1320, %v1321
  %v1323 = vsel %vm1215, %v1272, 0.0
  %v1324 = vadd.f32 %v1322, %v1323
  %v1325 = vsel %vm1215, %v1274, 0.0
  %v1326 = vadd.f32 %v1324, %v1325
  %v1327 = vsel %vm1215, %v1276, 0.0
  %v1328 = vadd.f32 %v1326, %v1327
  %v1329 = vsel %vm1215, %v1278, 0.0
  %v1330 = vadd.f32 %v1328, %v1329
  %v1331 = vsel %vm1215, %v1280, 0.0
  %v1332 = vadd.f32 %v1330, %v1331
  %v1333 = vsel %vm1215, %v1282, 0.0
  %v1334 = vadd.f32 %v1332, %v1333
  %v1335 = vsel %vm1215, %v1284, 0.0
  %v1336 = vadd.f32 %v1334, %v1335
  %v1337 = vrot.slane %v1336, 4
  %v1338 = vadd.f32 %v1336, %v1337
  %v1339 = vrot.slane %v1338, 2
  %v1340 = vadd.f32 %v1338, %v1339
  %v1341 = vrot.slane %v1340, 1
  %v1342 = vadd.f32 %v1340, %v1341
  %vm1343 = vcmask 1040384
  %v1344 = vsel %vm1343, %v1214, %v1305
  %v1345 = vsel %vm1343, %v1252, %v1342
  %v1348 = vrot.slane %v1345, 6
  %vm1349 = vcmask 1041408
  %v1350 = vsel %vm1349, %v1344, %v1348
  %vm1352 = vcmask 519170
  %vm1353 = vmor %vm1352, %vm1349
  %1354 = vst.msk [vmem:[%s4] sm:$0xf] %vm1353, %v1350
  // Predicated region
  $region14: #{inception_c_forward.10} parent=0 // pred_check
    _
  $region15: #{inception_c_forward.10} parent=0 // pred_check_branch
    %1356 = sbr.rel (0) target = $region17
  $region16: #{inception_c_forward.10} parent=0 // pred_region
    _
  $region17: #{inception_c_forward.10} parent=0 // pred_fallthru
    _
  // Predicated region
  $region18: #{inception_c_forward.10} parent=0 // pred_check
    _
  $region19: #{inception_c_forward.10} parent=0 // pred_check_branch
    %1358 = sbr.rel (0) target = $region21
  $region20: #{inception_c_forward.10} parent=0 // pred_region
    _
  $region21: #{inception_c_forward.10} parent=0 // pred_fallthru
    _
  // Predicated region
  $region22: #{inception_c_forward.10} parent=0 // pred_check
    _
  $region23: #{inception_c_forward.10} parent=0 // pred_check_branch
    %1360 = sbr.rel (0) target = $region25
  $region24: #{inception_c_forward.10} parent=0 // pred_region
    _
  $region25: #{inception_c_forward.10} parent=0 // pred_fallthru
    _
  // Predicated region
  $region26: #{inception_c_forward.10} parent=0 // pred_check
    _
  $region27: #{inception_c_forward.10} parent=0 // pred_check_branch
    %1362 = sbr.rel (0) target = $region29
  $region28: #{inception_c_forward.10} parent=0 // pred_region
    _
  $region29: #{inception_c_forward.10} parent=0 // pred_fallthru
    _

// kernel: inception_c_forward.12
$region0: #{inception_c_forward.12}
  #allocation0 [shape = 'u32[]', space=smem, size = 0x4, offset = 0x4, fixed_abs, tag = 'smem constant byte address 0x4 - core index']
  #allocation1 [shape = 'u32[72,128]{1,0:T(1,128)}', space=vmem, size = 0x9000, scoped, tag = 'internal scratch']
  %s0 = inlined_call_operand.vmem [shape: bf16[2,8,8,8], index: 0, kind: input, shape index: {}]
  %s1 = inlined_call_operand.vmem [shape: f32[2,8], index: 1, kind: input, shape index: {}]
  %s2 = inlined_call_operand.vmem [shape: bf16[7,8,8], index: 2, kind: input, shape index: {}]
  %s3 = inlined_call_operand.vmem [shape: bf16[2,8,8,8], index: 3, kind: output, shape index: {0}]
  %s4 = inlined_call_operand.vmem [shape: f32[1,2,8], index: 4, kind: output, shape index: {1}]
  %5 = xla_tuple %s3, %s4
  %s6 = sld [smem:[#allocation0]]
  $region30: #{inception_c_forward.12} parent=0
    _
  %s8 = ssub.s32 1, %s6
  %s9 = scalar_select 0, %s8, %s6
  // Predicated region
  $region2: #{inception_c_forward.12} parent=0 // pred_check
    _
  $region3: #{inception_c_forward.12} parent=0 // pred_check_branch
    %11 = sbr.rel (0) target = $region5
  $region4: #{inception_c_forward.12} parent=0 // pred_region
    _
  $region5: #{inception_c_forward.12} parent=0 // pred_fallthru
    _
  // Predicated region
  $region6: #{inception_c_forward.12} parent=0 // pred_check
    _
  $region7: #{inception_c_forward.12} parent=0 // pred_check_branch
    %13 = sbr.rel (0) target = $region9
  $region8: #{inception_c_forward.12} parent=0 // pred_region
    _
  $region9: #{inception_c_forward.12} parent=0 // pred_fallthru
    _
  // Predicated region
  $region10: #{inception_c_forward.12} parent=0 // pred_check
    _
  $region11: #{inception_c_forward.12} parent=0 // pred_check_branch
    %15 = sbr.rel (0) target = $region13
  $region12: #{inception_c_forward.12} parent=0 // pred_region
    _
  $region13: #{inception_c_forward.12} parent=0 // pred_fallthru
    _
  %v17 = vld [vmem:[%s0] sm:$0xf]
  %v18 = vld [vmem:[%s0 + $0x4] sm:$0xf]
  %v19 = vld [vmem:[%s0 + $0x8] sm:$0xf]
  %v20 = vld [vmem:[%s0 + $0xc] sm:$0xf]
  %v21 = vld [vmem:[%s0 + $0x10] sm:$0xf]
  %v22 = vld [vmem:[%s0 + $0x14] sm:$0xf]
  %v23 = vld [vmem:[%s0 + $0x18] sm:$0xf]
  %v24 = vld [vmem:[%s0 + $0x1c] sm:$0xf]
  %v25 = vld [vmem:[%s0 + $0x20] sm:$0xf]
  %v26 = vld [vmem:[%s0 + $0x24] sm:$0xf]
  %v27 = vld [vmem:[%s0 + $0x28] sm:$0xf]
  %v28 = vld [vmem:[%s0 + $0x2c] sm:$0xf]
  %v29 = vld [vmem:[%s0 + $0x30] sm:$0xf]
  %v30 = vld [vmem:[%s0 + $0x34] sm:$0xf]
  %v31 = vld [vmem:[%s0 + $0x38] sm:$0xf]
  %v32 = vld [vmem:[%s0 + $0x3c] sm:$0xf]
  %v33 = vunpack.c.l.bf16 %v17
  %v34 = vunpack.c.l.bf16 %v18
  %v35 = vunpack.c.l.bf16 %v19
  %v36 = vunpack.c.l.bf16 %v20
  %v37 = vunpack.c.l.bf16 %v21
  %v38 = vunpack.c.l.bf16 %v22
  %v39 = vunpack.c.l.bf16 %v23
  %v40 = vunpack.c.l.bf16 %v24
  %v41 = vunpack.c.l.bf16 %v25
  %v42 = vunpack.c.l.bf16 %v26
  %v43 = vunpack.c.l.bf16 %v27
  %v44 = vunpack.c.l.bf16 %v28
  %v45 = vunpack.c.l.bf16 %v29
  %v46 = vunpack.c.l.bf16 %v30
  %v47 = vunpack.c.l.bf16 %v31
  %v48 = vunpack.c.l.bf16 %v32
  %v49 = vld [vmem:[%s1] sm:$0x1]
  %v50 = vperm.slane %v49, 0
  %v51 = vmul.f32 %v33, %v50
  %v52 = vmul.f32 %v34, %v50
  %v53 = vmul.f32 %v35, %v50
  %v54 = vmul.f32 %v36, %v50
  %v55 = vmul.f32 %v37, %v50
  %v56 = vmul.f32 %v38, %v50
  %v57 = vmul.f32 %v39, %v50
  %v58 = vmul.f32 %v40, %v50
  %v59 = vmul.f32 %v41, %v50
  %v60 = vmul.f32 %v42, %v50
  %v61 = vmul.f32 %v43, %v50
  %v62 = vmul.f32 %v44, %v50
  %v63 = vmul.f32 %v45, %v50
  %v64 = vmul.f32 %v46, %v50
  %v65 = vmul.f32 %v47, %v50
  %v66 = vmul.f32 %v48, %v50
  %v67 = vld [vmem:[%s1 + $0x1] sm:$0x1]
  %v68 = vperm.slane %v67, 0
  %v69 = vadd.f32 %v51, %v68
  %v70 = vadd.f32 %v52, %v68
  %v71 = vadd.f32 %v53, %v68
  %v72 = vadd.f32 %v54, %v68
  %v73 = vadd.f32 %v55, %v68
  %v74 = vadd.f32 %v56, %v68
  %v75 = vadd.f32 %v57, %v68
  %v76 = vadd.f32 %v58, %v68
  %v77 = vadd.f32 %v59, %v68
  %v78 = vadd.f32 %v60, %v68
  %v79 = vadd.f32 %v61, %v68
  %v80 = vadd.f32 %v62, %v68
  %v81 = vadd.f32 %v63, %v68
  %v82 = vadd.f32 %v64, %v68
  %v83 = vadd.f32 %v65, %v68
  %v84 = vadd.f32 %v66, %v68
  %v85 = vmax.f32 %v69, 0.0
  %v86 = vmax.f32 %v70, 0.0
  %v87 = vmax.f32 %v71, 0.0
  %v88 = vmax.f32 %v72, 0.0
  %v89 = vmax.f32 %v73, 0.0
  %v90 = vmax.f32 %v74, 0.0
  %v91 = vmax.f32 %v75, 0.0
  %v92 = vmax.f32 %v76, 0.0
  %v93 = vmax.f32 %v77, 0.0
  %v94 = vmax.f32 %v78, 0.0
  %v95 = vmax.f32 %v79, 0.0
  %v96 = vmax.f32 %v80, 0.0
  %v97 = vmax.f32 %v81, 0.0
  %v98 = vmax.f32 %v82, 0.0
  %v99 = vmax.f32 %v83, 0.0
  %v100 = vmax.f32 %v84, 0.0
  %v101 = vld [vmem:[%s2] sm:$0xf]
  %v102 = vld [vmem:[%s2 + $0x4] sm:$0xf]
  %v103 = vld [vmem:[%s2 + $0x8] sm:$0xf]
  %v104 = vld [vmem:[%s2 + $0xc] sm:$0xf]
  %v105 = vld [vmem:[%s2 + $0x10] sm:$0xf]
  %v106 = vld [vmem:[%s2 + $0x14] sm:$0xf]
  %v107 = vld [vmem:[%s2 + $0x18] sm:$0xf]
  %v124 = vrot.slane %v85, 5
  %v125 = vrot.slane %v86, 5
  %v126 = vrot.slane %v87, 5
  %v127 = vrot.slane %v88, 5
  %v128 = vrot.slane %v89, 5
  %v129 = vrot.slane %v90, 5
  %v130 = vrot.slane %v91, 5
  %v131 = vrot.slane %v92, 5
  %v132 = vrot.slane %v93, 5
  %v133 = vrot.slane %v94, 5
  %v134 = vrot.slane %v95, 5
  %v135 = vrot.slane %v96, 5
  %v136 = vrot.slane %v97, 5
  %v137 = vrot.slane %v98, 5
  %v138 = vrot.slane %v99, 5
  %v139 = vrot.slane %v100, 5
  %vm156 = vcmask 1042432
  %v157 = vsel %vm156, 0.0, %v124
  %v158 = vsel %vm156, 0.0, %v125
  %v159 = vsel %vm156, 0.0, %v126
  %v160 = vsel %vm156, 0.0, %v127
  %v161 = vsel %vm156, 0.0, %v128
  %v162 = vsel %vm156, 0.0, %v129
  %v163 = vsel %vm156, 0.0, %v130
  %v164 = vsel %vm156, 0.0, %v131
  %v165 = vsel %vm156, 0.0, %v132
  %v166 = vsel %vm156, 0.0, %v133
  %v167 = vsel %vm156, 0.0, %v134
  %v168 = vsel %vm156, 0.0, %v135
  %v169 = vsel %vm156, 0.0, %v136
  %v170 = vsel %vm156, 0.0, %v137
  %v171 = vsel %vm156, 0.0, %v138
  %v172 = vsel %vm156, 0.0, %v139
  %v173 = vsel %vm156, %v124, 0.0
  %v174 = vsel %vm156, %v125, 0.0
  %v175 = vsel %vm156, %v126, 0.0
  %v176 = vsel %vm156, %v127, 0.0
  %v177 = vsel %vm156, %v128, 0.0
  %v178 = vsel %vm156, %v129, 0.0
  %v179 = vsel %vm156, %v130, 0.0
  %v180 = vsel %vm156, %v131, 0.0
  %v181 = vsel %vm156, %v132, 0.0
  %v182 = vsel %vm156, %v133, 0.0
  %v183 = vsel %vm156, %v134, 0.0
  %v184 = vsel %vm156, %v135, 0.0
  %v185 = vsel %vm156, %v136, 0.0
  %v186 = vsel %vm156, %v137, 0.0
  %v187 = vsel %vm156, %v138, 0.0
  %v188 = vsel %vm156, %v139, 0.0
  %v189 = vpack.c.bf16 %v157, %v157
  %v190 = vpack.c.bf16 %v173, %v173
  %v191 = vpack.c.bf16 %v158, %v158
  %v192 = vpack.c.bf16 %v174, %v174
  %v193 = vpack.c.bf16 %v159, %v159
  %v194 = vpack.c.bf16 %v175, %v175
  %v195 = vpack.c.bf16 %v160, %v160
  %v196 = vpack.c.bf16 %v176, %v176
  %v197 = vpack.c.bf16 %v161, %v161
  %v198 = vpack.c.bf16 %v177, %v177
  %v199 = vpack.c.bf16 %v162, %v162
  %v200 = vpack.c.bf16 %v178, %v178
  %v201 = vpack.c.bf16 %v163, %v163
  %v202 = vpack.c.bf16 %v179, %v179
  %v203 = vpack.c.bf16 %v164, %v164
  %v204 = vpack.c.bf16 %v180, %v180
  %v205 = vpack.c.bf16 %v165, %v165
  %v206 = vpack.c.bf16 %v181, %v181
  %v207 = vpack.c.bf16 %v166, %v166
  %v208 = vpack.c.bf16 %v182, %v182
  %v209 = vpack.c.bf16 %v167, %v167
  %v210 = vpack.c.bf16 %v183, %v183
  %v211 = vpack.c.bf16 %v168, %v168
  %v212 = vpack.c.bf16 %v184, %v184
  %v213 = vpack.c.bf16 %v169, %v169
  %v214 = vpack.c.bf16 %v185, %v185
  %v215 = vpack.c.bf16 %v170, %v170
  %v216 = vpack.c.bf16 %v186, %v186
  %v217 = vpack.c.bf16 %v171, %v171
  %v218 = vpack.c.bf16 %v187, %v187
  %v219 = vpack.c.bf16 %v172, %v172
  %v220 = vpack.c.bf16 %v188, %v188
  %vm221 = vsmask.f32 3328
  %vm222 = vsmask.f32 7440
  %vm223 = vmor %vm221, %vm222
  %v225 = vshrl.u32 %v189, 16
  %v227 = vrot.slane %v225, 4
  %v228 = vshll.u32 %v189, 16
  %v230 = vrot.slane %v228, 5
  %v231 = vor.u32 %v227, %v230
  %v232 = vrot.slane %v231, 4
  %v234 = vshll.u32 %v190, 16
  %v236 = vrot.slane %v234, 5
  %v237 = vsel %vm223, %v232, %v236
  %v239 = vshrl.u32 %v191, 16
  %v241 = vrot.slane %v239, 4
  %v242 = vshll.u32 %v191, 16
  %v244 = vrot.slane %v242, 5
  %v245 = vor.u32 %v241, %v244
  %v246 = vrot.slane %v245, 4
  %v248 = vshll.u32 %v192, 16
  %v250 = vrot.slane %v248, 5
  %v251 = vsel %vm223, %v246, %v250
  %v253 = vshrl.u32 %v193, 16
  %v255 = vrot.slane %v253, 4
  %v256 = vshll.u32 %v193, 16
  %v258 = vrot.slane %v256, 5
  %v259 = vor.u32 %v255, %v258
  %v260 = vrot.slane %v259, 4
  %v262 = vshll.u32 %v194, 16
  %v264 = vrot.slane %v262, 5
  %v265 = vsel %vm223, %v260, %v264
  %v267 = vshrl.u32 %v195, 16
  %v269 = vrot.slane %v267, 4
  %v270 = vshll.u32 %v195, 16
  %v272 = vrot.slane %v270, 5
  %v273 = vor.u32 %v269, %v272
  %v274 = vrot.slane %v273, 4
  %v276 = vshll.u32 %v196, 16
  %v278 = vrot.slane %v276, 5
  %v279 = vsel %vm223, %v274, %v278
  %v281 = vshrl.u32 %v197, 16
  %v283 = vrot.slane %v281, 4
  %v284 = vshll.u32 %v197, 16
  %v286 = vrot.slane %v284, 5
  %v287 = vor.u32 %v283, %v286
  %v288 = vrot.slane %v287, 4
  %v290 = vshll.u32 %v198, 16
  %v292 = vrot.slane %v290, 5
  %v293 = vsel %vm223, %v288, %v292
  %v295 = vshrl.u32 %v199, 16
  %v297 = vrot.slane %v295, 4
  %v298 = vshll.u32 %v199, 16
  %v300 = vrot.slane %v298, 5
  %v301 = vor.u32 %v297, %v300
  %v302 = vrot.slane %v301, 4
  %v304 = vshll.u32 %v200, 16
  %v306 = vrot.slane %v304, 5
  %v307 = vsel %vm223, %v302, %v306
  %v309 = vshrl.u32 %v201, 16
  %v311 = vrot.slane %v309, 4
  %v312 = vshll.u32 %v201, 16
  %v314 = vrot.slane %v312, 5
  %v315 = vor.u32 %v311, %v314
  %v316 = vrot.slane %v315, 4
  %v318 = vshll.u32 %v202, 16
  %v320 = vrot.slane %v318, 5
  %v321 = vsel %vm223, %v316, %v320
  %v323 = vshrl.u32 %v203, 16
  %v325 = vrot.slane %v323, 4
  %v326 = vshll.u32 %v203, 16
  %v328 = vrot.slane %v326, 5
  %v329 = vor.u32 %v325, %v328
  %v330 = vrot.slane %v329, 4
  %v332 = vshll.u32 %v204, 16
  %v334 = vrot.slane %v332, 5
  %v335 = vsel %vm223, %v330, %v334
  %v337 = vshrl.u32 %v205, 16
  %v339 = vrot.slane %v337, 4
  %v340 = vshll.u32 %v205, 16
  %v342 = vrot.slane %v340, 5
  %v343 = vor.u32 %v339, %v342
  %v344 = vrot.slane %v343, 4
  %v346 = vshll.u32 %v206, 16
  %v348 = vrot.slane %v346, 5
  %v349 = vsel %vm223, %v344, %v348
  %v351 = vshrl.u32 %v207, 16
  %v353 = vrot.slane %v351, 4
  %v354 = vshll.u32 %v207, 16
  %v356 = vrot.slane %v354, 5
  %v357 = vor.u32 %v353, %v356
  %v358 = vrot.slane %v357, 4
  %v360 = vshll.u32 %v208, 16
  %v362 = vrot.slane %v360, 5
  %v363 = vsel %vm223, %v358, %v362
  %v365 = vshrl.u32 %v209, 16
  %v367 = vrot.slane %v365, 4
  %v368 = vshll.u32 %v209, 16
  %v370 = vrot.slane %v368, 5
  %v371 = vor.u32 %v367, %v370
  %v372 = vrot.slane %v371, 4
  %v374 = vshll.u32 %v210, 16
  %v376 = vrot.slane %v374, 5
  %v377 = vsel %vm223, %v372, %v376
  %v379 = vshrl.u32 %v211, 16
  %v381 = vrot.slane %v379, 4
  %v382 = vshll.u32 %v211, 16
  %v384 = vrot.slane %v382, 5
  %v385 = vor.u32 %v381, %v384
  %v386 = vrot.slane %v385, 4
  %v388 = vshll.u32 %v212, 16
  %v390 = vrot.slane %v388, 5
  %v391 = vsel %vm223, %v386, %v390
  %v393 = vshrl.u32 %v213, 16
  %v395 = vrot.slane %v393, 4
  %v396 = vshll.u32 %v213, 16
  %v398 = vrot.slane %v396, 5
  %v399 = vor.u32 %v395, %v398
  %v400 = vrot.slane %v399, 4
  %v402 = vshll.u32 %v214, 16
  %v404 = vrot.slane %v402, 5
  %v405 = vsel %vm223, %v400, %v404
  %v407 = vshrl.u32 %v215, 16
  %v409 = vrot.slane %v407, 4
  %v410 = vshll.u32 %v215, 16
  %v412 = vrot.slane %v410, 5
  %v413 = vor.u32 %v409, %v412
  %v414 = vrot.slane %v413, 4
  %v416 = vshll.u32 %v216, 16
  %v418 = vrot.slane %v416, 5
  %v419 = vsel %vm223, %v414, %v418
  %v421 = vshrl.u32 %v217, 16
  %v423 = vrot.slane %v421, 4
  %v424 = vshll.u32 %v217, 16
  %v426 = vrot.slane %v424, 5
  %v427 = vor.u32 %v423, %v426
  %v428 = vrot.slane %v427, 4
  %v430 = vshll.u32 %v218, 16
  %v432 = vrot.slane %v430, 5
  %v433 = vsel %vm223, %v428, %v432
  %v435 = vshrl.u32 %v219, 16
  %v437 = vrot.slane %v435, 4
  %v438 = vshll.u32 %v219, 16
  %v440 = vrot.slane %v438, 5
  %v441 = vor.u32 %v437, %v440
  %v442 = vrot.slane %v441, 4
  %v444 = vshll.u32 %v220, 16
  %v446 = vrot.slane %v444, 5
  %v447 = vsel %vm223, %v442, %v446
  %v448 = vunpack.c.l.b16 %v237
  %v449 = vunpack.c.l.b16 %v251
  %v450 = vunpack.c.l.b16 %v265
  %v451 = vunpack.c.l.b16 %v279
  %v452 = vunpack.c.l.b16 %v293
  %v453 = vunpack.c.l.b16 %v307
  %v454 = vunpack.c.l.b16 %v321
  %v455 = vunpack.c.l.b16 %v335
  %v456 = vunpack.c.l.b16 %v349
  %v457 = vunpack.c.l.b16 %v363
  %v458 = vunpack.c.l.b16 %v377
  %v459 = vunpack.c.l.b16 %v391
  %v460 = vunpack.c.l.b16 %v405
  %v461 = vunpack.c.l.b16 %v419
  %v462 = vunpack.c.l.b16 %v433
  %v463 = vunpack.c.l.b16 %v447
  %v464 = vpack.c.b16 %v449, %v448
  %v465 = vpack.c.b16 %v451, %v450
  %v466 = vpack.c.b16 %v453, %v452
  %v467 = vpack.c.b16 %v455, %v454
  %v468 = vpack.c.b16 %v457, %v456
  %v469 = vpack.c.b16 %v459, %v458
  %v470 = vpack.c.b16 %v461, %v460
  %v471 = vpack.c.b16 %v463, %v462
  %vm472 = vcmask 64512
  %v474 = vsel %vm472, %v464, 0
  %v477 = vsel %vm472, %v465, 0
  %v480 = vsel %vm472, %v466, 0
  %v483 = vsel %vm472, %v467, 0
  %v486 = vsel %vm472, %v468, 0
  %v489 = vsel %vm472, %v469, 0
  %v492 = vsel %vm472, %v470, 0
  %v495 = vsel %vm472, %v471, 0
  %vm497 = vcmask 1043456
  %v499 = vsel %vm497, %v102, 0
  %501 = vmatpush.bf16.msra.mxu0 0
  %502 = vmatpush.bf16.msra.mxu0 0
  %503 = vmatpush.bf16.msra.mxu0 0
  %504 = vmatpush.bf16.msra.mxu0 0
  %505 = vmatpush.bf16.msra.mxu0 0
  %506 = vmatpush.bf16.msra.mxu0 0
  %507 = vmatpush.bf16.msra.mxu0 0
  %508 = vmatpush.bf16.msra.mxu0 %v499
  %509 = vmatmul.bf16.gmra.mxu0 %v474
  %v510 = vpop.f32.mrf.mxu0
  %v511 = vadd.f32 0.0, %v510
  %v512 = vpop.f32.mrf.mxu0
  %v513 = vadd.f32 0.0, %v512
  %514 = vmatmul.bf16.gmra.mxu0 %v477
  %v515 = vpop.f32.mrf.mxu0
  %v516 = vadd.f32 0.0, %v515
  %v517 = vpop.f32.mrf.mxu0
  %v518 = vadd.f32 0.0, %v517
  %519 = vmatmul.bf16.gmra.mxu0 %v480
  %v520 = vpop.f32.mrf.mxu0
  %v521 = vadd.f32 0.0, %v520
  %v522 = vpop.f32.mrf.mxu0
  %v523 = vadd.f32 0.0, %v522
  %524 = vmatmul.bf16.gmra.mxu0 %v483
  %v525 = vpop.f32.mrf.mxu0
  %v526 = vadd.f32 0.0, %v525
  %v527 = vpop.f32.mrf.mxu0
  %v528 = vadd.f32 0.0, %v527
  %529 = vmatmul.bf16.gmra.mxu0 %v486
  %v530 = vpop.f32.mrf.mxu0
  %v531 = vadd.f32 0.0, %v530
  %v532 = vpop.f32.mrf.mxu0
  %v533 = vadd.f32 0.0, %v532
  %534 = vmatmul.bf16.gmra.mxu0 %v489
  %v535 = vpop.f32.mrf.mxu0
  %v536 = vadd.f32 0.0, %v535
  %v537 = vpop.f32.mrf.mxu0
  %v538 = vadd.f32 0.0, %v537
  %539 = vmatmul.bf16.gmra.mxu0 %v492
  %v540 = vpop.f32.mrf.mxu0
  %v541 = vadd.f32 0.0, %v540
  %v542 = vpop.f32.mrf.mxu0
  %v543 = vadd.f32 0.0, %v542
  %544 = vmatmul.bf16.gmra.mxu0 %v495
  %v545 = vpop.f32.mrf.mxu0
  %v546 = vadd.f32 0.0, %v545
  %v547 = vpop.f32.mrf.mxu0
  %v548 = vadd.f32 0.0, %v547
  %549 = vdwg.mxu0
  %v566 = vunpack.c.l.b16 %v189
  %v567 = vunpack.c.l.b16 %v191
  %v568 = vunpack.c.l.b16 %v193
  %v569 = vunpack.c.l.b16 %v195
  %v570 = vunpack.c.l.b16 %v197
  %v571 = vunpack.c.l.b16 %v199
  %v572 = vunpack.c.l.b16 %v201
  %v573 = vunpack.c.l.b16 %v203
  %v574 = vunpack.c.l.b16 %v205
  %v575 = vunpack.c.l.b16 %v207
  %v576 = vunpack.c.l.b16 %v209
  %v577 = vunpack.c.l.b16 %v211
  %v578 = vunpack.c.l.b16 %v213
  %v579 = vunpack.c.l.b16 %v215
  %v580 = vunpack.c.l.b16 %v217
  %v581 = vunpack.c.l.b16 %v219
  %v582 = vpack.c.b16 %v567, %v566
  %v583 = vpack.c.b16 %v569, %v568
  %v584 = vpack.c.b16 %v571, %v570
  %v585 = vpack.c.b16 %v573, %v572
  %v586 = vpack.c.b16 %v575, %v574
  %v587 = vpack.c.b16 %v577, %v576
  %v588 = vpack.c.b16 %v579, %v578
  %v589 = vpack.c.b16 %v581, %v580
  %v591 = vsel %vm472, %v582, 0
  %v594 = vsel %vm472, %v583, 0
  %v597 = vsel %vm472, %v584, 0
  %v600 = vsel %vm472, %v585, 0
  %v603 = vsel %vm472, %v586, 0
  %v606 = vsel %vm472, %v587, 0
  %v609 = vsel %vm472, %v588, 0
  %v612 = vsel %vm472, %v589, 0
  %v615 = vsel %vm497, %v101, 0
  %617 = vmatpush.bf16.msra.mxu0 0
  %618 = vmatpush.bf16.msra.mxu0 0
  %619 = vmatpush.bf16.msra.mxu0 0
  %620 = vmatpush.bf16.msra.mxu0 0
  %621 = vmatpush.bf16.msra.mxu0 0
  %622 = vmatpush.bf16.msra.mxu0 0
  %623 = vmatpush.bf16.msra.mxu0 0
  %624 = vmatpush.bf16.msra.mxu0 %v615
  %625 = vmatmul.bf16.gmra.mxu0 %v591
  %v626 = vpop.f32.mrf.mxu0
  %v627 = vadd.f32 %v511, %v626
  %v628 = vpop.f32.mrf.mxu0
  %v629 = vadd.f32 %v513, %v628
  %630 = vmatmul.bf16.gmra.mxu0 %v594
  %v631 = vpop.f32.mrf.mxu0
  %v632 = vadd.f32 %v516, %v631
  %v633 = vpop.f32.mrf.mxu0
  %v634 = vadd.f32 %v518, %v633
  %635 = vmatmul.bf16.gmra.mxu0 %v597
  %v636 = vpop.f32.mrf.mxu0
  %v637 = vadd.f32 %v521, %v636
  %v638 = vpop.f32.mrf.mxu0
  %v639 = vadd.f32 %v523, %v638
  %640 = vmatmul.bf16.gmra.mxu0 %v600
  %v641 = vpop.f32.mrf.mxu0
  %v642 = vadd.f32 %v526, %v641
  %v643 = vpop.f32.mrf.mxu0
  %v644 = vadd.f32 %v528, %v643
  %645 = vmatmul.bf16.gmra.mxu0 %v603
  %v646 = vpop.f32.mrf.mxu0
  %v647 = vadd.f32 %v531, %v646
  %v648 = vpop.f32.mrf.mxu0
  %v649 = vadd.f32 %v533, %v648
  %650 = vmatmul.bf16.gmra.mxu0 %v606
  %v651 = vpop.f32.mrf.mxu0
  %v652 = vadd.f32 %v536, %v651
  %v653 = vpop.f32.mrf.mxu0
  %v654 = vadd.f32 %v538, %v653
  %655 = vmatmul.bf16.gmra.mxu0 %v609
  %v656 = vpop.f32.mrf.mxu0
  %v657 = vadd.f32 %v541, %v656
  %v658 = vpop.f32.mrf.mxu0
  %v659 = vadd.f32 %v543, %v658
  %660 = vmatmul.bf16.gmra.mxu0 %v612
  %v661 = vpop.f32.mrf.mxu0
  %v662 = vadd.f32 %v546, %v661
  %v663 = vpop.f32.mrf.mxu0
  %v664 = vadd.f32 %v548, %v663
  %665 = vdwg.mxu0
  %vm682 = vcmask 1042432
  %vm683 = vcmask 1046532
  %vm684 = vmor %vm682, %vm683
  %v685 = vrot.slane %v189, 5
  %v686 = vrot.slane %v685, 4
  %v687 = vrot.slane %v190, 5
  %v688 = vsel %vm684, %v686, %v687
  %v689 = vrot.slane %v191, 5
  %v690 = vrot.slane %v689, 4
  %v691 = vrot.slane %v192, 5
  %v692 = vsel %vm684, %v690, %v691
  %v693 = vrot.slane %v193, 5
  %v694 = vrot.slane %v693, 4
  %v695 = vrot.slane %v194, 5
  %v696 = vsel %vm684, %v694, %v695
  %v697 = vrot.slane %v195, 5
  %v698 = vrot.slane %v697, 4
  %v699 = vrot.slane %v196, 5
  %v700 = vsel %vm684, %v698, %v699
  %v701 = vrot.slane %v197, 5
  %v702 = vrot.slane %v701, 4
  %v703 = vrot.slane %v198, 5
  %v704 = vsel %vm684, %v702, %v703
  %v705 = vrot.slane %v199, 5
  %v706 = vrot.slane %v705, 4
  %v707 = vrot.slane %v200, 5
  %v708 = vsel %vm684, %v706, %v707
  %v709 = vrot.slane %v201, 5
  %v710 = vrot.slane %v709, 4
  %v711 = vrot.slane %v202, 5
  %v712 = vsel %vm684, %v710, %v711
  %v713 = vrot.slane %v203, 5
  %v714 = vrot.slane %v713, 4
  %v715 = vrot.slane %v204, 5
  %v716 = vsel %vm684, %v714, %v715
  %v717 = vrot.slane %v205, 5
  %v718 = vrot.slane %v717, 4
  %v719 = vrot.slane %v206, 5
  %v720 = vsel %vm684, %v718, %v719
  %v721 = vrot.slane %v207, 5
  %v722 = vrot.slane %v721, 4
  %v723 = vrot.slane %v208, 5
  %v724 = vsel %vm684, %v722, %v723
  %v725 = vrot.slane %v209, 5
  %v726 = vrot.slane %v725, 4
  %v727 = vrot.slane %v210, 5
  %v728 = vsel %vm684, %v726, %v727
  %v729 = vrot.slane %v211, 5
  %v730 = vrot.slane %v729, 4
  %v731 = vrot.slane %v212, 5
  %v732 = vsel %vm684, %v730, %v731
  %v733 = vrot.slane %v213, 5
  %v734 = vrot.slane %v733, 4
  %v735 = vrot.slane %v214, 5
  %v736 = vsel %vm684, %v734, %v735
  %v737 = vrot.slane %v215, 5
  %v738 = vrot.slane %v737, 4
  %v739 = vrot.slane %v216, 5
  %v740 = vsel %vm684, %v738, %v739
  %v741 = vrot.slane %v217, 5
  %v742 = vrot.slane %v741, 4
  %v743 = vrot.slane %v218, 5
  %v744 = vsel %vm684, %v742, %v743
  %v745 = vrot.slane %v219, 5
  %v746 = vrot.slane %v745, 4
  %v747 = vrot.slane %v220, 5
  %v748 = vsel %vm684, %v746, %v747
  %v749 = vunpack.c.l.b16 %v688
  %v750 = vunpack.c.l.b16 %v692
  %v751 = vunpack.c.l.b16 %v696
  %v752 = vunpack.c.l.b16 %v700
  %v753 = vunpack.c.l.b16 %v704
  %v754 = vunpack.c.l.b16 %v708
  %v755 = vunpack.c.l.b16 %v712
  %v756 = vunpack.c.l.b16 %v716
  %v757 = vunpack.c.l.b16 %v720
  %v758 = vunpack.c.l.b16 %v724
  %v759 = vunpack.c.l.b16 %v728
  %v760 = vunpack.c.l.b16 %v732
  %v761 = vunpack.c.l.b16 %v736
  %v762 = vunpack.c.l.b16 %v740
  %v763 = vunpack.c.l.b16 %v744
  %v764 = vunpack.c.l.b16 %v748
  %v765 = vpack.c.b16 %v750, %v749
  %v766 = vpack.c.b16 %v752, %v751
  %v767 = vpack.c.b16 %v754, %v753
  %v768 = vpack.c.b16 %v756, %v755
  %v769 = vpack.c.b16 %v758, %v757
  %v770 = vpack.c.b16 %v760, %v759
  %v771 = vpack.c.b16 %v762, %v761
  %v772 = vpack.c.b16 %v764, %v763
  %v774 = vsel %vm472, %v765, 0
  %v777 = vsel %vm472, %v766, 0
  %v780 = vsel %vm472, %v767, 0
  %v783 = vsel %vm472, %v768, 0
  %v786 = vsel %vm472, %v769, 0
  %v789 = vsel %vm472, %v770, 0
  %v792 = vsel %vm472, %v771, 0
  %v795 = vsel %vm472, %v772, 0
  %v798 = vsel %vm497, %v103, 0
  %800 = vmatpush.bf16.msra.mxu0 0
  %801 = vmatpush.bf16.msra.mxu0 0
  %802 = vmatpush.bf16.msra.mxu0 0
  %803 = vmatpush.bf16.msra.mxu0 0
  %804 = vmatpush.bf16.msra.mxu0 0
  %805 = vmatpush.bf16.msra.mxu0 0
  %806 = vmatpush.bf16.msra.mxu0 0
  %807 = vmatpush.bf16.msra.mxu0 %v798
  %808 = vmatmul.bf16.gmra.mxu0 %v774
  %v809 = vpop.f32.mrf.mxu0
  %v810 = vadd.f32 0.0, %v809
  %v811 = vpop.f32.mrf.mxu0
  %v812 = vadd.f32 0.0, %v811
  %813 = vmatmul.bf16.gmra.mxu0 %v777
  %v814 = vpop.f32.mrf.mxu0
  %v815 = vadd.f32 0.0, %v814
  %v816 = vpop.f32.mrf.mxu0
  %v817 = vadd.f32 0.0, %v816
  %818 = vmatmul.bf16.gmra.mxu0 %v780
  %v819 = vpop.f32.mrf.mxu0
  %v820 = vadd.f32 0.0, %v819
  %v821 = vpop.f32.mrf.mxu0
  %v822 = vadd.f32 0.0, %v821
  %823 = vmatmul.bf16.gmra.mxu0 %v783
  %v824 = vpop.f32.mrf.mxu0
  %v825 = vadd.f32 0.0, %v824
  %v826 = vpop.f32.mrf.mxu0
  %v827 = vadd.f32 0.0, %v826
  %828 = vmatmul.bf16.gmra.mxu0 %v786
  %v829 = vpop.f32.mrf.mxu0
  %v830 = vadd.f32 0.0, %v829
  %v831 = vpop.f32.mrf.mxu0
  %v832 = vadd.f32 0.0, %v831
  %833 = vmatmul.bf16.gmra.mxu0 %v789
  %v834 = vpop.f32.mrf.mxu0
  %v835 = vadd.f32 0.0, %v834
  %v836 = vpop.f32.mrf.mxu0
  %v837 = vadd.f32 0.0, %v836
  %838 = vmatmul.bf16.gmra.mxu0 %v792
  %v839 = vpop.f32.mrf.mxu0
  %v840 = vadd.f32 0.0, %v839
  %v841 = vpop.f32.mrf.mxu0
  %v842 = vadd.f32 0.0, %v841
  %843 = vmatmul.bf16.gmra.mxu0 %v795
  %v844 = vpop.f32.mrf.mxu0
  %v845 = vadd.f32 0.0, %v844
  %v846 = vpop.f32.mrf.mxu0
  %v847 = vadd.f32 0.0, %v846
  %848 = vdwg.mxu0
  %v849 = vadd.f32 %v627, %v810
  %v850 = vadd.f32 %v629, %v812
  %v851 = vadd.f32 %v632, %v815
  %v852 = vadd.f32 %v634, %v817
  %v853 = vadd.f32 %v637, %v820
  %v854 = vadd.f32 %v639, %v822
  %v855 = vadd.f32 %v642, %v825
  %v856 = vadd.f32 %v644, %v827
  %v857 = vadd.f32 %v647, %v830
  %v858 = vadd.f32 %v649, %v832
  %v859 = vadd.f32 %v652, %v835
  %v860 = vadd.f32 %v654, %v837
  %v861 = vadd.f32 %v657, %v840
  %v862 = vadd.f32 %v659, %v842
  %v863 = vadd.f32 %v662, %v845
  %v864 = vadd.f32 %v664, %v847
  %vm865 = vsmask.f32 2304
  %vm866 = vsmask.f32 6416
  %vm867 = vmor %vm865, %vm866
  %v868 = vrot.slane %v225, 5
  %v869 = vrot.slane %v228, 6
  %v870 = vor.u32 %v868, %v869
  %v871 = vrot.slane %v870, 4
  %v872 = vshrl.u32 %v190, 16
  %v874 = vrot.slane %v872, 5
  %v875 = vrot.slane %v234, 6
  %v876 = vor.u32 %v874, %v875
  %v877 = vsel %vm867, %v871, %v876
  %v878 = vrot.slane %v239, 5
  %v879 = vrot.slane %v242, 6
  %v880 = vor.u32 %v878, %v879
  %v881 = vrot.slane %v880, 4
  %v882 = vshrl.u32 %v192, 16
  %v884 = vrot.slane %v882, 5
  %v885 = vrot.slane %v248, 6
  %v886 = vor.u32 %v884, %v885
  %v887 = vsel %vm867, %v881, %v886
  %v888 = vrot.slane %v253, 5
  %v889 = vrot.slane %v256, 6
  %v890 = vor.u32 %v888, %v889
  %v891 = vrot.slane %v890, 4
  %v892 = vshrl.u32 %v194, 16
  %v894 = vrot.slane %v892, 5
  %v895 = vrot.slane %v262, 6
  %v896 = vor.u32 %v894, %v895
  %v897 = vsel %vm867, %v891, %v896
  %v898 = vrot.slane %v267, 5
  %v899 = vrot.slane %v270, 6
  %v900 = vor.u32 %v898, %v899
  %v901 = vrot.slane %v900, 4
  %v902 = vshrl.u32 %v196, 16
  %v904 = vrot.slane %v902, 5
  %v905 = vrot.slane %v276, 6
  %v906 = vor.u32 %v904, %v905
  %v907 = vsel %vm867, %v901, %v906
  %v908 = vrot.slane %v281, 5
  %v909 = vrot.slane %v284, 6
  %v910 = vor.u32 %v908, %v909
  %v911 = vrot.slane %v910, 4
  %v912 = vshrl.u32 %v198, 16
  %v914 = vrot.slane %v912, 5
  %v915 = vrot.slane %v290, 6
  %v916 = vor.u32 %v914, %v915
  %v917 = vsel %vm867, %v911, %v916
  %v918 = vrot.slane %v295, 5
  %v919 = vrot.slane %v298, 6
  %v920 = vor.u32 %v918, %v919
  %v921 = vrot.slane %v920, 4
  %v922 = vshrl.u32 %v200, 16
  %v924 = vrot.slane %v922, 5
  %v925 = vrot.slane %v304, 6
  %v926 = vor.u32 %v924, %v925
  %v927 = vsel %vm867, %v921, %v926
  %v928 = vrot.slane %v309, 5
  %v929 = vrot.slane %v312, 6
  %v930 = vor.u32 %v928, %v929
  %v931 = vrot.slane %v930, 4
  %v932 = vshrl.u32 %v202, 16
  %v934 = vrot.slane %v932, 5
  %v935 = vrot.slane %v318, 6
  %v936 = vor.u32 %v934, %v935
  %v937 = vsel %vm867, %v931, %v936
  %v938 = vrot.slane %v323, 5
  %v939 = vrot.slane %v326, 6
  %v940 = vor.u32 %v938, %v939
  %v941 = vrot.slane %v940, 4
  %v942 = vshrl.u32 %v204, 16
  %v944 = vrot.slane %v942, 5
  %v945 = vrot.slane %v332, 6
  %v946 = vor.u32 %v944, %v945
  %v947 = vsel %vm867, %v941, %v946
  %v948 = vrot.slane %v337, 5
  %v949 = vrot.slane %v340, 6
  %v950 = vor.u32 %v948, %v949
  %v951 = vrot.slane %v950, 4
  %v952 = vshrl.u32 %v206, 16
  %v954 = vrot.slane %v952, 5
  %v955 = vrot.slane %v346, 6
  %v956 = vor.u32 %v954, %v955
  %v957 = vsel %vm867, %v951, %v956
  %v958 = vrot.slane %v351, 5
  %v959 = vrot.slane %v354, 6
  %v960 = vor.u32 %v958, %v959
  %v961 = vrot.slane %v960, 4
  %v962 = vshrl.u32 %v208, 16
  %v964 = vrot.slane %v962, 5
  %v965 = vrot.slane %v360, 6
  %v966 = vor.u32 %v964, %v965
  %v967 = vsel %vm867, %v961, %v966
  %v968 = vrot.slane %v365, 5
  %v969 = vrot.slane %v368, 6
  %v970 = vor.u32 %v968, %v969
  %v971 = vrot.slane %v970, 4
  %v972 = vshrl.u32 %v210, 16
  %v974 = vrot.slane %v972, 5
  %v975 = vrot.slane %v374, 6
  %v976 = vor.u32 %v974, %v975
  %v977 = vsel %vm867, %v971, %v976
  %v978 = vrot.slane %v379, 5
  %v979 = vrot.slane %v382, 6
  %v980 = vor.u32 %v978, %v979
  %v981 = vrot.slane %v980, 4
  %v982 = vshrl.u32 %v212, 16
  %v984 = vrot.slane %v982, 5
  %v985 = vrot.slane %v388, 6
  %v986 = vor.u32 %v984, %v985
  %v987 = vsel %vm867, %v981, %v986
  %v988 = vrot.slane %v393, 5
  %v989 = vrot.slane %v396, 6
  %v990 = vor.u32 %v988, %v989
  %v991 = vrot.slane %v990, 4
  %v992 = vshrl.u32 %v214, 16
  %v994 = vrot.slane %v992, 5
  %v995 = vrot.slane %v402, 6
  %v996 = vor.u32 %v994, %v995
  %v997 = vsel %vm867, %v991, %v996
  %v998 = vrot.slane %v407, 5
  %v999 = vrot.slane %v410, 6
  %v1000 = vor.u32 %v998, %v999
  %v1001 = vrot.slane %v1000, 4
  %v1002 = vshrl.u32 %v216, 16
  %v1004 = vrot.slane %v1002, 5
  %v1005 = vrot.slane %v416, 6
  %v1006 = vor.u32 %v1004, %v1005
  %v1007 = vsel %vm867, %v1001, %v1006
  %v1008 = vrot.slane %v421, 5
  %v1009 = vrot.slane %v424, 6
  %v1010 = vor.u32 %v1008, %v1009
  %v1011 = vrot.slane %v1010, 4
  %v1012 = vshrl.u32 %v218, 16
  %v1014 = vrot.slane %v1012, 5
  %v1015 = vrot.slane %v430, 6
  %v1016 = vor.u32 %v1014, %v1015
  %v1017 = vsel %vm867, %v1011, %v1016
  %v1018 = vrot.slane %v435, 5
  %v1019 = vrot.slane %v438, 6
  %v1020 = vor.u32 %v1018, %v1019
  %v1021 = vrot.slane %v1020, 4
  %v1022 = vshrl.u32 %v220, 16
  %v1024 = vrot.slane %v1022, 5
  %v1025 = vrot.slane %v444, 6
  %v1026 = vor.u32 %v1024, %v1025
  %v1027 = vsel %vm867, %v1021, %v1026
  %v1028 = vunpack.c.l.b16 %v877
  %v1029 = vunpack.c.l.b16 %v887
  %v1030 = vunpack.c.l.b16 %v897
  %v1031 = vunpack.c.l.b16 %v907
  %v1032 = vunpack.c.l.b16 %v917
  %v1033 = vunpack.c.l.b16 %v927
  %v1034 = vunpack.c.l.b16 %v937
  %v1035 = vunpack.c.l.b16 %v947
  %v1036 = vunpack.c.l.b16 %v957
  %v1037 = vunpack.c.l.b16 %v967
  %v1038 = vunpack.c.l.b16 %v977
  %v1039 = vunpack.c.l.b16 %v987
  %v1040 = vunpack.c.l.b16 %v997
  %v1041 = vunpack.c.l.b16 %v1007
  %v1042 = vunpack.c.l.b16 %v1017
  %v1043 = vunpack.c.l.b16 %v1027
  %v1044 = vpack.c.b16 %v1029, %v1028
  %v1045 = vpack.c.b16 %v1031, %v1030
  %v1046 = vpack.c.b16 %v1033, %v1032
  %v1047 = vpack.c.b16 %v1035, %v1034
  %v1048 = vpack.c.b16 %v1037, %v1036
  %v1049 = vpack.c.b16 %v1039, %v1038
  %v1050 = vpack.c.b16 %v1041, %v1040
  %v1051 = vpack.c.b16 %v1043, %v1042
  %v1053 = vsel %vm472, %v1044, 0
  %v1056 = vsel %vm472, %v1045, 0
  %v1059 = vsel %vm472, %v1046, 0
  %v1062 = vsel %vm472, %v1047, 0
  %v1065 = vsel %vm472, %v1048, 0
  %v1068 = vsel %vm472, %v1049, 0
  %v1071 = vsel %vm472, %v1050, 0
  %v1074 = vsel %vm472, %v1051, 0
  %v1077 = vsel %vm497, %v104, 0
  %1079 = vmatpush.bf16.msra.mxu0 0
  %1080 = vmatpush.bf16.msra.mxu0 0
  %1081 = vmatpush.bf16.msra.mxu0 0
  %1082 = vmatpush.bf16.msra.mxu0 0
  %1083 = vmatpush.bf16.msra.mxu0 0
  %1084 = vmatpush.bf16.msra.mxu0 0
  %1085 = vmatpush.bf16.msra.mxu0 0
  %1086 = vmatpush.bf16.msra.mxu0 %v1077
  %1087 = vmatmul.bf16.gmra.mxu0 %v1053
  %v1088 = vpop.f32.mrf.mxu0
  %v1089 = vadd.f32 0.0, %v1088
  %v1090 = vpop.f32.mrf.mxu0
  %v1091 = vadd.f32 0.0, %v1090
  %1092 = vmatmul.bf16.gmra.mxu0 %v1056
  %v1093 = vpop.f32.mrf.mxu0
  %v1094 = vadd.f32 0.0, %v1093
  %v1095 = vpop.f32.mrf.mxu0
  %v1096 = vadd.f32 0.0, %v1095
  %1097 = vmatmul.bf16.gmra.mxu0 %v1059
  %v1098 = vpop.f32.mrf.mxu0
  %v1099 = vadd.f32 0.0, %v1098
  %v1100 = vpop.f32.mrf.mxu0
  %v1101 = vadd.f32 0.0, %v1100
  %1102 = vmatmul.bf16.gmra.mxu0 %v1062
  %v1103 = vpop.f32.mrf.mxu0
  %v1104 = vadd.f32 0.0, %v1103
  %v1105 = vpop.f32.mrf.mxu0
  %v1106 = vadd.f32 0.0, %v1105
  %1107 = vmatmul.bf16.gmra.mxu0 %v1065
  %v1108 = vpop.f32.mrf.mxu0
  %v1109 = vadd.f32 0.0, %v1108
  %v1110 = vpop.f32.mrf.mxu0
  %v1111 = vadd.f32 0.0, %v1110
  %1112 = vmatmul.bf16.gmra.mxu0 %v1068
  %v1113 = vpop.f32.mrf.mxu0
  %v1114 = vadd.f32 0.0, %v1113
  %v1115 = vpop.f32.mrf.mxu0
  %v1116 = vadd.f32 0.0, %v1115
  %1117 = vmatmul.bf16.gmra.mxu0 %v1071
  %v1118 = vpop.f32.mrf.mxu0
  %v1119 = vadd.f32 0.0, %v1118
  %v1120 = vpop.f32.mrf.mxu0
  %v1121 = vadd.f32 0.0, %v1120
  %1122 = vmatmul.bf16.gmra.mxu0 %v1074
  %v1123 = vpop.f32.mrf.mxu0
  %v1124 = vadd.f32 0.0, %v1123
  %v1125 = vpop.f32.mrf.mxu0
  %v1126 = vadd.f32 0.0, %v1125
  %1127 = vdwg.mxu0
  %v1128 = vadd.f32 %v849, %v1089
  %v1129 = vadd.f32 %v850, %v1091
  %v1130 = vadd.f32 %v851, %v1094
  %v1131 = vadd.f32 %v852, %v1096
  %v1132 = vadd.f32 %v853, %v1099
  %v1133 = vadd.f32 %v854, %v1101
  %v1134 = vadd.f32 %v855, %v1104
  %v1135 = vadd.f32 %v856, %v1106
  %v1136 = vadd.f32 %v857, %v1109
  %v1137 = vadd.f32 %v858, %v1111
  %v1138 = vadd.f32 %v859, %v1114
  %v1139 = vadd.f32 %v860, %v1116
  %v1140 = vadd.f32 %v861, %v1119
  %v1141 = vadd.f32 %v862, %v1121
  %v1142 = vadd.f32 %v863, %v1124
  %v1143 = vadd.f32 %v864, %v1126
  %vm1144 = vcmask 1041408
  %vm1145 = vcmask 1045508
  %vm1146 = vmor %vm1144, %vm1145
  %v1147 = vrot.slane %v189, 6
  %v1148 = vrot.slane %v1147, 4
  %v1149 = vrot.slane %v190, 6
  %v1150 = vsel %vm1146, %v1148, %v1149
  %v1151 = vrot.slane %v191, 6
  %v1152 = vrot.slane %v1151, 4
  %v1153 = vrot.slane %v192, 6
  %v1154 = vsel %vm1146, %v1152, %v1153
  %v1155 = vrot.slane %v193, 6
  %v1156 = vrot.slane %v1155, 4
  %v1157 = vrot.slane %v194, 6
  %v1158 = vsel %vm1146, %v1156, %v1157
  %v1159 = vrot.slane %v195, 6
  %v1160 = vrot.slane %v1159, 4
  %v1161 = vrot.slane %v196, 6
  %v1162 = vsel %vm1146, %v1160, %v1161
  %v1163 = vrot.slane %v197, 6
  %v1164 = vrot.slane %v1163, 4
  %v1165 = vrot.slane %v198, 6
  %v1166 = vsel %vm1146, %v1164, %v1165
  %v1167 = vrot.slane %v199, 6
  %v1168 = vrot.slane %v1167, 4
  %v1169 = vrot.slane %v200, 6
  %v1170 = vsel %vm1146, %v1168, %v1169
  %v1171 = vrot.slane %v201, 6
  %v1172 = vrot.slane %v1171, 4
  %v1173 = vrot.slane %v202, 6
  %v1174 = vsel %vm1146, %v1172, %v1173
  %v1175 = vrot.slane %v203, 6
  %v1176 = vrot.slane %v1175, 4
  %v1177 = vrot.slane %v204, 6
  %v1178 = vsel %vm1146, %v1176, %v1177
  %v1179 = vrot.slane %v205, 6
  %v1180 = vrot.slane %v1179, 4
  %v1181 = vrot.slane %v206, 6
  %v1182 = vsel %vm1146, %v1180, %v1181
  %v1183 = vrot.slane %v207, 6
  %v1184 = vrot.slane %v1183, 4
  %v1185 = vrot.slane %v208, 6
  %v1186 = vsel %vm1146, %v1184, %v1185
  %v1187 = vrot.slane %v209, 6
  %v1188 = vrot.slane %v1187, 4
  %v1189 = vrot.slane %v210, 6
  %v1190 = vsel %vm1146, %v1188, %v1189
  %v1191 = vrot.slane %v211, 6
  %v1192 = vrot.slane %v1191, 4
  %v1193 = vrot.slane %v212, 6
  %v1194 = vsel %vm1146, %v1192, %v1193
  %v1195 = vrot.slane %v213, 6
  %v1196 = vrot.slane %v1195, 4
  %v1197 = vrot.slane %v214, 6
  %v1198 = vsel %vm1146, %v1196, %v1197
  %v1199 = vrot.slane %v215, 6
  %v1200 = vrot.slane %v1199, 4
  %v1201 = vrot.slane %v216, 6
  %v1202 = vsel %vm1146, %v1200, %v1201
  %v1203 = vrot.slane %v217, 6
  %v1204 = vrot.slane %v1203, 4
  %v1205 = vrot.slane %v218, 6
  %v1206 = vsel %vm1146, %v1204, %v1205
  %v1207 = vrot.slane %v219, 6
  %v1208 = vrot.slane %v1207, 4
  %v1209 = vrot.slane %v220, 6
  %v1210 = vsel %vm1146, %v1208, %v1209
  %v1211 = vunpack.c.l.b16 %v1150
  %v1212 = vunpack.c.l.b16 %v1154
  %v1213 = vunpack.c.l.b16 %v1158
  %v1214 = vunpack.c.l.b16 %v1162
  %v1215 = vunpack.c.l.b16 %v1166
  %v1216 = vunpack.c.l.b16 %v1170
  %v1217 = vunpack.c.l.b16 %v1174
  %v1218 = vunpack.c.l.b16 %v1178
  %v1219 = vunpack.c.l.b16 %v1182
  %v1220 = vunpack.c.l.b16 %v1186
  %v1221 = vunpack.c.l.b16 %v1190
  %v1222 = vunpack.c.l.b16 %v1194
  %v1223 = vunpack.c.l.b16 %v1198
  %v1224 = vunpack.c.l.b16 %v1202
  %v1225 = vunpack.c.l.b16 %v1206
  %v1226 = vunpack.c.l.b16 %v1210
  %v1227 = vpack.c.b16 %v1212, %v1211
  %v1228 = vpack.c.b16 %v1214, %v1213
  %v1229 = vpack.c.b16 %v1216, %v1215
  %v1230 = vpack.c.b16 %v1218, %v1217
  %v1231 = vpack.c.b16 %v1220, %v1219
  %v1232 = vpack.c.b16 %v1222, %v1221
  %v1233 = vpack.c.b16 %v1224, %v1223
  %v1234 = vpack.c.b16 %v1226, %v1225
  %v1236 = vsel %vm472, %v1227, 0
  %v1239 = vsel %vm472, %v1228, 0
  %v1242 = vsel %vm472, %v1229, 0
  %v1245 = vsel %vm472, %v1230, 0
  %v1248 = vsel %vm472, %v1231, 0
  %v1251 = vsel %vm472, %v1232, 0
  %v1254 = vsel %vm472, %v1233, 0
  %v1257 = vsel %vm472, %v1234, 0
  %v1260 = vsel %vm497, %v105, 0
  %1262 = vmatpush.bf16.msra.mxu0 0
  %1263 = vmatpush.bf16.msra.mxu0 0
  %1264 = vmatpush.bf16.msra.mxu0 0
  %1265 = vmatpush.bf16.msra.mxu0 0
  %1266 = vmatpush.bf16.msra.mxu0 0
  %1267 = vmatpush.bf16.msra.mxu0 0
  %1268 = vmatpush.bf16.msra.mxu0 0
  %1269 = vmatpush.bf16.msra.mxu0 %v1260
  %1270 = vmatmul.bf16.gmra.mxu0 %v1236
  %v1271 = vpop.f32.mrf.mxu0
  %v1272 = vadd.f32 0.0, %v1271
  %v1273 = vpop.f32.mrf.mxu0
  %v1274 = vadd.f32 0.0, %v1273
  %1275 = vmatmul.bf16.gmra.mxu0 %v1239
  %v1276 = vpop.f32.mrf.mxu0
  %v1277 = vadd.f32 0.0, %v1276
  %v1278 = vpop.f32.mrf.mxu0
  %v1279 = vadd.f32 0.0, %v1278
  %1280 = vmatmul.bf16.gmra.mxu0 %v1242
  %v1281 = vpop.f32.mrf.mxu0
  %v1282 = vadd.f32 0.0, %v1281
  %v1283 = vpop.f32.mrf.mxu0
  %v1284 = vadd.f32 0.0, %v1283
  %1285 = vmatmul.bf16.gmra.mxu0 %v1245
  %v1286 = vpop.f32.mrf.mxu0
  %v1287 = vadd.f32 0.0, %v1286
  %v1288 = vpop.f32.mrf.mxu0
  %v1289 = vadd.f32 0.0, %v1288
  %1290 = vmatmul.bf16.gmra.mxu0 %v1248
  %v1291 = vpop.f32.mrf.mxu0
  %v1292 = vadd.f32 0.0, %v1291
  %v1293 = vpop.f32.mrf.mxu0
  %v1294 = vadd.f32 0.0, %v1293
  %1295 = vmatmul.bf16.gmra.mxu0 %v1251
  %v1296 = vpop.f32.mrf.mxu0
  %v1297 = vadd.f32 0.0, %v1296
  %v1298 = vpop.f32.mrf.mxu0
  %v1299 = vadd.f32 0.0, %v1298
  %1300 = vmatmul.bf16.gmra.mxu0 %v1254
  %v1301 = vpop.f32.mrf.mxu0
  %v1302 = vadd.f32 0.0, %v1301
  %v1303 = vpop.f32.mrf.mxu0
  %v1304 = vadd.f32 0.0, %v1303
  %1305 = vmatmul.bf16.gmra.mxu0 %v1257
  %v1306 = vpop.f32.mrf.mxu0
  %v1307 = vadd.f32 0.0, %v1306
  %v1308 = vpop.f32.mrf.mxu0
  %v1309 = vadd.f32 0.0, %v1308
  %1310 = vdwg.mxu0
  %v1311 = vadd.f32 %v1128, %v1272
  %v1312 = vadd.f32 %v1129, %v1274
  %v1313 = vadd.f32 %v1130, %v1277
  %v1314 = vadd.f32 %v1131, %v1279
  %v1315 = vadd.f32 %v1132, %v1282
  %v1316 = vadd.f32 %v1133, %v1284
  %v1317 = vadd.f32 %v1134, %v1287
  %v1318 = vadd.f32 %v1135, %v1289
  %v1319 = vadd.f32 %v1136, %v1292
  %v1320 = vadd.f32 %v1137, %v1294
  %v1321 = vadd.f32 %v1138, %v1297
  %v1322 = vadd.f32 %v1139, %v1299
  %v1323 = vadd.f32 %v1140, %v1302
  %v1324 = vadd.f32 %v1141, %v1304
  %v1325 = vadd.f32 %v1142, %v1307
  %v1326 = vadd.f32 %v1143, %v1309
  %vm1327 = vsmask.f32 1280
  %vm1328 = vsmask.f32 5392
  %vm1329 = vmor %vm1327, %vm1328
  %v1330 = vrot.slane %v225, 6
  %v1331 = vrot.slane %v228, 7
  %v1332 = vor.u32 %v1330, %v1331
  %v1333 = vrot.slane %v1332, 4
  %v1334 = vrot.slane %v872, 6
  %v1335 = vrot.slane %v234, 7
  %v1336 = vor.u32 %v1334, %v1335
  %v1337 = vsel %vm1329, %v1333, %v1336
  %v1338 = vrot.slane %v239, 6
  %v1339 = vrot.slane %v242, 7
  %v1340 = vor.u32 %v1338, %v1339
  %v1341 = vrot.slane %v1340, 4
  %v1342 = vrot.slane %v882, 6
  %v1343 = vrot.slane %v248, 7
  %v1344 = vor.u32 %v1342, %v1343
  %v1345 = vsel %vm1329, %v1341, %v1344
  %v1346 = vrot.slane %v253, 6
  %v1347 = vrot.slane %v256, 7
  %v1348 = vor.u32 %v1346, %v1347
  %v1349 = vrot.slane %v1348, 4
  %v1350 = vrot.slane %v892, 6
  %v1351 = vrot.slane %v262, 7
  %v1352 = vor.u32 %v1350, %v1351
  %v1353 = vsel %vm1329, %v1349, %v1352
  %v1354 = vrot.slane %v267, 6
  %v1355 = vrot.slane %v270, 7
  %v1356 = vor.u32 %v1354, %v1355
  %v1357 = vrot.slane %v1356, 4
  %v1358 = vrot.slane %v902, 6
  %v1359 = vrot.slane %v276, 7
  %v1360 = vor.u32 %v1358, %v1359
  %v1361 = vsel %vm1329, %v1357, %v1360
  %v1362 = vrot.slane %v281, 6
  %v1363 = vrot.slane %v284, 7
  %v1364 = vor.u32 %v1362, %v1363
  %v1365 = vrot.slane %v1364, 4
  %v1366 = vrot.slane %v912, 6
  %v1367 = vrot.slane %v290, 7
  %v1368 = vor.u32 %v1366, %v1367
  %v1369 = vsel %vm1329, %v1365, %v1368
  %v1370 = vrot.slane %v295, 6
  %v1371 = vrot.slane %v298, 7
  %v1372 = vor.u32 %v1370, %v1371
  %v1373 = vrot.slane %v1372, 4
  %v1374 = vrot.slane %v922, 6
  %v1375 = vrot.slane %v304, 7
  %v1376 = vor.u32 %v1374, %v1375
  %v1377 = vsel %vm1329, %v1373, %v1376
  %v1378 = vrot.slane %v309, 6
  %v1379 = vrot.slane %v312, 7
  %v1380 = vor.u32 %v1378, %v1379
  %v1381 = vrot.slane %v1380, 4
  %v1382 = vrot.slane %v932, 6
  %v1383 = vrot.slane %v318, 7
  %v1384 = vor.u32 %v1382, %v1383
  %v1385 = vsel %vm1329, %v1381, %v1384
  %v1386 = vrot.slane %v323, 6
  %v1387 = vrot.slane %v326, 7
  %v1388 = vor.u32 %v1386, %v1387
  %v1389 = vrot.slane %v1388, 4
  %v1390 = vrot.slane %v942, 6
  %v1391 = vrot.slane %v332, 7
  %v1392 = vor.u32 %v1390, %v1391
  %v1393 = vsel %vm1329, %v1389, %v1392
  %v1394 = vrot.slane %v337, 6
  %v1395 = vrot.slane %v340, 7
  %v1396 = vor.u32 %v1394, %v1395
  %v1397 = vrot.slane %v1396, 4
  %v1398 = vrot.slane %v952, 6
  %v1399 = vrot.slane %v346, 7
  %v1400 = vor.u32 %v1398, %v1399
  %v1401 = vsel %vm1329, %v1397, %v1400
  %v1402 = vrot.slane %v351, 6
  %v1403 = vrot.slane %v354, 7
  %v1404 = vor.u32 %v1402, %v1403
  %v1405 = vrot.slane %v1404, 4
  %v1406 = vrot.slane %v962, 6
  %v1407 = vrot.slane %v360, 7
  %v1408 = vor.u32 %v1406, %v1407
  %v1409 = vsel %vm1329, %v1405, %v1408
  %v1410 = vrot.slane %v365, 6
  %v1411 = vrot.slane %v368, 7
  %v1412 = vor.u32 %v1410, %v1411
  %v1413 = vrot.slane %v1412, 4
  %v1414 = vrot.slane %v972, 6
  %v1415 = vrot.slane %v374, 7
  %v1416 = vor.u32 %v1414, %v1415
  %v1417 = vsel %vm1329, %v1413, %v1416
  %v1418 = vrot.slane %v379, 6
  %v1419 = vrot.slane %v382, 7
  %v1420 = vor.u32 %v1418, %v1419
  %v1421 = vrot.slane %v1420, 4
  %v1422 = vrot.slane %v982, 6
  %v1423 = vrot.slane %v388, 7
  %v1424 = vor.u32 %v1422, %v1423
  %v1425 = vsel %vm1329, %v1421, %v1424
  %v1426 = vrot.slane %v393, 6
  %v1427 = vrot.slane %v396, 7
  %v1428 = vor.u32 %v1426, %v1427
  %v1429 = vrot.slane %v1428, 4
  %v1430 = vrot.slane %v992, 6
  %v1431 = vrot.slane %v402, 7
  %v1432 = vor.u32 %v1430, %v1431
  %v1433 = vsel %vm1329, %v1429, %v1432
  %v1434 = vrot.slane %v407, 6
  %v1435 = vrot.slane %v410, 7
  %v1436 = vor.u32 %v1434, %v1435
  %v1437 = vrot.slane %v1436, 4
  %v1438 = vrot.slane %v1002, 6
  %v1439 = vrot.slane %v416, 7
  %v1440 = vor.u32 %v1438, %v1439
  %v1441 = vsel %vm1329, %v1437, %v1440
  %v1442 = vrot.slane %v421, 6
  %v1443 = vrot.slane %v424, 7
  %v1444 = vor.u32 %v1442, %v1443
  %v1445 = vrot.slane %v1444, 4
  %v1446 = vrot.slane %v1012, 6
  %v1447 = vrot.slane %v430, 7
  %v1448 = vor.u32 %v1446, %v1447
  %v1449 = vsel %vm1329, %v1445, %v1448
  %v1450 = vrot.slane %v435, 6
  %v1451 = vrot.slane %v438, 7
  %v1452 = vor.u32 %v1450, %v1451
  %v1453 = vrot.slane %v1452, 4
  %v1454 = vrot.slane %v1022, 6
  %v1455 = vrot.slane %v444, 7
  %v1456 = vor.u32 %v1454, %v1455
  %v1457 = vsel %vm1329, %v1453, %v1456
  %v1458 = vunpack.c.l.b16 %v1337
  %v1459 = vunpack.c.l.b16 %v1345
  %v1460 = vunpack.c.l.b16 %v1353
  %v1461 = vunpack.c.l.b16 %v1361
  %v1462 = vunpack.c.l.b16 %v1369
  %v1463 = vunpack.c.l.b16 %v1377
  %v1464 = vunpack.c.l.b16 %v1385
  %v1465 = vunpack.c.l.b16 %v1393
  %v1466 = vunpack.c.l.b16 %v1401
  %v1467 = vunpack.c.l.b16 %v1409
  %v1468 = vunpack.c.l.b16 %v1417
  %v1469 = vunpack.c.l.b16 %v1425
  %v1470 = vunpack.c.l.b16 %v1433
  %v1471 = vunpack.c.l.b16 %v1441
  %v1472 = vunpack.c.l.b16 %v1449
  %v1473 = vunpack.c.l.b16 %v1457
  %v1474 = vpack.c.b16 %v1459, %v1458
  %v1475 = vpack.c.b16 %v1461, %v1460
  %v1476 = vpack.c.b16 %v1463, %v1462
  %v1477 = vpack.c.b16 %v1465, %v1464
  %v1478 = vpack.c.b16 %v1467, %v1466
  %v1479 = vpack.c.b16 %v1469, %v1468
  %v1480 = vpack.c.b16 %v1471, %v1470
  %v1481 = vpack.c.b16 %v1473, %v1472
  %v1483 = vsel %vm472, %v1474, 0
  %v1486 = vsel %vm472, %v1475, 0
  %v1489 = vsel %vm472, %v1476, 0
  %v1492 = vsel %vm472, %v1477, 0
  %v1495 = vsel %vm472, %v1478, 0
  %v1498 = vsel %vm472, %v1479, 0
  %v1501 = vsel %vm472, %v1480, 0
  %v1504 = vsel %vm472, %v1481, 0
  %v1507 = vsel %vm497, %v106, 0
  %1509 = vmatpush.bf16.msra.mxu0 0
  %1510 = vmatpush.bf16.msra.mxu0 0
  %1511 = vmatpush.bf16.msra.mxu0 0
  %1512 = vmatpush.bf16.msra.mxu0 0
  %1513 = vmatpush.bf16.msra.mxu0 0
  %1514 = vmatpush.bf16.msra.mxu0 0
  %1515 = vmatpush.bf16.msra.mxu0 0
  %1516 = vmatpush.bf16.msra.mxu0 %v1507
  %1517 = vmatmul.bf16.gmra.mxu0 %v1483
  %v1518 = vpop.f32.mrf.mxu0
  %v1519 = vadd.f32 0.0, %v1518
  %v1520 = vpop.f32.mrf.mxu0
  %v1521 = vadd.f32 0.0, %v1520
  %1522 = vmatmul.bf16.gmra.mxu0 %v1486
  %v1523 = vpop.f32.mrf.mxu0
  %v1524 = vadd.f32 0.0, %v1523
  %v1525 = vpop.f32.mrf.mxu0
  %v1526 = vadd.f32 0.0, %v1525
  %1527 = vmatmul.bf16.gmra.mxu0 %v1489
  %v1528 = vpop.f32.mrf.mxu0
  %v1529 = vadd.f32 0.0, %v1528
  %v1530 = vpop.f32.mrf.mxu0
  %v1531 = vadd.f32 0.0, %v1530
  %1532 = vmatmul.bf16.gmra.mxu0 %v1492
  %v1533 = vpop.f32.mrf.mxu0
  %v1534 = vadd.f32 0.0, %v1533
  %v1535 = vpop.f32.mrf.mxu0
  %v1536 = vadd.f32 0.0, %v1535
  %1537 = vmatmul.bf16.gmra.mxu0 %v1495
  %v1538 = vpop.f32.mrf.mxu0
  %v1539 = vadd.f32 0.0, %v1538
  %v1540 = vpop.f32.mrf.mxu0
  %v1541 = vadd.f32 0.0, %v1540
  %1542 = vmatmul.bf16.gmra.mxu0 %v1498
  %v1543 = vpop.f32.mrf.mxu0
  %v1544 = vadd.f32 0.0, %v1543
  %v1545 = vpop.f32.mrf.mxu0
  %v1546 = vadd.f32 0.0, %v1545
  %1547 = vmatmul.bf16.gmra.mxu0 %v1501
  %v1548 = vpop.f32.mrf.mxu0
  %v1549 = vadd.f32 0.0, %v1548
  %v1550 = vpop.f32.mrf.mxu0
  %v1551 = vadd.f32 0.0, %v1550
  %1552 = vmatmul.bf16.gmra.mxu0 %v1504
  %v1553 = vpop.f32.mrf.mxu0
  %v1554 = vadd.f32 0.0, %v1553
  %v1555 = vpop.f32.mrf.mxu0
  %v1556 = vadd.f32 0.0, %v1555
  %1557 = vdwg.mxu0
  %v1558 = vadd.f32 %v1311, %v1519
  %v1559 = vadd.f32 %v1312, %v1521
  %v1560 = vadd.f32 %v1313, %v1524
  %v1561 = vadd.f32 %v1314, %v1526
  %v1562 = vadd.f32 %v1315, %v1529
  %v1563 = vadd.f32 %v1316, %v1531
  %v1564 = vadd.f32 %v1317, %v1534
  %v1565 = vadd.f32 %v1318, %v1536
  %v1566 = vadd.f32 %v1319, %v1539
  %v1567 = vadd.f32 %v1320, %v1541
  %v1568 = vadd.f32 %v1321, %v1544
  %v1569 = vadd.f32 %v1322, %v1546
  %v1570 = vadd.f32 %v1323, %v1549
  %v1571 = vadd.f32 %v1324, %v1551
  %v1572 = vadd.f32 %v1325, %v1554
  %v1573 = vadd.f32 %v1326, %v1556
  %vm1574 = vcmask 1040384
  %vm1575 = vcmask 1044484
  %vm1576 = vmor %vm1574, %vm1575
  %v1577 = vrot.slane %v189, 7
  %v1578 = vrot.slane %v1577, 4
  %v1579 = vrot.slane %v190, 7
  %v1580 = vsel %vm1576, %v1578, %v1579
  %v1581 = vrot.slane %v191, 7
  %v1582 = vrot.slane %v1581, 4
  %v1583 = vrot.slane %v192, 7
  %v1584 = vsel %vm1576, %v1582, %v1583
  %v1585 = vrot.slane %v193, 7
  %v1586 = vrot.slane %v1585, 4
  %v1587 = vrot.slane %v194, 7
  %v1588 = vsel %vm1576, %v1586, %v1587
  %v1589 = vrot.slane %v195, 7
  %v1590 = vrot.slane %v1589, 4
  %v1591 = vrot.slane %v196, 7
  %v1592 = vsel %vm1576, %v1590, %v1591
  %v1593 = vrot.slane %v197, 7
  %v1594 = vrot.slane %v1593, 4
  %v1595 = vrot.slane %v198, 7
  %v1596 = vsel %vm1576, %v1594, %v1595
  %v1597 = vrot.slane %v199, 7
  %v1598 = vrot.slane %v1597, 4
  %v1599 = vrot.slane %v200, 7
  %v1600 = vsel %vm1576, %v1598, %v1599
  %v1601 = vrot.slane %v201, 7
  %v1602 = vrot.slane %v1601, 4
  %v1603 = vrot.slane %v202, 7
  %v1604 = vsel %vm1576, %v1602, %v1603
  %v1605 = vrot.slane %v203, 7
  %v1606 = vrot.slane %v1605, 4
  %v1607 = vrot.slane %v204, 7
  %v1608 = vsel %vm1576, %v1606, %v1607
  %v1609 = vrot.slane %v205, 7
  %v1610 = vrot.slane %v1609, 4
  %v1611 = vrot.slane %v206, 7
  %v1612 = vsel %vm1576, %v1610, %v1611
  %v1613 = vrot.slane %v207, 7
  %v1614 = vrot.slane %v1613, 4
  %v1615 = vrot.slane %v208, 7
  %v1616 = vsel %vm1576, %v1614, %v1615
  %v1617 = vrot.slane %v209, 7
  %v1618 = vrot.slane %v1617, 4
  %v1619 = vrot.slane %v210, 7
  %v1620 = vsel %vm1576, %v1618, %v1619
  %v1621 = vrot.slane %v211, 7
  %v1622 = vrot.slane %v1621, 4
  %v1623 = vrot.slane %v212, 7
  %v1624 = vsel %vm1576, %v1622, %v1623
  %v1625 = vrot.slane %v213, 7
  %v1626 = vrot.slane %v1625, 4
  %v1627 = vrot.slane %v214, 7
  %v1628 = vsel %vm1576, %v1626, %v1627
  %v1629 = vrot.slane %v215, 7
  %v1630 = vrot.slane %v1629, 4
  %v1631 = vrot.slane %v216, 7
  %v1632 = vsel %vm1576, %v1630, %v1631
  %v1633 = vrot.slane %v217, 7
  %v1634 = vrot.slane %v1633, 4
  %v1635 = vrot.slane %v218, 7
  %v1636 = vsel %vm1576, %v1634, %v1635
  %v1637 = vrot.slane %v219, 7
  %v1638 = vrot.slane %v1637, 4
  %v1639 = vrot.slane %v220, 7
  %v1640 = vsel %vm1576, %v1638, %v1639
  %v1641 = vunpack.c.l.b16 %v1580
  %v1642 = vunpack.c.l.b16 %v1584
  %v1643 = vunpack.c.l.b16 %v1588
  %v1644 = vunpack.c.l.b16 %v1592
  %v1645 = vunpack.c.l.b16 %v1596
  %v1646 = vunpack.c.l.b16 %v1600
  %v1647 = vunpack.c.l.b16 %v1604
  %v1648 = vunpack.c.l.b16 %v1608
  %v1649 = vunpack.c.l.b16 %v1612
  %v1650 = vunpack.c.l.b16 %v1616
  %v1651 = vunpack.c.l.b16 %v1620
  %v1652 = vunpack.c.l.b16 %v1624
  %v1653 = vunpack.c.l.b16 %v1628
  %v1654 = vunpack.c.l.b16 %v1632
  %v1655 = vunpack.c.l.b16 %v1636
  %v1656 = vunpack.c.l.b16 %v1640
  %v1657 = vpack.c.b16 %v1642, %v1641
  %v1658 = vpack.c.b16 %v1644, %v1643
  %v1659 = vpack.c.b16 %v1646, %v1645
  %v1660 = vpack.c.b16 %v1648, %v1647
  %v1661 = vpack.c.b16 %v1650, %v1649
  %v1662 = vpack.c.b16 %v1652, %v1651
  %v1663 = vpack.c.b16 %v1654, %v1653
  %v1664 = vpack.c.b16 %v1656, %v1655
  %v1666 = vsel %vm472, %v1657, 0
  %v1669 = vsel %vm472, %v1658, 0
  %v1672 = vsel %vm472, %v1659, 0
  %v1675 = vsel %vm472, %v1660, 0
  %v1678 = vsel %vm472, %v1661, 0
  %v1681 = vsel %vm472, %v1662, 0
  %v1684 = vsel %vm472, %v1663, 0
  %v1687 = vsel %vm472, %v1664, 0
  %v1690 = vsel %vm497, %v107, 0
  %1692 = vmatpush.bf16.msra.mxu0 0
  %1693 = vmatpush.bf16.msra.mxu0 0
  %1694 = vmatpush.bf16.msra.mxu0 0
  %1695 = vmatpush.bf16.msra.mxu0 0
  %1696 = vmatpush.bf16.msra.mxu0 0
  %1697 = vmatpush.bf16.msra.mxu0 0
  %1698 = vmatpush.bf16.msra.mxu0 0
  %1699 = vmatpush.bf16.msra.mxu0 %v1690
  %1700 = vmatmul.bf16.gmra.mxu0 %v1666
  %v1701 = vpop.f32.mrf.mxu0
  %v1702 = vadd.f32 0.0, %v1701
  %v1703 = vpop.f32.mrf.mxu0
  %v1704 = vadd.f32 0.0, %v1703
  %1705 = vmatmul.bf16.gmra.mxu0 %v1669
  %v1706 = vpop.f32.mrf.mxu0
  %v1707 = vadd.f32 0.0, %v1706
  %v1708 = vpop.f32.mrf.mxu0
  %v1709 = vadd.f32 0.0, %v1708
  %1710 = vmatmul.bf16.gmra.mxu0 %v1672
  %v1711 = vpop.f32.mrf.mxu0
  %v1712 = vadd.f32 0.0, %v1711
  %v1713 = vpop.f32.mrf.mxu0
  %v1714 = vadd.f32 0.0, %v1713
  %1715 = vmatmul.bf16.gmra.mxu0 %v1675
  %v1716 = vpop.f32.mrf.mxu0
  %v1717 = vadd.f32 0.0, %v1716
  %v1718 = vpop.f32.mrf.mxu0
  %v1719 = vadd.f32 0.0, %v1718
  %1720 = vmatmul.bf16.gmra.mxu0 %v1678
  %v1721 = vpop.f32.mrf.mxu0
  %v1722 = vadd.f32 0.0, %v1721
  %v1723 = vpop.f32.mrf.mxu0
  %v1724 = vadd.f32 0.0, %v1723
  %1725 = vmatmul.bf16.gmra.mxu0 %v1681
  %v1726 = vpop.f32.mrf.mxu0
  %v1727 = vadd.f32 0.0, %v1726
  %v1728 = vpop.f32.mrf.mxu0
  %v1729 = vadd.f32 0.0, %v1728
  %1730 = vmatmul.bf16.gmra.mxu0 %v1684
  %v1731 = vpop.f32.mrf.mxu0
  %v1732 = vadd.f32 0.0, %v1731
  %v1733 = vpop.f32.mrf.mxu0
  %v1734 = vadd.f32 0.0, %v1733
  %1735 = vmatmul.bf16.gmra.mxu0 %v1687
  %v1736 = vpop.f32.mrf.mxu0
  %v1737 = vadd.f32 0.0, %v1736
  %v1738 = vpop.f32.mrf.mxu0
  %v1739 = vadd.f32 0.0, %v1738
  %1740 = vdwg.mxu0
  %v1741 = vadd.f32 %v1558, %v1702
  %v1742 = vadd.f32 %v1559, %v1704
  %v1743 = vadd.f32 %v1560, %v1707
  %v1744 = vadd.f32 %v1561, %v1709
  %v1745 = vadd.f32 %v1562, %v1712
  %v1746 = vadd.f32 %v1563, %v1714
  %v1747 = vadd.f32 %v1564, %v1717
  %v1748 = vadd.f32 %v1565, %v1719
  %v1749 = vadd.f32 %v1566, %v1722
  %v1750 = vadd.f32 %v1567, %v1724
  %v1751 = vadd.f32 %v1568, %v1727
  %v1752 = vadd.f32 %v1569, %v1729
  %v1753 = vadd.f32 %v1570, %v1732
  %v1754 = vadd.f32 %v1571, %v1734
  %v1755 = vadd.f32 %v1572, %v1737
  %v1756 = vadd.f32 %v1573, %v1739
  %v1757 = vpack.c.bf16 %v1741, %v1741
  %v1758 = vpack.c.bf16 %v1742, %v1742
  %v1759 = vpack.c.bf16 %v1743, %v1743
  %v1760 = vpack.c.bf16 %v1744, %v1744
  %v1761 = vpack.c.bf16 %v1745, %v1745
  %v1762 = vpack.c.bf16 %v1746, %v1746
  %v1763 = vpack.c.bf16 %v1747, %v1747
  %v1764 = vpack.c.bf16 %v1748, %v1748
  %v1765 = vpack.c.bf16 %v1749, %v1749
  %v1766 = vpack.c.bf16 %v1750, %v1750
  %v1767 = vpack.c.bf16 %v1751, %v1751
  %v1768 = vpack.c.bf16 %v1752, %v1752
  %v1769 = vpack.c.bf16 %v1753, %v1753
  %v1770 = vpack.c.bf16 %v1754, %v1754
  %v1771 = vpack.c.bf16 %v1755, %v1755
  %v1772 = vpack.c.bf16 %v1756, %v1756
  %vm1773 = vcmask 60416
  %1774 = vst.msk [vmem:[%s3] sm:$0xf] %vm1773, %v1757
  %1775 = vst.msk [vmem:[%s3 + $0x4] sm:$0xf] %vm1773, %v1758
  %1776 = vst.msk [vmem:[%s3 + $0x8] sm:$0xf] %vm1773, %v1759
  %1777 = vst.msk [vmem:[%s3 + $0xc] sm:$0xf] %vm1773, %v1760
  %1778 = vst.msk [vmem:[%s3 + $0x10] sm:$0xf] %vm1773, %v1761
  %1779 = vst.msk [vmem:[%s3 + $0x14] sm:$0xf] %vm1773, %v1762
  %1780 = vst.msk [vmem:[%s3 + $0x18] sm:$0xf] %vm1773, %v1763
  %1781 = vst.msk [vmem:[%s3 + $0x1c] sm:$0xf] %vm1773, %v1764
  %1782 = vst.msk [vmem:[%s3 + $0x20] sm:$0xf] %vm1773, %v1765
  %1783 = vst.msk [vmem:[%s3 + $0x24] sm:$0xf] %vm1773, %v1766
  %1784 = vst.msk [vmem:[%s3 + $0x28] sm:$0xf] %vm1773, %v1767
  %1785 = vst.msk [vmem:[%s3 + $0x2c] sm:$0xf] %vm1773, %v1768
  %1786 = vst.msk [vmem:[%s3 + $0x30] sm:$0xf] %vm1773, %v1769
  %1787 = vst.msk [vmem:[%s3 + $0x34] sm:$0xf] %vm1773, %v1770
  %1788 = vst.msk [vmem:[%s3 + $0x38] sm:$0xf] %vm1773, %v1771
  %1789 = vst.msk [vmem:[%s3 + $0x3c] sm:$0xf] %vm1773, %v1772
  %v1790 = vsel %vm472, %v1741, 0.0
  %v1791 = vsel %vm472, %v1742, 0.0
  %v1792 = vadd.f32 %v1790, %v1791
  %v1793 = vsel %vm472, %v1743, 0.0
  %v1794 = vadd.f32 %v1792, %v1793
  %v1795 = vsel %vm472, %v1744, 0.0
  %v1796 = vadd.f32 %v1794, %v1795
  %v1797 = vsel %vm472, %v1745, 0.0
  %v1798 = vadd.f32 %v1796, %v1797
  %v1799 = vsel %vm472, %v1746, 0.0
  %v1800 = vadd.f32 %v1798, %v1799
  %v1801 = vsel %vm472, %v1747, 0.0
  %v1802 = vadd.f32 %v1800, %v1801
  %v1803 = vsel %vm472, %v1748, 0.0
  %v1804 = vadd.f32 %v1802, %v1803
  %v1805 = vsel %vm472, %v1749, 0.0
  %v1806 = vadd.f32 %v1804, %v1805
  %v1807 = vsel %vm472, %v1750, 0.0
  %v1808 = vadd.f32 %v1806, %v1807
  %v1809 = vsel %vm472, %v1751, 0.0
  %v1810 = vadd.f32 %v1808, %v1809
  %v1811 = vsel %vm472, %v1752, 0.0
  %v1812 = vadd.f32 %v1810, %v1811
  %v1813 = vsel %vm472, %v1753, 0.0
  %v1814 = vadd.f32 %v1812, %v1813
  %v1815 = vsel %vm472, %v1754, 0.0
  %v1816 = vadd.f32 %v1814, %v1815
  %v1817 = vsel %vm472, %v1755, 0.0
  %v1818 = vadd.f32 %v1816, %v1817
  %v1819 = vsel %vm472, %v1756, 0.0
  %v1820 = vadd.f32 %v1818, %v1819
  %v1821 = vrot.slane %v1820, 4
  %v1822 = vadd.f32 %v1820, %v1821
  %v1823 = vrot.slane %v1822, 2
  %v1824 = vadd.f32 %v1822, %v1823
  %v1825 = vrot.slane %v1824, 1
  %v1826 = vadd.f32 %v1824, %v1825
  %v1827 = vmul.f32 %v1741, %v1741
  %v1828 = vmul.f32 %v1742, %v1742
  %v1829 = vmul.f32 %v1743, %v1743
  %v1830 = vmul.f32 %v1744, %v1744
  %v1831 = vmul.f32 %v1745, %v1745
  %v1832 = vmul.f32 %v1746, %v1746
  %v1833 = vmul.f32 %v1747, %v1747
  %v1834 = vmul.f32 %v1748, %v1748
  %v1835 = vmul.f32 %v1749, %v1749
  %v1836 = vmul.f32 %v1750, %v1750
  %v1837 = vmul.f32 %v1751, %v1751
  %v1838 = vmul.f32 %v1752, %v1752
  %v1839 = vmul.f32 %v1753, %v1753
  %v1840 = vmul.f32 %v1754, %v1754
  %v1841 = vmul.f32 %v1755, %v1755
  %v1842 = vmul.f32 %v1756, %v1756
  %v1843 = vsel %vm472, %v1827, 0.0
  %v1844 = vsel %vm472, %v1828, 0.0
  %v1845 = vadd.f32 %v1843, %v1844
  %v1846 = vsel %vm472, %v1829, 0.0
  %v1847 = vadd.f32 %v1845, %v1846
  %v1848 = vsel %vm472, %v1830, 0.0
  %v1849 = vadd.f32 %v1847, %v1848
  %v1850 = vsel %vm472, %v1831, 0.0
  %v1851 = vadd.f32 %v1849, %v1850
  %v1852 = vsel %vm472, %v1832, 0.0
  %v1853 = vadd.f32 %v1851, %v1852
  %v1854 = vsel %vm472, %v1833, 0.0
  %v1855 = vadd.f32 %v1853, %v1854
  %v1856 = vsel %vm472, %v1834, 0.0
  %v1857 = vadd.f32 %v1855, %v1856
  %v1858 = vsel %vm472, %v1835, 0.0
  %v1859 = vadd.f32 %v1857, %v1858
  %v1860 = vsel %vm472, %v1836, 0.0
  %v1861 = vadd.f32 %v1859, %v1860
  %v1862 = vsel %vm472, %v1837, 0.0
  %v1863 = vadd.f32 %v1861, %v1862
  %v1864 = vsel %vm472, %v1838, 0.0
  %v1865 = vadd.f32 %v1863, %v1864
  %v1866 = vsel %vm472, %v1839, 0.0
  %v1867 = vadd.f32 %v1865, %v1866
  %v1868 = vsel %vm472, %v1840, 0.0
  %v1869 = vadd.f32 %v1867, %v1868
  %v1870 = vsel %vm472, %v1841, 0.0
  %v1871 = vadd.f32 %v1869, %v1870
  %v1872 = vsel %vm472, %v1842, 0.0
  %v1873 = vadd.f32 %v1871, %v1872
  %v1874 = vrot.slane %v1873, 4
  %v1875 = vadd.f32 %v1873, %v1874
  %v1876 = vrot.slane %v1875, 2
  %v1877 = vadd.f32 %v1875, %v1876
  %v1878 = vrot.slane %v1877, 1
  %v1879 = vadd.f32 %v1877, %v1878
  %vm1880 = vcmask 1040384
  %v1881 = vsel %vm1880, %v1826, %v1879
  %vm1882 = vcmask 58368
  %1883 = vst.msk [vmem:[%s4] sm:$0x3] %vm1882, %v1881
  // Predicated region
  $region14: #{inception_c_forward.12} parent=0 // pred_check
    _
  $region15: #{inception_c_forward.12} parent=0 // pred_check_branch
    %1885 = sbr.rel (0) target = $region17
  $region16: #{inception_c_forward.12} parent=0 // pred_region
    _
  $region17: #{inception_c_forward.12} parent=0 // pred_fallthru
    _
  // Predicated region
  $region18: #{inception_c_forward.12} parent=0 // pred_check
    _
  $region19: #{inception_c_forward.12} parent=0 // pred_check_branch
    %1887 = sbr.rel (0) target = $region21
  $region20: #{inception_c_forward.12} parent=0 // pred_region
    _
  $region21: #{inception_c_forward.12} parent=0 // pred_fallthru
    _
  // Predicated region
  $region22: #{inception_c_forward.12} parent=0 // pred_check
    _
  $region23: #{inception_c_forward.12} parent=0 // pred_check_branch
    %1889 = sbr.rel (0) target = $region25
  $region24: #{inception_c_forward.12} parent=0 // pred_region
    _
  $region25: #{inception_c_forward.12} parent=0 // pred_fallthru
    _
  // Predicated region
  $region26: #{inception_c_forward.12} parent=0 // pred_check
    _
  $region27: #{inception_c_forward.12} parent=0 // pred_check_branch
    %1891 = sbr.rel (0) target = $region29
  $region28: #{inception_c_forward.12} parent=0 // pred_region
    _
  $region29: #{inception_c_forward.12} parent=0 // pred_fallthru
    _

// kernel: inception_c_forward.8
$region0: #{inception_c_forward.8}
  #allocation0 [shape = 'u32[]', space=smem, size = 0x4, offset = 0x4, fixed_abs, tag = 'smem constant byte address 0x4 - core index']
  #allocation1 [shape = 'u32[72,128]{1,0:T(1,128)}', space=vmem, size = 0x9000, scoped, tag = 'internal scratch']
  %s0 = inlined_call_operand.vmem [shape: bf16[2,8,8,16], index: 0, kind: input, shape index: {}]
  %s1 = inlined_call_operand.vmem [shape: bf16[16,8], index: 1, kind: input, shape index: {}]
  %s2 = inlined_call_operand.vmem [shape: bf16[16,8], index: 2, kind: input, shape index: {}]
  %s3 = inlined_call_operand.vmem [shape: bf16[16,192], index: 3, kind: input, shape index: {}]
  %s4 = inlined_call_operand.vmem [shape: bf16[16,192], index: 4, kind: input, shape index: {}]
  %s5 = inlined_call_operand.vmem [shape: bf16[2,8,8,8], index: 5, kind: output, shape index: {0}]
  %s6 = inlined_call_operand.vmem [shape: bf16[2,8,8,8], index: 6, kind: output, shape index: {1}]
  %s7 = inlined_call_operand.vmem [shape: bf16[2,8,8,192], index: 7, kind: output, shape index: {2}]
  %s8 = inlined_call_operand.vmem [shape: bf16[2,8,8,192], index: 8, kind: output, shape index: {3}]
  %s9 = inlined_call_operand.vmem [shape: f32[1,2,8], index: 9, kind: output, shape index: {4}]
  %s10 = inlined_call_operand.vmem [shape: f32[1,2,8], index: 10, kind: output, shape index: {5}]
  %s11 = inlined_call_operand.vmem [shape: f32[1,2,192], index: 11, kind: output, shape index: {6}]
  %s12 = inlined_call_operand.vmem [shape: f32[1,2,192], index: 12, kind: output, shape index: {7}]
  %13 = xla_tuple %s5, %s6, %s7, %s8, %s9, %s10, %s11, %s12
  %s14 = sld [smem:[#allocation0]]
  $region86: #{inception_c_forward.8} parent=0
    _
  %s16 = ssub.s32 1, %s14
  %s17 = scalar_select 0, %s16, %s14
  // Predicated region
  $region2: #{inception_c_forward.8} parent=0 // pred_check
    _
  $region3: #{inception_c_forward.8} parent=0 // pred_check_branch
    %19 = sbr.rel (0) target = $region5
  $region4: #{inception_c_forward.8} parent=0 // pred_region
    _
  $region5: #{inception_c_forward.8} parent=0 // pred_fallthru
    _
  // Predicated region
  $region6: #{inception_c_forward.8} parent=0 // pred_check
    _
  $region7: #{inception_c_forward.8} parent=0 // pred_check_branch
    %21 = sbr.rel (0) target = $region9
  $region8: #{inception_c_forward.8} parent=0 // pred_region
    _
  $region9: #{inception_c_forward.8} parent=0 // pred_fallthru
    _
  // Predicated region
  $region10: #{inception_c_forward.8} parent=0 // pred_check
    _
  $region11: #{inception_c_forward.8} parent=0 // pred_check_branch
    %23 = sbr.rel (0) target = $region13
  $region12: #{inception_c_forward.8} parent=0 // pred_region
    _
  $region13: #{inception_c_forward.8} parent=0 // pred_fallthru
    _
  // Predicated region
  $region14: #{inception_c_forward.8} parent=0 // pred_check
    _
  $region15: #{inception_c_forward.8} parent=0 // pred_check_branch
    %25 = sbr.rel (0) target = $region17
  $region16: #{inception_c_forward.8} parent=0 // pred_region
    _
  $region17: #{inception_c_forward.8} parent=0 // pred_fallthru
    _
  // Predicated region
  $region18: #{inception_c_forward.8} parent=0 // pred_check
    _
  $region19: #{inception_c_forward.8} parent=0 // pred_check_branch
    %27 = sbr.rel (0) target = $region21
  $region20: #{inception_c_forward.8} parent=0 // pred_region
    _
  $region21: #{inception_c_forward.8} parent=0 // pred_fallthru
    _
  %v29 = vld [vmem:[%s0] sm:$0xf]
  %v30 = vld [vmem:[%s0 + $0x4] sm:$0xf]
  %v31 = vld [vmem:[%s0 + $0x8] sm:$0xf]
  %v32 = vld [vmem:[%s0 + $0xc] sm:$0xf]
  %v33 = vld [vmem:[%s0 + $0x10] sm:$0xf]
  %v34 = vld [vmem:[%s0 + $0x14] sm:$0xf]
  %v35 = vld [vmem:[%s0 + $0x18] sm:$0xf]
  %v36 = vld [vmem:[%s0 + $0x1c] sm:$0xf]
  %v37 = vld [vmem:[%s0 + $0x20] sm:$0xf]
  %v38 = vld [vmem:[%s0 + $0x24] sm:$0xf]
  %v39 = vld [vmem:[%s0 + $0x28] sm:$0xf]
  %v40 = vld [vmem:[%s0 + $0x2c] sm:$0xf]
  %v41 = vld [vmem:[%s0 + $0x30] sm:$0xf]
  %v42 = vld [vmem:[%s0 + $0x34] sm:$0xf]
  %v43 = vld [vmem:[%s0 + $0x38] sm:$0xf]
  %v44 = vld [vmem:[%s0 + $0x3c] sm:$0xf]
  %v45 = vld [vmem:[%s1] sm:$0xf]
  %v46 = vld [vmem:[%s1 + $0x4] sm:$0xf]
  %v63 = vunpack.c.l.b16 %v29
  %v64 = vunpack.c.l.b16 %v30
  %v65 = vunpack.c.l.b16 %v31
  %v66 = vunpack.c.l.b16 %v32
  %v67 = vunpack.c.l.b16 %v33
  %v68 = vunpack.c.l.b16 %v34
  %v69 = vunpack.c.l.b16 %v35
  %v70 = vunpack.c.l.b16 %v36
  %v71 = vunpack.c.l.b16 %v37
  %v72 = vunpack.c.l.b16 %v38
  %v73 = vunpack.c.l.b16 %v39
  %v74 = vunpack.c.l.b16 %v40
  %v75 = vunpack.c.l.b16 %v41
  %v76 = vunpack.c.l.b16 %v42
  %v77 = vunpack.c.l.b16 %v43
  %v78 = vunpack.c.l.b16 %v44
  %v79 = vpack.c.b16 %v64, %v63
  %v80 = vpack.c.b16 %v66, %v65
  %v81 = vpack.c.b16 %v68, %v67
  %v82 = vpack.c.b16 %v70, %v69
  %v83 = vpack.c.b16 %v72, %v71
  %v84 = vpack.c.b16 %v74, %v73
  %v85 = vpack.c.b16 %v76, %v75
  %v86 = vpack.c.b16 %v78, %v77
  %v89 = vunpack.c.l.b16 %v45
  %v90 = vunpack.c.l.b16 %v46
  %v91 = vpack.c.b16 %v90, %v89
  %vm93 = vcmask 130048
  %v95 = vsel %vm93, %v79, 0
  %v98 = vsel %vm93, %v80, 0
  %v101 = vsel %vm93, %v81, 0
  %v104 = vsel %vm93, %v82, 0
  %v107 = vsel %vm93, %v83, 0
  %v110 = vsel %vm93, %v84, 0
  %v113 = vsel %vm93, %v85, 0
  %v116 = vsel %vm93, %v86, 0
  %118 = vmatpush.bf16.msra.mxu0 0
  %119 = vmatpush.bf16.msra.mxu0 0
  %120 = vmatpush.bf16.msra.mxu0 0
  %121 = vmatpush.bf16.msra.mxu0 0
  %122 = vmatpush.bf16.msra.mxu0 0
  %123 = vmatpush.bf16.msra.mxu0 0
  %124 = vmatpush.bf16.msra.mxu0 0
  %125 = vmatpush.bf16.msra.mxu0 %v91
  %126 = vmatmul.bf16.gmra.mxu0 %v95
  %v127 = vpop.f32.mrf.mxu0
  %v128 = vadd.f32 0.0, %v127
  %v129 = vpop.f32.mrf.mxu0
  %v130 = vadd.f32 0.0, %v129
  %131 = vmatmul.bf16.gmra.mxu0 %v98
  %v132 = vpop.f32.mrf.mxu0
  %v133 = vadd.f32 0.0, %v132
  %v134 = vpop.f32.mrf.mxu0
  %v135 = vadd.f32 0.0, %v134
  %136 = vmatmul.bf16.gmra.mxu0 %v101
  %v137 = vpop.f32.mrf.mxu0
  %v138 = vadd.f32 0.0, %v137
  %v139 = vpop.f32.mrf.mxu0
  %v140 = vadd.f32 0.0, %v139
  %141 = vmatmul.bf16.gmra.mxu0 %v104
  %v142 = vpop.f32.mrf.mxu0
  %v143 = vadd.f32 0.0, %v142
  %v144 = vpop.f32.mrf.mxu0
  %v145 = vadd.f32 0.0, %v144
  %146 = vmatmul.bf16.gmra.mxu0 %v107
  %v147 = vpop.f32.mrf.mxu0
  %v148 = vadd.f32 0.0, %v147
  %v149 = vpop.f32.mrf.mxu0
  %v150 = vadd.f32 0.0, %v149
  %151 = vmatmul.bf16.gmra.mxu0 %v110
  %v152 = vpop.f32.mrf.mxu0
  %v153 = vadd.f32 0.0, %v152
  %v154 = vpop.f32.mrf.mxu0
  %v155 = vadd.f32 0.0, %v154
  %156 = vmatmul.bf16.gmra.mxu0 %v113
  %v157 = vpop.f32.mrf.mxu0
  %v158 = vadd.f32 0.0, %v157
  %v159 = vpop.f32.mrf.mxu0
  %v160 = vadd.f32 0.0, %v159
  %161 = vmatmul.bf16.gmra.mxu0 %v116
  %v162 = vpop.f32.mrf.mxu0
  %v163 = vadd.f32 0.0, %v162
  %v164 = vpop.f32.mrf.mxu0
  %v165 = vadd.f32 0.0, %v164
  %166 = vdwg.mxu0
  %v167 = vpack.c.bf16 %v128, %v128
  %v168 = vpack.c.bf16 %v130, %v130
  %v169 = vpack.c.bf16 %v133, %v133
  %v170 = vpack.c.bf16 %v135, %v135
  %v171 = vpack.c.bf16 %v138, %v138
  %v172 = vpack.c.bf16 %v140, %v140
  %v173 = vpack.c.bf16 %v143, %v143
  %v174 = vpack.c.bf16 %v145, %v145
  %v175 = vpack.c.bf16 %v148, %v148
  %v176 = vpack.c.bf16 %v150, %v150
  %v177 = vpack.c.bf16 %v153, %v153
  %v178 = vpack.c.bf16 %v155, %v155
  %v179 = vpack.c.bf16 %v158, %v158
  %v180 = vpack.c.bf16 %v160, %v160
  %v181 = vpack.c.bf16 %v163, %v163
  %v182 = vpack.c.bf16 %v165, %v165
  %vm183 = vcmask 60416
  %184 = vst.msk [vmem:[%s5] sm:$0xf] %vm183, %v167
  %185 = vst.msk [vmem:[%s5 + $0x4] sm:$0xf] %vm183, %v168
  %186 = vst.msk [vmem:[%s5 + $0x8] sm:$0xf] %vm183, %v169
  %187 = vst.msk [vmem:[%s5 + $0xc] sm:$0xf] %vm183, %v170
  %188 = vst.msk [vmem:[%s5 + $0x10] sm:$0xf] %vm183, %v171
  %189 = vst.msk [vmem:[%s5 + $0x14] sm:$0xf] %vm183, %v172
  %190 = vst.msk [vmem:[%s5 + $0x18] sm:$0xf] %vm183, %v173
  %191 = vst.msk [vmem:[%s5 + $0x1c] sm:$0xf] %vm183, %v174
  %192 = vst.msk [vmem:[%s5 + $0x20] sm:$0xf] %vm183, %v175
  %193 = vst.msk [vmem:[%s5 + $0x24] sm:$0xf] %vm183, %v176
  %194 = vst.msk [vmem:[%s5 + $0x28] sm:$0xf] %vm183, %v177
  %195 = vst.msk [vmem:[%s5 + $0x2c] sm:$0xf] %vm183, %v178
  %196 = vst.msk [vmem:[%s5 + $0x30] sm:$0xf] %vm183, %v179
  %197 = vst.msk [vmem:[%s5 + $0x34] sm:$0xf] %vm183, %v180
  %198 = vst.msk [vmem:[%s5 + $0x38] sm:$0xf] %vm183, %v181
  %199 = vst.msk [vmem:[%s5 + $0x3c] sm:$0xf] %vm183, %v182
  %vm200 = vcmask 64512
  %v201 = vsel %vm200, %v128, 0.0
  %v202 = vsel %vm200, %v130, 0.0
  %v203 = vadd.f32 %v201, %v202
  %v204 = vsel %vm200, %v133, 0.0
  %v205 = vadd.f32 %v203, %v204
  %v206 = vsel %vm200, %v135, 0.0
  %v207 = vadd.f32 %v205, %v206
  %v208 = vsel %vm200, %v138, 0.0
  %v209 = vadd.f32 %v207, %v208
  %v210 = vsel %vm200, %v140, 0.0
  %v211 = vadd.f32 %v209, %v210
  %v212 = vsel %vm200, %v143, 0.0
  %v213 = vadd.f32 %v211, %v212
  %v214 = vsel %vm200, %v145, 0.0
  %v215 = vadd.f32 %v213, %v214
  %v216 = vsel %vm200, %v148, 0.0
  %v217 = vadd.f32 %v215, %v216
  %v218 = vsel %vm200, %v150, 0.0
  %v219 = vadd.f32 %v217, %v218
  %v220 = vsel %vm200, %v153, 0.0
  %v221 = vadd.f32 %v219, %v220
  %v222 = vsel %vm200, %v155, 0.0
  %v223 = vadd.f32 %v221, %v222
  %v224 = vsel %vm200, %v158, 0.0
  %v225 = vadd.f32 %v223, %v224
  %v226 = vsel %vm200, %v160, 0.0
  %v227 = vadd.f32 %v225, %v226
  %v228 = vsel %vm200, %v163, 0.0
  %v229 = vadd.f32 %v227, %v228
  %v230 = vsel %vm200, %v165, 0.0
  %v231 = vadd.f32 %v229, %v230
  %v232 = vrot.slane %v231, 4
  %v233 = vadd.f32 %v231, %v232
  %v234 = vrot.slane %v233, 2
  %v235 = vadd.f32 %v233, %v234
  %v236 = vrot.slane %v235, 1
  %v237 = vadd.f32 %v235, %v236
  %v238 = vmul.f32 %v128, %v128
  %v239 = vmul.f32 %v130, %v130
  %v240 = vmul.f32 %v133, %v133
  %v241 = vmul.f32 %v135, %v135
  %v242 = vmul.f32 %v138, %v138
  %v243 = vmul.f32 %v140, %v140
  %v244 = vmul.f32 %v143, %v143
  %v245 = vmul.f32 %v145, %v145
  %v246 = vmul.f32 %v148, %v148
  %v247 = vmul.f32 %v150, %v150
  %v248 = vmul.f32 %v153, %v153
  %v249 = vmul.f32 %v155, %v155
  %v250 = vmul.f32 %v158, %v158
  %v251 = vmul.f32 %v160, %v160
  %v252 = vmul.f32 %v163, %v163
  %v253 = vmul.f32 %v165, %v165
  %v254 = vsel %vm200, %v238, 0.0
  %v255 = vsel %vm200, %v239, 0.0
  %v256 = vadd.f32 %v254, %v255
  %v257 = vsel %vm200, %v240, 0.0
  %v258 = vadd.f32 %v256, %v257
  %v259 = vsel %vm200, %v241, 0.0
  %v260 = vadd.f32 %v258, %v259
  %v261 = vsel %vm200, %v242, 0.0
  %v262 = vadd.f32 %v260, %v261
  %v263 = vsel %vm200, %v243, 0.0
  %v264 = vadd.f32 %v262, %v263
  %v265 = vsel %vm200, %v244, 0.0
  %v266 = vadd.f32 %v264, %v265
  %v267 = vsel %vm200, %v245, 0.0
  %v268 = vadd.f32 %v266, %v267
  %v269 = vsel %vm200, %v246, 0.0
  %v270 = vadd.f32 %v268, %v269
  %v271 = vsel %vm200, %v247, 0.0
  %v272 = vadd.f32 %v270, %v271
  %v273 = vsel %vm200, %v248, 0.0
  %v274 = vadd.f32 %v272, %v273
  %v275 = vsel %vm200, %v249, 0.0
  %v276 = vadd.f32 %v274, %v275
  %v277 = vsel %vm200, %v250, 0.0
  %v278 = vadd.f32 %v276, %v277
  %v279 = vsel %vm200, %v251, 0.0
  %v280 = vadd.f32 %v278, %v279
  %v281 = vsel %vm200, %v252, 0.0
  %v282 = vadd.f32 %v280, %v281
  %v283 = vsel %vm200, %v253, 0.0
  %v284 = vadd.f32 %v282, %v283
  %v285 = vrot.slane %v284, 4
  %v286 = vadd.f32 %v284, %v285
  %v287 = vrot.slane %v286, 2
  %v288 = vadd.f32 %v286, %v287
  %v289 = vrot.slane %v288, 1
  %v290 = vadd.f32 %v288, %v289
  %vm291 = vcmask 1040384
  %v292 = vsel %vm291, %v237, %v290
  %vm293 = vcmask 58368
  %294 = vst.msk [vmem:[%s9] sm:$0x3] %vm293, %v292
  %v295 = vld [vmem:[%s2] sm:$0xf]
  %v296 = vld [vmem:[%s2 + $0x4] sm:$0xf]
  %v299 = vunpack.c.l.b16 %v295
  %v300 = vunpack.c.l.b16 %v296
  %v301 = vpack.c.b16 %v300, %v299
  %303 = vmatpush.bf16.msra.mxu0 0
  %304 = vmatpush.bf16.msra.mxu0 0
  %305 = vmatpush.bf16.msra.mxu0 0
  %306 = vmatpush.bf16.msra.mxu0 0
  %307 = vmatpush.bf16.msra.mxu0 0
  %308 = vmatpush.bf16.msra.mxu0 0
  %309 = vmatpush.bf16.msra.mxu0 0
  %310 = vmatpush.bf16.msra.mxu0 %v301
  %311 = vmatmul.bf16.gmra.mxu0 %v95
  %v312 = vpop.f32.mrf.mxu0
  %v313 = vadd.f32 0.0, %v312
  %v314 = vpop.f32.mrf.mxu0
  %v315 = vadd.f32 0.0, %v314
  %316 = vmatmul.bf16.gmra.mxu0 %v98
  %v317 = vpop.f32.mrf.mxu0
  %v318 = vadd.f32 0.0, %v317
  %v319 = vpop.f32.mrf.mxu0
  %v320 = vadd.f32 0.0, %v319
  %321 = vmatmul.bf16.gmra.mxu0 %v101
  %v322 = vpop.f32.mrf.mxu0
  %v323 = vadd.f32 0.0, %v322
  %v324 = vpop.f32.mrf.mxu0
  %v325 = vadd.f32 0.0, %v324
  %326 = vmatmul.bf16.gmra.mxu0 %v104
  %v327 = vpop.f32.mrf.mxu0
  %v328 = vadd.f32 0.0, %v327
  %v329 = vpop.f32.mrf.mxu0
  %v330 = vadd.f32 0.0, %v329
  %331 = vmatmul.bf16.gmra.mxu0 %v107
  %v332 = vpop.f32.mrf.mxu0
  %v333 = vadd.f32 0.0, %v332
  %v334 = vpop.f32.mrf.mxu0
  %v335 = vadd.f32 0.0, %v334
  %336 = vmatmul.bf16.gmra.mxu0 %v110
  %v337 = vpop.f32.mrf.mxu0
  %v338 = vadd.f32 0.0, %v337
  %v339 = vpop.f32.mrf.mxu0
  %v340 = vadd.f32 0.0, %v339
  %341 = vmatmul.bf16.gmra.mxu0 %v113
  %v342 = vpop.f32.mrf.mxu0
  %v343 = vadd.f32 0.0, %v342
  %v344 = vpop.f32.mrf.mxu0
  %v345 = vadd.f32 0.0, %v344
  %346 = vmatmul.bf16.gmra.mxu0 %v116
  %v347 = vpop.f32.mrf.mxu0
  %v348 = vadd.f32 0.0, %v347
  %v349 = vpop.f32.mrf.mxu0
  %v350 = vadd.f32 0.0, %v349
  %351 = vdwg.mxu0
  %v352 = vpack.c.bf16 %v313, %v313
  %v353 = vpack.c.bf16 %v315, %v315
  %v354 = vpack.c.bf16 %v318, %v318
  %v355 = vpack.c.bf16 %v320, %v320
  %v356 = vpack.c.bf16 %v323, %v323
  %v357 = vpack.c.bf16 %v325, %v325
  %v358 = vpack.c.bf16 %v328, %v328
  %v359 = vpack.c.bf16 %v330, %v330
  %v360 = vpack.c.bf16 %v333, %v333
  %v361 = vpack.c.bf16 %v335, %v335
  %v362 = vpack.c.bf16 %v338, %v338
  %v363 = vpack.c.bf16 %v340, %v340
  %v364 = vpack.c.bf16 %v343, %v343
  %v365 = vpack.c.bf16 %v345, %v345
  %v366 = vpack.c.bf16 %v348, %v348
  %v367 = vpack.c.bf16 %v350, %v350
  %368 = vst.msk [vmem:[%s6] sm:$0xf] %vm183, %v352
  %369 = vst.msk [vmem:[%s6 + $0x4] sm:$0xf] %vm183, %v353
  %370 = vst.msk [vmem:[%s6 + $0x8] sm:$0xf] %vm183, %v354
  %371 = vst.msk [vmem:[%s6 + $0xc] sm:$0xf] %vm183, %v355
  %372 = vst.msk [vmem:[%s6 + $0x10] sm:$0xf] %vm183, %v356
  %373 = vst.msk [vmem:[%s6 + $0x14] sm:$0xf] %vm183, %v357
  %374 = vst.msk [vmem:[%s6 + $0x18] sm:$0xf] %vm183, %v358
  %375 = vst.msk [vmem:[%s6 + $0x1c] sm:$0xf] %vm183, %v359
  %376 = vst.msk [vmem:[%s6 + $0x20] sm:$0xf] %vm183, %v360
  %377 = vst.msk [vmem:[%s6 + $0x24] sm:$0xf] %vm183, %v361
  %378 = vst.msk [vmem:[%s6 + $0x28] sm:$0xf] %vm183, %v362
  %379 = vst.msk [vmem:[%s6 + $0x2c] sm:$0xf] %vm183, %v363
  %380 = vst.msk [vmem:[%s6 + $0x30] sm:$0xf] %vm183, %v364
  %381 = vst.msk [vmem:[%s6 + $0x34] sm:$0xf] %vm183, %v365
  %382 = vst.msk [vmem:[%s6 + $0x38] sm:$0xf] %vm183, %v366
  %383 = vst.msk [vmem:[%s6 + $0x3c] sm:$0xf] %vm183, %v367
  %v384 = vsel %vm200, %v313, 0.0
  %v385 = vsel %vm200, %v315, 0.0
  %v386 = vadd.f32 %v384, %v385
  %v387 = vsel %vm200, %v318, 0.0
  %v388 = vadd.f32 %v386, %v387
  %v389 = vsel %vm200, %v320, 0.0
  %v390 = vadd.f32 %v388, %v389
  %v391 = vsel %vm200, %v323, 0.0
  %v392 = vadd.f32 %v390, %v391
  %v393 = vsel %vm200, %v325, 0.0
  %v394 = vadd.f32 %v392, %v393
  %v395 = vsel %vm200, %v328, 0.0
  %v396 = vadd.f32 %v394, %v395
  %v397 = vsel %vm200, %v330, 0.0
  %v398 = vadd.f32 %v396, %v397
  %v399 = vsel %vm200, %v333, 0.0
  %v400 = vadd.f32 %v398, %v399
  %v401 = vsel %vm200, %v335, 0.0
  %v402 = vadd.f32 %v400, %v401
  %v403 = vsel %vm200, %v338, 0.0
  %v404 = vadd.f32 %v402, %v403
  %v405 = vsel %vm200, %v340, 0.0
  %v406 = vadd.f32 %v404, %v405
  %v407 = vsel %vm200, %v343, 0.0
  %v408 = vadd.f32 %v406, %v407
  %v409 = vsel %vm200, %v345, 0.0
  %v410 = vadd.f32 %v408, %v409
  %v411 = vsel %vm200, %v348, 0.0
  %v412 = vadd.f32 %v410, %v411
  %v413 = vsel %vm200, %v350, 0.0
  %v414 = vadd.f32 %v412, %v413
  %v415 = vrot.slane %v414, 4
  %v416 = vadd.f32 %v414, %v415
  %v417 = vrot.slane %v416, 2
  %v418 = vadd.f32 %v416, %v417
  %v419 = vrot.slane %v418, 1
  %v420 = vadd.f32 %v418, %v419
  %v421 = vmul.f32 %v313, %v313
  %v422 = vmul.f32 %v315, %v315
  %v423 = vmul.f32 %v318, %v318
  %v424 = vmul.f32 %v320, %v320
  %v425 = vmul.f32 %v323, %v323
  %v426 = vmul.f32 %v325, %v325
  %v427 = vmul.f32 %v328, %v328
  %v428 = vmul.f32 %v330, %v330
  %v429 = vmul.f32 %v333, %v333
  %v430 = vmul.f32 %v335, %v335
  %v431 = vmul.f32 %v338, %v338
  %v432 = vmul.f32 %v340, %v340
  %v433 = vmul.f32 %v343, %v343
  %v434 = vmul.f32 %v345, %v345
  %v435 = vmul.f32 %v348, %v348
  %v436 = vmul.f32 %v350, %v350
  %v437 = vsel %vm200, %v421, 0.0
  %v438 = vsel %vm200, %v422, 0.0
  %v439 = vadd.f32 %v437, %v438
  %v440 = vsel %vm200, %v423, 0.0
  %v441 = vadd.f32 %v439, %v440
  %v442 = vsel %vm200, %v424, 0.0
  %v443 = vadd.f32 %v441, %v442
  %v444 = vsel %vm200, %v425, 0.0
  %v445 = vadd.f32 %v443, %v444
  %v446 = vsel %vm200, %v426, 0.0
  %v447 = vadd.f32 %v445, %v446
  %v448 = vsel %vm200, %v427, 0.0
  %v449 = vadd.f32 %v447, %v448
  %v450 = vsel %vm200, %v428, 0.0
  %v451 = vadd.f32 %v449, %v450
  %v452 = vsel %vm200, %v429, 0.0
  %v453 = vadd.f32 %v451, %v452
  %v454 = vsel %vm200, %v430, 0.0
  %v455 = vadd.f32 %v453, %v454
  %v456 = vsel %vm200, %v431, 0.0
  %v457 = vadd.f32 %v455, %v456
  %v458 = vsel %vm200, %v432, 0.0
  %v459 = vadd.f32 %v457, %v458
  %v460 = vsel %vm200, %v433, 0.0
  %v461 = vadd.f32 %v459, %v460
  %v462 = vsel %vm200, %v434, 0.0
  %v463 = vadd.f32 %v461, %v462
  %v464 = vsel %vm200, %v435, 0.0
  %v465 = vadd.f32 %v463, %v464
  %v466 = vsel %vm200, %v436, 0.0
  %v467 = vadd.f32 %v465, %v466
  %v468 = vrot.slane %v467, 4
  %v469 = vadd.f32 %v467, %v468
  %v470 = vrot.slane %v469, 2
  %v471 = vadd.f32 %v469, %v470
  %v472 = vrot.slane %v471, 1
  %v473 = vadd.f32 %v471, %v472
  %v474 = vsel %vm291, %v420, %v473
  %475 = vst.msk [vmem:[%s10] sm:$0x3] %vm293, %v474
  %v476 = vld [vmem:[%s3] sm:$0xff]
  %v477 = vld [vmem:[%s3 + $0x8] sm:$0xff]
  %v480 = vunpack.c.l.b16 %v476
  %v481 = vunpack.c.h.b16 %v476
  %v482 = vunpack.c.l.b16 %v477
  %v483 = vunpack.c.h.b16 %v477
  %v484 = vpack.c.b16 %v482, %v480
  %v485 = vpack.c.b16 %v483, %v481
  %488 = vmatpush.bf16.msra.mxu0 0
  %489 = vmatpush.bf16.msra.mxu0 0
  %490 = vmatpush.bf16.msra.mxu0 0
  %491 = vmatpush.bf16.msra.mxu0 0
  %492 = vmatpush.bf16.msra.mxu0 0
  %493 = vmatpush.bf16.msra.mxu0 0
  %494 = vmatpush.bf16.msra.mxu0 0
  %495 = vmatpush.bf16.msra.mxu0 %v484
  %496 = vmatmul.bf16.gmra.mxu0 %v95
  %v497 = vpop.f32.mrf.mxu0
  %v498 = vadd.f32 0.0, %v497
  %v499 = vpop.f32.mrf.mxu0
  %v500 = vadd.f32 0.0, %v499
  %501 = vmatmul.bf16.gmra.mxu0 %v98
  %v502 = vpop.f32.mrf.mxu0
  %v503 = vadd.f32 0.0, %v502
  %v504 = vpop.f32.mrf.mxu0
  %v505 = vadd.f32 0.0, %v504
  %506 = vmatmul.bf16.gmra.mxu0 %v101
  %v507 = vpop.f32.mrf.mxu0
  %v508 = vadd.f32 0.0, %v507
  %v509 = vpop.f32.mrf.mxu0
  %v510 = vadd.f32 0.0, %v509
  %511 = vmatmul.bf16.gmra.mxu0 %v104
  %v512 = vpop.f32.mrf.mxu0
  %v513 = vadd.f32 0.0, %v512
  %v514 = vpop.f32.mrf.mxu0
  %v515 = vadd.f32 0.0, %v514
  %516 = vmatmul.bf16.gmra.mxu0 %v107
  %v517 = vpop.f32.mrf.mxu0
  %v518 = vadd.f32 0.0, %v517
  %v519 = vpop.f32.mrf.mxu0
  %v520 = vadd.f32 0.0, %v519
  %521 = vmatmul.bf16.gmra.mxu0 %v110
  %v522 = vpop.f32.mrf.mxu0
  %v523 = vadd.f32 0.0, %v522
  %v524 = vpop.f32.mrf.mxu0
  %v525 = vadd.f32 0.0, %v524
  %526 = vmatmul.bf16.gmra.mxu0 %v113
  %v527 = vpop.f32.mrf.mxu0
  %v528 = vadd.f32 0.0, %v527
  %v529 = vpop.f32.mrf.mxu0
  %v530 = vadd.f32 0.0, %v529
  %531 = vmatmul.bf16.gmra.mxu0 %v116
  %v532 = vpop.f32.mrf.mxu0
  %v533 = vadd.f32 0.0, %v532
  %v534 = vpop.f32.mrf.mxu0
  %v535 = vadd.f32 0.0, %v534
  %536 = vdwg.mxu0
  %537 = vmatpush.bf16.msra.mxu0 0
  %538 = vmatpush.bf16.msra.mxu0 0
  %539 = vmatpush.bf16.msra.mxu0 0
  %540 = vmatpush.bf16.msra.mxu0 0
  %541 = vmatpush.bf16.msra.mxu0 0
  %542 = vmatpush.bf16.msra.mxu0 0
  %543 = vmatpush.bf16.msra.mxu0 0
  %544 = vmatpush.bf16.msra.mxu0 %v485
  %545 = vmatmul.bf16.gmra.mxu0 %v95
  %v546 = vpop.f32.mrf.mxu0
  %v547 = vadd.f32 0.0, %v546
  %v548 = vpop.f32.mrf.mxu0
  %v549 = vadd.f32 0.0, %v548
  %550 = vmatmul.bf16.gmra.mxu0 %v98
  %v551 = vpop.f32.mrf.mxu0
  %v552 = vadd.f32 0.0, %v551
  %v553 = vpop.f32.mrf.mxu0
  %v554 = vadd.f32 0.0, %v553
  %555 = vmatmul.bf16.gmra.mxu0 %v101
  %v556 = vpop.f32.mrf.mxu0
  %v557 = vadd.f32 0.0, %v556
  %v558 = vpop.f32.mrf.mxu0
  %v559 = vadd.f32 0.0, %v558
  %560 = vmatmul.bf16.gmra.mxu0 %v104
  %v561 = vpop.f32.mrf.mxu0
  %v562 = vadd.f32 0.0, %v561
  %v563 = vpop.f32.mrf.mxu0
  %v564 = vadd.f32 0.0, %v563
  %565 = vmatmul.bf16.gmra.mxu0 %v107
  %v566 = vpop.f32.mrf.mxu0
  %v567 = vadd.f32 0.0, %v566
  %v568 = vpop.f32.mrf.mxu0
  %v569 = vadd.f32 0.0, %v568
  %570 = vmatmul.bf16.gmra.mxu0 %v110
  %v571 = vpop.f32.mrf.mxu0
  %v572 = vadd.f32 0.0, %v571
  %v573 = vpop.f32.mrf.mxu0
  %v574 = vadd.f32 0.0, %v573
  %575 = vmatmul.bf16.gmra.mxu0 %v113
  %v576 = vpop.f32.mrf.mxu0
  %v577 = vadd.f32 0.0, %v576
  %v578 = vpop.f32.mrf.mxu0
  %v579 = vadd.f32 0.0, %v578
  %580 = vmatmul.bf16.gmra.mxu0 %v116
  %v581 = vpop.f32.mrf.mxu0
  %v582 = vadd.f32 0.0, %v581
  %v583 = vpop.f32.mrf.mxu0
  %v584 = vadd.f32 0.0, %v583
  %585 = vdwg.mxu0
  %v586 = vpack.c.bf16 %v547, %v498
  %v587 = vpack.c.bf16 %v549, %v500
  %v588 = vpack.c.bf16 %v552, %v503
  %v589 = vpack.c.bf16 %v554, %v505
  %v590 = vpack.c.bf16 %v557, %v508
  %v591 = vpack.c.bf16 %v559, %v510
  %v592 = vpack.c.bf16 %v562, %v513
  %v593 = vpack.c.bf16 %v564, %v515
  %v594 = vpack.c.bf16 %v567, %v518
  %v595 = vpack.c.bf16 %v569, %v520
  %v596 = vpack.c.bf16 %v572, %v523
  %v597 = vpack.c.bf16 %v574, %v525
  %v598 = vpack.c.bf16 %v577, %v528
  %v599 = vpack.c.bf16 %v579, %v530
  %v600 = vpack.c.bf16 %v582, %v533
  %v601 = vpack.c.bf16 %v584, %v535
  %vm602 = vcmask 1043456
  %vm603 = vcmask 523268
  %vm604 = vmor %vm603, %vm602
  %605 = vst.msk [vmem:[%s7] sm:$0xff] %vm604, %v586
  %606 = vst.msk [vmem:[%s7 + $0x8] sm:$0xff] %vm604, %v587
  %607 = vst.msk [vmem:[%s7 + $0x10] sm:$0xff] %vm604, %v588
  %608 = vst.msk [vmem:[%s7 + $0x18] sm:$0xff] %vm604, %v589
  %609 = vst.msk [vmem:[%s7 + $0x20] sm:$0xff] %vm604, %v590
  %610 = vst.msk [vmem:[%s7 + $0x28] sm:$0xff] %vm604, %v591
  %611 = vst.msk [vmem:[%s7 + $0x30] sm:$0xff] %vm604, %v592
  %612 = vst.msk [vmem:[%s7 + $0x38] sm:$0xff] %vm604, %v593
  %613 = vst.msk [vmem:[%s7 + $0x40] sm:$0xff] %vm604, %v594
  %614 = vst.msk [vmem:[%s7 + $0x48] sm:$0xff] %vm604, %v595
  %615 = vst.msk [vmem:[%s7 + $0x50] sm:$0xff] %vm604, %v596
  %616 = vst.msk [vmem:[%s7 + $0x58] sm:$0xff] %vm604, %v597
  %617 = vst.msk [vmem:[%s7 + $0x60] sm:$0xff] %vm604, %v598
  %618 = vst.msk [vmem:[%s7 + $0x68] sm:$0xff] %vm604, %v599
  %619 = vst.msk [vmem:[%s7 + $0x70] sm:$0xff] %vm604, %v600
  %620 = vst.msk [vmem:[%s7 + $0x78] sm:$0xff] %vm604, %v601
  %v621 = vadd.f32 %v498, %v500
  %v622 = vadd.f32 %v621, %v503
  %v623 = vadd.f32 %v622, %v505
  %v624 = vadd.f32 %v623, %v508
  %v625 = vadd.f32 %v624, %v510
  %v626 = vadd.f32 %v625, %v513
  %v627 = vadd.f32 %v626, %v515
  %v628 = vadd.f32 %v627, %v518
  %v629 = vadd.f32 %v628, %v520
  %v630 = vadd.f32 %v629, %v523
  %v631 = vadd.f32 %v630, %v525
  %v632 = vadd.f32 %v631, %v528
  %v633 = vadd.f32 %v632, %v530
  %v634 = vadd.f32 %v633, %v533
  %v635 = vadd.f32 %v634, %v535
  %v636 = vrot.slane %v635, 4
  %v637 = vadd.f32 %v635, %v636
  %v638 = vrot.slane %v637, 2
  %v639 = vadd.f32 %v637, %v638
  %v640 = vrot.slane %v639, 1
  %v641 = vadd.f32 %v639, %v640
  %vm642 = vcmask 523264
  %v643 = vsel %vm642, %v547, 0.0
  %v644 = vsel %vm642, %v549, 0.0
  %v645 = vadd.f32 %v643, %v644
  %v646 = vsel %vm642, %v552, 0.0
  %v647 = vadd.f32 %v645, %v646
  %v648 = vsel %vm642, %v554, 0.0
  %v649 = vadd.f32 %v647, %v648
  %v650 = vsel %vm642, %v557, 0.0
  %v651 = vadd.f32 %v649, %v650
  %v652 = vsel %vm642, %v559, 0.0
  %v653 = vadd.f32 %v651, %v652
  %v654 = vsel %vm642, %v562, 0.0
  %v655 = vadd.f32 %v653, %v654
  %v656 = vsel %vm642, %v564, 0.0
  %v657 = vadd.f32 %v655, %v656
  %v658 = vsel %vm642, %v567, 0.0
  %v659 = vadd.f32 %v657, %v658
  %v660 = vsel %vm642, %v569, 0.0
  %v661 = vadd.f32 %v659, %v660
  %v662 = vsel %vm642, %v572, 0.0
  %v663 = vadd.f32 %v661, %v662
  %v664 = vsel %vm642, %v574, 0.0
  %v665 = vadd.f32 %v663, %v664
  %v666 = vsel %vm642, %v577, 0.0
  %v667 = vadd.f32 %v665, %v666
  %v668 = vsel %vm642, %v579, 0.0
  %v669 = vadd.f32 %v667, %v668
  %v670 = vsel %vm642, %v582, 0.0
  %v671 = vadd.f32 %v669, %v670
  %v672 = vsel %vm642, %v584, 0.0
  %v673 = vadd.f32 %v671, %v672
  %v674 = vrot.slane %v673, 4
  %v675 = vadd.f32 %v673, %v674
  %v676 = vrot.slane %v675, 2
  %v677 = vadd.f32 %v675, %v676
  %v678 = vrot.slane %v677, 1
  %v679 = vadd.f32 %v677, %v678
  %v680 = vmul.f32 %v498, %v498
  %v681 = vmul.f32 %v547, %v547
  %v682 = vmul.f32 %v500, %v500
  %v683 = vmul.f32 %v549, %v549
  %v684 = vmul.f32 %v503, %v503
  %v685 = vmul.f32 %v552, %v552
  %v686 = vmul.f32 %v505, %v505
  %v687 = vmul.f32 %v554, %v554
  %v688 = vmul.f32 %v508, %v508
  %v689 = vmul.f32 %v557, %v557
  %v690 = vmul.f32 %v510, %v510
  %v691 = vmul.f32 %v559, %v559
  %v692 = vmul.f32 %v513, %v513
  %v693 = vmul.f32 %v562, %v562
  %v694 = vmul.f32 %v515, %v515
  %v695 = vmul.f32 %v564, %v564
  %v696 = vmul.f32 %v518, %v518
  %v697 = vmul.f32 %v567, %v567
  %v698 = vmul.f32 %v520, %v520
  %v699 = vmul.f32 %v569, %v569
  %v700 = vmul.f32 %v523, %v523
  %v701 = vmul.f32 %v572, %v572
  %v702 = vmul.f32 %v525, %v525
  %v703 = vmul.f32 %v574, %v574
  %v704 = vmul.f32 %v528, %v528
  %v705 = vmul.f32 %v577, %v577
  %v706 = vmul.f32 %v530, %v530
  %v707 = vmul.f32 %v579, %v579
  %v708 = vmul.f32 %v533, %v533
  %v709 = vmul.f32 %v582, %v582
  %v710 = vmul.f32 %v535, %v535
  %v711 = vmul.f32 %v584, %v584
  %v712 = vadd.f32 %v680, %v682
  %v713 = vadd.f32 %v712, %v684
  %v714 = vadd.f32 %v713, %v686
  %v715 = vadd.f32 %v714, %v688
  %v716 = vadd.f32 %v715, %v690
  %v717 = vadd.f32 %v716, %v692
  %v718 = vadd.f32 %v717, %v694
  %v719 = vadd.f32 %v718, %v696
  %v720 = vadd.f32 %v719, %v698
  %v721 = vadd.f32 %v720, %v700
  %v722 = vadd.f32 %v721, %v702
  %v723 = vadd.f32 %v722, %v704
  %v724 = vadd.f32 %v723, %v706
  %v725 = vadd.f32 %v724, %v708
  %v726 = vadd.f32 %v725, %v710
  %v727 = vrot.slane %v726, 4
  %v728 = vadd.f32 %v726, %v727
  %v729 = vrot.slane %v728, 2
  %v730 = vadd.f32 %v728, %v729
  %v731 = vrot.slane %v730, 1
  %v732 = vadd.f32 %v730, %v731
  %v733 = vsel %vm642, %v681, 0.0
  %v734 = vsel %vm642, %v683, 0.0
  %v735 = vadd.f32 %v733, %v734
  %v736 = vsel %vm642, %v685, 0.0
  %v737 = vadd.f32 %v735, %v736
  %v738 = vsel %vm642, %v687, 0.0
  %v739 = vadd.f32 %v737, %v738
  %v740 = vsel %vm642, %v689, 0.0
  %v741 = vadd.f32 %v739, %v740
  %v742 = vsel %vm642, %v691, 0.0
  %v743 = vadd.f32 %v741, %v742
  %v744 = vsel %vm642, %v693, 0.0
  %v745 = vadd.f32 %v743, %v744
  %v746 = vsel %vm642, %v695, 0.0
  %v747 = vadd.f32 %v745, %v746
  %v748 = vsel %vm642, %v697, 0.0
  %v749 = vadd.f32 %v747, %v748
  %v750 = vsel %vm642, %v699, 0.0
  %v751 = vadd.f32 %v749, %v750
  %v752 = vsel %vm642, %v701, 0.0
  %v753 = vadd.f32 %v751, %v752
  %v754 = vsel %vm642, %v703, 0.0
  %v755 = vadd.f32 %v753, %v754
  %v756 = vsel %vm642, %v705, 0.0
  %v757 = vadd.f32 %v755, %v756
  %v758 = vsel %vm642, %v707, 0.0
  %v759 = vadd.f32 %v757, %v758
  %v760 = vsel %vm642, %v709, 0.0
  %v761 = vadd.f32 %v759, %v760
  %v762 = vsel %vm642, %v711, 0.0
  %v763 = vadd.f32 %v761, %v762
  %v764 = vrot.slane %v763, 4
  %v765 = vadd.f32 %v763, %v764
  %v766 = vrot.slane %v765, 2
  %v767 = vadd.f32 %v765, %v766
  %v768 = vrot.slane %v767, 1
  %v769 = vadd.f32 %v767, %v768
  %v770 = vsel %vm291, %v641, %v732
  %v771 = vsel %vm291, %v679, %v769
  %v774 = vrot.slane %v771, 6
  %vm775 = vcmask 1041408
  %v776 = vsel %vm775, %v770, %v774
  %vm778 = vcmask 519170
  %vm779 = vmor %vm778, %vm775
  %780 = vst.msk [vmem:[%s11] sm:$0xf] %vm779, %v776
  %v781 = vunpack.c.l.bf16 %v29
  %v782 = vunpack.c.l.bf16 %v30
  %v783 = vunpack.c.l.bf16 %v31
  %v784 = vunpack.c.l.bf16 %v32
  %v785 = vunpack.c.l.bf16 %v33
  %v786 = vunpack.c.l.bf16 %v34
  %v787 = vunpack.c.l.bf16 %v35
  %v788 = vunpack.c.l.bf16 %v36
  %v789 = vunpack.c.l.bf16 %v37
  %v790 = vunpack.c.l.bf16 %v38
  %v791 = vunpack.c.l.bf16 %v39
  %v792 = vunpack.c.l.bf16 %v40
  %v793 = vunpack.c.l.bf16 %v41
  %v794 = vunpack.c.l.bf16 %v42
  %v795 = vunpack.c.l.bf16 %v43
  %v796 = vunpack.c.l.bf16 %v44
  %v813 = vrot.slane %v781, 7
  %v814 = vrot.slane %v782, 7
  %v815 = vrot.slane %v783, 7
  %v816 = vrot.slane %v784, 7
  %v817 = vrot.slane %v785, 7
  %v818 = vrot.slane %v786, 7
  %v819 = vrot.slane %v787, 7
  %v820 = vrot.slane %v788, 7
  %v821 = vrot.slane %v789, 7
  %v822 = vrot.slane %v790, 7
  %v823 = vrot.slane %v791, 7
  %v824 = vrot.slane %v792, 7
  %v825 = vrot.slane %v793, 7
  %v826 = vrot.slane %v794, 7
  %v827 = vrot.slane %v795, 7
  %v828 = vrot.slane %v796, 7
  %v845 = vsel %vm291, 0.0, %v813
  %v846 = vsel %vm291, 0.0, %v814
  %v847 = vsel %vm291, 0.0, %v815
  %v848 = vsel %vm291, 0.0, %v816
  %v849 = vsel %vm291, 0.0, %v817
  %v850 = vsel %vm291, 0.0, %v818
  %v851 = vsel %vm291, 0.0, %v819
  %v852 = vsel %vm291, 0.0, %v820
  %v853 = vsel %vm291, 0.0, %v821
  %v854 = vsel %vm291, 0.0, %v822
  %v855 = vsel %vm291, 0.0, %v823
  %v856 = vsel %vm291, 0.0, %v824
  %v857 = vsel %vm291, 0.0, %v825
  %v858 = vsel %vm291, 0.0, %v826
  %v859 = vsel %vm291, 0.0, %v827
  %v860 = vsel %vm291, 0.0, %v828
  %v861 = vsel %vm291, %v813, 0.0
  %v862 = vsel %vm291, %v814, 0.0
  %v863 = vsel %vm291, %v815, 0.0
  %v864 = vsel %vm291, %v816, 0.0
  %v865 = vsel %vm291, %v817, 0.0
  %v866 = vsel %vm291, %v818, 0.0
  %v867 = vsel %vm291, %v819, 0.0
  %v868 = vsel %vm291, %v820, 0.0
  %v869 = vsel %vm291, %v821, 0.0
  %v870 = vsel %vm291, %v822, 0.0
  %v871 = vsel %vm291, %v823, 0.0
  %v872 = vsel %vm291, %v824, 0.0
  %v873 = vsel %vm291, %v825, 0.0
  %v874 = vsel %vm291, %v826, 0.0
  %v875 = vsel %vm291, %v827, 0.0
  %v876 = vsel %vm291, %v828, 0.0
  %vm909 = vcmask 1046528
  %v910 = vrot.slane %v845, 1
  %v911 = vrot.slane %v861, 1
  %v912 = vsel %vm909, %v910, %v911
  %v913 = vrot.slane %v846, 1
  %v914 = vrot.slane %v862, 1
  %v915 = vsel %vm909, %v913, %v914
  %v916 = vrot.slane %v847, 1
  %v917 = vrot.slane %v863, 1
  %v918 = vsel %vm909, %v916, %v917
  %v919 = vrot.slane %v848, 1
  %v920 = vrot.slane %v864, 1
  %v921 = vsel %vm909, %v919, %v920
  %v922 = vrot.slane %v849, 1
  %v923 = vrot.slane %v865, 1
  %v924 = vsel %vm909, %v922, %v923
  %v925 = vrot.slane %v850, 1
  %v926 = vrot.slane %v866, 1
  %v927 = vsel %vm909, %v925, %v926
  %v928 = vrot.slane %v851, 1
  %v929 = vrot.slane %v867, 1
  %v930 = vsel %vm909, %v928, %v929
  %v931 = vrot.slane %v852, 1
  %v932 = vrot.slane %v868, 1
  %v933 = vsel %vm909, %v931, %v932
  %v934 = vrot.slane %v853, 1
  %v935 = vrot.slane %v869, 1
  %v936 = vsel %vm909, %v934, %v935
  %v937 = vrot.slane %v854, 1
  %v938 = vrot.slane %v870, 1
  %v939 = vsel %vm909, %v937, %v938
  %v940 = vrot.slane %v855, 1
  %v941 = vrot.slane %v871, 1
  %v942 = vsel %vm909, %v940, %v941
  %v943 = vrot.slane %v856, 1
  %v944 = vrot.slane %v872, 1
  %v945 = vsel %vm909, %v943, %v944
  %v946 = vrot.slane %v857, 1
  %v947 = vrot.slane %v873, 1
  %v948 = vsel %vm909, %v946, %v947
  %v949 = vrot.slane %v858, 1
  %v950 = vrot.slane %v874, 1
  %v951 = vsel %vm909, %v949, %v950
  %v952 = vrot.slane %v859, 1
  %v953 = vrot.slane %v875, 1
  %v954 = vsel %vm909, %v952, %v953
  %v955 = vrot.slane %v860, 1
  %v956 = vrot.slane %v876, 1
  %v957 = vsel %vm909, %v955, %v956
  %v974 = vadd.f32 %v845, %v912
  %v975 = vadd.f32 %v846, %v915
  %v976 = vadd.f32 %v847, %v918
  %v977 = vadd.f32 %v848, %v921
  %v978 = vadd.f32 %v849, %v924
  %v979 = vadd.f32 %v850, %v927
  %v980 = vadd.f32 %v851, %v930
  %v981 = vadd.f32 %v852, %v933
  %v982 = vadd.f32 %v853, %v936
  %v983 = vadd.f32 %v854, %v939
  %v984 = vadd.f32 %v855, %v942
  %v985 = vadd.f32 %v856, %v945
  %v986 = vadd.f32 %v857, %v948
  %v987 = vadd.f32 %v858, %v951
  %v988 = vadd.f32 %v859, %v954
  %v989 = vadd.f32 %v860, %v957
  %vm990 = vcmask 1045504
  %v991 = vrot.slane %v845, 2
  %v992 = vrot.slane %v861, 2
  %v993 = vsel %vm990, %v991, %v992
  %v994 = vrot.slane %v846, 2
  %v995 = vrot.slane %v862, 2
  %v996 = vsel %vm990, %v994, %v995
  %v997 = vrot.slane %v847, 2
  %v998 = vrot.slane %v863, 2
  %v999 = vsel %vm990, %v997, %v998
  %v1000 = vrot.slane %v848, 2
  %v1001 = vrot.slane %v864, 2
  %v1002 = vsel %vm990, %v1000, %v1001
  %v1003 = vrot.slane %v849, 2
  %v1004 = vrot.slane %v865, 2
  %v1005 = vsel %vm990, %v1003, %v1004
  %v1006 = vrot.slane %v850, 2
  %v1007 = vrot.slane %v866, 2
  %v1008 = vsel %vm990, %v1006, %v1007
  %v1009 = vrot.slane %v851, 2
  %v1010 = vrot.slane %v867, 2
  %v1011 = vsel %vm990, %v1009, %v1010
  %v1012 = vrot.slane %v852, 2
  %v1013 = vrot.slane %v868, 2
  %v1014 = vsel %vm990, %v1012, %v1013
  %v1015 = vrot.slane %v853, 2
  %v1016 = vrot.slane %v869, 2
  %v1017 = vsel %vm990, %v1015, %v1016
  %v1018 = vrot.slane %v854, 2
  %v1019 = vrot.slane %v870, 2
  %v1020 = vsel %vm990, %v1018, %v1019
  %v1021 = vrot.slane %v855, 2
  %v1022 = vrot.slane %v871, 2
  %v1023 = vsel %vm990, %v1021, %v1022
  %v1024 = vrot.slane %v856, 2
  %v1025 = vrot.slane %v872, 2
  %v1026 = vsel %vm990, %v1024, %v1025
  %v1027 = vrot.slane %v857, 2
  %v1028 = vrot.slane %v873, 2
  %v1029 = vsel %vm990, %v1027, %v1028
  %v1030 = vrot.slane %v858, 2
  %v1031 = vrot.slane %v874, 2
  %v1032 = vsel %vm990, %v1030, %v1031
  %v1033 = vrot.slane %v859, 2
  %v1034 = vrot.slane %v875, 2
  %v1035 = vsel %vm990, %v1033, %v1034
  %v1036 = vrot.slane %v860, 2
  %v1037 = vrot.slane %v876, 2
  %v1038 = vsel %vm990, %v1036, %v1037
  %v1055 = vadd.f32 %v974, %v993
  %v1056 = vadd.f32 %v975, %v996
  %v1057 = vadd.f32 %v976, %v999
  %v1058 = vadd.f32 %v977, %v1002
  %v1059 = vadd.f32 %v978, %v1005
  %v1060 = vadd.f32 %v979, %v1008
  %v1061 = vadd.f32 %v980, %v1011
  %v1062 = vadd.f32 %v981, %v1014
  %v1063 = vadd.f32 %v982, %v1017
  %v1064 = vadd.f32 %v983, %v1020
  %v1065 = vadd.f32 %v984, %v1023
  %v1066 = vadd.f32 %v985, %v1026
  %v1067 = vadd.f32 %v986, %v1029
  %v1068 = vadd.f32 %v987, %v1032
  %v1069 = vadd.f32 %v988, %v1035
  %v1070 = vadd.f32 %v989, %v1038
  %v1071 = vadd.f32 %v1055, 0.0
  %v1072 = vadd.f32 %v1055, %v1056
  %v1073 = vadd.f32 %v1056, %v1057
  %v1074 = vadd.f32 %v1057, %v1058
  %v1075 = vadd.f32 %v1058, %v1059
  %v1076 = vadd.f32 %v1059, %v1060
  %v1077 = vadd.f32 %v1060, %v1061
  %v1078 = vadd.f32 %v1061, %v1062
  %v1079 = vadd.f32 %v1063, 0.0
  %v1080 = vadd.f32 %v1063, %v1064
  %v1081 = vadd.f32 %v1064, %v1065
  %v1082 = vadd.f32 %v1065, %v1066
  %v1083 = vadd.f32 %v1066, %v1067
  %v1084 = vadd.f32 %v1067, %v1068
  %v1085 = vadd.f32 %v1068, %v1069
  %v1086 = vadd.f32 %v1069, %v1070
  %v1087 = vadd.f32 %v1071, %v1056
  %v1088 = vadd.f32 %v1072, %v1057
  %v1089 = vadd.f32 %v1073, %v1058
  %v1090 = vadd.f32 %v1074, %v1059
  %v1091 = vadd.f32 %v1075, %v1060
  %v1092 = vadd.f32 %v1076, %v1061
  %v1093 = vadd.f32 %v1077, %v1062
  %v1094 = vadd.f32 %v1078, 0.0
  %v1095 = vadd.f32 %v1079, %v1064
  %v1096 = vadd.f32 %v1080, %v1065
  %v1097 = vadd.f32 %v1081, %v1066
  %v1098 = vadd.f32 %v1082, %v1067
  %v1099 = vadd.f32 %v1083, %v1068
  %v1100 = vadd.f32 %v1084, %v1069
  %v1101 = vadd.f32 %v1085, %v1070
  %v1102 = vadd.f32 %v1086, 0.0
  %v1103 = vmul.f32 %v1087, 0.11111111
  %v1104 = vmul.f32 %v1088, 0.11111111
  %v1105 = vmul.f32 %v1089, 0.11111111
  %v1106 = vmul.f32 %v1090, 0.11111111
  %v1107 = vmul.f32 %v1091, 0.11111111
  %v1108 = vmul.f32 %v1092, 0.11111111
  %v1109 = vmul.f32 %v1093, 0.11111111
  %v1110 = vmul.f32 %v1094, 0.11111111
  %v1111 = vmul.f32 %v1095, 0.11111111
  %v1112 = vmul.f32 %v1096, 0.11111111
  %v1113 = vmul.f32 %v1097, 0.11111111
  %v1114 = vmul.f32 %v1098, 0.11111111
  %v1115 = vmul.f32 %v1099, 0.11111111
  %v1116 = vmul.f32 %v1100, 0.11111111
  %v1117 = vmul.f32 %v1101, 0.11111111
  %v1118 = vmul.f32 %v1102, 0.11111111
  %v1119 = vpack.c.bf16 %v1104, %v1103
  %v1120 = vpack.c.bf16 %v1106, %v1105
  %v1121 = vpack.c.bf16 %v1108, %v1107
  %v1122 = vpack.c.bf16 %v1110, %v1109
  %v1123 = vpack.c.bf16 %v1112, %v1111
  %v1124 = vpack.c.bf16 %v1114, %v1113
  %v1125 = vpack.c.bf16 %v1116, %v1115
  %v1126 = vpack.c.bf16 %v1118, %v1117
  %v1127 = vld [vmem:[%s4] sm:$0xff]
  %v1128 = vld [vmem:[%s4 + $0x8] sm:$0xff]
  %v1131 = vunpack.c.l.b16 %v1127
  %v1132 = vunpack.c.h.b16 %v1127
  %v1133 = vunpack.c.l.b16 %v1128
  %v1134 = vunpack.c.h.b16 %v1128
  %v1135 = vpack.c.b16 %v1133, %v1131
  %v1136 = vpack.c.b16 %v1134, %v1132
  %v1140 = vsel %vm93, %v1119, 0
  %v1143 = vsel %vm93, %v1120, 0
  %v1146 = vsel %vm93, %v1121, 0
  %v1149 = vsel %vm93, %v1122, 0
  %v1152 = vsel %vm93, %v1123, 0
  %v1155 = vsel %vm93, %v1124, 0
  %v1158 = vsel %vm93, %v1125, 0
  %v1161 = vsel %vm93, %v1126, 0
  %1163 = vmatpush.bf16.msra.mxu0 0
  %1164 = vmatpush.bf16.msra.mxu0 0
  %1165 = vmatpush.bf16.msra.mxu0 0
  %1166 = vmatpush.bf16.msra.mxu0 0
  %1167 = vmatpush.bf16.msra.mxu0 0
  %1168 = vmatpush.bf16.msra.mxu0 0
  %1169 = vmatpush.bf16.msra.mxu0 0
  %1170 = vmatpush.bf16.msra.mxu0 %v1135
  %1171 = vmatmul.bf16.gmra.mxu0 %v1140
  %v1172 = vpop.f32.mrf.mxu0
  %v1173 = vadd.f32 0.0, %v1172
  %v1174 = vpop.f32.mrf.mxu0
  %v1175 = vadd.f32 0.0, %v1174
  %1176 = vmatmul.bf16.gmra.mxu0 %v1143
  %v1177 = vpop.f32.mrf.mxu0
  %v1178 = vadd.f32 0.0, %v1177
  %v1179 = vpop.f32.mrf.mxu0
  %v1180 = vadd.f32 0.0, %v1179
  %1181 = vmatmul.bf16.gmra.mxu0 %v1146
  %v1182 = vpop.f32.mrf.mxu0
  %v1183 = vadd.f32 0.0, %v1182
  %v1184 = vpop.f32.mrf.mxu0
  %v1185 = vadd.f32 0.0, %v1184
  %1186 = vmatmul.bf16.gmra.mxu0 %v1149
  %v1187 = vpop.f32.mrf.mxu0
  %v1188 = vadd.f32 0.0, %v1187
  %v1189 = vpop.f32.mrf.mxu0
  %v1190 = vadd.f32 0.0, %v1189
  %1191 = vmatmul.bf16.gmra.mxu0 %v1152
  %v1192 = vpop.f32.mrf.mxu0
  %v1193 = vadd.f32 0.0, %v1192
  %v1194 = vpop.f32.mrf.mxu0
  %v1195 = vadd.f32 0.0, %v1194
  %1196 = vmatmul.bf16.gmra.mxu0 %v1155
  %v1197 = vpop.f32.mrf.mxu0
  %v1198 = vadd.f32 0.0, %v1197
  %v1199 = vpop.f32.mrf.mxu0
  %v1200 = vadd.f32 0.0, %v1199
  %1201 = vmatmul.bf16.gmra.mxu0 %v1158
  %v1202 = vpop.f32.mrf.mxu0
  %v1203 = vadd.f32 0.0, %v1202
  %v1204 = vpop.f32.mrf.mxu0
  %v1205 = vadd.f32 0.0, %v1204
  %1206 = vmatmul.bf16.gmra.mxu0 %v1161
  %v1207 = vpop.f32.mrf.mxu0
  %v1208 = vadd.f32 0.0, %v1207
  %v1209 = vpop.f32.mrf.mxu0
  %v1210 = vadd.f32 0.0, %v1209
  %1211 = vdwg.mxu0
  %1212 = vmatpush.bf16.msra.mxu0 0
  %1213 = vmatpush.bf16.msra.mxu0 0
  %1214 = vmatpush.bf16.msra.mxu0 0
  %1215 = vmatpush.bf16.msra.mxu0 0
  %1216 = vmatpush.bf16.msra.mxu0 0
  %1217 = vmatpush.bf16.msra.mxu0 0
  %1218 = vmatpush.bf16.msra.mxu0 0
  %1219 = vmatpush.bf16.msra.mxu0 %v1136
  %1220 = vmatmul.bf16.gmra.mxu0 %v1140
  %v1221 = vpop.f32.mrf.mxu0
  %v1222 = vadd.f32 0.0, %v1221
  %v1223 = vpop.f32.mrf.mxu0
  %v1224 = vadd.f32 0.0, %v1223
  %1225 = vmatmul.bf16.gmra.mxu0 %v1143
  %v1226 = vpop.f32.mrf.mxu0
  %v1227 = vadd.f32 0.0, %v1226
  %v1228 = vpop.f32.mrf.mxu0
  %v1229 = vadd.f32 0.0, %v1228
  %1230 = vmatmul.bf16.gmra.mxu0 %v1146
  %v1231 = vpop.f32.mrf.mxu0
  %v1232 = vadd.f32 0.0, %v1231
  %v1233 = vpop.f32.mrf.mxu0
  %v1234 = vadd.f32 0.0, %v1233
  %1235 = vmatmul.bf16.gmra.mxu0 %v1149
  %v1236 = vpop.f32.mrf.mxu0
  %v1237 = vadd.f32 0.0, %v1236
  %v1238 = vpop.f32.mrf.mxu0
  %v1239 = vadd.f32 0.0, %v1238
  %1240 = vmatmul.bf16.gmra.mxu0 %v1152
  %v1241 = vpop.f32.mrf.mxu0
  %v1242 = vadd.f32 0.0, %v1241
  %v1243 = vpop.f32.mrf.mxu0
  %v1244 = vadd.f32 0.0, %v1243
  %1245 = vmatmul.bf16.gmra.mxu0 %v1155
  %v1246 = vpop.f32.mrf.mxu0
  %v1247 = vadd.f32 0.0, %v1246
  %v1248 = vpop.f32.mrf.mxu0
  %v1249 = vadd.f32 0.0, %v1248
  %1250 = vmatmul.bf16.gmra.mxu0 %v1158
  %v1251 = vpop.f32.mrf.mxu0
  %v1252 = vadd.f32 0.0, %v1251
  %v1253 = vpop.f32.mrf.mxu0
  %v1254 = vadd.f32 0.0, %v1253
  %1255 = vmatmul.bf16.gmra.mxu0 %v1161
  %v1256 = vpop.f32.mrf.mxu0
  %v1257 = vadd.f32 0.0, %v1256
  %v1258 = vpop.f32.mrf.mxu0
  %v1259 = vadd.f32 0.0, %v1258
  %1260 = vdwg.mxu0
  %v1261 = vpack.c.bf16 %v1222, %v1173
  %v1262 = vpack.c.bf16 %v1224, %v1175
  %v1263 = vpack.c.bf16 %v1227, %v1178
  %v1264 = vpack.c.bf16 %v1229, %v1180
  %v1265 = vpack.c.bf16 %v1232, %v1183
  %v1266 = vpack.c.bf16 %v1234, %v1185
  %v1267 = vpack.c.bf16 %v1237, %v1188
  %v1268 = vpack.c.bf16 %v1239, %v1190
  %v1269 = vpack.c.bf16 %v1242, %v1193
  %v1270 = vpack.c.bf16 %v1244, %v1195
  %v1271 = vpack.c.bf16 %v1247, %v1198
  %v1272 = vpack.c.bf16 %v1249, %v1200
  %v1273 = vpack.c.bf16 %v1252, %v1203
  %v1274 = vpack.c.bf16 %v1254, %v1205
  %v1275 = vpack.c.bf16 %v1257, %v1208
  %v1276 = vpack.c.bf16 %v1259, %v1210
  %1277 = vst.msk [vmem:[%s8] sm:$0xff] %vm604, %v1261
  %1278 = vst.msk [vmem:[%s8 + $0x8] sm:$0xff] %vm604, %v1262
  %1279 = vst.msk [vmem:[%s8 + $0x10] sm:$0xff] %vm604, %v1263
  %1280 = vst.msk [vmem:[%s8 + $0x18] sm:$0xff] %vm604, %v1264
  %1281 = vst.msk [vmem:[%s8 + $0x20] sm:$0xff] %vm604, %v1265
  %1282 = vst.msk [vmem:[%s8 + $0x28] sm:$0xff] %vm604, %v1266
  %1283 = vst.msk [vmem:[%s8 + $0x30] sm:$0xff] %vm604, %v1267
  %1284 = vst.msk [vmem:[%s8 + $0x38] sm:$0xff] %vm604, %v1268
  %1285 = vst.msk [vmem:[%s8 + $0x40] sm:$0xff] %vm604, %v1269
  %1286 = vst.msk [vmem:[%s8 + $0x48] sm:$0xff] %vm604, %v1270
  %1287 = vst.msk [vmem:[%s8 + $0x50] sm:$0xff] %vm604, %v1271
  %1288 = vst.msk [vmem:[%s8 + $0x58] sm:$0xff] %vm604, %v1272
  %1289 = vst.msk [vmem:[%s8 + $0x60] sm:$0xff] %vm604, %v1273
  %1290 = vst.msk [vmem:[%s8 + $0x68] sm:$0xff] %vm604, %v1274
  %1291 = vst.msk [vmem:[%s8 + $0x70] sm:$0xff] %vm604, %v1275
  %1292 = vst.msk [vmem:[%s8 + $0x78] sm:$0xff] %vm604, %v1276
  %v1293 = vadd.f32 %v1173, %v1175
  %v1294 = vadd.f32 %v1293, %v1178
  %v1295 = vadd.f32 %v1294, %v1180
  %v1296 = vadd.f32 %v1295, %v1183
  %v1297 = vadd.f32 %v1296, %v1185
  %v1298 = vadd.f32 %v1297, %v1188
  %v1299 = vadd.f32 %v1298, %v1190
  %v1300 = vadd.f32 %v1299, %v1193
  %v1301 = vadd.f32 %v1300, %v1195
  %v1302 = vadd.f32 %v1301, %v1198
  %v1303 = vadd.f32 %v1302, %v1200
  %v1304 = vadd.f32 %v1303, %v1203
  %v1305 = vadd.f32 %v1304, %v1205
  %v1306 = vadd.f32 %v1305, %v1208
  %v1307 = vadd.f32 %v1306, %v1210
  %v1308 = vrot.slane %v1307, 4
  %v1309 = vadd.f32 %v1307, %v1308
  %v1310 = vrot.slane %v1309, 2
  %v1311 = vadd.f32 %v1309, %v1310
  %v1312 = vrot.slane %v1311, 1
  %v1313 = vadd.f32 %v1311, %v1312
  %v1314 = vsel %vm642, %v1222, 0.0
  %v1315 = vsel %vm642, %v1224, 0.0
  %v1316 = vadd.f32 %v1314, %v1315
  %v1317 = vsel %vm642, %v1227, 0.0
  %v1318 = vadd.f32 %v1316, %v1317
  %v1319 = vsel %vm642, %v1229, 0.0
  %v1320 = vadd.f32 %v1318, %v1319
  %v1321 = vsel %vm642, %v1232, 0.0
  %v1322 = vadd.f32 %v1320, %v1321
  %v1323 = vsel %vm642, %v1234, 0.0
  %v1324 = vadd.f32 %v1322, %v1323
  %v1325 = vsel %vm642, %v1237, 0.0
  %v1326 = vadd.f32 %v1324, %v1325
  %v1327 = vsel %vm642, %v1239, 0.0
  %v1328 = vadd.f32 %v1326, %v1327
  %v1329 = vsel %vm642, %v1242, 0.0
  %v1330 = vadd.f32 %v1328, %v1329
  %v1331 = vsel %vm642, %v1244, 0.0
  %v1332 = vadd.f32 %v1330, %v1331
  %v1333 = vsel %vm642, %v1247, 0.0
  %v1334 = vadd.f32 %v1332, %v1333
  %v1335 = vsel %vm642, %v1249, 0.0
  %v1336 = vadd.f32 %v1334, %v1335
  %v1337 = vsel %vm642, %v1252, 0.0
  %v1338 = vadd.f32 %v1336, %v1337
  %v1339 = vsel %vm642, %v1254, 0.0
  %v1340 = vadd.f32 %v1338, %v1339
  %v1341 = vsel %vm642, %v1257, 0.0
  %v1342 = vadd.f32 %v1340, %v1341
  %v1343 = vsel %vm642, %v1259, 0.0
  %v1344 = vadd.f32 %v1342, %v1343
  %v1345 = vrot.slane %v1344, 4
  %v1346 = vadd.f32 %v1344, %v1345
  %v1347 = vrot.slane %v1346, 2
  %v1348 = vadd.f32 %v1346, %v1347
  %v1349 = vrot.slane %v1348, 1
  %v1350 = vadd.f32 %v1348, %v1349
  %v1351 = vmul.f32 %v1173, %v1173
  %v1352 = vmul.f32 %v1222, %v1222
  %v1353 = vmul.f32 %v1175, %v1175
  %v1354 = vmul.f32 %v1224, %v1224
  %v1355 = vmul.f32 %v1178, %v1178
  %v1356 = vmul.f32 %v1227, %v1227
  %v1357 = vmul.f32 %v1180, %v1180
  %v1358 = vmul.f32 %v1229, %v1229
  %v1359 = vmul.f32 %v1183, %v1183
  %v1360 = vmul.f32 %v1232, %v1232
  %v1361 = vmul.f32 %v1185, %v1185
  %v1362 = vmul.f32 %v1234, %v1234
  %v1363 = vmul.f32 %v1188, %v1188
  %v1364 = vmul.f32 %v1237, %v1237
  %v1365 = vmul.f32 %v1190, %v1190
  %v1366 = vmul.f32 %v1239, %v1239
  %v1367 = vmul.f32 %v1193, %v1193
  %v1368 = vmul.f32 %v1242, %v1242
  %v1369 = vmul.f32 %v1195, %v1195
  %v1370 = vmul.f32 %v1244, %v1244
  %v1371 = vmul.f32 %v1198, %v1198
  %v1372 = vmul.f32 %v1247, %v1247
  %v1373 = vmul.f32 %v1200, %v1200
  %v1374 = vmul.f32 %v1249, %v1249
  %v1375 = vmul.f32 %v1203, %v1203
  %v1376 = vmul.f32 %v1252, %v1252
  %v1377 = vmul.f32 %v1205, %v1205
  %v1378 = vmul.f32 %v1254, %v1254
  %v1379 = vmul.f32 %v1208, %v1208
  %v1380 = vmul.f32 %v1257, %v1257
  %v1381 = vmul.f32 %v1210, %v1210
  %v1382 = vmul.f32 %v1259, %v1259
  %v1383 = vadd.f32 %v1351, %v1353
  %v1384 = vadd.f32 %v1383, %v1355
  %v1385 = vadd.f32 %v1384, %v1357
  %v1386 = vadd.f32 %v1385, %v1359
  %v1387 = vadd.f32 %v1386, %v1361
  %v1388 = vadd.f32 %v1387, %v1363
  %v1389 = vadd.f32 %v1388, %v1365
  %v1390 = vadd.f32 %v1389, %v1367
  %v1391 = vadd.f32 %v1390, %v1369
  %v1392 = vadd.f32 %v1391, %v1371
  %v1393 = vadd.f32 %v1392, %v1373
  %v1394 = vadd.f32 %v1393, %v1375
  %v1395 = vadd.f32 %v1394, %v1377
  %v1396 = vadd.f32 %v1395, %v1379
  %v1397 = vadd.f32 %v1396, %v1381
  %v1398 = vrot.slane %v1397, 4
  %v1399 = vadd.f32 %v1397, %v1398
  %v1400 = vrot.slane %v1399, 2
  %v1401 = vadd.f32 %v1399, %v1400
  %v1402 = vrot.slane %v1401, 1
  %v1403 = vadd.f32 %v1401, %v1402
  %v1404 = vsel %vm642, %v1352, 0.0
  %v1405 = vsel %vm642, %v1354, 0.0
  %v1406 = vadd.f32 %v1404, %v1405
  %v1407 = vsel %vm642, %v1356, 0.0
  %v1408 = vadd.f32 %v1406, %v1407
  %v1409 = vsel %vm642, %v1358, 0.0
  %v1410 = vadd.f32 %v1408, %v1409
  %v1411 = vsel %vm642, %v1360, 0.0
  %v1412 = vadd.f32 %v1410, %v1411
  %v1413 = vsel %vm642, %v1362, 0.0
  %v1414 = vadd.f32 %v1412, %v1413
  %v1415 = vsel %vm642, %v1364, 0.0
  %v1416 = vadd.f32 %v1414, %v1415
  %v1417 = vsel %vm642, %v1366, 0.0
  %v1418 = vadd.f32 %v1416, %v1417
  %v1419 = vsel %vm642, %v1368, 0.0
  %v1420 = vadd.f32 %v1418, %v1419
  %v1421 = vsel %vm642, %v1370, 0.0
  %v1422 = vadd.f32 %v1420, %v1421
  %v1423 = vsel %vm642, %v1372, 0.0
  %v1424 = vadd.f32 %v1422, %v1423
  %v1425 = vsel %vm642, %v1374, 0.0
  %v1426 = vadd.f32 %v1424, %v1425
  %v1427 = vsel %vm642, %v1376, 0.0
  %v1428 = vadd.f32 %v1426, %v1427
  %v1429 = vsel %vm642, %v1378, 0.0
  %v1430 = vadd.f32 %v1428, %v1429
  %v1431 = vsel %vm642, %v1380, 0.0
  %v1432 = vadd.f32 %v1430, %v1431
  %v1433 = vsel %vm642, %v1382, 0.0
  %v1434 = vadd.f32 %v1432, %v1433
  %v1435 = vrot.slane %v1434, 4
  %v1436 = vadd.f32 %v1434, %v1435
  %v1437 = vrot.slane %v1436, 2
  %v1438 = vadd.f32 %v1436, %v1437
  %v1439 = vrot.slane %v1438, 1
  %v1440 = vadd.f32 %v1438, %v1439
  %v1441 = vsel %vm291, %v1313, %v1403
  %v1442 = vsel %vm291, %v1350, %v1440
  %v1445 = vrot.slane %v1442, 6
  %v1446 = vsel %vm775, %v1441, %v1445
  %1448 = vst.msk [vmem:[%s12] sm:$0xf] %vm779, %v1446
  // Predicated region
  $region22: #{inception_c_forward.8} parent=0 // pred_check
    _
  $region23: #{inception_c_forward.8} parent=0 // pred_check_branch
    %1450 = sbr.rel (0) target = $region25
  $region24: #{inception_c_forward.8} parent=0 // pred_region
    _
  $region25: #{inception_c_forward.8} parent=0 // pred_fallthru
    _
  // Predicated region
  $region26: #{inception_c_forward.8} parent=0 // pred_check
    _
  $region27: #{inception_c_forward.8} parent=0 // pred_check_branch
    %1452 = sbr.rel (0) target = $region29
  $region28: #{inception_c_forward.8} parent=0 // pred_region
    _
  $region29: #{inception_c_forward.8} parent=0 // pred_fallthru
    _
  // Predicated region
  $region30: #{inception_c_forward.8} parent=0 // pred_check
    _
  $region31: #{inception_c_forward.8} parent=0 // pred_check_branch
    %1454 = sbr.rel (0) target = $region33
  $region32: #{inception_c_forward.8} parent=0 // pred_region
    _
  $region33: #{inception_c_forward.8} parent=0 // pred_fallthru
    _
  // Predicated region
  $region34: #{inception_c_forward.8} parent=0 // pred_check
    _
  $region35: #{inception_c_forward.8} parent=0 // pred_check_branch
    %1456 = sbr.rel (0) target = $region37
  $region36: #{inception_c_forward.8} parent=0 // pred_region
    _
  $region37: #{inception_c_forward.8} parent=0 // pred_fallthru
    _
  // Predicated region
  $region38: #{inception_c_forward.8} parent=0 // pred_check
    _
  $region39: #{inception_c_forward.8} parent=0 // pred_check_branch
    %1458 = sbr.rel (0) target = $region41
  $region40: #{inception_c_forward.8} parent=0 // pred_region
    _
  $region41: #{inception_c_forward.8} parent=0 // pred_fallthru
    _
  // Predicated region
  $region42: #{inception_c_forward.8} parent=0 // pred_check
    _
  $region43: #{inception_c_forward.8} parent=0 // pred_check_branch
    %1460 = sbr.rel (0) target = $region45
  $region44: #{inception_c_forward.8} parent=0 // pred_region
    _
  $region45: #{inception_c_forward.8} parent=0 // pred_fallthru
    _
  // Predicated region
  $region46: #{inception_c_forward.8} parent=0 // pred_check
    _
  $region47: #{inception_c_forward.8} parent=0 // pred_check_branch
    %1462 = sbr.rel (0) target = $region49
  $region48: #{inception_c_forward.8} parent=0 // pred_region
    _
  $region49: #{inception_c_forward.8} parent=0 // pred_fallthru
    _
  // Predicated region
  $region50: #{inception_c_forward.8} parent=0 // pred_check
    _
  $region51: #{inception_c_forward.8} parent=0 // pred_check_branch
    %1464 = sbr.rel (0) target = $region53
  $region52: #{inception_c_forward.8} parent=0 // pred_region
    _
  $region53: #{inception_c_forward.8} parent=0 // pred_fallthru
    _
  // Predicated region
  $region54: #{inception_c_forward.8} parent=0 // pred_check
    _
  $region55: #{inception_c_forward.8} parent=0 // pred_check_branch
    %1466 = sbr.rel (0) target = $region57
  $region56: #{inception_c_forward.8} parent=0 // pred_region
    _
  $region57: #{inception_c_forward.8} parent=0 // pred_fallthru
    _
  // Predicated region
  $region58: #{inception_c_forward.8} parent=0 // pred_check
    _
  $region59: #{inception_c_forward.8} parent=0 // pred_check_branch
    %1468 = sbr.rel (0) target = $region61
  $region60: #{inception_c_forward.8} parent=0 // pred_region
    _
  $region61: #{inception_c_forward.8} parent=0 // pred_fallthru
    _
  // Predicated region
  $region62: #{inception_c_forward.8} parent=0 // pred_check
    _
  $region63: #{inception_c_forward.8} parent=0 // pred_check_branch
    %1470 = sbr.rel (0) target = $region65
  $region64: #{inception_c_forward.8} parent=0 // pred_region
    _
  $region65: #{inception_c_forward.8} parent=0 // pred_fallthru
    _
  // Predicated region
  $region66: #{inception_c_forward.8} parent=0 // pred_check
    _
  $region67: #{inception_c_forward.8} parent=0 // pred_check_branch
    %1472 = sbr.rel (0) target = $region69
  $region68: #{inception_c_forward.8} parent=0 // pred_region
    _
  $region69: #{inception_c_forward.8} parent=0 // pred_fallthru
    _
  // Predicated region
  $region70: #{inception_c_forward.8} parent=0 // pred_check
    _
  $region71: #{inception_c_forward.8} parent=0 // pred_check_branch
    %1474 = sbr.rel (0) target = $region73
  $region72: #{inception_c_forward.8} parent=0 // pred_region
    _
  $region73: #{inception_c_forward.8} parent=0 // pred_fallthru
    _
  // Predicated region
  $region74: #{inception_c_forward.8} parent=0 // pred_check
    _
  $region75: #{inception_c_forward.8} parent=0 // pred_check_branch
    %1476 = sbr.rel (0) target = $region77
  $region76: #{inception_c_forward.8} parent=0 // pred_region
    _
  $region77: #{inception_c_forward.8} parent=0 // pred_fallthru
    _
  // Predicated region
  $region78: #{inception_c_forward.8} parent=0 // pred_check
    _
  $region79: #{inception_c_forward.8} parent=0 // pred_check_branch
    %1478 = sbr.rel (0) target = $region81
  $region80: #{inception_c_forward.8} parent=0 // pred_region
    _
  $region81: #{inception_c_forward.8} parent=0 // pred_fallthru
    _
  // Predicated region
  $region82: #{inception_c_forward.8} parent=0 // pred_check
    _
  $region83: #{inception_c_forward.8} parent=0 // pred_check_branch
    %1480 = sbr.rel (0) target = $region85
  $region84: #{inception_c_forward.8} parent=0 // pred_region
    _
  $region85: #{inception_c_forward.8} parent=0 // pred_fallthru
    _

// kernel: inception_c_forward.15
$region0: #{inception_c_forward.15}
  #allocation0 [shape = 'u32[]', space=smem, size = 0x4, offset = 0x4, fixed_abs, tag = 'smem constant byte address 0x4 - core index']
  #allocation1 [shape = 'u32[72,128]{1,0:T(1,128)}', space=vmem, size = 0x9000, scoped, tag = 'internal scratch']
  %s0 = inlined_call_operand.vmem [shape: bf16[2,8,8,192], index: 0, kind: input, shape index: {}]
  %s1 = inlined_call_operand.vmem [shape: bf16[2,8,8,192], index: 1, kind: input, shape index: {}]
  %s2 = inlined_call_operand.vmem [shape: bf16[2,8,8,192], index: 2, kind: input, shape index: {}]
  %s3 = inlined_call_operand.vmem [shape: bf16[2,8,8,192], index: 3, kind: input, shape index: {}]
  %s4 = inlined_call_operand.vmem [shape: f32[2,192], index: 4, kind: input, shape index: {}]
  %s5 = inlined_call_operand.vmem [shape: f32[2,192], index: 5, kind: input, shape index: {}]
  %s6 = inlined_call_operand.vmem [shape: f32[2,192], index: 6, kind: input, shape index: {}]
  %s7 = inlined_call_operand.vmem [shape: f32[2,192], index: 7, kind: input, shape index: {}]
  %s8 = inlined_call_operand.hbm [shape: f32[2,8,8,768], index: 8, kind: output, shape index: {}]
  %s9 = sld [smem:[#allocation0]]
  $region42: #{inception_c_forward.15} parent=0
    _
  %s11 = ssub.s32 1, %s9
  %s12 = scalar_select 0, %s11, %s9
  $region1: #{inception_c_forward.15} parent=0
    #allocation2 [shape = 'u8[393216]{0}', space=vmem, size = 0x60000, scoped, tag = 'output window, operand 0, single buffered']
    #allocation3 [shape = 's32[1]{0}', space=sflag, size = 0x4, scoped, tag = 'scoped memory for inception_c_forward.15']
    %13 = vsyncpa [#allocation3], 0
    // Predicated region
    $region2: #{inception_c_forward.15} parent=1 // pred_check
      _
    $region3: #{inception_c_forward.15} parent=1 // pred_check_branch
      %15 = sbr.rel (0) target = $region5
    $region4: #{inception_c_forward.15} parent=1 // pred_region
      _
    $region5: #{inception_c_forward.15} parent=1 // pred_fallthru
      _
    // Predicated region
    $region6: #{inception_c_forward.15} parent=1 // pred_check
      _
    $region7: #{inception_c_forward.15} parent=1 // pred_check_branch
      %17 = sbr.rel (0) target = $region9
    $region8: #{inception_c_forward.15} parent=1 // pred_region
      _
    $region9: #{inception_c_forward.15} parent=1 // pred_fallthru
      _
    // Predicated region
    $region10: #{inception_c_forward.15} parent=1 // pred_check
      _
    $region11: #{inception_c_forward.15} parent=1 // pred_check_branch
      %19 = sbr.rel (0) target = $region13
    $region12: #{inception_c_forward.15} parent=1 // pred_region
      _
    $region13: #{inception_c_forward.15} parent=1 // pred_fallthru
      _
    // Predicated region
    $region14: #{inception_c_forward.15} parent=1 // pred_check
      _
    $region15: #{inception_c_forward.15} parent=1 // pred_check_branch
      %21 = sbr.rel (0) target = $region17
    $region16: #{inception_c_forward.15} parent=1 // pred_region
      _
    $region17: #{inception_c_forward.15} parent=1 // pred_fallthru
      _
    // Predicated region
    $region18: #{inception_c_forward.15} parent=1 // pred_check
      _
    $region19: #{inception_c_forward.15} parent=1 // pred_check_branch
      %23 = sbr.rel (0) target = $region21
    $region20: #{inception_c_forward.15} parent=1 // pred_region
      _
    $region21: #{inception_c_forward.15} parent=1 // pred_fallthru
      _
    // Predicated region
    $region22: #{inception_c_forward.15} parent=1 // pred_check
      _
    $region23: #{inception_c_forward.15} parent=1 // pred_check_branch
      %25 = sbr.rel (0) target = $region25
    $region24: #{inception_c_forward.15} parent=1 // pred_region
      _
    $region25: #{inception_c_forward.15} parent=1 // pred_fallthru
      _
    // Predicated region
    $region26: #{inception_c_forward.15} parent=1 // pred_check
      _
    $region27: #{inception_c_forward.15} parent=1 // pred_check_branch
      %27 = sbr.rel (0) target = $region29
    $region28: #{inception_c_forward.15} parent=1 // pred_region
      _
    $region29: #{inception_c_forward.15} parent=1 // pred_fallthru
      _
    // Predicated region
    $region30: #{inception_c_forward.15} parent=1 // pred_check
      _
    $region31: #{inception_c_forward.15} parent=1 // pred_check_branch
      %29 = sbr.rel (0) target = $region33
    $region32: #{inception_c_forward.15} parent=1 // pred_region
      _
    $region33: #{inception_c_forward.15} parent=1 // pred_fallthru
      _
    %v30 = vld [vmem:[%s0] sm:$0xff]
    %v31 = vld [vmem:[%s0 + $0x8] sm:$0xff]
    %v32 = vld [vmem:[%s0 + $0x10] sm:$0xff]
    %v33 = vld [vmem:[%s0 + $0x18] sm:$0xff]
    %v34 = vld [vmem:[%s0 + $0x20] sm:$0xff]
    %v35 = vld [vmem:[%s0 + $0x28] sm:$0xff]
    %v36 = vld [vmem:[%s0 + $0x30] sm:$0xff]
    %v37 = vld [vmem:[%s0 + $0x38] sm:$0xff]
    %v38 = vld [vmem:[%s0 + $0x40] sm:$0xff]
    %v39 = vld [vmem:[%s0 + $0x48] sm:$0xff]
    %v40 = vld [vmem:[%s0 + $0x50] sm:$0xff]
    %v41 = vld [vmem:[%s0 + $0x58] sm:$0xff]
    %v42 = vld [vmem:[%s0 + $0x60] sm:$0xff]
    %v43 = vld [vmem:[%s0 + $0x68] sm:$0xff]
    %v44 = vld [vmem:[%s0 + $0x70] sm:$0xff]
    %v45 = vld [vmem:[%s0 + $0x78] sm:$0xff]
    %v46 = vunpack.c.l.bf16 %v30
    %v47 = vunpack.c.h.bf16 %v30
    %v48 = vunpack.c.l.bf16 %v31
    %v49 = vunpack.c.h.bf16 %v31
    %v50 = vunpack.c.l.bf16 %v32
    %v51 = vunpack.c.h.bf16 %v32
    %v52 = vunpack.c.l.bf16 %v33
    %v53 = vunpack.c.h.bf16 %v33
    %v54 = vunpack.c.l.bf16 %v34
    %v55 = vunpack.c.h.bf16 %v34
    %v56 = vunpack.c.l.bf16 %v35
    %v57 = vunpack.c.h.bf16 %v35
    %v58 = vunpack.c.l.bf16 %v36
    %v59 = vunpack.c.h.bf16 %v36
    %v60 = vunpack.c.l.bf16 %v37
    %v61 = vunpack.c.h.bf16 %v37
    %v62 = vunpack.c.l.bf16 %v38
    %v63 = vunpack.c.h.bf16 %v38
    %v64 = vunpack.c.l.bf16 %v39
    %v65 = vunpack.c.h.bf16 %v39
    %v66 = vunpack.c.l.bf16 %v40
    %v67 = vunpack.c.h.bf16 %v40
    %v68 = vunpack.c.l.bf16 %v41
    %v69 = vunpack.c.h.bf16 %v41
    %v70 = vunpack.c.l.bf16 %v42
    %v71 = vunpack.c.h.bf16 %v42
    %v72 = vunpack.c.l.bf16 %v43
    %v73 = vunpack.c.h.bf16 %v43
    %v74 = vunpack.c.l.bf16 %v44
    %v75 = vunpack.c.h.bf16 %v44
    %v76 = vunpack.c.l.bf16 %v45
    %v77 = vunpack.c.h.bf16 %v45
    %v78 = vld [vmem:[%s4] ss:$2 sm:$0x3]
    %v80 = vperm.slane %v78, 0
    %v81 = vperm.slane %v78, 1
    %v84 = vmul.f32 %v46, %v80
    %v85 = vmul.f32 %v47, %v81
    %v86 = vmul.f32 %v48, %v80
    %v87 = vmul.f32 %v49, %v81
    %v88 = vmul.f32 %v50, %v80
    %v89 = vmul.f32 %v51, %v81
    %v90 = vmul.f32 %v52, %v80
    %v91 = vmul.f32 %v53, %v81
    %v92 = vmul.f32 %v54, %v80
    %v93 = vmul.f32 %v55, %v81
    %v94 = vmul.f32 %v56, %v80
    %v95 = vmul.f32 %v57, %v81
    %v96 = vmul.f32 %v58, %v80
    %v97 = vmul.f32 %v59, %v81
    %v98 = vmul.f32 %v60, %v80
    %v99 = vmul.f32 %v61, %v81
    %v100 = vmul.f32 %v62, %v80
    %v101 = vmul.f32 %v63, %v81
    %v102 = vmul.f32 %v64, %v80
    %v103 = vmul.f32 %v65, %v81
    %v104 = vmul.f32 %v66, %v80
    %v105 = vmul.f32 %v67, %v81
    %v106 = vmul.f32 %v68, %v80
    %v107 = vmul.f32 %v69, %v81
    %v108 = vmul.f32 %v70, %v80
    %v109 = vmul.f32 %v71, %v81
    %v110 = vmul.f32 %v72, %v80
    %v111 = vmul.f32 %v73, %v81
    %v112 = vmul.f32 %v74, %v80
    %v113 = vmul.f32 %v75, %v81
    %v114 = vmul.f32 %v76, %v80
    %v115 = vmul.f32 %v77, %v81
    %s116 = scalar_lea.vmem %s4, 1
    %v117 = vld [vmem:[%s116] ss:$2 sm:$0x3]
    %v119 = vperm.slane %v117, 0
    %v120 = vperm.slane %v117, 1
    %v123 = vadd.f32 %v84, %v119
    %v124 = vadd.f32 %v85, %v120
    %v125 = vadd.f32 %v86, %v119
    %v126 = vadd.f32 %v87, %v120
    %v127 = vadd.f32 %v88, %v119
    %v128 = vadd.f32 %v89, %v120
    %v129 = vadd.f32 %v90, %v119
    %v130 = vadd.f32 %v91, %v120
    %v131 = vadd.f32 %v92, %v119
    %v132 = vadd.f32 %v93, %v120
    %v133 = vadd.f32 %v94, %v119
    %v134 = vadd.f32 %v95, %v120
    %v135 = vadd.f32 %v96, %v119
    %v136 = vadd.f32 %v97, %v120
    %v137 = vadd.f32 %v98, %v119
    %v138 = vadd.f32 %v99, %v120
    %v139 = vadd.f32 %v100, %v119
    %v140 = vadd.f32 %v101, %v120
    %v141 = vadd.f32 %v102, %v119
    %v142 = vadd.f32 %v103, %v120
    %v143 = vadd.f32 %v104, %v119
    %v144 = vadd.f32 %v105, %v120
    %v145 = vadd.f32 %v106, %v119
    %v146 = vadd.f32 %v107, %v120
    %v147 = vadd.f32 %v108, %v119
    %v148 = vadd.f32 %v109, %v120
    %v149 = vadd.f32 %v110, %v119
    %v150 = vadd.f32 %v111, %v120
    %v151 = vadd.f32 %v112, %v119
    %v152 = vadd.f32 %v113, %v120
    %v153 = vadd.f32 %v114, %v119
    %v154 = vadd.f32 %v115, %v120
    %v155 = vmax.f32 %v123, 0.0
    %v156 = vmax.f32 %v124, 0.0
    %v157 = vmax.f32 %v125, 0.0
    %v158 = vmax.f32 %v126, 0.0
    %v159 = vmax.f32 %v127, 0.0
    %v160 = vmax.f32 %v128, 0.0
    %v161 = vmax.f32 %v129, 0.0
    %v162 = vmax.f32 %v130, 0.0
    %v163 = vmax.f32 %v131, 0.0
    %v164 = vmax.f32 %v132, 0.0
    %v165 = vmax.f32 %v133, 0.0
    %v166 = vmax.f32 %v134, 0.0
    %v167 = vmax.f32 %v135, 0.0
    %v168 = vmax.f32 %v136, 0.0
    %v169 = vmax.f32 %v137, 0.0
    %v170 = vmax.f32 %v138, 0.0
    %v171 = vmax.f32 %v139, 0.0
    %v172 = vmax.f32 %v140, 0.0
    %v173 = vmax.f32 %v141, 0.0
    %v174 = vmax.f32 %v142, 0.0
    %v175 = vmax.f32 %v143, 0.0
    %v176 = vmax.f32 %v144, 0.0
    %v177 = vmax.f32 %v145, 0.0
    %v178 = vmax.f32 %v146, 0.0
    %v179 = vmax.f32 %v147, 0.0
    %v180 = vmax.f32 %v148, 0.0
    %v181 = vmax.f32 %v149, 0.0
    %v182 = vmax.f32 %v150, 0.0
    %v183 = vmax.f32 %v151, 0.0
    %v184 = vmax.f32 %v152, 0.0
    %v185 = vmax.f32 %v153, 0.0
    %v186 = vmax.f32 %v154, 0.0
    %v187 = vld [vmem:[%s1] sm:$0xff]
    %v188 = vld [vmem:[%s1 + $0x8] sm:$0xff]
    %v189 = vld [vmem:[%s1 + $0x10] sm:$0xff]
    %v190 = vld [vmem:[%s1 + $0x18] sm:$0xff]
    %v191 = vld [vmem:[%s1 + $0x20] sm:$0xff]
    %v192 = vld [vmem:[%s1 + $0x28] sm:$0xff]
    %v193 = vld [vmem:[%s1 + $0x30] sm:$0xff]
    %v194 = vld [vmem:[%s1 + $0x38] sm:$0xff]
    %v195 = vld [vmem:[%s1 + $0x40] sm:$0xff]
    %v196 = vld [vmem:[%s1 + $0x48] sm:$0xff]
    %v197 = vld [vmem:[%s1 + $0x50] sm:$0xff]
    %v198 = vld [vmem:[%s1 + $0x58] sm:$0xff]
    %v199 = vld [vmem:[%s1 + $0x60] sm:$0xff]
    %v200 = vld [vmem:[%s1 + $0x68] sm:$0xff]
    %v201 = vld [vmem:[%s1 + $0x70] sm:$0xff]
    %v202 = vld [vmem:[%s1 + $0x78] sm:$0xff]
    %v203 = vunpack.c.l.bf16 %v187
    %v204 = vunpack.c.h.bf16 %v187
    %v205 = vunpack.c.l.bf16 %v188
    %v206 = vunpack.c.h.bf16 %v188
    %v207 = vunpack.c.l.bf16 %v189
    %v208 = vunpack.c.h.bf16 %v189
    %v209 = vunpack.c.l.bf16 %v190
    %v210 = vunpack.c.h.bf16 %v190
    %v211 = vunpack.c.l.bf16 %v191
    %v212 = vunpack.c.h.bf16 %v191
    %v213 = vunpack.c.l.bf16 %v192
    %v214 = vunpack.c.h.bf16 %v192
    %v215 = vunpack.c.l.bf16 %v193
    %v216 = vunpack.c.h.bf16 %v193
    %v217 = vunpack.c.l.bf16 %v194
    %v218 = vunpack.c.h.bf16 %v194
    %v219 = vunpack.c.l.bf16 %v195
    %v220 = vunpack.c.h.bf16 %v195
    %v221 = vunpack.c.l.bf16 %v196
    %v222 = vunpack.c.h.bf16 %v196
    %v223 = vunpack.c.l.bf16 %v197
    %v224 = vunpack.c.h.bf16 %v197
    %v225 = vunpack.c.l.bf16 %v198
    %v226 = vunpack.c.h.bf16 %v198
    %v227 = vunpack.c.l.bf16 %v199
    %v228 = vunpack.c.h.bf16 %v199
    %v229 = vunpack.c.l.bf16 %v200
    %v230 = vunpack.c.h.bf16 %v200
    %v231 = vunpack.c.l.bf16 %v201
    %v232 = vunpack.c.h.bf16 %v201
    %v233 = vunpack.c.l.bf16 %v202
    %v234 = vunpack.c.h.bf16 %v202
    %v235 = vld [vmem:[%s5] ss:$2 sm:$0x3]
    %v237 = vperm.slane %v235, 0
    %v238 = vperm.slane %v235, 1
    %v241 = vmul.f32 %v203, %v237
    %v242 = vmul.f32 %v204, %v238
    %v243 = vmul.f32 %v205, %v237
    %v244 = vmul.f32 %v206, %v238
    %v245 = vmul.f32 %v207, %v237
    %v246 = vmul.f32 %v208, %v238
    %v247 = vmul.f32 %v209, %v237
    %v248 = vmul.f32 %v210, %v238
    %v249 = vmul.f32 %v211, %v237
    %v250 = vmul.f32 %v212, %v238
    %v251 = vmul.f32 %v213, %v237
    %v252 = vmul.f32 %v214, %v238
    %v253 = vmul.f32 %v215, %v237
    %v254 = vmul.f32 %v216, %v238
    %v255 = vmul.f32 %v217, %v237
    %v256 = vmul.f32 %v218, %v238
    %v257 = vmul.f32 %v219, %v237
    %v258 = vmul.f32 %v220, %v238
    %v259 = vmul.f32 %v221, %v237
    %v260 = vmul.f32 %v222, %v238
    %v261 = vmul.f32 %v223, %v237
    %v262 = vmul.f32 %v224, %v238
    %v263 = vmul.f32 %v225, %v237
    %v264 = vmul.f32 %v226, %v238
    %v265 = vmul.f32 %v227, %v237
    %v266 = vmul.f32 %v228, %v238
    %v267 = vmul.f32 %v229, %v237
    %v268 = vmul.f32 %v230, %v238
    %v269 = vmul.f32 %v231, %v237
    %v270 = vmul.f32 %v232, %v238
    %v271 = vmul.f32 %v233, %v237
    %v272 = vmul.f32 %v234, %v238
    %s273 = scalar_lea.vmem %s5, 1
    %v274 = vld [vmem:[%s273] ss:$2 sm:$0x3]
    %v276 = vperm.slane %v274, 0
    %v277 = vperm.slane %v274, 1
    %v280 = vadd.f32 %v241, %v276
    %v281 = vadd.f32 %v242, %v277
    %v282 = vadd.f32 %v243, %v276
    %v283 = vadd.f32 %v244, %v277
    %v284 = vadd.f32 %v245, %v276
    %v285 = vadd.f32 %v246, %v277
    %v286 = vadd.f32 %v247, %v276
    %v287 = vadd.f32 %v248, %v277
    %v288 = vadd.f32 %v249, %v276
    %v289 = vadd.f32 %v250, %v277
    %v290 = vadd.f32 %v251, %v276
    %v291 = vadd.f32 %v252, %v277
    %v292 = vadd.f32 %v253, %v276
    %v293 = vadd.f32 %v254, %v277
    %v294 = vadd.f32 %v255, %v276
    %v295 = vadd.f32 %v256, %v277
    %v296 = vadd.f32 %v257, %v276
    %v297 = vadd.f32 %v258, %v277
    %v298 = vadd.f32 %v259, %v276
    %v299 = vadd.f32 %v260, %v277
    %v300 = vadd.f32 %v261, %v276
    %v301 = vadd.f32 %v262, %v277
    %v302 = vadd.f32 %v263, %v276
    %v303 = vadd.f32 %v264, %v277
    %v304 = vadd.f32 %v265, %v276
    %v305 = vadd.f32 %v266, %v277
    %v306 = vadd.f32 %v267, %v276
    %v307 = vadd.f32 %v268, %v277
    %v308 = vadd.f32 %v269, %v276
    %v309 = vadd.f32 %v270, %v277
    %v310 = vadd.f32 %v271, %v276
    %v311 = vadd.f32 %v272, %v277
    %v312 = vmax.f32 %v280, 0.0
    %v313 = vmax.f32 %v281, 0.0
    %v314 = vmax.f32 %v282, 0.0
    %v315 = vmax.f32 %v283, 0.0
    %v316 = vmax.f32 %v284, 0.0
    %v317 = vmax.f32 %v285, 0.0
    %v318 = vmax.f32 %v286, 0.0
    %v319 = vmax.f32 %v287, 0.0
    %v320 = vmax.f32 %v288, 0.0
    %v321 = vmax.f32 %v289, 0.0
    %v322 = vmax.f32 %v290, 0.0
    %v323 = vmax.f32 %v291, 0.0
    %v324 = vmax.f32 %v292, 0.0
    %v325 = vmax.f32 %v293, 0.0
    %v326 = vmax.f32 %v294, 0.0
    %v327 = vmax.f32 %v295, 0.0
    %v328 = vmax.f32 %v296, 0.0
    %v329 = vmax.f32 %v297, 0.0
    %v330 = vmax.f32 %v298, 0.0
    %v331 = vmax.f32 %v299, 0.0
    %v332 = vmax.f32 %v300, 0.0
    %v333 = vmax.f32 %v301, 0.0
    %v334 = vmax.f32 %v302, 0.0
    %v335 = vmax.f32 %v303, 0.0
    %v336 = vmax.f32 %v304, 0.0
    %v337 = vmax.f32 %v305, 0.0
    %v338 = vmax.f32 %v306, 0.0
    %v339 = vmax.f32 %v307, 0.0
    %v340 = vmax.f32 %v308, 0.0
    %v341 = vmax.f32 %v309, 0.0
    %v342 = vmax.f32 %v310, 0.0
    %v343 = vmax.f32 %v311, 0.0
    %v344 = vld [vmem:[%s2] sm:$0xff]
    %v345 = vld [vmem:[%s2 + $0x8] sm:$0xff]
    %v346 = vld [vmem:[%s2 + $0x10] sm:$0xff]
    %v347 = vld [vmem:[%s2 + $0x18] sm:$0xff]
    %v348 = vld [vmem:[%s2 + $0x20] sm:$0xff]
    %v349 = vld [vmem:[%s2 + $0x28] sm:$0xff]
    %v350 = vld [vmem:[%s2 + $0x30] sm:$0xff]
    %v351 = vld [vmem:[%s2 + $0x38] sm:$0xff]
    %v352 = vld [vmem:[%s2 + $0x40] sm:$0xff]
    %v353 = vld [vmem:[%s2 + $0x48] sm:$0xff]
    %v354 = vld [vmem:[%s2 + $0x50] sm:$0xff]
    %v355 = vld [vmem:[%s2 + $0x58] sm:$0xff]
    %v356 = vld [vmem:[%s2 + $0x60] sm:$0xff]
    %v357 = vld [vmem:[%s2 + $0x68] sm:$0xff]
    %v358 = vld [vmem:[%s2 + $0x70] sm:$0xff]
    %v359 = vld [vmem:[%s2 + $0x78] sm:$0xff]
    %v360 = vunpack.c.l.bf16 %v344
    %v361 = vunpack.c.h.bf16 %v344
    %v362 = vunpack.c.l.bf16 %v345
    %v363 = vunpack.c.h.bf16 %v345
    %v364 = vunpack.c.l.bf16 %v346
    %v365 = vunpack.c.h.bf16 %v346
    %v366 = vunpack.c.l.bf16 %v347
    %v367 = vunpack.c.h.bf16 %v347
    %v368 = vunpack.c.l.bf16 %v348
    %v369 = vunpack.c.h.bf16 %v348
    %v370 = vunpack.c.l.bf16 %v349
    %v371 = vunpack.c.h.bf16 %v349
    %v372 = vunpack.c.l.bf16 %v350
    %v373 = vunpack.c.h.bf16 %v350
    %v374 = vunpack.c.l.bf16 %v351
    %v375 = vunpack.c.h.bf16 %v351
    %v376 = vunpack.c.l.bf16 %v352
    %v377 = vunpack.c.h.bf16 %v352
    %v378 = vunpack.c.l.bf16 %v353
    %v379 = vunpack.c.h.bf16 %v353
    %v380 = vunpack.c.l.bf16 %v354
    %v381 = vunpack.c.h.bf16 %v354
    %v382 = vunpack.c.l.bf16 %v355
    %v383 = vunpack.c.h.bf16 %v355
    %v384 = vunpack.c.l.bf16 %v356
    %v385 = vunpack.c.h.bf16 %v356
    %v386 = vunpack.c.l.bf16 %v357
    %v387 = vunpack.c.h.bf16 %v357
    %v388 = vunpack.c.l.bf16 %v358
    %v389 = vunpack.c.h.bf16 %v358
    %v390 = vunpack.c.l.bf16 %v359
    %v391 = vunpack.c.h.bf16 %v359
    %v392 = vld [vmem:[%s6] ss:$2 sm:$0x3]
    %v394 = vperm.slane %v392, 0
    %v395 = vperm.slane %v392, 1
    %v398 = vmul.f32 %v360, %v394
    %v399 = vmul.f32 %v361, %v395
    %v400 = vmul.f32 %v362, %v394
    %v401 = vmul.f32 %v363, %v395
    %v402 = vmul.f32 %v364, %v394
    %v403 = vmul.f32 %v365, %v395
    %v404 = vmul.f32 %v366, %v394
    %v405 = vmul.f32 %v367, %v395
    %v406 = vmul.f32 %v368, %v394
    %v407 = vmul.f32 %v369, %v395
    %v408 = vmul.f32 %v370, %v394
    %v409 = vmul.f32 %v371, %v395
    %v410 = vmul.f32 %v372, %v394
    %v411 = vmul.f32 %v373, %v395
    %v412 = vmul.f32 %v374, %v394
    %v413 = vmul.f32 %v375, %v395
    %v414 = vmul.f32 %v376, %v394
    %v415 = vmul.f32 %v377, %v395
    %v416 = vmul.f32 %v378, %v394
    %v417 = vmul.f32 %v379, %v395
    %v418 = vmul.f32 %v380, %v394
    %v419 = vmul.f32 %v381, %v395
    %v420 = vmul.f32 %v382, %v394
    %v421 = vmul.f32 %v383, %v395
    %v422 = vmul.f32 %v384, %v394
    %v423 = vmul.f32 %v385, %v395
    %v424 = vmul.f32 %v386, %v394
    %v425 = vmul.f32 %v387, %v395
    %v426 = vmul.f32 %v388, %v394
    %v427 = vmul.f32 %v389, %v395
    %v428 = vmul.f32 %v390, %v394
    %v429 = vmul.f32 %v391, %v395
    %s430 = scalar_lea.vmem %s6, 1
    %v431 = vld [vmem:[%s430] ss:$2 sm:$0x3]
    %v433 = vperm.slane %v431, 0
    %v434 = vperm.slane %v431, 1
    %v437 = vadd.f32 %v398, %v433
    %v438 = vadd.f32 %v399, %v434
    %v439 = vadd.f32 %v400, %v433
    %v440 = vadd.f32 %v401, %v434
    %v441 = vadd.f32 %v402, %v433
    %v442 = vadd.f32 %v403, %v434
    %v443 = vadd.f32 %v404, %v433
    %v444 = vadd.f32 %v405, %v434
    %v445 = vadd.f32 %v406, %v433
    %v446 = vadd.f32 %v407, %v434
    %v447 = vadd.f32 %v408, %v433
    %v448 = vadd.f32 %v409, %v434
    %v449 = vadd.f32 %v410, %v433
    %v450 = vadd.f32 %v411, %v434
    %v451 = vadd.f32 %v412, %v433
    %v452 = vadd.f32 %v413, %v434
    %v453 = vadd.f32 %v414, %v433
    %v454 = vadd.f32 %v415, %v434
    %v455 = vadd.f32 %v416, %v433
    %v456 = vadd.f32 %v417, %v434
    %v457 = vadd.f32 %v418, %v433
    %v458 = vadd.f32 %v419, %v434
    %v459 = vadd.f32 %v420, %v433
    %v460 = vadd.f32 %v421, %v434
    %v461 = vadd.f32 %v422, %v433
    %v462 = vadd.f32 %v423, %v434
    %v463 = vadd.f32 %v424, %v433
    %v464 = vadd.f32 %v425, %v434
    %v465 = vadd.f32 %v426, %v433
    %v466 = vadd.f32 %v427, %v434
    %v467 = vadd.f32 %v428, %v433
    %v468 = vadd.f32 %v429, %v434
    %v469 = vmax.f32 %v437, 0.0
    %v470 = vmax.f32 %v438, 0.0
    %v471 = vmax.f32 %v439, 0.0
    %v472 = vmax.f32 %v440, 0.0
    %v473 = vmax.f32 %v441, 0.0
    %v474 = vmax.f32 %v442, 0.0
    %v475 = vmax.f32 %v443, 0.0
    %v476 = vmax.f32 %v444, 0.0
    %v477 = vmax.f32 %v445, 0.0
    %v478 = vmax.f32 %v446, 0.0
    %v479 = vmax.f32 %v447, 0.0
    %v480 = vmax.f32 %v448, 0.0
    %v481 = vmax.f32 %v449, 0.0
    %v482 = vmax.f32 %v450, 0.0
    %v483 = vmax.f32 %v451, 0.0
    %v484 = vmax.f32 %v452, 0.0
    %v485 = vmax.f32 %v453, 0.0
    %v486 = vmax.f32 %v454, 0.0
    %v487 = vmax.f32 %v455, 0.0
    %v488 = vmax.f32 %v456, 0.0
    %v489 = vmax.f32 %v457, 0.0
    %v490 = vmax.f32 %v458, 0.0
    %v491 = vmax.f32 %v459, 0.0
    %v492 = vmax.f32 %v460, 0.0
    %v493 = vmax.f32 %v461, 0.0
    %v494 = vmax.f32 %v462, 0.0
    %v495 = vmax.f32 %v463, 0.0
    %v496 = vmax.f32 %v464, 0.0
    %v497 = vmax.f32 %v465, 0.0
    %v498 = vmax.f32 %v466, 0.0
    %v499 = vmax.f32 %v467, 0.0
    %v500 = vmax.f32 %v468, 0.0
    %v501 = vld [vmem:[%s3] sm:$0xff]
    %v502 = vld [vmem:[%s3 + $0x8] sm:$0xff]
    %v503 = vld [vmem:[%s3 + $0x10] sm:$0xff]
    %v504 = vld [vmem:[%s3 + $0x18] sm:$0xff]
    %v505 = vld [vmem:[%s3 + $0x20] sm:$0xff]
    %v506 = vld [vmem:[%s3 + $0x28] sm:$0xff]
    %v507 = vld [vmem:[%s3 + $0x30] sm:$0xff]
    %v508 = vld [vmem:[%s3 + $0x38] sm:$0xff]
    %v509 = vld [vmem:[%s3 + $0x40] sm:$0xff]
    %v510 = vld [vmem:[%s3 + $0x48] sm:$0xff]
    %v511 = vld [vmem:[%s3 + $0x50] sm:$0xff]
    %v512 = vld [vmem:[%s3 + $0x58] sm:$0xff]
    %v513 = vld [vmem:[%s3 + $0x60] sm:$0xff]
    %v514 = vld [vmem:[%s3 + $0x68] sm:$0xff]
    %v515 = vld [vmem:[%s3 + $0x70] sm:$0xff]
    %v516 = vld [vmem:[%s3 + $0x78] sm:$0xff]
    %v517 = vunpack.c.l.bf16 %v501
    %v518 = vunpack.c.h.bf16 %v501
    %v519 = vunpack.c.l.bf16 %v502
    %v520 = vunpack.c.h.bf16 %v502
    %v521 = vunpack.c.l.bf16 %v503
    %v522 = vunpack.c.h.bf16 %v503
    %v523 = vunpack.c.l.bf16 %v504
    %v524 = vunpack.c.h.bf16 %v504
    %v525 = vunpack.c.l.bf16 %v505
    %v526 = vunpack.c.h.bf16 %v505
    %v527 = vunpack.c.l.bf16 %v506
    %v528 = vunpack.c.h.bf16 %v506
    %v529 = vunpack.c.l.bf16 %v507
    %v530 = vunpack.c.h.bf16 %v507
    %v531 = vunpack.c.l.bf16 %v508
    %v532 = vunpack.c.h.bf16 %v508
    %v533 = vunpack.c.l.bf16 %v509
    %v534 = vunpack.c.h.bf16 %v509
    %v535 = vunpack.c.l.bf16 %v510
    %v536 = vunpack.c.h.bf16 %v510
    %v537 = vunpack.c.l.bf16 %v511
    %v538 = vunpack.c.h.bf16 %v511
    %v539 = vunpack.c.l.bf16 %v512
    %v540 = vunpack.c.h.bf16 %v512
    %v541 = vunpack.c.l.bf16 %v513
    %v542 = vunpack.c.h.bf16 %v513
    %v543 = vunpack.c.l.bf16 %v514
    %v544 = vunpack.c.h.bf16 %v514
    %v545 = vunpack.c.l.bf16 %v515
    %v546 = vunpack.c.h.bf16 %v515
    %v547 = vunpack.c.l.bf16 %v516
    %v548 = vunpack.c.h.bf16 %v516
    %v549 = vld [vmem:[%s7] ss:$2 sm:$0x3]
    %v551 = vperm.slane %v549, 0
    %v552 = vperm.slane %v549, 1
    %v555 = vmul.f32 %v517, %v551
    %v556 = vmul.f32 %v518, %v552
    %v557 = vmul.f32 %v519, %v551
    %v558 = vmul.f32 %v520, %v552
    %v559 = vmul.f32 %v521, %v551
    %v560 = vmul.f32 %v522, %v552
    %v561 = vmul.f32 %v523, %v551
    %v562 = vmul.f32 %v524, %v552
    %v563 = vmul.f32 %v525, %v551
    %v564 = vmul.f32 %v526, %v552
    %v565 = vmul.f32 %v527, %v551
    %v566 = vmul.f32 %v528, %v552
    %v567 = vmul.f32 %v529, %v551
    %v568 = vmul.f32 %v530, %v552
    %v569 = vmul.f32 %v531, %v551
    %v570 = vmul.f32 %v532, %v552
    %v571 = vmul.f32 %v533, %v551
    %v572 = vmul.f32 %v534, %v552
    %v573 = vmul.f32 %v535, %v551
    %v574 = vmul.f32 %v536, %v552
    %v575 = vmul.f32 %v537, %v551
    %v576 = vmul.f32 %v538, %v552
    %v577 = vmul.f32 %v539, %v551
    %v578 = vmul.f32 %v540, %v552
    %v579 = vmul.f32 %v541, %v551
    %v580 = vmul.f32 %v542, %v552
    %v581 = vmul.f32 %v543, %v551
    %v582 = vmul.f32 %v544, %v552
    %v583 = vmul.f32 %v545, %v551
    %v584 = vmul.f32 %v546, %v552
    %v585 = vmul.f32 %v547, %v551
    %v586 = vmul.f32 %v548, %v552
    %s587 = scalar_lea.vmem %s7, 1
    %v588 = vld [vmem:[%s587] ss:$2 sm:$0x3]
    %v590 = vperm.slane %v588, 0
    %v591 = vperm.slane %v588, 1
    %v594 = vadd.f32 %v555, %v590
    %v595 = vadd.f32 %v556, %v591
    %v596 = vadd.f32 %v557, %v590
    %v597 = vadd.f32 %v558, %v591
    %v598 = vadd.f32 %v559, %v590
    %v599 = vadd.f32 %v560, %v591
    %v600 = vadd.f32 %v561, %v590
    %v601 = vadd.f32 %v562, %v591
    %v602 = vadd.f32 %v563, %v590
    %v603 = vadd.f32 %v564, %v591
    %v604 = vadd.f32 %v565, %v590
    %v605 = vadd.f32 %v566, %v591
    %v606 = vadd.f32 %v567, %v590
    %v607 = vadd.f32 %v568, %v591
    %v608 = vadd.f32 %v569, %v590
    %v609 = vadd.f32 %v570, %v591
    %v610 = vadd.f32 %v571, %v590
    %v611 = vadd.f32 %v572, %v591
    %v612 = vadd.f32 %v573, %v590
    %v613 = vadd.f32 %v574, %v591
    %v614 = vadd.f32 %v575, %v590
    %v615 = vadd.f32 %v576, %v591
    %v616 = vadd.f32 %v577, %v590
    %v617 = vadd.f32 %v578, %v591
    %v618 = vadd.f32 %v579, %v590
    %v619 = vadd.f32 %v580, %v591
    %v620 = vadd.f32 %v581, %v590
    %v621 = vadd.f32 %v582, %v591
    %v622 = vadd.f32 %v583, %v590
    %v623 = vadd.f32 %v584, %v591
    %v624 = vadd.f32 %v585, %v590
    %v625 = vadd.f32 %v586, %v591
    %v626 = vmax.f32 %v594, 0.0
    %v627 = vmax.f32 %v595, 0.0
    %v628 = vmax.f32 %v596, 0.0
    %v629 = vmax.f32 %v597, 0.0
    %v630 = vmax.f32 %v598, 0.0
    %v631 = vmax.f32 %v599, 0.0
    %v632 = vmax.f32 %v600, 0.0
    %v633 = vmax.f32 %v601, 0.0
    %v634 = vmax.f32 %v602, 0.0
    %v635 = vmax.f32 %v603, 0.0
    %v636 = vmax.f32 %v604, 0.0
    %v637 = vmax.f32 %v605, 0.0
    %v638 = vmax.f32 %v606, 0.0
    %v639 = vmax.f32 %v607, 0.0
    %v640 = vmax.f32 %v608, 0.0
    %v641 = vmax.f32 %v609, 0.0
    %v642 = vmax.f32 %v610, 0.0
    %v643 = vmax.f32 %v611, 0.0
    %v644 = vmax.f32 %v612, 0.0
    %v645 = vmax.f32 %v613, 0.0
    %v646 = vmax.f32 %v614, 0.0
    %v647 = vmax.f32 %v615, 0.0
    %v648 = vmax.f32 %v616, 0.0
    %v649 = vmax.f32 %v617, 0.0
    %v650 = vmax.f32 %v618, 0.0
    %v651 = vmax.f32 %v619, 0.0
    %v652 = vmax.f32 %v620, 0.0
    %v653 = vmax.f32 %v621, 0.0
    %v654 = vmax.f32 %v622, 0.0
    %v655 = vmax.f32 %v623, 0.0
    %v656 = vmax.f32 %v624, 0.0
    %v657 = vmax.f32 %v625, 0.0
    %690 = vrot.lane.b32.xlu0 %v312, 64
    %v691 = vpop.permute.xlu0 %690
    %692 = vrot.lane.b32.xlu0 %v313, 64
    %v693 = vpop.permute.xlu0 %692
    %694 = vrot.lane.b32.xlu0 %v314, 64
    %v695 = vpop.permute.xlu0 %694
    %696 = vrot.lane.b32.xlu0 %v315, 64
    %v697 = vpop.permute.xlu0 %696
    %698 = vrot.lane.b32.xlu0 %v316, 64
    %v699 = vpop.permute.xlu0 %698
    %700 = vrot.lane.b32.xlu0 %v317, 64
    %v701 = vpop.permute.xlu0 %700
    %702 = vrot.lane.b32.xlu0 %v318, 64
    %v703 = vpop.permute.xlu0 %702
    %704 = vrot.lane.b32.xlu0 %v319, 64
    %v705 = vpop.permute.xlu0 %704
    %706 = vrot.lane.b32.xlu0 %v320, 64
    %v707 = vpop.permute.xlu0 %706
    %708 = vrot.lane.b32.xlu0 %v321, 64
    %v709 = vpop.permute.xlu0 %708
    %710 = vrot.lane.b32.xlu0 %v322, 64
    %v711 = vpop.permute.xlu0 %710
    %712 = vrot.lane.b32.xlu0 %v323, 64
    %v713 = vpop.permute.xlu0 %712
    %714 = vrot.lane.b32.xlu0 %v324, 64
    %v715 = vpop.permute.xlu0 %714
    %716 = vrot.lane.b32.xlu0 %v325, 64
    %v717 = vpop.permute.xlu0 %716
    %718 = vrot.lane.b32.xlu0 %v326, 64
    %v719 = vpop.permute.xlu0 %718
    %720 = vrot.lane.b32.xlu0 %v327, 64
    %v721 = vpop.permute.xlu0 %720
    %722 = vrot.lane.b32.xlu0 %v328, 64
    %v723 = vpop.permute.xlu0 %722
    %724 = vrot.lane.b32.xlu0 %v329, 64
    %v725 = vpop.permute.xlu0 %724
    %726 = vrot.lane.b32.xlu0 %v330, 64
    %v727 = vpop.permute.xlu0 %726
    %728 = vrot.lane.b32.xlu0 %v331, 64
    %v729 = vpop.permute.xlu0 %728
    %730 = vrot.lane.b32.xlu0 %v332, 64
    %v731 = vpop.permute.xlu0 %730
    %732 = vrot.lane.b32.xlu0 %v333, 64
    %v733 = vpop.permute.xlu0 %732
    %734 = vrot.lane.b32.xlu0 %v334, 64
    %v735 = vpop.permute.xlu0 %734
    %736 = vrot.lane.b32.xlu0 %v335, 64
    %v737 = vpop.permute.xlu0 %736
    %738 = vrot.lane.b32.xlu0 %v336, 64
    %v739 = vpop.permute.xlu0 %738
    %740 = vrot.lane.b32.xlu0 %v337, 64
    %v741 = vpop.permute.xlu0 %740
    %742 = vrot.lane.b32.xlu0 %v338, 64
    %v743 = vpop.permute.xlu0 %742
    %744 = vrot.lane.b32.xlu0 %v339, 64
    %v745 = vpop.permute.xlu0 %744
    %746 = vrot.lane.b32.xlu0 %v340, 64
    %v747 = vpop.permute.xlu0 %746
    %748 = vrot.lane.b32.xlu0 %v341, 64
    %v749 = vpop.permute.xlu0 %748
    %750 = vrot.lane.b32.xlu0 %v342, 64
    %v751 = vpop.permute.xlu0 %750
    %752 = vrot.lane.b32.xlu0 %v343, 64
    %v753 = vpop.permute.xlu0 %752
    %vm754 = vcmask 523264
    %v755 = vsel %vm754, %v691, %v693
    %v756 = vsel %vm754, %v695, %v697
    %v757 = vsel %vm754, %v699, %v701
    %v758 = vsel %vm754, %v703, %v705
    %v759 = vsel %vm754, %v707, %v709
    %v760 = vsel %vm754, %v711, %v713
    %v761 = vsel %vm754, %v715, %v717
    %v762 = vsel %vm754, %v719, %v721
    %v763 = vsel %vm754, %v723, %v725
    %v764 = vsel %vm754, %v727, %v729
    %v765 = vsel %vm754, %v731, %v733
    %v766 = vsel %vm754, %v735, %v737
    %v767 = vsel %vm754, %v739, %v741
    %v768 = vsel %vm754, %v743, %v745
    %v769 = vsel %vm754, %v747, %v749
    %v770 = vsel %vm754, %v751, %v753
    %835 = vrot.lane.b32.xlu0 %v626, 64
    %v836 = vpop.permute.xlu0 %835
    %837 = vrot.lane.b32.xlu0 %v627, 64
    %v838 = vpop.permute.xlu0 %837
    %839 = vrot.lane.b32.xlu0 %v628, 64
    %v840 = vpop.permute.xlu0 %839
    %841 = vrot.lane.b32.xlu0 %v629, 64
    %v842 = vpop.permute.xlu0 %841
    %843 = vrot.lane.b32.xlu0 %v630, 64
    %v844 = vpop.permute.xlu0 %843
    %845 = vrot.lane.b32.xlu0 %v631, 64
    %v846 = vpop.permute.xlu0 %845
    %847 = vrot.lane.b32.xlu0 %v632, 64
    %v848 = vpop.permute.xlu0 %847
    %849 = vrot.lane.b32.xlu0 %v633, 64
    %v850 = vpop.permute.xlu0 %849
    %851 = vrot.lane.b32.xlu0 %v634, 64
    %v852 = vpop.permute.xlu0 %851
    %853 = vrot.lane.b32.xlu0 %v635, 64
    %v854 = vpop.permute.xlu0 %853
    %855 = vrot.lane.b32.xlu0 %v636, 64
    %v856 = vpop.permute.xlu0 %855
    %857 = vrot.lane.b32.xlu0 %v637, 64
    %v858 = vpop.permute.xlu0 %857
    %859 = vrot.lane.b32.xlu0 %v638, 64
    %v860 = vpop.permute.xlu0 %859
    %861 = vrot.lane.b32.xlu0 %v639, 64
    %v862 = vpop.permute.xlu0 %861
    %863 = vrot.lane.b32.xlu0 %v640, 64
    %v864 = vpop.permute.xlu0 %863
    %865 = vrot.lane.b32.xlu0 %v641, 64
    %v866 = vpop.permute.xlu0 %865
    %867 = vrot.lane.b32.xlu0 %v642, 64
    %v868 = vpop.permute.xlu0 %867
    %869 = vrot.lane.b32.xlu0 %v643, 64
    %v870 = vpop.permute.xlu0 %869
    %871 = vrot.lane.b32.xlu0 %v644, 64
    %v872 = vpop.permute.xlu0 %871
    %873 = vrot.lane.b32.xlu0 %v645, 64
    %v874 = vpop.permute.xlu0 %873
    %875 = vrot.lane.b32.xlu0 %v646, 64
    %v876 = vpop.permute.xlu0 %875
    %877 = vrot.lane.b32.xlu0 %v647, 64
    %v878 = vpop.permute.xlu0 %877
    %879 = vrot.lane.b32.xlu0 %v648, 64
    %v880 = vpop.permute.xlu0 %879
    %881 = vrot.lane.b32.xlu0 %v649, 64
    %v882 = vpop.permute.xlu0 %881
    %883 = vrot.lane.b32.xlu0 %v650, 64
    %v884 = vpop.permute.xlu0 %883
    %885 = vrot.lane.b32.xlu0 %v651, 64
    %v886 = vpop.permute.xlu0 %885
    %887 = vrot.lane.b32.xlu0 %v652, 64
    %v888 = vpop.permute.xlu0 %887
    %889 = vrot.lane.b32.xlu0 %v653, 64
    %v890 = vpop.permute.xlu0 %889
    %891 = vrot.lane.b32.xlu0 %v654, 64
    %v892 = vpop.permute.xlu0 %891
    %893 = vrot.lane.b32.xlu0 %v655, 64
    %v894 = vpop.permute.xlu0 %893
    %895 = vrot.lane.b32.xlu0 %v656, 64
    %v896 = vpop.permute.xlu0 %895
    %897 = vrot.lane.b32.xlu0 %v657, 64
    %v898 = vpop.permute.xlu0 %897
    %v899 = vsel %vm754, %v836, %v838
    %v900 = vsel %vm754, %v840, %v842
    %v901 = vsel %vm754, %v844, %v846
    %v902 = vsel %vm754, %v848, %v850
    %v903 = vsel %vm754, %v852, %v854
    %v904 = vsel %vm754, %v856, %v858
    %v905 = vsel %vm754, %v860, %v862
    %v906 = vsel %vm754, %v864, %v866
    %v907 = vsel %vm754, %v868, %v870
    %v908 = vsel %vm754, %v872, %v874
    %v909 = vsel %vm754, %v876, %v878
    %v910 = vsel %vm754, %v880, %v882
    %v911 = vsel %vm754, %v884, %v886
    %v912 = vsel %vm754, %v888, %v890
    %v913 = vsel %vm754, %v892, %v894
    %v914 = vsel %vm754, %v896, %v898
    %v947 = vsel %vm754, %v156, %v691
    %v948 = vsel %vm754, %v158, %v695
    %v949 = vsel %vm754, %v160, %v699
    %v950 = vsel %vm754, %v162, %v703
    %v951 = vsel %vm754, %v164, %v707
    %v952 = vsel %vm754, %v166, %v711
    %v953 = vsel %vm754, %v168, %v715
    %v954 = vsel %vm754, %v170, %v719
    %v955 = vsel %vm754, %v172, %v723
    %v956 = vsel %vm754, %v174, %v727
    %v957 = vsel %vm754, %v176, %v731
    %v958 = vsel %vm754, %v178, %v735
    %v959 = vsel %vm754, %v180, %v739
    %v960 = vsel %vm754, %v182, %v743
    %v961 = vsel %vm754, %v184, %v747
    %v962 = vsel %vm754, %v186, %v751
    %v963 = vsel %vm754, %v470, %v836
    %v964 = vsel %vm754, %v472, %v840
    %v965 = vsel %vm754, %v474, %v844
    %v966 = vsel %vm754, %v476, %v848
    %v967 = vsel %vm754, %v478, %v852
    %v968 = vsel %vm754, %v480, %v856
    %v969 = vsel %vm754, %v482, %v860
    %v970 = vsel %vm754, %v484, %v864
    %v971 = vsel %vm754, %v486, %v868
    %v972 = vsel %vm754, %v488, %v872
    %v973 = vsel %vm754, %v490, %v876
    %v974 = vsel %vm754, %v492, %v880
    %v975 = vsel %vm754, %v494, %v884
    %v976 = vsel %vm754, %v496, %v888
    %v977 = vsel %vm754, %v498, %v892
    %v978 = vsel %vm754, %v500, %v896
    %979 = vst [vmem:[#allocation2] sm:$0xff] %v155
    %980 = vst [vmem:[#allocation2 + $0x8] sm:$0xff] %v947
    %981 = vst [vmem:[#allocation2 + $0x10] sm:$0xff] %v755
    %982 = vst [vmem:[#allocation2 + $0x18] sm:$0xff] %v469
    %983 = vst [vmem:[#allocation2 + $0x20] sm:$0xff] %v963
    %984 = vst [vmem:[#allocation2 + $0x28] sm:$0xff] %v899
    %985 = vst [vmem:[#allocation2 + $0x30] sm:$0xff] %v157
    %986 = vst [vmem:[#allocation2 + $0x38] sm:$0xff] %v948
    %987 = vst [vmem:[#allocation2 + $0x40] sm:$0xff] %v756
    %988 = vst [vmem:[#allocation2 + $0x48] sm:$0xff] %v471
    %989 = vst [vmem:[#allocation2 + $0x50] sm:$0xff] %v964
    %990 = vst [vmem:[#allocation2 + $0x58] sm:$0xff] %v900
    %991 = vst [vmem:[#allocation2 + $0x60] sm:$0xff] %v159
    %992 = vst [vmem:[#allocation2 + $0x68] sm:$0xff] %v949
    %993 = vst [vmem:[#allocation2 + $0x70] sm:$0xff] %v757
    %994 = vst [vmem:[#allocation2 + $0x78] sm:$0xff] %v473
    %995 = vst [vmem:[#allocation2 + $0x80] sm:$0xff] %v965
    %996 = vst [vmem:[#allocation2 + $0x88] sm:$0xff] %v901
    %997 = vst [vmem:[#allocation2 + $0x90] sm:$0xff] %v161
    %998 = vst [vmem:[#allocation2 + $0x98] sm:$0xff] %v950
    %999 = vst [vmem:[#allocation2 + $0xa0] sm:$0xff] %v758
    %1000 = vst [vmem:[#allocation2 + $0xa8] sm:$0xff] %v475
    %1001 = vst [vmem:[#allocation2 + $0xb0] sm:$0xff] %v966
    %1002 = vst [vmem:[#allocation2 + $0xb8] sm:$0xff] %v902
    %1003 = vst [vmem:[#allocation2 + $0xc0] sm:$0xff] %v163
    %1004 = vst [vmem:[#allocation2 + $0xc8] sm:$0xff] %v951
    %1005 = vst [vmem:[#allocation2 + $0xd0] sm:$0xff] %v759
    %1006 = vst [vmem:[#allocation2 + $0xd8] sm:$0xff] %v477
    %1007 = vst [vmem:[#allocation2 + $0xe0] sm:$0xff] %v967
    %1008 = vst [vmem:[#allocation2 + $0xe8] sm:$0xff] %v903
    %1009 = vst [vmem:[#allocation2 + $0xf0] sm:$0xff] %v165
    %1010 = vst [vmem:[#allocation2 + $0xf8] sm:$0xff] %v952
    %1011 = vst [vmem:[#allocation2 + $0x100] sm:$0xff] %v760
    %1012 = vst [vmem:[#allocation2 + $0x108] sm:$0xff] %v479
    %1013 = vst [vmem:[#allocation2 + $0x110] sm:$0xff] %v968
    %1014 = vst [vmem:[#allocation2 + $0x118] sm:$0xff] %v904
    %1015 = vst [vmem:[#allocation2 + $0x120] sm:$0xff] %v167
    %1016 = vst [vmem:[#allocation2 + $0x128] sm:$0xff] %v953
    %1017 = vst [vmem:[#allocation2 + $0x130] sm:$0xff] %v761
    %1018 = vst [vmem:[#allocation2 + $0x138] sm:$0xff] %v481
    %1019 = vst [vmem:[#allocation2 + $0x140] sm:$0xff] %v969
    %1020 = vst [vmem:[#allocation2 + $0x148] sm:$0xff] %v905
    %1021 = vst [vmem:[#allocation2 + $0x150] sm:$0xff] %v169
    %1022 = vst [vmem:[#allocation2 + $0x158] sm:$0xff] %v954
    %1023 = vst [vmem:[#allocation2 + $0x160] sm:$0xff] %v762
    %1024 = vst [vmem:[#allocation2 + $0x168] sm:$0xff] %v483
    %1025 = vst [vmem:[#allocation2 + $0x170] sm:$0xff] %v970
    %1026 = vst [vmem:[#allocation2 + $0x178] sm:$0xff] %v906
    %1027 = vst [vmem:[#allocation2 + $0x180] sm:$0xff] %v171
    %1028 = vst [vmem:[#allocation2 + $0x188] sm:$0xff] %v955
    %1029 = vst [vmem:[#allocation2 + $0x190] sm:$0xff] %v763
    %1030 = vst [vmem:[#allocation2 + $0x198] sm:$0xff] %v485
    %1031 = vst [vmem:[#allocation2 + $0x1a0] sm:$0xff] %v971
    %1032 = vst [vmem:[#allocation2 + $0x1a8] sm:$0xff] %v907
    %1033 = vst [vmem:[#allocation2 + $0x1b0] sm:$0xff] %v173
    %1034 = vst [vmem:[#allocation2 + $0x1b8] sm:$0xff] %v956
    %1035 = vst [vmem:[#allocation2 + $0x1c0] sm:$0xff] %v764
    %1036 = vst [vmem:[#allocation2 + $0x1c8] sm:$0xff] %v487
    %1037 = vst [vmem:[#allocation2 + $0x1d0] sm:$0xff] %v972
    %1038 = vst [vmem:[#allocation2 + $0x1d8] sm:$0xff] %v908
    %1039 = vst [vmem:[#allocation2 + $0x1e0] sm:$0xff] %v175
    %1040 = vst [vmem:[#allocation2 + $0x1e8] sm:$0xff] %v957
    %1041 = vst [vmem:[#allocation2 + $0x1f0] sm:$0xff] %v765
    %1042 = vst [vmem:[#allocation2 + $0x1f8] sm:$0xff] %v489
    %1043 = vst [vmem:[#allocation2 + $0x200] sm:$0xff] %v973
    %1044 = vst [vmem:[#allocation2 + $0x208] sm:$0xff] %v909
    %1045 = vst [vmem:[#allocation2 + $0x210] sm:$0xff] %v177
    %1046 = vst [vmem:[#allocation2 + $0x218] sm:$0xff] %v958
    %1047 = vst [vmem:[#allocation2 + $0x220] sm:$0xff] %v766
    %1048 = vst [vmem:[#allocation2 + $0x228] sm:$0xff] %v491
    %1049 = vst [vmem:[#allocation2 + $0x230] sm:$0xff] %v974
    %1050 = vst [vmem:[#allocation2 + $0x238] sm:$0xff] %v910
    %1051 = vst [vmem:[#allocation2 + $0x240] sm:$0xff] %v179
    %1052 = vst [vmem:[#allocation2 + $0x248] sm:$0xff] %v959
    %1053 = vst [vmem:[#allocation2 + $0x250] sm:$0xff] %v767
    %1054 = vst [vmem:[#allocation2 + $0x258] sm:$0xff] %v493
    %1055 = vst [vmem:[#allocation2 + $0x260] sm:$0xff] %v975
    %1056 = vst [vmem:[#allocation2 + $0x268] sm:$0xff] %v911
    %1057 = vst [vmem:[#allocation2 + $0x270] sm:$0xff] %v181
    %1058 = vst [vmem:[#allocation2 + $0x278] sm:$0xff] %v960
    %1059 = vst [vmem:[#allocation2 + $0x280] sm:$0xff] %v768
    %1060 = vst [vmem:[#allocation2 + $0x288] sm:$0xff] %v495
    %1061 = vst [vmem:[#allocation2 + $0x290] sm:$0xff] %v976
    %1062 = vst [vmem:[#allocation2 + $0x298] sm:$0xff] %v912
    %1063 = vst [vmem:[#allocation2 + $0x2a0] sm:$0xff] %v183
    %1064 = vst [vmem:[#allocation2 + $0x2a8] sm:$0xff] %v961
    %1065 = vst [vmem:[#allocation2 + $0x2b0] sm:$0xff] %v769
    %1066 = vst [vmem:[#allocation2 + $0x2b8] sm:$0xff] %v497
    %1067 = vst [vmem:[#allocation2 + $0x2c0] sm:$0xff] %v977
    %1068 = vst [vmem:[#allocation2 + $0x2c8] sm:$0xff] %v913
    %1069 = vst [vmem:[#allocation2 + $0x2d0] sm:$0xff] %v185
    %1070 = vst [vmem:[#allocation2 + $0x2d8] sm:$0xff] %v962
    %1071 = vst [vmem:[#allocation2 + $0x2e0] sm:$0xff] %v770
    %1072 = vst [vmem:[#allocation2 + $0x2e8] sm:$0xff] %v499
    %1073 = vst [vmem:[#allocation2 + $0x2f0] sm:$0xff] %v978
    %1074 = vst [vmem:[#allocation2 + $0x2f8] sm:$0xff] %v914
    // Predicated region
    $region34: #{inception_c_forward.15} parent=1 // pred_check
      _
    $region35: #{inception_c_forward.15} parent=1 // pred_check_branch
      %1076 = sbr.rel (0) target = $region37
    $region36: #{inception_c_forward.15} parent=1 // pred_region
      %1078 = vsyncadd [#allocation3], 0
      %s1079 = sshll.u32 [#allocation2], 4
      %s1080 = int_to_ptr.vmem [resolvable:$true] %s1079
      %s1081 = sshll.u32 %s8, 4
      %s1082 = int_to_ptr.hbm [resolvable:$true] %s1081
      %1087 = dma.vmem_to_hbm [thread:$0]  %s1080, 12288, %s1082, [#allocation3], 768, 768, 48
    $region37: #{inception_c_forward.15} parent=1 // pred_fallthru
      _
    // Predicated region
    $region38: #{inception_c_forward.15} parent=1 // pred_check
      _
    $region39: #{inception_c_forward.15} parent=1 // pred_check_branch
      %1089 = sbr.rel (0) target = $region41
    $region40: #{inception_c_forward.15} parent=1 // pred_region
      %1091 = dma.done [#allocation3], 12288
    $region41: #{inception_c_forward.15} parent=1 // pred_fallthru
      _
    %1092 = vsyncpa [#allocation3], 1

// kernel: inception_c_forward.14
$region0: #{inception_c_forward.14}
  #allocation0 [shape = 'u32[]', space=smem, size = 0x4, offset = 0x4, fixed_abs, tag = 'smem constant byte address 0x4 - core index']
  #allocation1 [shape = 'u32[72,128]{1,0:T(1,128)}', space=vmem, size = 0x9000, scoped, tag = 'internal scratch']
  %s0 = inlined_call_operand.vmem [shape: bf16[2,8,8,8], index: 0, kind: input, shape index: {}]
  %s1 = inlined_call_operand.vmem [shape: f32[2,8], index: 1, kind: input, shape index: {}]
  %s2 = inlined_call_operand.vmem [shape: bf16[7,8,192], index: 2, kind: input, shape index: {}]
  %s3 = inlined_call_operand.vmem [shape: bf16[2,8,8,192], index: 3, kind: output, shape index: {0}]
  %s4 = inlined_call_operand.vmem [shape: f32[1,2,192], index: 4, kind: output, shape index: {1}]
  %5 = xla_tuple %s3, %s4
  %s6 = sld [smem:[#allocation0]]
  $region30: #{inception_c_forward.14} parent=0
    _
  %s8 = ssub.s32 1, %s6
  %s9 = scalar_select 0, %s8, %s6
  // Predicated region
  $region2: #{inception_c_forward.14} parent=0 // pred_check
    _
  $region3: #{inception_c_forward.14} parent=0 // pred_check_branch
    %11 = sbr.rel (0) target = $region5
  $region4: #{inception_c_forward.14} parent=0 // pred_region
    _
  $region5: #{inception_c_forward.14} parent=0 // pred_fallthru
    _
  // Predicated region
  $region6: #{inception_c_forward.14} parent=0 // pred_check
    _
  $region7: #{inception_c_forward.14} parent=0 // pred_check_branch
    %13 = sbr.rel (0) target = $region9
  $region8: #{inception_c_forward.14} parent=0 // pred_region
    _
  $region9: #{inception_c_forward.14} parent=0 // pred_fallthru
    _
  // Predicated region
  $region10: #{inception_c_forward.14} parent=0 // pred_check
    _
  $region11: #{inception_c_forward.14} parent=0 // pred_check_branch
    %15 = sbr.rel (0) target = $region13
  $region12: #{inception_c_forward.14} parent=0 // pred_region
    _
  $region13: #{inception_c_forward.14} parent=0 // pred_fallthru
    _
  %v17 = vld [vmem:[%s0] sm:$0xf]
  %v18 = vld [vmem:[%s0 + $0x4] sm:$0xf]
  %v19 = vld [vmem:[%s0 + $0x8] sm:$0xf]
  %v20 = vld [vmem:[%s0 + $0xc] sm:$0xf]
  %v21 = vld [vmem:[%s0 + $0x10] sm:$0xf]
  %v22 = vld [vmem:[%s0 + $0x14] sm:$0xf]
  %v23 = vld [vmem:[%s0 + $0x18] sm:$0xf]
  %v24 = vld [vmem:[%s0 + $0x1c] sm:$0xf]
  %v25 = vld [vmem:[%s0 + $0x20] sm:$0xf]
  %v26 = vld [vmem:[%s0 + $0x24] sm:$0xf]
  %v27 = vld [vmem:[%s0 + $0x28] sm:$0xf]
  %v28 = vld [vmem:[%s0 + $0x2c] sm:$0xf]
  %v29 = vld [vmem:[%s0 + $0x30] sm:$0xf]
  %v30 = vld [vmem:[%s0 + $0x34] sm:$0xf]
  %v31 = vld [vmem:[%s0 + $0x38] sm:$0xf]
  %v32 = vld [vmem:[%s0 + $0x3c] sm:$0xf]
  %v33 = vunpack.c.l.bf16 %v17
  %v34 = vunpack.c.l.bf16 %v18
  %v35 = vunpack.c.l.bf16 %v19
  %v36 = vunpack.c.l.bf16 %v20
  %v37 = vunpack.c.l.bf16 %v21
  %v38 = vunpack.c.l.bf16 %v22
  %v39 = vunpack.c.l.bf16 %v23
  %v40 = vunpack.c.l.bf16 %v24
  %v41 = vunpack.c.l.bf16 %v25
  %v42 = vunpack.c.l.bf16 %v26
  %v43 = vunpack.c.l.bf16 %v27
  %v44 = vunpack.c.l.bf16 %v28
  %v45 = vunpack.c.l.bf16 %v29
  %v46 = vunpack.c.l.bf16 %v30
  %v47 = vunpack.c.l.bf16 %v31
  %v48 = vunpack.c.l.bf16 %v32
  %v49 = vld [vmem:[%s1] sm:$0x1]
  %v50 = vperm.slane %v49, 0
  %v51 = vmul.f32 %v33, %v50
  %v52 = vmul.f32 %v34, %v50
  %v53 = vmul.f32 %v35, %v50
  %v54 = vmul.f32 %v36, %v50
  %v55 = vmul.f32 %v37, %v50
  %v56 = vmul.f32 %v38, %v50
  %v57 = vmul.f32 %v39, %v50
  %v58 = vmul.f32 %v40, %v50
  %v59 = vmul.f32 %v41, %v50
  %v60 = vmul.f32 %v42, %v50
  %v61 = vmul.f32 %v43, %v50
  %v62 = vmul.f32 %v44, %v50
  %v63 = vmul.f32 %v45, %v50
  %v64 = vmul.f32 %v46, %v50
  %v65 = vmul.f32 %v47, %v50
  %v66 = vmul.f32 %v48, %v50
  %v67 = vld [vmem:[%s1 + $0x1] sm:$0x1]
  %v68 = vperm.slane %v67, 0
  %v69 = vadd.f32 %v51, %v68
  %v70 = vadd.f32 %v52, %v68
  %v71 = vadd.f32 %v53, %v68
  %v72 = vadd.f32 %v54, %v68
  %v73 = vadd.f32 %v55, %v68
  %v74 = vadd.f32 %v56, %v68
  %v75 = vadd.f32 %v57, %v68
  %v76 = vadd.f32 %v58, %v68
  %v77 = vadd.f32 %v59, %v68
  %v78 = vadd.f32 %v60, %v68
  %v79 = vadd.f32 %v61, %v68
  %v80 = vadd.f32 %v62, %v68
  %v81 = vadd.f32 %v63, %v68
  %v82 = vadd.f32 %v64, %v68
  %v83 = vadd.f32 %v65, %v68
  %v84 = vadd.f32 %v66, %v68
  %v85 = vmax.f32 %v69, 0.0
  %v86 = vmax.f32 %v70, 0.0
  %v87 = vmax.f32 %v71, 0.0
  %v88 = vmax.f32 %v72, 0.0
  %v89 = vmax.f32 %v73, 0.0
  %v90 = vmax.f32 %v74, 0.0
  %v91 = vmax.f32 %v75, 0.0
  %v92 = vmax.f32 %v76, 0.0
  %v93 = vmax.f32 %v77, 0.0
  %v94 = vmax.f32 %v78, 0.0
  %v95 = vmax.f32 %v79, 0.0
  %v96 = vmax.f32 %v80, 0.0
  %v97 = vmax.f32 %v81, 0.0
  %v98 = vmax.f32 %v82, 0.0
  %v99 = vmax.f32 %v83, 0.0
  %v100 = vmax.f32 %v84, 0.0
  %v101 = vld [vmem:[%s2] sm:$0xff]
  %v102 = vld [vmem:[%s2 + $0x8] sm:$0xff]
  %v103 = vld [vmem:[%s2 + $0x10] sm:$0xff]
  %v104 = vld [vmem:[%s2 + $0x18] sm:$0xff]
  %v105 = vld [vmem:[%s2 + $0x20] sm:$0xff]
  %v106 = vld [vmem:[%s2 + $0x28] sm:$0xff]
  %v107 = vld [vmem:[%s2 + $0x30] sm:$0xff]
  %v124 = vrot.slane %v85, 5
  %v125 = vrot.slane %v86, 5
  %v126 = vrot.slane %v87, 5
  %v127 = vrot.slane %v88, 5
  %v128 = vrot.slane %v89, 5
  %v129 = vrot.slane %v90, 5
  %v130 = vrot.slane %v91, 5
  %v131 = vrot.slane %v92, 5
  %v132 = vrot.slane %v93, 5
  %v133 = vrot.slane %v94, 5
  %v134 = vrot.slane %v95, 5
  %v135 = vrot.slane %v96, 5
  %v136 = vrot.slane %v97, 5
  %v137 = vrot.slane %v98, 5
  %v138 = vrot.slane %v99, 5
  %v139 = vrot.slane %v100, 5
  %vm156 = vcmask 1042432
  %v157 = vsel %vm156, 0.0, %v124
  %v158 = vsel %vm156, 0.0, %v125
  %v159 = vsel %vm156, 0.0, %v126
  %v160 = vsel %vm156, 0.0, %v127
  %v161 = vsel %vm156, 0.0, %v128
  %v162 = vsel %vm156, 0.0, %v129
  %v163 = vsel %vm156, 0.0, %v130
  %v164 = vsel %vm156, 0.0, %v131
  %v165 = vsel %vm156, 0.0, %v132
  %v166 = vsel %vm156, 0.0, %v133
  %v167 = vsel %vm156, 0.0, %v134
  %v168 = vsel %vm156, 0.0, %v135
  %v169 = vsel %vm156, 0.0, %v136
  %v170 = vsel %vm156, 0.0, %v137
  %v171 = vsel %vm156, 0.0, %v138
  %v172 = vsel %vm156, 0.0, %v139
  %v173 = vsel %vm156, %v124, 0.0
  %v174 = vsel %vm156, %v125, 0.0
  %v175 = vsel %vm156, %v126, 0.0
  %v176 = vsel %vm156, %v127, 0.0
  %v177 = vsel %vm156, %v128, 0.0
  %v178 = vsel %vm156, %v129, 0.0
  %v179 = vsel %vm156, %v130, 0.0
  %v180 = vsel %vm156, %v131, 0.0
  %v181 = vsel %vm156, %v132, 0.0
  %v182 = vsel %vm156, %v133, 0.0
  %v183 = vsel %vm156, %v134, 0.0
  %v184 = vsel %vm156, %v135, 0.0
  %v185 = vsel %vm156, %v136, 0.0
  %v186 = vsel %vm156, %v137, 0.0
  %v187 = vsel %vm156, %v138, 0.0
  %v188 = vsel %vm156, %v139, 0.0
  %v189 = vpack.c.bf16 %v157, %v157
  %v190 = vpack.c.bf16 %v173, %v173
  %v191 = vpack.c.bf16 %v158, %v158
  %v192 = vpack.c.bf16 %v174, %v174
  %v193 = vpack.c.bf16 %v159, %v159
  %v194 = vpack.c.bf16 %v175, %v175
  %v195 = vpack.c.bf16 %v160, %v160
  %v196 = vpack.c.bf16 %v176, %v176
  %v197 = vpack.c.bf16 %v161, %v161
  %v198 = vpack.c.bf16 %v177, %v177
  %v199 = vpack.c.bf16 %v162, %v162
  %v200 = vpack.c.bf16 %v178, %v178
  %v201 = vpack.c.bf16 %v163, %v163
  %v202 = vpack.c.bf16 %v179, %v179
  %v203 = vpack.c.bf16 %v164, %v164
  %v204 = vpack.c.bf16 %v180, %v180
  %v205 = vpack.c.bf16 %v165, %v165
  %v206 = vpack.c.bf16 %v181, %v181
  %v207 = vpack.c.bf16 %v166, %v166
  %v208 = vpack.c.bf16 %v182, %v182
  %v209 = vpack.c.bf16 %v167, %v167
  %v210 = vpack.c.bf16 %v183, %v183
  %v211 = vpack.c.bf16 %v168, %v168
  %v212 = vpack.c.bf16 %v184, %v184
  %v213 = vpack.c.bf16 %v169, %v169
  %v214 = vpack.c.bf16 %v185, %v185
  %v215 = vpack.c.bf16 %v170, %v170
  %v216 = vpack.c.bf16 %v186, %v186
  %v217 = vpack.c.bf16 %v171, %v171
  %v218 = vpack.c.bf16 %v187, %v187
  %v219 = vpack.c.bf16 %v172, %v172
  %v220 = vpack.c.bf16 %v188, %v188
  %vm221 = vsmask.f32 3328
  %vm222 = vsmask.f32 7440
  %vm223 = vmor %vm221, %vm222
  %v225 = vshrl.u32 %v189, 16
  %v227 = vrot.slane %v225, 4
  %v228 = vshll.u32 %v189, 16
  %v230 = vrot.slane %v228, 5
  %v231 = vor.u32 %v227, %v230
  %v232 = vrot.slane %v231, 4
  %v234 = vshll.u32 %v190, 16
  %v236 = vrot.slane %v234, 5
  %v237 = vsel %vm223, %v232, %v236
  %v239 = vshrl.u32 %v191, 16
  %v241 = vrot.slane %v239, 4
  %v242 = vshll.u32 %v191, 16
  %v244 = vrot.slane %v242, 5
  %v245 = vor.u32 %v241, %v244
  %v246 = vrot.slane %v245, 4
  %v248 = vshll.u32 %v192, 16
  %v250 = vrot.slane %v248, 5
  %v251 = vsel %vm223, %v246, %v250
  %v253 = vshrl.u32 %v193, 16
  %v255 = vrot.slane %v253, 4
  %v256 = vshll.u32 %v193, 16
  %v258 = vrot.slane %v256, 5
  %v259 = vor.u32 %v255, %v258
  %v260 = vrot.slane %v259, 4
  %v262 = vshll.u32 %v194, 16
  %v264 = vrot.slane %v262, 5
  %v265 = vsel %vm223, %v260, %v264
  %v267 = vshrl.u32 %v195, 16
  %v269 = vrot.slane %v267, 4
  %v270 = vshll.u32 %v195, 16
  %v272 = vrot.slane %v270, 5
  %v273 = vor.u32 %v269, %v272
  %v274 = vrot.slane %v273, 4
  %v276 = vshll.u32 %v196, 16
  %v278 = vrot.slane %v276, 5
  %v279 = vsel %vm223, %v274, %v278
  %v281 = vshrl.u32 %v197, 16
  %v283 = vrot.slane %v281, 4
  %v284 = vshll.u32 %v197, 16
  %v286 = vrot.slane %v284, 5
  %v287 = vor.u32 %v283, %v286
  %v288 = vrot.slane %v287, 4
  %v290 = vshll.u32 %v198, 16
  %v292 = vrot.slane %v290, 5
  %v293 = vsel %vm223, %v288, %v292
  %v295 = vshrl.u32 %v199, 16
  %v297 = vrot.slane %v295, 4
  %v298 = vshll.u32 %v199, 16
  %v300 = vrot.slane %v298, 5
  %v301 = vor.u32 %v297, %v300
  %v302 = vrot.slane %v301, 4
  %v304 = vshll.u32 %v200, 16
  %v306 = vrot.slane %v304, 5
  %v307 = vsel %vm223, %v302, %v306
  %v309 = vshrl.u32 %v201, 16
  %v311 = vrot.slane %v309, 4
  %v312 = vshll.u32 %v201, 16
  %v314 = vrot.slane %v312, 5
  %v315 = vor.u32 %v311, %v314
  %v316 = vrot.slane %v315, 4
  %v318 = vshll.u32 %v202, 16
  %v320 = vrot.slane %v318, 5
  %v321 = vsel %vm223, %v316, %v320
  %v323 = vshrl.u32 %v203, 16
  %v325 = vrot.slane %v323, 4
  %v326 = vshll.u32 %v203, 16
  %v328 = vrot.slane %v326, 5
  %v329 = vor.u32 %v325, %v328
  %v330 = vrot.slane %v329, 4
  %v332 = vshll.u32 %v204, 16
  %v334 = vrot.slane %v332, 5
  %v335 = vsel %vm223, %v330, %v334
  %v337 = vshrl.u32 %v205, 16
  %v339 = vrot.slane %v337, 4
  %v340 = vshll.u32 %v205, 16
  %v342 = vrot.slane %v340, 5
  %v343 = vor.u32 %v339, %v342
  %v344 = vrot.slane %v343, 4
  %v346 = vshll.u32 %v206, 16
  %v348 = vrot.slane %v346, 5
  %v349 = vsel %vm223, %v344, %v348
  %v351 = vshrl.u32 %v207, 16
  %v353 = vrot.slane %v351, 4
  %v354 = vshll.u32 %v207, 16
  %v356 = vrot.slane %v354, 5
  %v357 = vor.u32 %v353, %v356
  %v358 = vrot.slane %v357, 4
  %v360 = vshll.u32 %v208, 16
  %v362 = vrot.slane %v360, 5
  %v363 = vsel %vm223, %v358, %v362
  %v365 = vshrl.u32 %v209, 16
  %v367 = vrot.slane %v365, 4
  %v368 = vshll.u32 %v209, 16
  %v370 = vrot.slane %v368, 5
  %v371 = vor.u32 %v367, %v370
  %v372 = vrot.slane %v371, 4
  %v374 = vshll.u32 %v210, 16
  %v376 = vrot.slane %v374, 5
  %v377 = vsel %vm223, %v372, %v376
  %v379 = vshrl.u32 %v211, 16
  %v381 = vrot.slane %v379, 4
  %v382 = vshll.u32 %v211, 16
  %v384 = vrot.slane %v382, 5
  %v385 = vor.u32 %v381, %v384
  %v386 = vrot.slane %v385, 4
  %v388 = vshll.u32 %v212, 16
  %v390 = vrot.slane %v388, 5
  %v391 = vsel %vm223, %v386, %v390
  %v393 = vshrl.u32 %v213, 16
  %v395 = vrot.slane %v393, 4
  %v396 = vshll.u32 %v213, 16
  %v398 = vrot.slane %v396, 5
  %v399 = vor.u32 %v395, %v398
  %v400 = vrot.slane %v399, 4
  %v402 = vshll.u32 %v214, 16
  %v404 = vrot.slane %v402, 5
  %v405 = vsel %vm223, %v400, %v404
  %v407 = vshrl.u32 %v215, 16
  %v409 = vrot.slane %v407, 4
  %v410 = vshll.u32 %v215, 16
  %v412 = vrot.slane %v410, 5
  %v413 = vor.u32 %v409, %v412
  %v414 = vrot.slane %v413, 4
  %v416 = vshll.u32 %v216, 16
  %v418 = vrot.slane %v416, 5
  %v419 = vsel %vm223, %v414, %v418
  %v421 = vshrl.u32 %v217, 16
  %v423 = vrot.slane %v421, 4
  %v424 = vshll.u32 %v217, 16
  %v426 = vrot.slane %v424, 5
  %v427 = vor.u32 %v423, %v426
  %v428 = vrot.slane %v427, 4
  %v430 = vshll.u32 %v218, 16
  %v432 = vrot.slane %v430, 5
  %v433 = vsel %vm223, %v428, %v432
  %v435 = vshrl.u32 %v219, 16
  %v437 = vrot.slane %v435, 4
  %v438 = vshll.u32 %v219, 16
  %v440 = vrot.slane %v438, 5
  %v441 = vor.u32 %v437, %v440
  %v442 = vrot.slane %v441, 4
  %v444 = vshll.u32 %v220, 16
  %v446 = vrot.slane %v444, 5
  %v447 = vsel %vm223, %v442, %v446
  %v448 = vunpack.c.l.b16 %v237
  %v449 = vunpack.c.l.b16 %v251
  %v450 = vunpack.c.l.b16 %v265
  %v451 = vunpack.c.l.b16 %v279
  %v452 = vunpack.c.l.b16 %v293
  %v453 = vunpack.c.l.b16 %v307
  %v454 = vunpack.c.l.b16 %v321
  %v455 = vunpack.c.l.b16 %v335
  %v456 = vunpack.c.l.b16 %v349
  %v457 = vunpack.c.l.b16 %v363
  %v458 = vunpack.c.l.b16 %v377
  %v459 = vunpack.c.l.b16 %v391
  %v460 = vunpack.c.l.b16 %v405
  %v461 = vunpack.c.l.b16 %v419
  %v462 = vunpack.c.l.b16 %v433
  %v463 = vunpack.c.l.b16 %v447
  %v464 = vpack.c.b16 %v449, %v448
  %v465 = vpack.c.b16 %v451, %v450
  %v466 = vpack.c.b16 %v453, %v452
  %v467 = vpack.c.b16 %v455, %v454
  %v468 = vpack.c.b16 %v457, %v456
  %v469 = vpack.c.b16 %v459, %v458
  %v470 = vpack.c.b16 %v461, %v460
  %v471 = vpack.c.b16 %v463, %v462
  %v473 = vunpack.c.l.b16 %v102
  %v474 = vunpack.c.h.b16 %v102
  %v475 = vpack.c.b16 %v473, %v473
  %v476 = vpack.c.b16 %v474, %v474
  %vm477 = vcmask 64512
  %v479 = vsel %vm477, %v464, 0
  %v482 = vsel %vm477, %v465, 0
  %v485 = vsel %vm477, %v466, 0
  %v488 = vsel %vm477, %v467, 0
  %v491 = vsel %vm477, %v468, 0
  %v494 = vsel %vm477, %v469, 0
  %v497 = vsel %vm477, %v470, 0
  %v500 = vsel %vm477, %v471, 0
  %vm502 = vcmask 1043456
  %v504 = vsel %vm502, %v475, 0
  %v507 = vsel %vm502, %v476, 0
  %509 = vmatpush.bf16.msra.mxu0 0
  %510 = vmatpush.bf16.msra.mxu0 0
  %511 = vmatpush.bf16.msra.mxu0 0
  %512 = vmatpush.bf16.msra.mxu0 0
  %513 = vmatpush.bf16.msra.mxu0 0
  %514 = vmatpush.bf16.msra.mxu0 0
  %515 = vmatpush.bf16.msra.mxu0 0
  %516 = vmatpush.bf16.msra.mxu0 %v504
  %517 = vmatmul.bf16.gmra.mxu0 %v479
  %v518 = vpop.f32.mrf.mxu0
  %v519 = vadd.f32 0.0, %v518
  %v520 = vpop.f32.mrf.mxu0
  %v521 = vadd.f32 0.0, %v520
  %522 = vmatmul.bf16.gmra.mxu0 %v482
  %v523 = vpop.f32.mrf.mxu0
  %v524 = vadd.f32 0.0, %v523
  %v525 = vpop.f32.mrf.mxu0
  %v526 = vadd.f32 0.0, %v525
  %527 = vmatmul.bf16.gmra.mxu0 %v485
  %v528 = vpop.f32.mrf.mxu0
  %v529 = vadd.f32 0.0, %v528
  %v530 = vpop.f32.mrf.mxu0
  %v531 = vadd.f32 0.0, %v530
  %532 = vmatmul.bf16.gmra.mxu0 %v488
  %v533 = vpop.f32.mrf.mxu0
  %v534 = vadd.f32 0.0, %v533
  %v535 = vpop.f32.mrf.mxu0
  %v536 = vadd.f32 0.0, %v535
  %537 = vmatmul.bf16.gmra.mxu0 %v491
  %v538 = vpop.f32.mrf.mxu0
  %v539 = vadd.f32 0.0, %v538
  %v540 = vpop.f32.mrf.mxu0
  %v541 = vadd.f32 0.0, %v540
  %542 = vmatmul.bf16.gmra.mxu0 %v494
  %v543 = vpop.f32.mrf.mxu0
  %v544 = vadd.f32 0.0, %v543
  %v545 = vpop.f32.mrf.mxu0
  %v546 = vadd.f32 0.0, %v545
  %547 = vmatmul.bf16.gmra.mxu0 %v497
  %v548 = vpop.f32.mrf.mxu0
  %v549 = vadd.f32 0.0, %v548
  %v550 = vpop.f32.mrf.mxu0
  %v551 = vadd.f32 0.0, %v550
  %552 = vmatmul.bf16.gmra.mxu0 %v500
  %v553 = vpop.f32.mrf.mxu0
  %v554 = vadd.f32 0.0, %v553
  %v555 = vpop.f32.mrf.mxu0
  %v556 = vadd.f32 0.0, %v555
  %557 = vdwg.mxu0
  %558 = vmatpush.bf16.msra.mxu0 0
  %559 = vmatpush.bf16.msra.mxu0 0
  %560 = vmatpush.bf16.msra.mxu0 0
  %561 = vmatpush.bf16.msra.mxu0 0
  %562 = vmatpush.bf16.msra.mxu0 0
  %563 = vmatpush.bf16.msra.mxu0 0
  %564 = vmatpush.bf16.msra.mxu0 0
  %565 = vmatpush.bf16.msra.mxu0 %v507
  %566 = vmatmul.bf16.gmra.mxu0 %v479
  %v567 = vpop.f32.mrf.mxu0
  %v568 = vadd.f32 0.0, %v567
  %v569 = vpop.f32.mrf.mxu0
  %v570 = vadd.f32 0.0, %v569
  %571 = vmatmul.bf16.gmra.mxu0 %v482
  %v572 = vpop.f32.mrf.mxu0
  %v573 = vadd.f32 0.0, %v572
  %v574 = vpop.f32.mrf.mxu0
  %v575 = vadd.f32 0.0, %v574
  %576 = vmatmul.bf16.gmra.mxu0 %v485
  %v577 = vpop.f32.mrf.mxu0
  %v578 = vadd.f32 0.0, %v577
  %v579 = vpop.f32.mrf.mxu0
  %v580 = vadd.f32 0.0, %v579
  %581 = vmatmul.bf16.gmra.mxu0 %v488
  %v582 = vpop.f32.mrf.mxu0
  %v583 = vadd.f32 0.0, %v582
  %v584 = vpop.f32.mrf.mxu0
  %v585 = vadd.f32 0.0, %v584
  %586 = vmatmul.bf16.gmra.mxu0 %v491
  %v587 = vpop.f32.mrf.mxu0
  %v588 = vadd.f32 0.0, %v587
  %v589 = vpop.f32.mrf.mxu0
  %v590 = vadd.f32 0.0, %v589
  %591 = vmatmul.bf16.gmra.mxu0 %v494
  %v592 = vpop.f32.mrf.mxu0
  %v593 = vadd.f32 0.0, %v592
  %v594 = vpop.f32.mrf.mxu0
  %v595 = vadd.f32 0.0, %v594
  %596 = vmatmul.bf16.gmra.mxu0 %v497
  %v597 = vpop.f32.mrf.mxu0
  %v598 = vadd.f32 0.0, %v597
  %v599 = vpop.f32.mrf.mxu0
  %v600 = vadd.f32 0.0, %v599
  %601 = vmatmul.bf16.gmra.mxu0 %v500
  %v602 = vpop.f32.mrf.mxu0
  %v603 = vadd.f32 0.0, %v602
  %v604 = vpop.f32.mrf.mxu0
  %v605 = vadd.f32 0.0, %v604
  %606 = vdwg.mxu0
  %v623 = vunpack.c.l.b16 %v189
  %v624 = vunpack.c.l.b16 %v191
  %v625 = vunpack.c.l.b16 %v193
  %v626 = vunpack.c.l.b16 %v195
  %v627 = vunpack.c.l.b16 %v197
  %v628 = vunpack.c.l.b16 %v199
  %v629 = vunpack.c.l.b16 %v201
  %v630 = vunpack.c.l.b16 %v203
  %v631 = vunpack.c.l.b16 %v205
  %v632 = vunpack.c.l.b16 %v207
  %v633 = vunpack.c.l.b16 %v209
  %v634 = vunpack.c.l.b16 %v211
  %v635 = vunpack.c.l.b16 %v213
  %v636 = vunpack.c.l.b16 %v215
  %v637 = vunpack.c.l.b16 %v217
  %v638 = vunpack.c.l.b16 %v219
  %v639 = vpack.c.b16 %v624, %v623
  %v640 = vpack.c.b16 %v626, %v625
  %v641 = vpack.c.b16 %v628, %v627
  %v642 = vpack.c.b16 %v630, %v629
  %v643 = vpack.c.b16 %v632, %v631
  %v644 = vpack.c.b16 %v634, %v633
  %v645 = vpack.c.b16 %v636, %v635
  %v646 = vpack.c.b16 %v638, %v637
  %v648 = vunpack.c.l.b16 %v101
  %v649 = vunpack.c.h.b16 %v101
  %v650 = vpack.c.b16 %v648, %v648
  %v651 = vpack.c.b16 %v649, %v649
  %v653 = vsel %vm477, %v639, 0
  %v656 = vsel %vm477, %v640, 0
  %v659 = vsel %vm477, %v641, 0
  %v662 = vsel %vm477, %v642, 0
  %v665 = vsel %vm477, %v643, 0
  %v668 = vsel %vm477, %v644, 0
  %v671 = vsel %vm477, %v645, 0
  %v674 = vsel %vm477, %v646, 0
  %v677 = vsel %vm502, %v650, 0
  %v680 = vsel %vm502, %v651, 0
  %682 = vmatpush.bf16.msra.mxu0 0
  %683 = vmatpush.bf16.msra.mxu0 0
  %684 = vmatpush.bf16.msra.mxu0 0
  %685 = vmatpush.bf16.msra.mxu0 0
  %686 = vmatpush.bf16.msra.mxu0 0
  %687 = vmatpush.bf16.msra.mxu0 0
  %688 = vmatpush.bf16.msra.mxu0 0
  %689 = vmatpush.bf16.msra.mxu0 %v677
  %690 = vmatmul.bf16.gmra.mxu0 %v653
  %v691 = vpop.f32.mrf.mxu0
  %v692 = vadd.f32 %v519, %v691
  %v693 = vpop.f32.mrf.mxu0
  %v694 = vadd.f32 %v521, %v693
  %695 = vmatmul.bf16.gmra.mxu0 %v656
  %v696 = vpop.f32.mrf.mxu0
  %v697 = vadd.f32 %v524, %v696
  %v698 = vpop.f32.mrf.mxu0
  %v699 = vadd.f32 %v526, %v698
  %700 = vmatmul.bf16.gmra.mxu0 %v659
  %v701 = vpop.f32.mrf.mxu0
  %v702 = vadd.f32 %v529, %v701
  %v703 = vpop.f32.mrf.mxu0
  %v704 = vadd.f32 %v531, %v703
  %705 = vmatmul.bf16.gmra.mxu0 %v662
  %v706 = vpop.f32.mrf.mxu0
  %v707 = vadd.f32 %v534, %v706
  %v708 = vpop.f32.mrf.mxu0
  %v709 = vadd.f32 %v536, %v708
  %710 = vmatmul.bf16.gmra.mxu0 %v665
  %v711 = vpop.f32.mrf.mxu0
  %v712 = vadd.f32 %v539, %v711
  %v713 = vpop.f32.mrf.mxu0
  %v714 = vadd.f32 %v541, %v713
  %715 = vmatmul.bf16.gmra.mxu0 %v668
  %v716 = vpop.f32.mrf.mxu0
  %v717 = vadd.f32 %v544, %v716
  %v718 = vpop.f32.mrf.mxu0
  %v719 = vadd.f32 %v546, %v718
  %720 = vmatmul.bf16.gmra.mxu0 %v671
  %v721 = vpop.f32.mrf.mxu0
  %v722 = vadd.f32 %v549, %v721
  %v723 = vpop.f32.mrf.mxu0
  %v724 = vadd.f32 %v551, %v723
  %725 = vmatmul.bf16.gmra.mxu0 %v674
  %v726 = vpop.f32.mrf.mxu0
  %v727 = vadd.f32 %v554, %v726
  %v728 = vpop.f32.mrf.mxu0
  %v729 = vadd.f32 %v556, %v728
  %730 = vdwg.mxu0
  %731 = vmatpush.bf16.msra.mxu0 0
  %732 = vmatpush.bf16.msra.mxu0 0
  %733 = vmatpush.bf16.msra.mxu0 0
  %734 = vmatpush.bf16.msra.mxu0 0
  %735 = vmatpush.bf16.msra.mxu0 0
  %736 = vmatpush.bf16.msra.mxu0 0
  %737 = vmatpush.bf16.msra.mxu0 0
  %738 = vmatpush.bf16.msra.mxu0 %v680
  %739 = vmatmul.bf16.gmra.mxu0 %v653
  %v740 = vpop.f32.mrf.mxu0
  %v741 = vadd.f32 %v568, %v740
  %v742 = vpop.f32.mrf.mxu0
  %v743 = vadd.f32 %v570, %v742
  %744 = vmatmul.bf16.gmra.mxu0 %v656
  %v745 = vpop.f32.mrf.mxu0
  %v746 = vadd.f32 %v573, %v745
  %v747 = vpop.f32.mrf.mxu0
  %v748 = vadd.f32 %v575, %v747
  %749 = vmatmul.bf16.gmra.mxu0 %v659
  %v750 = vpop.f32.mrf.mxu0
  %v751 = vadd.f32 %v578, %v750
  %v752 = vpop.f32.mrf.mxu0
  %v753 = vadd.f32 %v580, %v752
  %754 = vmatmul.bf16.gmra.mxu0 %v662
  %v755 = vpop.f32.mrf.mxu0
  %v756 = vadd.f32 %v583, %v755
  %v757 = vpop.f32.mrf.mxu0
  %v758 = vadd.f32 %v585, %v757
  %759 = vmatmul.bf16.gmra.mxu0 %v665
  %v760 = vpop.f32.mrf.mxu0
  %v761 = vadd.f32 %v588, %v760
  %v762 = vpop.f32.mrf.mxu0
  %v763 = vadd.f32 %v590, %v762
  %764 = vmatmul.bf16.gmra.mxu0 %v668
  %v765 = vpop.f32.mrf.mxu0
  %v766 = vadd.f32 %v593, %v765
  %v767 = vpop.f32.mrf.mxu0
  %v768 = vadd.f32 %v595, %v767
  %769 = vmatmul.bf16.gmra.mxu0 %v671
  %v770 = vpop.f32.mrf.mxu0
  %v771 = vadd.f32 %v598, %v770
  %v772 = vpop.f32.mrf.mxu0
  %v773 = vadd.f32 %v600, %v772
  %774 = vmatmul.bf16.gmra.mxu0 %v674
  %v775 = vpop.f32.mrf.mxu0
  %v776 = vadd.f32 %v603, %v775
  %v777 = vpop.f32.mrf.mxu0
  %v778 = vadd.f32 %v605, %v777
  %779 = vdwg.mxu0
  %vm796 = vcmask 1042432
  %vm797 = vcmask 1046532
  %vm798 = vmor %vm796, %vm797
  %v799 = vrot.slane %v189, 5
  %v800 = vrot.slane %v799, 4
  %v801 = vrot.slane %v190, 5
  %v802 = vsel %vm798, %v800, %v801
  %v803 = vrot.slane %v191, 5
  %v804 = vrot.slane %v803, 4
  %v805 = vrot.slane %v192, 5
  %v806 = vsel %vm798, %v804, %v805
  %v807 = vrot.slane %v193, 5
  %v808 = vrot.slane %v807, 4
  %v809 = vrot.slane %v194, 5
  %v810 = vsel %vm798, %v808, %v809
  %v811 = vrot.slane %v195, 5
  %v812 = vrot.slane %v811, 4
  %v813 = vrot.slane %v196, 5
  %v814 = vsel %vm798, %v812, %v813
  %v815 = vrot.slane %v197, 5
  %v816 = vrot.slane %v815, 4
  %v817 = vrot.slane %v198, 5
  %v818 = vsel %vm798, %v816, %v817
  %v819 = vrot.slane %v199, 5
  %v820 = vrot.slane %v819, 4
  %v821 = vrot.slane %v200, 5
  %v822 = vsel %vm798, %v820, %v821
  %v823 = vrot.slane %v201, 5
  %v824 = vrot.slane %v823, 4
  %v825 = vrot.slane %v202, 5
  %v826 = vsel %vm798, %v824, %v825
  %v827 = vrot.slane %v203, 5
  %v828 = vrot.slane %v827, 4
  %v829 = vrot.slane %v204, 5
  %v830 = vsel %vm798, %v828, %v829
  %v831 = vrot.slane %v205, 5
  %v832 = vrot.slane %v831, 4
  %v833 = vrot.slane %v206, 5
  %v834 = vsel %vm798, %v832, %v833
  %v835 = vrot.slane %v207, 5
  %v836 = vrot.slane %v835, 4
  %v837 = vrot.slane %v208, 5
  %v838 = vsel %vm798, %v836, %v837
  %v839 = vrot.slane %v209, 5
  %v840 = vrot.slane %v839, 4
  %v841 = vrot.slane %v210, 5
  %v842 = vsel %vm798, %v840, %v841
  %v843 = vrot.slane %v211, 5
  %v844 = vrot.slane %v843, 4
  %v845 = vrot.slane %v212, 5
  %v846 = vsel %vm798, %v844, %v845
  %v847 = vrot.slane %v213, 5
  %v848 = vrot.slane %v847, 4
  %v849 = vrot.slane %v214, 5
  %v850 = vsel %vm798, %v848, %v849
  %v851 = vrot.slane %v215, 5
  %v852 = vrot.slane %v851, 4
  %v853 = vrot.slane %v216, 5
  %v854 = vsel %vm798, %v852, %v853
  %v855 = vrot.slane %v217, 5
  %v856 = vrot.slane %v855, 4
  %v857 = vrot.slane %v218, 5
  %v858 = vsel %vm798, %v856, %v857
  %v859 = vrot.slane %v219, 5
  %v860 = vrot.slane %v859, 4
  %v861 = vrot.slane %v220, 5
  %v862 = vsel %vm798, %v860, %v861
  %v863 = vunpack.c.l.b16 %v802
  %v864 = vunpack.c.l.b16 %v806
  %v865 = vunpack.c.l.b16 %v810
  %v866 = vunpack.c.l.b16 %v814
  %v867 = vunpack.c.l.b16 %v818
  %v868 = vunpack.c.l.b16 %v822
  %v869 = vunpack.c.l.b16 %v826
  %v870 = vunpack.c.l.b16 %v830
  %v871 = vunpack.c.l.b16 %v834
  %v872 = vunpack.c.l.b16 %v838
  %v873 = vunpack.c.l.b16 %v842
  %v874 = vunpack.c.l.b16 %v846
  %v875 = vunpack.c.l.b16 %v850
  %v876 = vunpack.c.l.b16 %v854
  %v877 = vunpack.c.l.b16 %v858
  %v878 = vunpack.c.l.b16 %v862
  %v879 = vpack.c.b16 %v864, %v863
  %v880 = vpack.c.b16 %v866, %v865
  %v881 = vpack.c.b16 %v868, %v867
  %v882 = vpack.c.b16 %v870, %v869
  %v883 = vpack.c.b16 %v872, %v871
  %v884 = vpack.c.b16 %v874, %v873
  %v885 = vpack.c.b16 %v876, %v875
  %v886 = vpack.c.b16 %v878, %v877
  %v888 = vunpack.c.l.b16 %v103
  %v889 = vunpack.c.h.b16 %v103
  %v890 = vpack.c.b16 %v888, %v888
  %v891 = vpack.c.b16 %v889, %v889
  %v893 = vsel %vm477, %v879, 0
  %v896 = vsel %vm477, %v880, 0
  %v899 = vsel %vm477, %v881, 0
  %v902 = vsel %vm477, %v882, 0
  %v905 = vsel %vm477, %v883, 0
  %v908 = vsel %vm477, %v884, 0
  %v911 = vsel %vm477, %v885, 0
  %v914 = vsel %vm477, %v886, 0
  %v917 = vsel %vm502, %v890, 0
  %v920 = vsel %vm502, %v891, 0
  %922 = vmatpush.bf16.msra.mxu0 0
  %923 = vmatpush.bf16.msra.mxu0 0
  %924 = vmatpush.bf16.msra.mxu0 0
  %925 = vmatpush.bf16.msra.mxu0 0
  %926 = vmatpush.bf16.msra.mxu0 0
  %927 = vmatpush.bf16.msra.mxu0 0
  %928 = vmatpush.bf16.msra.mxu0 0
  %929 = vmatpush.bf16.msra.mxu0 %v917
  %930 = vmatmul.bf16.gmra.mxu0 %v893
  %v931 = vpop.f32.mrf.mxu0
  %v932 = vadd.f32 0.0, %v931
  %v933 = vpop.f32.mrf.mxu0
  %v934 = vadd.f32 0.0, %v933
  %935 = vmatmul.bf16.gmra.mxu0 %v896
  %v936 = vpop.f32.mrf.mxu0
  %v937 = vadd.f32 0.0, %v936
  %v938 = vpop.f32.mrf.mxu0
  %v939 = vadd.f32 0.0, %v938
  %940 = vmatmul.bf16.gmra.mxu0 %v899
  %v941 = vpop.f32.mrf.mxu0
  %v942 = vadd.f32 0.0, %v941
  %v943 = vpop.f32.mrf.mxu0
  %v944 = vadd.f32 0.0, %v943
  %945 = vmatmul.bf16.gmra.mxu0 %v902
  %v946 = vpop.f32.mrf.mxu0
  %v947 = vadd.f32 0.0, %v946
  %v948 = vpop.f32.mrf.mxu0
  %v949 = vadd.f32 0.0, %v948
  %950 = vmatmul.bf16.gmra.mxu0 %v905
  %v951 = vpop.f32.mrf.mxu0
  %v952 = vadd.f32 0.0, %v951
  %v953 = vpop.f32.mrf.mxu0
  %v954 = vadd.f32 0.0, %v953
  %955 = vmatmul.bf16.gmra.mxu0 %v908
  %v956 = vpop.f32.mrf.mxu0
  %v957 = vadd.f32 0.0, %v956
  %v958 = vpop.f32.mrf.mxu0
  %v959 = vadd.f32 0.0, %v958
  %960 = vmatmul.bf16.gmra.mxu0 %v911
  %v961 = vpop.f32.mrf.mxu0
  %v962 = vadd.f32 0.0, %v961
  %v963 = vpop.f32.mrf.mxu0
  %v964 = vadd.f32 0.0, %v963
  %965 = vmatmul.bf16.gmra.mxu0 %v914
  %v966 = vpop.f32.mrf.mxu0
  %v967 = vadd.f32 0.0, %v966
  %v968 = vpop.f32.mrf.mxu0
  %v969 = vadd.f32 0.0, %v968
  %970 = vdwg.mxu0
  %971 = vmatpush.bf16.msra.mxu0 0
  %972 = vmatpush.bf16.msra.mxu0 0
  %973 = vmatpush.bf16.msra.mxu0 0
  %974 = vmatpush.bf16.msra.mxu0 0
  %975 = vmatpush.bf16.msra.mxu0 0
  %976 = vmatpush.bf16.msra.mxu0 0
  %977 = vmatpush.bf16.msra.mxu0 0
  %978 = vmatpush.bf16.msra.mxu0 %v920
  %979 = vmatmul.bf16.gmra.mxu0 %v893
  %v980 = vpop.f32.mrf.mxu0
  %v981 = vadd.f32 0.0, %v980
  %v982 = vpop.f32.mrf.mxu0
  %v983 = vadd.f32 0.0, %v982
  %984 = vmatmul.bf16.gmra.mxu0 %v896
  %v985 = vpop.f32.mrf.mxu0
  %v986 = vadd.f32 0.0, %v985
  %v987 = vpop.f32.mrf.mxu0
  %v988 = vadd.f32 0.0, %v987
  %989 = vmatmul.bf16.gmra.mxu0 %v899
  %v990 = vpop.f32.mrf.mxu0
  %v991 = vadd.f32 0.0, %v990
  %v992 = vpop.f32.mrf.mxu0
  %v993 = vadd.f32 0.0, %v992
  %994 = vmatmul.bf16.gmra.mxu0 %v902
  %v995 = vpop.f32.mrf.mxu0
  %v996 = vadd.f32 0.0, %v995
  %v997 = vpop.f32.mrf.mxu0
  %v998 = vadd.f32 0.0, %v997
  %999 = vmatmul.bf16.gmra.mxu0 %v905
  %v1000 = vpop.f32.mrf.mxu0
  %v1001 = vadd.f32 0.0, %v1000
  %v1002 = vpop.f32.mrf.mxu0
  %v1003 = vadd.f32 0.0, %v1002
  %1004 = vmatmul.bf16.gmra.mxu0 %v908
  %v1005 = vpop.f32.mrf.mxu0
  %v1006 = vadd.f32 0.0, %v1005
  %v1007 = vpop.f32.mrf.mxu0
  %v1008 = vadd.f32 0.0, %v1007
  %1009 = vmatmul.bf16.gmra.mxu0 %v911
  %v1010 = vpop.f32.mrf.mxu0
  %v1011 = vadd.f32 0.0, %v1010
  %v1012 = vpop.f32.mrf.mxu0
  %v1013 = vadd.f32 0.0, %v1012
  %1014 = vmatmul.bf16.gmra.mxu0 %v914
  %v1015 = vpop.f32.mrf.mxu0
  %v1016 = vadd.f32 0.0, %v1015
  %v1017 = vpop.f32.mrf.mxu0
  %v1018 = vadd.f32 0.0, %v1017
  %1019 = vdwg.mxu0
  %v1020 = vadd.f32 %v692, %v932
  %v1021 = vadd.f32 %v741, %v981
  %v1022 = vadd.f32 %v694, %v934
  %v1023 = vadd.f32 %v743, %v983
  %v1024 = vadd.f32 %v697, %v937
  %v1025 = vadd.f32 %v746, %v986
  %v1026 = vadd.f32 %v699, %v939
  %v1027 = vadd.f32 %v748, %v988
  %v1028 = vadd.f32 %v702, %v942
  %v1029 = vadd.f32 %v751, %v991
  %v1030 = vadd.f32 %v704, %v944
  %v1031 = vadd.f32 %v753, %v993
  %v1032 = vadd.f32 %v707, %v947
  %v1033 = vadd.f32 %v756, %v996
  %v1034 = vadd.f32 %v709, %v949
  %v1035 = vadd.f32 %v758, %v998
  %v1036 = vadd.f32 %v712, %v952
  %v1037 = vadd.f32 %v761, %v1001
  %v1038 = vadd.f32 %v714, %v954
  %v1039 = vadd.f32 %v763, %v1003
  %v1040 = vadd.f32 %v717, %v957
  %v1041 = vadd.f32 %v766, %v1006
  %v1042 = vadd.f32 %v719, %v959
  %v1043 = vadd.f32 %v768, %v1008
  %v1044 = vadd.f32 %v722, %v962
  %v1045 = vadd.f32 %v771, %v1011
  %v1046 = vadd.f32 %v724, %v964
  %v1047 = vadd.f32 %v773, %v1013
  %v1048 = vadd.f32 %v727, %v967
  %v1049 = vadd.f32 %v776, %v1016
  %v1050 = vadd.f32 %v729, %v969
  %v1051 = vadd.f32 %v778, %v1018
  %vm1052 = vsmask.f32 2304
  %vm1053 = vsmask.f32 6416
  %vm1054 = vmor %vm1052, %vm1053
  %v1055 = vrot.slane %v225, 5
  %v1056 = vrot.slane %v228, 6
  %v1057 = vor.u32 %v1055, %v1056
  %v1058 = vrot.slane %v1057, 4
  %v1059 = vshrl.u32 %v190, 16
  %v1061 = vrot.slane %v1059, 5
  %v1062 = vrot.slane %v234, 6
  %v1063 = vor.u32 %v1061, %v1062
  %v1064 = vsel %vm1054, %v1058, %v1063
  %v1065 = vrot.slane %v239, 5
  %v1066 = vrot.slane %v242, 6
  %v1067 = vor.u32 %v1065, %v1066
  %v1068 = vrot.slane %v1067, 4
  %v1069 = vshrl.u32 %v192, 16
  %v1071 = vrot.slane %v1069, 5
  %v1072 = vrot.slane %v248, 6
  %v1073 = vor.u32 %v1071, %v1072
  %v1074 = vsel %vm1054, %v1068, %v1073
  %v1075 = vrot.slane %v253, 5
  %v1076 = vrot.slane %v256, 6
  %v1077 = vor.u32 %v1075, %v1076
  %v1078 = vrot.slane %v1077, 4
  %v1079 = vshrl.u32 %v194, 16
  %v1081 = vrot.slane %v1079, 5
  %v1082 = vrot.slane %v262, 6
  %v1083 = vor.u32 %v1081, %v1082
  %v1084 = vsel %vm1054, %v1078, %v1083
  %v1085 = vrot.slane %v267, 5
  %v1086 = vrot.slane %v270, 6
  %v1087 = vor.u32 %v1085, %v1086
  %v1088 = vrot.slane %v1087, 4
  %v1089 = vshrl.u32 %v196, 16
  %v1091 = vrot.slane %v1089, 5
  %v1092 = vrot.slane %v276, 6
  %v1093 = vor.u32 %v1091, %v1092
  %v1094 = vsel %vm1054, %v1088, %v1093
  %v1095 = vrot.slane %v281, 5
  %v1096 = vrot.slane %v284, 6
  %v1097 = vor.u32 %v1095, %v1096
  %v1098 = vrot.slane %v1097, 4
  %v1099 = vshrl.u32 %v198, 16
  %v1101 = vrot.slane %v1099, 5
  %v1102 = vrot.slane %v290, 6
  %v1103 = vor.u32 %v1101, %v1102
  %v1104 = vsel %vm1054, %v1098, %v1103
  %v1105 = vrot.slane %v295, 5
  %v1106 = vrot.slane %v298, 6
  %v1107 = vor.u32 %v1105, %v1106
  %v1108 = vrot.slane %v1107, 4
  %v1109 = vshrl.u32 %v200, 16
  %v1111 = vrot.slane %v1109, 5
  %v1112 = vrot.slane %v304, 6
  %v1113 = vor.u32 %v1111, %v1112
  %v1114 = vsel %vm1054, %v1108, %v1113
  %v1115 = vrot.slane %v309, 5
  %v1116 = vrot.slane %v312, 6
  %v1117 = vor.u32 %v1115, %v1116
  %v1118 = vrot.slane %v1117, 4
  %v1119 = vshrl.u32 %v202, 16
  %v1121 = vrot.slane %v1119, 5
  %v1122 = vrot.slane %v318, 6
  %v1123 = vor.u32 %v1121, %v1122
  %v1124 = vsel %vm1054, %v1118, %v1123
  %v1125 = vrot.slane %v323, 5
  %v1126 = vrot.slane %v326, 6
  %v1127 = vor.u32 %v1125, %v1126
  %v1128 = vrot.slane %v1127, 4
  %v1129 = vshrl.u32 %v204, 16
  %v1131 = vrot.slane %v1129, 5
  %v1132 = vrot.slane %v332, 6
  %v1133 = vor.u32 %v1131, %v1132
  %v1134 = vsel %vm1054, %v1128, %v1133
  %v1135 = vrot.slane %v337, 5
  %v1136 = vrot.slane %v340, 6
  %v1137 = vor.u32 %v1135, %v1136
  %v1138 = vrot.slane %v1137, 4
  %v1139 = vshrl.u32 %v206, 16
  %v1141 = vrot.slane %v1139, 5
  %v1142 = vrot.slane %v346, 6
  %v1143 = vor.u32 %v1141, %v1142
  %v1144 = vsel %vm1054, %v1138, %v1143
  %v1145 = vrot.slane %v351, 5
  %v1146 = vrot.slane %v354, 6
  %v1147 = vor.u32 %v1145, %v1146
  %v1148 = vrot.slane %v1147, 4
  %v1149 = vshrl.u32 %v208, 16
  %v1151 = vrot.slane %v1149, 5
  %v1152 = vrot.slane %v360, 6
  %v1153 = vor.u32 %v1151, %v1152
  %v1154 = vsel %vm1054, %v1148, %v1153
  %v1155 = vrot.slane %v365, 5
  %v1156 = vrot.slane %v368, 6
  %v1157 = vor.u32 %v1155, %v1156
  %v1158 = vrot.slane %v1157, 4
  %v1159 = vshrl.u32 %v210, 16
  %v1161 = vrot.slane %v1159, 5
  %v1162 = vrot.slane %v374, 6
  %v1163 = vor.u32 %v1161, %v1162
  %v1164 = vsel %vm1054, %v1158, %v1163
  %v1165 = vrot.slane %v379, 5
  %v1166 = vrot.slane %v382, 6
  %v1167 = vor.u32 %v1165, %v1166
  %v1168 = vrot.slane %v1167, 4
  %v1169 = vshrl.u32 %v212, 16
  %v1171 = vrot.slane %v1169, 5
  %v1172 = vrot.slane %v388, 6
  %v1173 = vor.u32 %v1171, %v1172
  %v1174 = vsel %vm1054, %v1168, %v1173
  %v1175 = vrot.slane %v393, 5
  %v1176 = vrot.slane %v396, 6
  %v1177 = vor.u32 %v1175, %v1176
  %v1178 = vrot.slane %v1177, 4
  %v1179 = vshrl.u32 %v214, 16
  %v1181 = vrot.slane %v1179, 5
  %v1182 = vrot.slane %v402, 6
  %v1183 = vor.u32 %v1181, %v1182
  %v1184 = vsel %vm1054, %v1178, %v1183
  %v1185 = vrot.slane %v407, 5
  %v1186 = vrot.slane %v410, 6
  %v1187 = vor.u32 %v1185, %v1186
  %v1188 = vrot.slane %v1187, 4
  %v1189 = vshrl.u32 %v216, 16
  %v1191 = vrot.slane %v1189, 5
  %v1192 = vrot.slane %v416, 6
  %v1193 = vor.u32 %v1191, %v1192
  %v1194 = vsel %vm1054, %v1188, %v1193
  %v1195 = vrot.slane %v421, 5
  %v1196 = vrot.slane %v424, 6
  %v1197 = vor.u32 %v1195, %v1196
  %v1198 = vrot.slane %v1197, 4
  %v1199 = vshrl.u32 %v218, 16
  %v1201 = vrot.slane %v1199, 5
  %v1202 = vrot.slane %v430, 6
  %v1203 = vor.u32 %v1201, %v1202
  %v1204 = vsel %vm1054, %v1198, %v1203
  %v1205 = vrot.slane %v435, 5
  %v1206 = vrot.slane %v438, 6
  %v1207 = vor.u32 %v1205, %v1206
  %v1208 = vrot.slane %v1207, 4
  %v1209 = vshrl.u32 %v220, 16
  %v1211 = vrot.slane %v1209, 5
  %v1212 = vrot.slane %v444, 6
  %v1213 = vor.u32 %v1211, %v1212
  %v1214 = vsel %vm1054, %v1208, %v1213
  %v1215 = vunpack.c.l.b16 %v1064
  %v1216 = vunpack.c.l.b16 %v1074
  %v1217 = vunpack.c.l.b16 %v1084
  %v1218 = vunpack.c.l.b16 %v1094
  %v1219 = vunpack.c.l.b16 %v1104
  %v1220 = vunpack.c.l.b16 %v1114
  %v1221 = vunpack.c.l.b16 %v1124
  %v1222 = vunpack.c.l.b16 %v1134
  %v1223 = vunpack.c.l.b16 %v1144
  %v1224 = vunpack.c.l.b16 %v1154
  %v1225 = vunpack.c.l.b16 %v1164
  %v1226 = vunpack.c.l.b16 %v1174
  %v1227 = vunpack.c.l.b16 %v1184
  %v1228 = vunpack.c.l.b16 %v1194
  %v1229 = vunpack.c.l.b16 %v1204
  %v1230 = vunpack.c.l.b16 %v1214
  %v1231 = vpack.c.b16 %v1216, %v1215
  %v1232 = vpack.c.b16 %v1218, %v1217
  %v1233 = vpack.c.b16 %v1220, %v1219
  %v1234 = vpack.c.b16 %v1222, %v1221
  %v1235 = vpack.c.b16 %v1224, %v1223
  %v1236 = vpack.c.b16 %v1226, %v1225
  %v1237 = vpack.c.b16 %v1228, %v1227
  %v1238 = vpack.c.b16 %v1230, %v1229
  %v1240 = vunpack.c.l.b16 %v104
  %v1241 = vunpack.c.h.b16 %v104
  %v1242 = vpack.c.b16 %v1240, %v1240
  %v1243 = vpack.c.b16 %v1241, %v1241
  %v1245 = vsel %vm477, %v1231, 0
  %v1248 = vsel %vm477, %v1232, 0
  %v1251 = vsel %vm477, %v1233, 0
  %v1254 = vsel %vm477, %v1234, 0
  %v1257 = vsel %vm477, %v1235, 0
  %v1260 = vsel %vm477, %v1236, 0
  %v1263 = vsel %vm477, %v1237, 0
  %v1266 = vsel %vm477, %v1238, 0
  %v1269 = vsel %vm502, %v1242, 0
  %v1272 = vsel %vm502, %v1243, 0
  %1274 = vmatpush.bf16.msra.mxu0 0
  %1275 = vmatpush.bf16.msra.mxu0 0
  %1276 = vmatpush.bf16.msra.mxu0 0
  %1277 = vmatpush.bf16.msra.mxu0 0
  %1278 = vmatpush.bf16.msra.mxu0 0
  %1279 = vmatpush.bf16.msra.mxu0 0
  %1280 = vmatpush.bf16.msra.mxu0 0
  %1281 = vmatpush.bf16.msra.mxu0 %v1269
  %1282 = vmatmul.bf16.gmra.mxu0 %v1245
  %v1283 = vpop.f32.mrf.mxu0
  %v1284 = vadd.f32 0.0, %v1283
  %v1285 = vpop.f32.mrf.mxu0
  %v1286 = vadd.f32 0.0, %v1285
  %1287 = vmatmul.bf16.gmra.mxu0 %v1248
  %v1288 = vpop.f32.mrf.mxu0
  %v1289 = vadd.f32 0.0, %v1288
  %v1290 = vpop.f32.mrf.mxu0
  %v1291 = vadd.f32 0.0, %v1290
  %1292 = vmatmul.bf16.gmra.mxu0 %v1251
  %v1293 = vpop.f32.mrf.mxu0
  %v1294 = vadd.f32 0.0, %v1293
  %v1295 = vpop.f32.mrf.mxu0
  %v1296 = vadd.f32 0.0, %v1295
  %1297 = vmatmul.bf16.gmra.mxu0 %v1254
  %v1298 = vpop.f32.mrf.mxu0
  %v1299 = vadd.f32 0.0, %v1298
  %v1300 = vpop.f32.mrf.mxu0
  %v1301 = vadd.f32 0.0, %v1300
  %1302 = vmatmul.bf16.gmra.mxu0 %v1257
  %v1303 = vpop.f32.mrf.mxu0
  %v1304 = vadd.f32 0.0, %v1303
  %v1305 = vpop.f32.mrf.mxu0
  %v1306 = vadd.f32 0.0, %v1305
  %1307 = vmatmul.bf16.gmra.mxu0 %v1260
  %v1308 = vpop.f32.mrf.mxu0
  %v1309 = vadd.f32 0.0, %v1308
  %v1310 = vpop.f32.mrf.mxu0
  %v1311 = vadd.f32 0.0, %v1310
  %1312 = vmatmul.bf16.gmra.mxu0 %v1263
  %v1313 = vpop.f32.mrf.mxu0
  %v1314 = vadd.f32 0.0, %v1313
  %v1315 = vpop.f32.mrf.mxu0
  %v1316 = vadd.f32 0.0, %v1315
  %1317 = vmatmul.bf16.gmra.mxu0 %v1266
  %v1318 = vpop.f32.mrf.mxu0
  %v1319 = vadd.f32 0.0, %v1318
  %v1320 = vpop.f32.mrf.mxu0
  %v1321 = vadd.f32 0.0, %v1320
  %1322 = vdwg.mxu0
  %1323 = vmatpush.bf16.msra.mxu0 0
  %1324 = vmatpush.bf16.msra.mxu0 0
  %1325 = vmatpush.bf16.msra.mxu0 0
  %1326 = vmatpush.bf16.msra.mxu0 0
  %1327 = vmatpush.bf16.msra.mxu0 0
  %1328 = vmatpush.bf16.msra.mxu0 0
  %1329 = vmatpush.bf16.msra.mxu0 0
  %1330 = vmatpush.bf16.msra.mxu0 %v1272
  %1331 = vmatmul.bf16.gmra.mxu0 %v1245
  %v1332 = vpop.f32.mrf.mxu0
  %v1333 = vadd.f32 0.0, %v1332
  %v1334 = vpop.f32.mrf.mxu0
  %v1335 = vadd.f32 0.0, %v1334
  %1336 = vmatmul.bf16.gmra.mxu0 %v1248
  %v1337 = vpop.f32.mrf.mxu0
  %v1338 = vadd.f32 0.0, %v1337
  %v1339 = vpop.f32.mrf.mxu0
  %v1340 = vadd.f32 0.0, %v1339
  %1341 = vmatmul.bf16.gmra.mxu0 %v1251
  %v1342 = vpop.f32.mrf.mxu0
  %v1343 = vadd.f32 0.0, %v1342
  %v1344 = vpop.f32.mrf.mxu0
  %v1345 = vadd.f32 0.0, %v1344
  %1346 = vmatmul.bf16.gmra.mxu0 %v1254
  %v1347 = vpop.f32.mrf.mxu0
  %v1348 = vadd.f32 0.0, %v1347
  %v1349 = vpop.f32.mrf.mxu0
  %v1350 = vadd.f32 0.0, %v1349
  %1351 = vmatmul.bf16.gmra.mxu0 %v1257
  %v1352 = vpop.f32.mrf.mxu0
  %v1353 = vadd.f32 0.0, %v1352
  %v1354 = vpop.f32.mrf.mxu0
  %v1355 = vadd.f32 0.0, %v1354
  %1356 = vmatmul.bf16.gmra.mxu0 %v1260
  %v1357 = vpop.f32.mrf.mxu0
  %v1358 = vadd.f32 0.0, %v1357
  %v1359 = vpop.f32.mrf.mxu0
  %v1360 = vadd.f32 0.0, %v1359
  %1361 = vmatmul.bf16.gmra.mxu0 %v1263
  %v1362 = vpop.f32.mrf.mxu0
  %v1363 = vadd.f32 0.0, %v1362
  %v1364 = vpop.f32.mrf.mxu0
  %v1365 = vadd.f32 0.0, %v1364
  %1366 = vmatmul.bf16.gmra.mxu0 %v1266
  %v1367 = vpop.f32.mrf.mxu0
  %v1368 = vadd.f32 0.0, %v1367
  %v1369 = vpop.f32.mrf.mxu0
  %v1370 = vadd.f32 0.0, %v1369
  %1371 = vdwg.mxu0
  %v1372 = vadd.f32 %v1020, %v1284
  %v1373 = vadd.f32 %v1021, %v1333
  %v1374 = vadd.f32 %v1022, %v1286
  %v1375 = vadd.f32 %v1023, %v1335
  %v1376 = vadd.f32 %v1024, %v1289
  %v1377 = vadd.f32 %v1025, %v1338
  %v1378 = vadd.f32 %v1026, %v1291
  %v1379 = vadd.f32 %v1027, %v1340
  %v1380 = vadd.f32 %v1028, %v1294
  %v1381 = vadd.f32 %v1029, %v1343
  %v1382 = vadd.f32 %v1030, %v1296
  %v1383 = vadd.f32 %v1031, %v1345
  %v1384 = vadd.f32 %v1032, %v1299
  %v1385 = vadd.f32 %v1033, %v1348
  %v1386 = vadd.f32 %v1034, %v1301
  %v1387 = vadd.f32 %v1035, %v1350
  %v1388 = vadd.f32 %v1036, %v1304
  %v1389 = vadd.f32 %v1037, %v1353
  %v1390 = vadd.f32 %v1038, %v1306
  %v1391 = vadd.f32 %v1039, %v1355
  %v1392 = vadd.f32 %v1040, %v1309
  %v1393 = vadd.f32 %v1041, %v1358
  %v1394 = vadd.f32 %v1042, %v1311
  %v1395 = vadd.f32 %v1043, %v1360
  %v1396 = vadd.f32 %v1044, %v1314
  %v1397 = vadd.f32 %v1045, %v1363
  %v1398 = vadd.f32 %v1046, %v1316
  %v1399 = vadd.f32 %v1047, %v1365
  %v1400 = vadd.f32 %v1048, %v1319
  %v1401 = vadd.f32 %v1049, %v1368
  %v1402 = vadd.f32 %v1050, %v1321
  %v1403 = vadd.f32 %v1051, %v1370
  %vm1404 = vcmask 1041408
  %vm1405 = vcmask 1045508
  %vm1406 = vmor %vm1404, %vm1405
  %v1407 = vrot.slane %v189, 6
  %v1408 = vrot.slane %v1407, 4
  %v1409 = vrot.slane %v190, 6
  %v1410 = vsel %vm1406, %v1408, %v1409
  %v1411 = vrot.slane %v191, 6
  %v1412 = vrot.slane %v1411, 4
  %v1413 = vrot.slane %v192, 6
  %v1414 = vsel %vm1406, %v1412, %v1413
  %v1415 = vrot.slane %v193, 6
  %v1416 = vrot.slane %v1415, 4
  %v1417 = vrot.slane %v194, 6
  %v1418 = vsel %vm1406, %v1416, %v1417
  %v1419 = vrot.slane %v195, 6
  %v1420 = vrot.slane %v1419, 4
  %v1421 = vrot.slane %v196, 6
  %v1422 = vsel %vm1406, %v1420, %v1421
  %v1423 = vrot.slane %v197, 6
  %v1424 = vrot.slane %v1423, 4
  %v1425 = vrot.slane %v198, 6
  %v1426 = vsel %vm1406, %v1424, %v1425
  %v1427 = vrot.slane %v199, 6
  %v1428 = vrot.slane %v1427, 4
  %v1429 = vrot.slane %v200, 6
  %v1430 = vsel %vm1406, %v1428, %v1429
  %v1431 = vrot.slane %v201, 6
  %v1432 = vrot.slane %v1431, 4
  %v1433 = vrot.slane %v202, 6
  %v1434 = vsel %vm1406, %v1432, %v1433
  %v1435 = vrot.slane %v203, 6
  %v1436 = vrot.slane %v1435, 4
  %v1437 = vrot.slane %v204, 6
  %v1438 = vsel %vm1406, %v1436, %v1437
  %v1439 = vrot.slane %v205, 6
  %v1440 = vrot.slane %v1439, 4
  %v1441 = vrot.slane %v206, 6
  %v1442 = vsel %vm1406, %v1440, %v1441
  %v1443 = vrot.slane %v207, 6
  %v1444 = vrot.slane %v1443, 4
  %v1445 = vrot.slane %v208, 6
  %v1446 = vsel %vm1406, %v1444, %v1445
  %v1447 = vrot.slane %v209, 6
  %v1448 = vrot.slane %v1447, 4
  %v1449 = vrot.slane %v210, 6
  %v1450 = vsel %vm1406, %v1448, %v1449
  %v1451 = vrot.slane %v211, 6
  %v1452 = vrot.slane %v1451, 4
  %v1453 = vrot.slane %v212, 6
  %v1454 = vsel %vm1406, %v1452, %v1453
  %v1455 = vrot.slane %v213, 6
  %v1456 = vrot.slane %v1455, 4
  %v1457 = vrot.slane %v214, 6
  %v1458 = vsel %vm1406, %v1456, %v1457
  %v1459 = vrot.slane %v215, 6
  %v1460 = vrot.slane %v1459, 4
  %v1461 = vrot.slane %v216, 6
  %v1462 = vsel %vm1406, %v1460, %v1461
  %v1463 = vrot.slane %v217, 6
  %v1464 = vrot.slane %v1463, 4
  %v1465 = vrot.slane %v218, 6
  %v1466 = vsel %vm1406, %v1464, %v1465
  %v1467 = vrot.slane %v219, 6
  %v1468 = vrot.slane %v1467, 4
  %v1469 = vrot.slane %v220, 6
  %v1470 = vsel %vm1406, %v1468, %v1469
  %v1471 = vunpack.c.l.b16 %v1410
  %v1472 = vunpack.c.l.b16 %v1414
  %v1473 = vunpack.c.l.b16 %v1418
  %v1474 = vunpack.c.l.b16 %v1422
  %v1475 = vunpack.c.l.b16 %v1426
  %v1476 = vunpack.c.l.b16 %v1430
  %v1477 = vunpack.c.l.b16 %v1434
  %v1478 = vunpack.c.l.b16 %v1438
  %v1479 = vunpack.c.l.b16 %v1442
  %v1480 = vunpack.c.l.b16 %v1446
  %v1481 = vunpack.c.l.b16 %v1450
  %v1482 = vunpack.c.l.b16 %v1454
  %v1483 = vunpack.c.l.b16 %v1458
  %v1484 = vunpack.c.l.b16 %v1462
  %v1485 = vunpack.c.l.b16 %v1466
  %v1486 = vunpack.c.l.b16 %v1470
  %v1487 = vpack.c.b16 %v1472, %v1471
  %v1488 = vpack.c.b16 %v1474, %v1473
  %v1489 = vpack.c.b16 %v1476, %v1475
  %v1490 = vpack.c.b16 %v1478, %v1477
  %v1491 = vpack.c.b16 %v1480, %v1479
  %v1492 = vpack.c.b16 %v1482, %v1481
  %v1493 = vpack.c.b16 %v1484, %v1483
  %v1494 = vpack.c.b16 %v1486, %v1485
  %v1496 = vunpack.c.l.b16 %v105
  %v1497 = vunpack.c.h.b16 %v105
  %v1498 = vpack.c.b16 %v1496, %v1496
  %v1499 = vpack.c.b16 %v1497, %v1497
  %v1501 = vsel %vm477, %v1487, 0
  %v1504 = vsel %vm477, %v1488, 0
  %v1507 = vsel %vm477, %v1489, 0
  %v1510 = vsel %vm477, %v1490, 0
  %v1513 = vsel %vm477, %v1491, 0
  %v1516 = vsel %vm477, %v1492, 0
  %v1519 = vsel %vm477, %v1493, 0
  %v1522 = vsel %vm477, %v1494, 0
  %v1525 = vsel %vm502, %v1498, 0
  %v1528 = vsel %vm502, %v1499, 0
  %1530 = vmatpush.bf16.msra.mxu0 0
  %1531 = vmatpush.bf16.msra.mxu0 0
  %1532 = vmatpush.bf16.msra.mxu0 0
  %1533 = vmatpush.bf16.msra.mxu0 0
  %1534 = vmatpush.bf16.msra.mxu0 0
  %1535 = vmatpush.bf16.msra.mxu0 0
  %1536 = vmatpush.bf16.msra.mxu0 0
  %1537 = vmatpush.bf16.msra.mxu0 %v1525
  %1538 = vmatmul.bf16.gmra.mxu0 %v1501
  %v1539 = vpop.f32.mrf.mxu0
  %v1540 = vadd.f32 0.0, %v1539
  %v1541 = vpop.f32.mrf.mxu0
  %v1542 = vadd.f32 0.0, %v1541
  %1543 = vmatmul.bf16.gmra.mxu0 %v1504
  %v1544 = vpop.f32.mrf.mxu0
  %v1545 = vadd.f32 0.0, %v1544
  %v1546 = vpop.f32.mrf.mxu0
  %v1547 = vadd.f32 0.0, %v1546
  %1548 = vmatmul.bf16.gmra.mxu0 %v1507
  %v1549 = vpop.f32.mrf.mxu0
  %v1550 = vadd.f32 0.0, %v1549
  %v1551 = vpop.f32.mrf.mxu0
  %v1552 = vadd.f32 0.0, %v1551
  %1553 = vmatmul.bf16.gmra.mxu0 %v1510
  %v1554 = vpop.f32.mrf.mxu0
  %v1555 = vadd.f32 0.0, %v1554
  %v1556 = vpop.f32.mrf.mxu0
  %v1557 = vadd.f32 0.0, %v1556
  %1558 = vmatmul.bf16.gmra.mxu0 %v1513
  %v1559 = vpop.f32.mrf.mxu0
  %v1560 = vadd.f32 0.0, %v1559
  %v1561 = vpop.f32.mrf.mxu0
  %v1562 = vadd.f32 0.0, %v1561
  %1563 = vmatmul.bf16.gmra.mxu0 %v1516
  %v1564 = vpop.f32.mrf.mxu0
  %v1565 = vadd.f32 0.0, %v1564
  %v1566 = vpop.f32.mrf.mxu0
  %v1567 = vadd.f32 0.0, %v1566
  %1568 = vmatmul.bf16.gmra.mxu0 %v1519
  %v1569 = vpop.f32.mrf.mxu0
  %v1570 = vadd.f32 0.0, %v1569
  %v1571 = vpop.f32.mrf.mxu0
  %v1572 = vadd.f32 0.0, %v1571
  %1573 = vmatmul.bf16.gmra.mxu0 %v1522
  %v1574 = vpop.f32.mrf.mxu0
  %v1575 = vadd.f32 0.0, %v1574
  %v1576 = vpop.f32.mrf.mxu0
  %v1577 = vadd.f32 0.0, %v1576
  %1578 = vdwg.mxu0
  %1579 = vmatpush.bf16.msra.mxu0 0
  %1580 = vmatpush.bf16.msra.mxu0 0
  %1581 = vmatpush.bf16.msra.mxu0 0
  %1582 = vmatpush.bf16.msra.mxu0 0
  %1583 = vmatpush.bf16.msra.mxu0 0
  %1584 = vmatpush.bf16.msra.mxu0 0
  %1585 = vmatpush.bf16.msra.mxu0 0
  %1586 = vmatpush.bf16.msra.mxu0 %v1528
  %1587 = vmatmul.bf16.gmra.mxu0 %v1501
  %v1588 = vpop.f32.mrf.mxu0
  %v1589 = vadd.f32 0.0, %v1588
  %v1590 = vpop.f32.mrf.mxu0
  %v1591 = vadd.f32 0.0, %v1590
  %1592 = vmatmul.bf16.gmra.mxu0 %v1504
  %v1593 = vpop.f32.mrf.mxu0
  %v1594 = vadd.f32 0.0, %v1593
  %v1595 = vpop.f32.mrf.mxu0
  %v1596 = vadd.f32 0.0, %v1595
  %1597 = vmatmul.bf16.gmra.mxu0 %v1507
  %v1598 = vpop.f32.mrf.mxu0
  %v1599 = vadd.f32 0.0, %v1598
  %v1600 = vpop.f32.mrf.mxu0
  %v1601 = vadd.f32 0.0, %v1600
  %1602 = vmatmul.bf16.gmra.mxu0 %v1510
  %v1603 = vpop.f32.mrf.mxu0
  %v1604 = vadd.f32 0.0, %v1603
  %v1605 = vpop.f32.mrf.mxu0
  %v1606 = vadd.f32 0.0, %v1605
  %1607 = vmatmul.bf16.gmra.mxu0 %v1513
  %v1608 = vpop.f32.mrf.mxu0
  %v1609 = vadd.f32 0.0, %v1608
  %v1610 = vpop.f32.mrf.mxu0
  %v1611 = vadd.f32 0.0, %v1610
  %1612 = vmatmul.bf16.gmra.mxu0 %v1516
  %v1613 = vpop.f32.mrf.mxu0
  %v1614 = vadd.f32 0.0, %v1613
  %v1615 = vpop.f32.mrf.mxu0
  %v1616 = vadd.f32 0.0, %v1615
  %1617 = vmatmul.bf16.gmra.mxu0 %v1519
  %v1618 = vpop.f32.mrf.mxu0
  %v1619 = vadd.f32 0.0, %v1618
  %v1620 = vpop.f32.mrf.mxu0
  %v1621 = vadd.f32 0.0, %v1620
  %1622 = vmatmul.bf16.gmra.mxu0 %v1522
  %v1623 = vpop.f32.mrf.mxu0
  %v1624 = vadd.f32 0.0, %v1623
  %v1625 = vpop.f32.mrf.mxu0
  %v1626 = vadd.f32 0.0, %v1625
  %1627 = vdwg.mxu0
  %v1628 = vadd.f32 %v1372, %v1540
  %v1629 = vadd.f32 %v1373, %v1589
  %v1630 = vadd.f32 %v1374, %v1542
  %v1631 = vadd.f32 %v1375, %v1591
  %v1632 = vadd.f32 %v1376, %v1545
  %v1633 = vadd.f32 %v1377, %v1594
  %v1634 = vadd.f32 %v1378, %v1547
  %v1635 = vadd.f32 %v1379, %v1596
  %v1636 = vadd.f32 %v1380, %v1550
  %v1637 = vadd.f32 %v1381, %v1599
  %v1638 = vadd.f32 %v1382, %v1552
  %v1639 = vadd.f32 %v1383, %v1601
  %v1640 = vadd.f32 %v1384, %v1555
  %v1641 = vadd.f32 %v1385, %v1604
  %v1642 = vadd.f32 %v1386, %v1557
  %v1643 = vadd.f32 %v1387, %v1606
  %v1644 = vadd.f32 %v1388, %v1560
  %v1645 = vadd.f32 %v1389, %v1609
  %v1646 = vadd.f32 %v1390, %v1562
  %v1647 = vadd.f32 %v1391, %v1611
  %v1648 = vadd.f32 %v1392, %v1565
  %v1649 = vadd.f32 %v1393, %v1614
  %v1650 = vadd.f32 %v1394, %v1567
  %v1651 = vadd.f32 %v1395, %v1616
  %v1652 = vadd.f32 %v1396, %v1570
  %v1653 = vadd.f32 %v1397, %v1619
  %v1654 = vadd.f32 %v1398, %v1572
  %v1655 = vadd.f32 %v1399, %v1621
  %v1656 = vadd.f32 %v1400, %v1575
  %v1657 = vadd.f32 %v1401, %v1624
  %v1658 = vadd.f32 %v1402, %v1577
  %v1659 = vadd.f32 %v1403, %v1626
  %vm1660 = vsmask.f32 1280
  %vm1661 = vsmask.f32 5392
  %vm1662 = vmor %vm1660, %vm1661
  %v1663 = vrot.slane %v225, 6
  %v1664 = vrot.slane %v228, 7
  %v1665 = vor.u32 %v1663, %v1664
  %v1666 = vrot.slane %v1665, 4
  %v1667 = vrot.slane %v1059, 6
  %v1668 = vrot.slane %v234, 7
  %v1669 = vor.u32 %v1667, %v1668
  %v1670 = vsel %vm1662, %v1666, %v1669
  %v1671 = vrot.slane %v239, 6
  %v1672 = vrot.slane %v242, 7
  %v1673 = vor.u32 %v1671, %v1672
  %v1674 = vrot.slane %v1673, 4
  %v1675 = vrot.slane %v1069, 6
  %v1676 = vrot.slane %v248, 7
  %v1677 = vor.u32 %v1675, %v1676
  %v1678 = vsel %vm1662, %v1674, %v1677
  %v1679 = vrot.slane %v253, 6
  %v1680 = vrot.slane %v256, 7
  %v1681 = vor.u32 %v1679, %v1680
  %v1682 = vrot.slane %v1681, 4
  %v1683 = vrot.slane %v1079, 6
  %v1684 = vrot.slane %v262, 7
  %v1685 = vor.u32 %v1683, %v1684
  %v1686 = vsel %vm1662, %v1682, %v1685
  %v1687 = vrot.slane %v267, 6
  %v1688 = vrot.slane %v270, 7
  %v1689 = vor.u32 %v1687, %v1688
  %v1690 = vrot.slane %v1689, 4
  %v1691 = vrot.slane %v1089, 6
  %v1692 = vrot.slane %v276, 7
  %v1693 = vor.u32 %v1691, %v1692
  %v1694 = vsel %vm1662, %v1690, %v1693
  %v1695 = vrot.slane %v281, 6
  %v1696 = vrot.slane %v284, 7
  %v1697 = vor.u32 %v1695, %v1696
  %v1698 = vrot.slane %v1697, 4
  %v1699 = vrot.slane %v1099, 6
  %v1700 = vrot.slane %v290, 7
  %v1701 = vor.u32 %v1699, %v1700
  %v1702 = vsel %vm1662, %v1698, %v1701
  %v1703 = vrot.slane %v295, 6
  %v1704 = vrot.slane %v298, 7
  %v1705 = vor.u32 %v1703, %v1704
  %v1706 = vrot.slane %v1705, 4
  %v1707 = vrot.slane %v1109, 6
  %v1708 = vrot.slane %v304, 7
  %v1709 = vor.u32 %v1707, %v1708
  %v1710 = vsel %vm1662, %v1706, %v1709
  %v1711 = vrot.slane %v309, 6
  %v1712 = vrot.slane %v312, 7
  %v1713 = vor.u32 %v1711, %v1712
  %v1714 = vrot.slane %v1713, 4
  %v1715 = vrot.slane %v1119, 6
  %v1716 = vrot.slane %v318, 7
  %v1717 = vor.u32 %v1715, %v1716
  %v1718 = vsel %vm1662, %v1714, %v1717
  %v1719 = vrot.slane %v323, 6
  %v1720 = vrot.slane %v326, 7
  %v1721 = vor.u32 %v1719, %v1720
  %v1722 = vrot.slane %v1721, 4
  %v1723 = vrot.slane %v1129, 6
  %v1724 = vrot.slane %v332, 7
  %v1725 = vor.u32 %v1723, %v1724
  %v1726 = vsel %vm1662, %v1722, %v1725
  %v1727 = vrot.slane %v337, 6
  %v1728 = vrot.slane %v340, 7
  %v1729 = vor.u32 %v1727, %v1728
  %v1730 = vrot.slane %v1729, 4
  %v1731 = vrot.slane %v1139, 6
  %v1732 = vrot.slane %v346, 7
  %v1733 = vor.u32 %v1731, %v1732
  %v1734 = vsel %vm1662, %v1730, %v1733
  %v1735 = vrot.slane %v351, 6
  %v1736 = vrot.slane %v354, 7
  %v1737 = vor.u32 %v1735, %v1736
  %v1738 = vrot.slane %v1737, 4
  %v1739 = vrot.slane %v1149, 6
  %v1740 = vrot.slane %v360, 7
  %v1741 = vor.u32 %v1739, %v1740
  %v1742 = vsel %vm1662, %v1738, %v1741
  %v1743 = vrot.slane %v365, 6
  %v1744 = vrot.slane %v368, 7
  %v1745 = vor.u32 %v1743, %v1744
  %v1746 = vrot.slane %v1745, 4
  %v1747 = vrot.slane %v1159, 6
  %v1748 = vrot.slane %v374, 7
  %v1749 = vor.u32 %v1747, %v1748
  %v1750 = vsel %vm1662, %v1746, %v1749
  %v1751 = vrot.slane %v379, 6
  %v1752 = vrot.slane %v382, 7
  %v1753 = vor.u32 %v1751, %v1752
  %v1754 = vrot.slane %v1753, 4
  %v1755 = vrot.slane %v1169, 6
  %v1756 = vrot.slane %v388, 7
  %v1757 = vor.u32 %v1755, %v1756
  %v1758 = vsel %vm1662, %v1754, %v1757
  %v1759 = vrot.slane %v393, 6
  %v1760 = vrot.slane %v396, 7
  %v1761 = vor.u32 %v1759, %v1760
  %v1762 = vrot.slane %v1761, 4
  %v1763 = vrot.slane %v1179, 6
  %v1764 = vrot.slane %v402, 7
  %v1765 = vor.u32 %v1763, %v1764
  %v1766 = vsel %vm1662, %v1762, %v1765
  %v1767 = vrot.slane %v407, 6
  %v1768 = vrot.slane %v410, 7
  %v1769 = vor.u32 %v1767, %v1768
  %v1770 = vrot.slane %v1769, 4
  %v1771 = vrot.slane %v1189, 6
  %v1772 = vrot.slane %v416, 7
  %v1773 = vor.u32 %v1771, %v1772
  %v1774 = vsel %vm1662, %v1770, %v1773
  %v1775 = vrot.slane %v421, 6
  %v1776 = vrot.slane %v424, 7
  %v1777 = vor.u32 %v1775, %v1776
  %v1778 = vrot.slane %v1777, 4
  %v1779 = vrot.slane %v1199, 6
  %v1780 = vrot.slane %v430, 7
  %v1781 = vor.u32 %v1779, %v1780
  %v1782 = vsel %vm1662, %v1778, %v1781
  %v1783 = vrot.slane %v435, 6
  %v1784 = vrot.slane %v438, 7
  %v1785 = vor.u32 %v1783, %v1784
  %v1786 = vrot.slane %v1785, 4
  %v1787 = vrot.slane %v1209, 6
  %v1788 = vrot.slane %v444, 7
  %v1789 = vor.u32 %v1787, %v1788
  %v1790 = vsel %vm1662, %v1786, %v1789
  %v1791 = vunpack.c.l.b16 %v1670
  %v1792 = vunpack.c.l.b16 %v1678
  %v1793 = vunpack.c.l.b16 %v1686
  %v1794 = vunpack.c.l.b16 %v1694
  %v1795 = vunpack.c.l.b16 %v1702
  %v1796 = vunpack.c.l.b16 %v1710
  %v1797 = vunpack.c.l.b16 %v1718
  %v1798 = vunpack.c.l.b16 %v1726
  %v1799 = vunpack.c.l.b16 %v1734
  %v1800 = vunpack.c.l.b16 %v1742
  %v1801 = vunpack.c.l.b16 %v1750
  %v1802 = vunpack.c.l.b16 %v1758
  %v1803 = vunpack.c.l.b16 %v1766
  %v1804 = vunpack.c.l.b16 %v1774
  %v1805 = vunpack.c.l.b16 %v1782
  %v1806 = vunpack.c.l.b16 %v1790
  %v1807 = vpack.c.b16 %v1792, %v1791
  %v1808 = vpack.c.b16 %v1794, %v1793
  %v1809 = vpack.c.b16 %v1796, %v1795
  %v1810 = vpack.c.b16 %v1798, %v1797
  %v1811 = vpack.c.b16 %v1800, %v1799
  %v1812 = vpack.c.b16 %v1802, %v1801
  %v1813 = vpack.c.b16 %v1804, %v1803
  %v1814 = vpack.c.b16 %v1806, %v1805
  %v1816 = vunpack.c.l.b16 %v106
  %v1817 = vunpack.c.h.b16 %v106
  %v1818 = vpack.c.b16 %v1816, %v1816
  %v1819 = vpack.c.b16 %v1817, %v1817
  %v1821 = vsel %vm477, %v1807, 0
  %v1824 = vsel %vm477, %v1808, 0
  %v1827 = vsel %vm477, %v1809, 0
  %v1830 = vsel %vm477, %v1810, 0
  %v1833 = vsel %vm477, %v1811, 0
  %v1836 = vsel %vm477, %v1812, 0
  %v1839 = vsel %vm477, %v1813, 0
  %v1842 = vsel %vm477, %v1814, 0
  %v1845 = vsel %vm502, %v1818, 0
  %v1848 = vsel %vm502, %v1819, 0
  %1850 = vmatpush.bf16.msra.mxu0 0
  %1851 = vmatpush.bf16.msra.mxu0 0
  %1852 = vmatpush.bf16.msra.mxu0 0
  %1853 = vmatpush.bf16.msra.mxu0 0
  %1854 = vmatpush.bf16.msra.mxu0 0
  %1855 = vmatpush.bf16.msra.mxu0 0
  %1856 = vmatpush.bf16.msra.mxu0 0
  %1857 = vmatpush.bf16.msra.mxu0 %v1845
  %1858 = vmatmul.bf16.gmra.mxu0 %v1821
  %v1859 = vpop.f32.mrf.mxu0
  %v1860 = vadd.f32 0.0, %v1859
  %v1861 = vpop.f32.mrf.mxu0
  %v1862 = vadd.f32 0.0, %v1861
  %1863 = vmatmul.bf16.gmra.mxu0 %v1824
  %v1864 = vpop.f32.mrf.mxu0
  %v1865 = vadd.f32 0.0, %v1864
  %v1866 = vpop.f32.mrf.mxu0
  %v1867 = vadd.f32 0.0, %v1866
  %1868 = vmatmul.bf16.gmra.mxu0 %v1827
  %v1869 = vpop.f32.mrf.mxu0
  %v1870 = vadd.f32 0.0, %v1869
  %v1871 = vpop.f32.mrf.mxu0
  %v1872 = vadd.f32 0.0, %v1871
  %1873 = vmatmul.bf16.gmra.mxu0 %v1830
  %v1874 = vpop.f32.mrf.mxu0
  %v1875 = vadd.f32 0.0, %v1874
  %v1876 = vpop.f32.mrf.mxu0
  %v1877 = vadd.f32 0.0, %v1876
  %1878 = vmatmul.bf16.gmra.mxu0 %v1833
  %v1879 = vpop.f32.mrf.mxu0
  %v1880 = vadd.f32 0.0, %v1879
  %v1881 = vpop.f32.mrf.mxu0
  %v1882 = vadd.f32 0.0, %v1881
  %1883 = vmatmul.bf16.gmra.mxu0 %v1836
  %v1884 = vpop.f32.mrf.mxu0
  %v1885 = vadd.f32 0.0, %v1884
  %v1886 = vpop.f32.mrf.mxu0
  %v1887 = vadd.f32 0.0, %v1886
  %1888 = vmatmul.bf16.gmra.mxu0 %v1839
  %v1889 = vpop.f32.mrf.mxu0
  %v1890 = vadd.f32 0.0, %v1889
  %v1891 = vpop.f32.mrf.mxu0
  %v1892 = vadd.f32 0.0, %v1891
  %1893 = vmatmul.bf16.gmra.mxu0 %v1842
  %v1894 = vpop.f32.mrf.mxu0
  %v1895 = vadd.f32 0.0, %v1894
  %v1896 = vpop.f32.mrf.mxu0
  %v1897 = vadd.f32 0.0, %v1896
  %1898 = vdwg.mxu0
  %1899 = vmatpush.bf16.msra.mxu0 0
  %1900 = vmatpush.bf16.msra.mxu0 0
  %1901 = vmatpush.bf16.msra.mxu0 0
  %1902 = vmatpush.bf16.msra.mxu0 0
  %1903 = vmatpush.bf16.msra.mxu0 0
  %1904 = vmatpush.bf16.msra.mxu0 0
  %1905 = vmatpush.bf16.msra.mxu0 0
  %1906 = vmatpush.bf16.msra.mxu0 %v1848
  %1907 = vmatmul.bf16.gmra.mxu0 %v1821
  %v1908 = vpop.f32.mrf.mxu0
  %v1909 = vadd.f32 0.0, %v1908
  %v1910 = vpop.f32.mrf.mxu0
  %v1911 = vadd.f32 0.0, %v1910
  %1912 = vmatmul.bf16.gmra.mxu0 %v1824
  %v1913 = vpop.f32.mrf.mxu0
  %v1914 = vadd.f32 0.0, %v1913
  %v1915 = vpop.f32.mrf.mxu0
  %v1916 = vadd.f32 0.0, %v1915
  %1917 = vmatmul.bf16.gmra.mxu0 %v1827
  %v1918 = vpop.f32.mrf.mxu0
  %v1919 = vadd.f32 0.0, %v1918
  %v1920 = vpop.f32.mrf.mxu0
  %v1921 = vadd.f32 0.0, %v1920
  %1922 = vmatmul.bf16.gmra.mxu0 %v1830
  %v1923 = vpop.f32.mrf.mxu0
  %v1924 = vadd.f32 0.0, %v1923
  %v1925 = vpop.f32.mrf.mxu0
  %v1926 = vadd.f32 0.0, %v1925
  %1927 = vmatmul.bf16.gmra.mxu0 %v1833
  %v1928 = vpop.f32.mrf.mxu0
  %v1929 = vadd.f32 0.0, %v1928
  %v1930 = vpop.f32.mrf.mxu0
  %v1931 = vadd.f32 0.0, %v1930
  %1932 = vmatmul.bf16.gmra.mxu0 %v1836
  %v1933 = vpop.f32.mrf.mxu0
  %v1934 = vadd.f32 0.0, %v1933
  %v1935 = vpop.f32.mrf.mxu0
  %v1936 = vadd.f32 0.0, %v1935
  %1937 = vmatmul.bf16.gmra.mxu0 %v1839
  %v1938 = vpop.f32.mrf.mxu0
  %v1939 = vadd.f32 0.0, %v1938
  %v1940 = vpop.f32.mrf.mxu0
  %v1941 = vadd.f32 0.0, %v1940
  %1942 = vmatmul.bf16.gmra.mxu0 %v1842
  %v1943 = vpop.f32.mrf.mxu0
  %v1944 = vadd.f32 0.0, %v1943
  %v1945 = vpop.f32.mrf.mxu0
  %v1946 = vadd.f32 0.0, %v1945
  %1947 = vdwg.mxu0
  %v1948 = vadd.f32 %v1628, %v1860
  %v1949 = vadd.f32 %v1629, %v1909
  %v1950 = vadd.f32 %v1630, %v1862
  %v1951 = vadd.f32 %v1631, %v1911
  %v1952 = vadd.f32 %v1632, %v1865
  %v1953 = vadd.f32 %v1633, %v1914
  %v1954 = vadd.f32 %v1634, %v1867
  %v1955 = vadd.f32 %v1635, %v1916
  %v1956 = vadd.f32 %v1636, %v1870
  %v1957 = vadd.f32 %v1637, %v1919
  %v1958 = vadd.f32 %v1638, %v1872
  %v1959 = vadd.f32 %v1639, %v1921
  %v1960 = vadd.f32 %v1640, %v1875
  %v1961 = vadd.f32 %v1641, %v1924
  %v1962 = vadd.f32 %v1642, %v1877
  %v1963 = vadd.f32 %v1643, %v1926
  %v1964 = vadd.f32 %v1644, %v1880
  %v1965 = vadd.f32 %v1645, %v1929
  %v1966 = vadd.f32 %v1646, %v1882
  %v1967 = vadd.f32 %v1647, %v1931
  %v1968 = vadd.f32 %v1648, %v1885
  %v1969 = vadd.f32 %v1649, %v1934
  %v1970 = vadd.f32 %v1650, %v1887
  %v1971 = vadd.f32 %v1651, %v1936
  %v1972 = vadd.f32 %v1652, %v1890
  %v1973 = vadd.f32 %v1653, %v1939
  %v1974 = vadd.f32 %v1654, %v1892
  %v1975 = vadd.f32 %v1655, %v1941
  %v1976 = vadd.f32 %v1656, %v1895
  %v1977 = vadd.f32 %v1657, %v1944
  %v1978 = vadd.f32 %v1658, %v1897
  %v1979 = vadd.f32 %v1659, %v1946
  %vm1980 = vcmask 1040384
  %vm1981 = vcmask 1044484
  %vm1982 = vmor %vm1980, %vm1981
  %v1983 = vrot.slane %v189, 7
  %v1984 = vrot.slane %v1983, 4
  %v1985 = vrot.slane %v190, 7
  %v1986 = vsel %vm1982, %v1984, %v1985
  %v1987 = vrot.slane %v191, 7
  %v1988 = vrot.slane %v1987, 4
  %v1989 = vrot.slane %v192, 7
  %v1990 = vsel %vm1982, %v1988, %v1989
  %v1991 = vrot.slane %v193, 7
  %v1992 = vrot.slane %v1991, 4
  %v1993 = vrot.slane %v194, 7
  %v1994 = vsel %vm1982, %v1992, %v1993
  %v1995 = vrot.slane %v195, 7
  %v1996 = vrot.slane %v1995, 4
  %v1997 = vrot.slane %v196, 7
  %v1998 = vsel %vm1982, %v1996, %v1997
  %v1999 = vrot.slane %v197, 7
  %v2000 = vrot.slane %v1999, 4
  %v2001 = vrot.slane %v198, 7
  %v2002 = vsel %vm1982, %v2000, %v2001
  %v2003 = vrot.slane %v199, 7
  %v2004 = vrot.slane %v2003, 4
  %v2005 = vrot.slane %v200, 7
  %v2006 = vsel %vm1982, %v2004, %v2005
  %v2007 = vrot.slane %v201, 7
  %v2008 = vrot.slane %v2007, 4
  %v2009 = vrot.slane %v202, 7
  %v2010 = vsel %vm1982, %v2008, %v2009
  %v2011 = vrot.slane %v203, 7
  %v2012 = vrot.slane %v2011, 4
  %v2013 = vrot.slane %v204, 7
  %v2014 = vsel %vm1982, %v2012, %v2013
  %v2015 = vrot.slane %v205, 7
  %v2016 = vrot.slane %v2015, 4
  %v2017 = vrot.slane %v206, 7
  %v2018 = vsel %vm1982, %v2016, %v2017
  %v2019 = vrot.slane %v207, 7
  %v2020 = vrot.slane %v2019, 4
  %v2021 = vrot.slane %v208, 7
  %v2022 = vsel %vm1982, %v2020, %v2021
  %v2023 = vrot.slane %v209, 7
  %v2024 = vrot.slane %v2023, 4
  %v2025 = vrot.slane %v210, 7
  %v2026 = vsel %vm1982, %v2024, %v2025
  %v2027 = vrot.slane %v211, 7
  %v2028 = vrot.slane %v2027, 4
  %v2029 = vrot.slane %v212, 7
  %v2030 = vsel %vm1982, %v2028, %v2029
  %v2031 = vrot.slane %v213, 7
  %v2032 = vrot.slane %v2031, 4
  %v2033 = vrot.slane %v214, 7
  %v2034 = vsel %vm1982, %v2032, %v2033
  %v2035 = vrot.slane %v215, 7
  %v2036 = vrot.slane %v2035, 4
  %v2037 = vrot.slane %v216, 7
  %v2038 = vsel %vm1982, %v2036, %v2037
  %v2039 = vrot.slane %v217, 7
  %v2040 = vrot.slane %v2039, 4
  %v2041 = vrot.slane %v218, 7
  %v2042 = vsel %vm1982, %v2040, %v2041
  %v2043 = vrot.slane %v219, 7
  %v2044 = vrot.slane %v2043, 4
  %v2045 = vrot.slane %v220, 7
  %v2046 = vsel %vm1982, %v2044, %v2045
  %v2047 = vunpack.c.l.b16 %v1986
  %v2048 = vunpack.c.l.b16 %v1990
  %v2049 = vunpack.c.l.b16 %v1994
  %v2050 = vunpack.c.l.b16 %v1998
  %v2051 = vunpack.c.l.b16 %v2002
  %v2052 = vunpack.c.l.b16 %v2006
  %v2053 = vunpack.c.l.b16 %v2010
  %v2054 = vunpack.c.l.b16 %v2014
  %v2055 = vunpack.c.l.b16 %v2018
  %v2056 = vunpack.c.l.b16 %v2022
  %v2057 = vunpack.c.l.b16 %v2026
  %v2058 = vunpack.c.l.b16 %v2030
  %v2059 = vunpack.c.l.b16 %v2034
  %v2060 = vunpack.c.l.b16 %v2038
  %v2061 = vunpack.c.l.b16 %v2042
  %v2062 = vunpack.c.l.b16 %v2046
  %v2063 = vpack.c.b16 %v2048, %v2047
  %v2064 = vpack.c.b16 %v2050, %v2049
  %v2065 = vpack.c.b16 %v2052, %v2051
  %v2066 = vpack.c.b16 %v2054, %v2053
  %v2067 = vpack.c.b16 %v2056, %v2055
  %v2068 = vpack.c.b16 %v2058, %v2057
  %v2069 = vpack.c.b16 %v2060, %v2059
  %v2070 = vpack.c.b16 %v2062, %v2061
  %v2072 = vunpack.c.l.b16 %v107
  %v2073 = vunpack.c.h.b16 %v107
  %v2074 = vpack.c.b16 %v2072, %v2072
  %v2075 = vpack.c.b16 %v2073, %v2073
  %v2077 = vsel %vm477, %v2063, 0
  %v2080 = vsel %vm477, %v2064, 0
  %v2083 = vsel %vm477, %v2065, 0
  %v2086 = vsel %vm477, %v2066, 0
  %v2089 = vsel %vm477, %v2067, 0
  %v2092 = vsel %vm477, %v2068, 0
  %v2095 = vsel %vm477, %v2069, 0
  %v2098 = vsel %vm477, %v2070, 0
  %v2101 = vsel %vm502, %v2074, 0
  %v2104 = vsel %vm502, %v2075, 0
  %2106 = vmatpush.bf16.msra.mxu0 0
  %2107 = vmatpush.bf16.msra.mxu0 0
  %2108 = vmatpush.bf16.msra.mxu0 0
  %2109 = vmatpush.bf16.msra.mxu0 0
  %2110 = vmatpush.bf16.msra.mxu0 0
  %2111 = vmatpush.bf16.msra.mxu0 0
  %2112 = vmatpush.bf16.msra.mxu0 0
  %2113 = vmatpush.bf16.msra.mxu0 %v2101
  %2114 = vmatmul.bf16.gmra.mxu0 %v2077
  %v2115 = vpop.f32.mrf.mxu0
  %v2116 = vadd.f32 0.0, %v2115
  %v2117 = vpop.f32.mrf.mxu0
  %v2118 = vadd.f32 0.0, %v2117
  %2119 = vmatmul.bf16.gmra.mxu0 %v2080
  %v2120 = vpop.f32.mrf.mxu0
  %v2121 = vadd.f32 0.0, %v2120
  %v2122 = vpop.f32.mrf.mxu0
  %v2123 = vadd.f32 0.0, %v2122
  %2124 = vmatmul.bf16.gmra.mxu0 %v2083
  %v2125 = vpop.f32.mrf.mxu0
  %v2126 = vadd.f32 0.0, %v2125
  %v2127 = vpop.f32.mrf.mxu0
  %v2128 = vadd.f32 0.0, %v2127
  %2129 = vmatmul.bf16.gmra.mxu0 %v2086
  %v2130 = vpop.f32.mrf.mxu0
  %v2131 = vadd.f32 0.0, %v2130
  %v2132 = vpop.f32.mrf.mxu0
  %v2133 = vadd.f32 0.0, %v2132
  %2134 = vmatmul.bf16.gmra.mxu0 %v2089
  %v2135 = vpop.f32.mrf.mxu0
  %v2136 = vadd.f32 0.0, %v2135
  %v2137 = vpop.f32.mrf.mxu0
  %v2138 = vadd.f32 0.0, %v2137
  %2139 = vmatmul.bf16.gmra.mxu0 %v2092
  %v2140 = vpop.f32.mrf.mxu0
  %v2141 = vadd.f32 0.0, %v2140
  %v2142 = vpop.f32.mrf.mxu0
  %v2143 = vadd.f32 0.0, %v2142
  %2144 = vmatmul.bf16.gmra.mxu0 %v2095
  %v2145 = vpop.f32.mrf.mxu0
  %v2146 = vadd.f32 0.0, %v2145
  %v2147 = vpop.f32.mrf.mxu0
  %v2148 = vadd.f32 0.0, %v2147
  %2149 = vmatmul.bf16.gmra.mxu0 %v2098
  %v2150 = vpop.f32.mrf.mxu0
  %v2151 = vadd.f32 0.0, %v2150
  %v2152 = vpop.f32.mrf.mxu0
  %v2153 = vadd.f32 0.0, %v2152
  %2154 = vdwg.mxu0
  %2155 = vmatpush.bf16.msra.mxu0 0
  %2156 = vmatpush.bf16.msra.mxu0 0
  %2157 = vmatpush.bf16.msra.mxu0 0
  %2158 = vmatpush.bf16.msra.mxu0 0
  %2159 = vmatpush.bf16.msra.mxu0 0
  %2160 = vmatpush.bf16.msra.mxu0 0
  %2161 = vmatpush.bf16.msra.mxu0 0
  %2162 = vmatpush.bf16.msra.mxu0 %v2104
  %2163 = vmatmul.bf16.gmra.mxu0 %v2077
  %v2164 = vpop.f32.mrf.mxu0
  %v2165 = vadd.f32 0.0, %v2164
  %v2166 = vpop.f32.mrf.mxu0
  %v2167 = vadd.f32 0.0, %v2166
  %2168 = vmatmul.bf16.gmra.mxu0 %v2080
  %v2169 = vpop.f32.mrf.mxu0
  %v2170 = vadd.f32 0.0, %v2169
  %v2171 = vpop.f32.mrf.mxu0
  %v2172 = vadd.f32 0.0, %v2171
  %2173 = vmatmul.bf16.gmra.mxu0 %v2083
  %v2174 = vpop.f32.mrf.mxu0
  %v2175 = vadd.f32 0.0, %v2174
  %v2176 = vpop.f32.mrf.mxu0
  %v2177 = vadd.f32 0.0, %v2176
  %2178 = vmatmul.bf16.gmra.mxu0 %v2086
  %v2179 = vpop.f32.mrf.mxu0
  %v2180 = vadd.f32 0.0, %v2179
  %v2181 = vpop.f32.mrf.mxu0
  %v2182 = vadd.f32 0.0, %v2181
  %2183 = vmatmul.bf16.gmra.mxu0 %v2089
  %v2184 = vpop.f32.mrf.mxu0
  %v2185 = vadd.f32 0.0, %v2184
  %v2186 = vpop.f32.mrf.mxu0
  %v2187 = vadd.f32 0.0, %v2186
  %2188 = vmatmul.bf16.gmra.mxu0 %v2092
  %v2189 = vpop.f32.mrf.mxu0
  %v2190 = vadd.f32 0.0, %v2189
  %v2191 = vpop.f32.mrf.mxu0
  %v2192 = vadd.f32 0.0, %v2191
  %2193 = vmatmul.bf16.gmra.mxu0 %v2095
  %v2194 = vpop.f32.mrf.mxu0
  %v2195 = vadd.f32 0.0, %v2194
  %v2196 = vpop.f32.mrf.mxu0
  %v2197 = vadd.f32 0.0, %v2196
  %2198 = vmatmul.bf16.gmra.mxu0 %v2098
  %v2199 = vpop.f32.mrf.mxu0
  %v2200 = vadd.f32 0.0, %v2199
  %v2201 = vpop.f32.mrf.mxu0
  %v2202 = vadd.f32 0.0, %v2201
  %2203 = vdwg.mxu0
  %v2204 = vadd.f32 %v1948, %v2116
  %v2205 = vadd.f32 %v1949, %v2165
  %v2206 = vadd.f32 %v1950, %v2118
  %v2207 = vadd.f32 %v1951, %v2167
  %v2208 = vadd.f32 %v1952, %v2121
  %v2209 = vadd.f32 %v1953, %v2170
  %v2210 = vadd.f32 %v1954, %v2123
  %v2211 = vadd.f32 %v1955, %v2172
  %v2212 = vadd.f32 %v1956, %v2126
  %v2213 = vadd.f32 %v1957, %v2175
  %v2214 = vadd.f32 %v1958, %v2128
  %v2215 = vadd.f32 %v1959, %v2177
  %v2216 = vadd.f32 %v1960, %v2131
  %v2217 = vadd.f32 %v1961, %v2180
  %v2218 = vadd.f32 %v1962, %v2133
  %v2219 = vadd.f32 %v1963, %v2182
  %v2220 = vadd.f32 %v1964, %v2136
  %v2221 = vadd.f32 %v1965, %v2185
  %v2222 = vadd.f32 %v1966, %v2138
  %v2223 = vadd.f32 %v1967, %v2187
  %v2224 = vadd.f32 %v1968, %v2141
  %v2225 = vadd.f32 %v1969, %v2190
  %v2226 = vadd.f32 %v1970, %v2143
  %v2227 = vadd.f32 %v1971, %v2192
  %v2228 = vadd.f32 %v1972, %v2146
  %v2229 = vadd.f32 %v1973, %v2195
  %v2230 = vadd.f32 %v1974, %v2148
  %v2231 = vadd.f32 %v1975, %v2197
  %v2232 = vadd.f32 %v1976, %v2151
  %v2233 = vadd.f32 %v1977, %v2200
  %v2234 = vadd.f32 %v1978, %v2153
  %v2235 = vadd.f32 %v1979, %v2202
  %v2236 = vpack.c.bf16 %v2205, %v2204
  %v2237 = vpack.c.bf16 %v2207, %v2206
  %v2238 = vpack.c.bf16 %v2209, %v2208
  %v2239 = vpack.c.bf16 %v2211, %v2210
  %v2240 = vpack.c.bf16 %v2213, %v2212
  %v2241 = vpack.c.bf16 %v2215, %v2214
  %v2242 = vpack.c.bf16 %v2217, %v2216
  %v2243 = vpack.c.bf16 %v2219, %v2218
  %v2244 = vpack.c.bf16 %v2221, %v2220
  %v2245 = vpack.c.bf16 %v2223, %v2222
  %v2246 = vpack.c.bf16 %v2225, %v2224
  %v2247 = vpack.c.bf16 %v2227, %v2226
  %v2248 = vpack.c.bf16 %v2229, %v2228
  %v2249 = vpack.c.bf16 %v2231, %v2230
  %v2250 = vpack.c.bf16 %v2233, %v2232
  %v2251 = vpack.c.bf16 %v2235, %v2234
  %vm2252 = vcmask 523268
  %vm2253 = vmor %vm2252, %vm502
  %2254 = vst.msk [vmem:[%s3] sm:$0xff] %vm2253, %v2236
  %2255 = vst.msk [vmem:[%s3 + $0x8] sm:$0xff] %vm2253, %v2237
  %2256 = vst.msk [vmem:[%s3 + $0x10] sm:$0xff] %vm2253, %v2238
  %2257 = vst.msk [vmem:[%s3 + $0x18] sm:$0xff] %vm2253, %v2239
  %2258 = vst.msk [vmem:[%s3 + $0x20] sm:$0xff] %vm2253, %v2240
  %2259 = vst.msk [vmem:[%s3 + $0x28] sm:$0xff] %vm2253, %v2241
  %2260 = vst.msk [vmem:[%s3 + $0x30] sm:$0xff] %vm2253, %v2242
  %2261 = vst.msk [vmem:[%s3 + $0x38] sm:$0xff] %vm2253, %v2243
  %2262 = vst.msk [vmem:[%s3 + $0x40] sm:$0xff] %vm2253, %v2244
  %2263 = vst.msk [vmem:[%s3 + $0x48] sm:$0xff] %vm2253, %v2245
  %2264 = vst.msk [vmem:[%s3 + $0x50] sm:$0xff] %vm2253, %v2246
  %2265 = vst.msk [vmem:[%s3 + $0x58] sm:$0xff] %vm2253, %v2247
  %2266 = vst.msk [vmem:[%s3 + $0x60] sm:$0xff] %vm2253, %v2248
  %2267 = vst.msk [vmem:[%s3 + $0x68] sm:$0xff] %vm2253, %v2249
  %2268 = vst.msk [vmem:[%s3 + $0x70] sm:$0xff] %vm2253, %v2250
  %2269 = vst.msk [vmem:[%s3 + $0x78] sm:$0xff] %vm2253, %v2251
  %v2270 = vadd.f32 %v2204, %v2206
  %v2271 = vadd.f32 %v2270, %v2208
  %v2272 = vadd.f32 %v2271, %v2210
  %v2273 = vadd.f32 %v2272, %v2212
  %v2274 = vadd.f32 %v2273, %v2214
  %v2275 = vadd.f32 %v2274, %v2216
  %v2276 = vadd.f32 %v2275, %v2218
  %v2277 = vadd.f32 %v2276, %v2220
  %v2278 = vadd.f32 %v2277, %v2222
  %v2279 = vadd.f32 %v2278, %v2224
  %v2280 = vadd.f32 %v2279, %v2226
  %v2281 = vadd.f32 %v2280, %v2228
  %v2282 = vadd.f32 %v2281, %v2230
  %v2283 = vadd.f32 %v2282, %v2232
  %v2284 = vadd.f32 %v2283, %v2234
  %v2285 = vrot.slane %v2284, 4
  %v2286 = vadd.f32 %v2284, %v2285
  %v2287 = vrot.slane %v2286, 2
  %v2288 = vadd.f32 %v2286, %v2287
  %v2289 = vrot.slane %v2288, 1
  %v2290 = vadd.f32 %v2288, %v2289
  %vm2291 = vcmask 523264
  %v2292 = vsel %vm2291, %v2205, 0.0
  %v2293 = vsel %vm2291, %v2207, 0.0
  %v2294 = vadd.f32 %v2292, %v2293
  %v2295 = vsel %vm2291, %v2209, 0.0
  %v2296 = vadd.f32 %v2294, %v2295
  %v2297 = vsel %vm2291, %v2211, 0.0
  %v2298 = vadd.f32 %v2296, %v2297
  %v2299 = vsel %vm2291, %v2213, 0.0
  %v2300 = vadd.f32 %v2298, %v2299
  %v2301 = vsel %vm2291, %v2215, 0.0
  %v2302 = vadd.f32 %v2300, %v2301
  %v2303 = vsel %vm2291, %v2217, 0.0
  %v2304 = vadd.f32 %v2302, %v2303
  %v2305 = vsel %vm2291, %v2219, 0.0
  %v2306 = vadd.f32 %v2304, %v2305
  %v2307 = vsel %vm2291, %v2221, 0.0
  %v2308 = vadd.f32 %v2306, %v2307
  %v2309 = vsel %vm2291, %v2223, 0.0
  %v2310 = vadd.f32 %v2308, %v2309
  %v2311 = vsel %vm2291, %v2225, 0.0
  %v2312 = vadd.f32 %v2310, %v2311
  %v2313 = vsel %vm2291, %v2227, 0.0
  %v2314 = vadd.f32 %v2312, %v2313
  %v2315 = vsel %vm2291, %v2229, 0.0
  %v2316 = vadd.f32 %v2314, %v2315
  %v2317 = vsel %vm2291, %v2231, 0.0
  %v2318 = vadd.f32 %v2316, %v2317
  %v2319 = vsel %vm2291, %v2233, 0.0
  %v2320 = vadd.f32 %v2318, %v2319
  %v2321 = vsel %vm2291, %v2235, 0.0
  %v2322 = vadd.f32 %v2320, %v2321
  %v2323 = vrot.slane %v2322, 4
  %v2324 = vadd.f32 %v2322, %v2323
  %v2325 = vrot.slane %v2324, 2
  %v2326 = vadd.f32 %v2324, %v2325
  %v2327 = vrot.slane %v2326, 1
  %v2328 = vadd.f32 %v2326, %v2327
  %v2329 = vmul.f32 %v2204, %v2204
  %v2330 = vmul.f32 %v2205, %v2205
  %v2331 = vmul.f32 %v2206, %v2206
  %v2332 = vmul.f32 %v2207, %v2207
  %v2333 = vmul.f32 %v2208, %v2208
  %v2334 = vmul.f32 %v2209, %v2209
  %v2335 = vmul.f32 %v2210, %v2210
  %v2336 = vmul.f32 %v2211, %v2211
  %v2337 = vmul.f32 %v2212, %v2212
  %v2338 = vmul.f32 %v2213, %v2213
  %v2339 = vmul.f32 %v2214, %v2214
  %v2340 = vmul.f32 %v2215, %v2215
  %v2341 = vmul.f32 %v2216, %v2216
  %v2342 = vmul.f32 %v2217, %v2217
  %v2343 = vmul.f32 %v2218, %v2218
  %v2344 = vmul.f32 %v2219, %v2219
  %v2345 = vmul.f32 %v2220, %v2220
  %v2346 = vmul.f32 %v2221, %v2221
  %v2347 = vmul.f32 %v2222, %v2222
  %v2348 = vmul.f32 %v2223, %v2223
  %v2349 = vmul.f32 %v2224, %v2224
  %v2350 = vmul.f32 %v2225, %v2225
  %v2351 = vmul.f32 %v2226, %v2226
  %v2352 = vmul.f32 %v2227, %v2227
  %v2353 = vmul.f32 %v2228, %v2228
  %v2354 = vmul.f32 %v2229, %v2229
  %v2355 = vmul.f32 %v2230, %v2230
  %v2356 = vmul.f32 %v2231, %v2231
  %v2357 = vmul.f32 %v2232, %v2232
  %v2358 = vmul.f32 %v2233, %v2233
  %v2359 = vmul.f32 %v2234, %v2234
  %v2360 = vmul.f32 %v2235, %v2235
  %v2361 = vadd.f32 %v2329, %v2331
  %v2362 = vadd.f32 %v2361, %v2333
  %v2363 = vadd.f32 %v2362, %v2335
  %v2364 = vadd.f32 %v2363, %v2337
  %v2365 = vadd.f32 %v2364, %v2339
  %v2366 = vadd.f32 %v2365, %v2341
  %v2367 = vadd.f32 %v2366, %v2343
  %v2368 = vadd.f32 %v2367, %v2345
  %v2369 = vadd.f32 %v2368, %v2347
  %v2370 = vadd.f32 %v2369, %v2349
  %v2371 = vadd.f32 %v2370, %v2351
  %v2372 = vadd.f32 %v2371, %v2353
  %v2373 = vadd.f32 %v2372, %v2355
  %v2374 = vadd.f32 %v2373, %v2357
  %v2375 = vadd.f32 %v2374, %v2359
  %v2376 = vrot.slane %v2375, 4
  %v2377 = vadd.f32 %v2375, %v2376
  %v2378 = vrot.slane %v2377, 2
  %v2379 = vadd.f32 %v2377, %v2378
  %v2380 = vrot.slane %v2379, 1
  %v2381 = vadd.f32 %v2379, %v2380
  %v2382 = vsel %vm2291, %v2330, 0.0
  %v2383 = vsel %vm2291, %v2332, 0.0
  %v2384 = vadd.f32 %v2382, %v2383
  %v2385 = vsel %vm2291, %v2334, 0.0
  %v2386 = vadd.f32 %v2384, %v2385
  %v2387 = vsel %vm2291, %v2336, 0.0
  %v2388 = vadd.f32 %v2386, %v2387
  %v2389 = vsel %vm2291, %v2338, 0.0
  %v2390 = vadd.f32 %v2388, %v2389
  %v2391 = vsel %vm2291, %v2340, 0.0
  %v2392 = vadd.f32 %v2390, %v2391
  %v2393 = vsel %vm2291, %v2342, 0.0
  %v2394 = vadd.f32 %v2392, %v2393
  %v2395 = vsel %vm2291, %v2344, 0.0
  %v2396 = vadd.f32 %v2394, %v2395
  %v2397 = vsel %vm2291, %v2346, 0.0
  %v2398 = vadd.f32 %v2396, %v2397
  %v2399 = vsel %vm2291, %v2348, 0.0
  %v2400 = vadd.f32 %v2398, %v2399
  %v2401 = vsel %vm2291, %v2350, 0.0
  %v2402 = vadd.f32 %v2400, %v2401
  %v2403 = vsel %vm2291, %v2352, 0.0
  %v2404 = vadd.f32 %v2402, %v2403
  %v2405 = vsel %vm2291, %v2354, 0.0
  %v2406 = vadd.f32 %v2404, %v2405
  %v2407 = vsel %vm2291, %v2356, 0.0
  %v2408 = vadd.f32 %v2406, %v2407
  %v2409 = vsel %vm2291, %v2358, 0.0
  %v2410 = vadd.f32 %v2408, %v2409
  %v2411 = vsel %vm2291, %v2360, 0.0
  %v2412 = vadd.f32 %v2410, %v2411
  %v2413 = vrot.slane %v2412, 4
  %v2414 = vadd.f32 %v2412, %v2413
  %v2415 = vrot.slane %v2414, 2
  %v2416 = vadd.f32 %v2414, %v2415
  %v2417 = vrot.slane %v2416, 1
  %v2418 = vadd.f32 %v2416, %v2417
  %vm2419 = vcmask 1040384
  %v2420 = vsel %vm2419, %v2290, %v2381
  %v2421 = vsel %vm2419, %v2328, %v2418
  %v2424 = vrot.slane %v2421, 6
  %vm2425 = vcmask 1041408
  %v2426 = vsel %vm2425, %v2420, %v2424
  %vm2428 = vcmask 519170
  %vm2429 = vmor %vm2428, %vm2425
  %2430 = vst.msk [vmem:[%s4] sm:$0xf] %vm2429, %v2426
  // Predicated region
  $region14: #{inception_c_forward.14} parent=0 // pred_check
    _
  $region15: #{inception_c_forward.14} parent=0 // pred_check_branch
    %2432 = sbr.rel (0) target = $region17
  $region16: #{inception_c_forward.14} parent=0 // pred_region
    _
  $region17: #{inception_c_forward.14} parent=0 // pred_fallthru
    _
  // Predicated region
  $region18: #{inception_c_forward.14} parent=0 // pred_check
    _
  $region19: #{inception_c_forward.14} parent=0 // pred_check_branch
    %2434 = sbr.rel (0) target = $region21
  $region20: #{inception_c_forward.14} parent=0 // pred_region
    _
  $region21: #{inception_c_forward.14} parent=0 // pred_fallthru
    _
  // Predicated region
  $region22: #{inception_c_forward.14} parent=0 // pred_check
    _
  $region23: #{inception_c_forward.14} parent=0 // pred_check_branch
    %2436 = sbr.rel (0) target = $region25
  $region24: #{inception_c_forward.14} parent=0 // pred_region
    _
  $region25: #{inception_c_forward.14} parent=0 // pred_fallthru
    _
  // Predicated region
  $region26: #{inception_c_forward.14} parent=0 // pred_check
    _
  $region27: #{inception_c_forward.14} parent=0 // pred_check_branch
    %2438 = sbr.rel (0) target = $region29
  $region28: #{inception_c_forward.14} parent=0 // pred_region
    _
  $region29: #{inception_c_forward.14} parent=0 // pred_fallthru
    _

</llo_original>
